<compile_context>
chip_gen: v7x
topology: tpu7x:2x2x1
jax: 0.10.0
libtpu: 0.0.40
codegen_flags: <defaults>
</compile_context>

<pallas_src>
import jax
import jax.numpy as jnp
from jax import lax
from jax.experimental import pallas as pl
from jax.experimental.pallas import tpu as pltpu


# -----------------------------------------------------------------------------
# Fused Mixed_4a kernel: one grid step == one image, everything in VMEM.
# -----------------------------------------------------------------------------
def _make_mixed4a_kernel(H, W, C0, C1):
    Ho, Wo = H - 2, W - 2

    def kernel(x_ref,
               w01_ref, s01_ref, b01_ref,      # fused 1x1 (both branches)
               w17_ref, s17_ref, b17_ref,      # branch1 1x7
               w71_ref, s71_ref, b71_ref,      # branch1 7x1
               w330_ref, s330_ref, b330_ref,   # branch0 3x3
               w331_ref, s331_ref, b331_ref,   # branch1 3x3
               o_ref,
               taps7_ref, taps9_ref):

        def mm_bn_relu(a2d, w_ref, s_ref, b_ref):
            acc = jnp.dot(a2d, w_ref[...], preferred_element_type=jnp.float32)
            return jnp.maximum(acc * s_ref[...] + b_ref[...], 0.0)

        x = x_ref[0]                                     # (H, W, Cin) bf16
        cin = x.shape[-1]

        # ---- stage 1: both 1x1 convs in one MXU matmul (Co = 2*C0) ----
        h01 = mm_bn_relu(x.reshape(H * W, cin), w01_ref, s01_ref, b01_ref)
        h01 = h01.astype(jnp.bfloat16)                   # bf16 intermediates
        h_b0 = h01[:, :C0].reshape(H, W, C0)
        h_b1 = h01[:, C0:].reshape(H, W, C0)

        # ---- stage 2: branch1 1x7 conv (pad W by 3), fused-K taps in VMEM ----
        taps7_ref[...] = jnp.zeros(taps7_ref.shape, taps7_ref.dtype)
        for j in range(7):
            sh = j - 3
            lo, hi = max(0, -sh), min(W, W - sh)
            if hi > lo:
                taps7_ref[:, lo:hi, j * C0:(j + 1) * C0] = \
                    h_b1[:, lo + sh:hi + sh, :]
        h = mm_bn_relu(taps7_ref[...].reshape(H * W, 7 * C0),
                       w17_ref, s17_ref, b17_ref)
        h_b1 = h.astype(jnp.bfloat16).reshape(H, W, C0)

        # ---- stage 3: branch1 7x1 conv (pad H by 3) ----
        taps7_ref[...] = jnp.zeros(taps7_ref.shape, taps7_ref.dtype)
        for i in range(7):
            sh = i - 3
            lo, hi = max(0, -sh), min(H, H - sh)
            if hi > lo:
                taps7_ref[lo:hi, :, i * C0:(i + 1) * C0] = \
                    h_b1[lo + sh:hi + sh, :, :]
        h = mm_bn_relu(taps7_ref[...].reshape(H * W, 7 * C0),
                       w71_ref, s71_ref, b71_ref)
        h_b1 = h.astype(jnp.bfloat16).reshape(H, W, C0)

        # ---- stage 4: both 3x3 VALID convs -> one channel-concat output ----
        for t in range(9):
            i, j = divmod(t, 3)
            taps9_ref[:, :, t * C0:(t + 1) * C0] = h_b0[i:i + Ho, j:j + Wo, :]
        y0 = mm_bn_relu(taps9_ref[...].reshape(Ho * Wo, 9 * C0),
                        w330_ref, s330_ref, b330_ref)
        o_ref[0, :, :, :C1] = y0.reshape(Ho, Wo, C1).astype(o_ref.dtype)

        for t in range(9):
            i, j = divmod(t, 3)
            taps9_ref[:, :, t * C0:(t + 1) * C0] = h_b1[i:i + Ho, j:j + Wo, :]
        y1 = mm_bn_relu(taps9_ref[...].reshape(Ho * Wo, 9 * C0),
                        w331_ref, s331_ref, b331_ref)
        o_ref[0, :, :, C1:] = y1.reshape(Ho, Wo, C1).astype(o_ref.dtype)

    return kernel


# -----------------------------------------------------------------------------
# Wrapper: BN folding, fused-K weight layout, layout transposes.
# -----------------------------------------------------------------------------
def _prep(layer, eps):
    """(OIHW weight, BN params) -> (fused-K bf16 weight, f32 scale, f32 bias)."""
    w, gamma, beta, mean, var = layer
    c_out, c_in, kh, kw = w.shape
    scale = gamma / jnp.sqrt(var + eps)
    bias = beta - mean * scale
    w_mat = jnp.transpose(w, (2, 3, 1, 0)).reshape(kh * kw * c_in, c_out)
    return (w_mat.astype(jnp.bfloat16),
            scale.reshape(1, c_out).astype(jnp.float32),
            bias.reshape(1, c_out).astype(jnp.float32))


def mixed_4a(x, params, eps=1e-3):
    """x: (N, Cin, H, W) NCHW f32 -> (N, 2*C1, H-2, W-2) NCHW f32."""
    n, c_in, h, w = x.shape
    x_nhwc = jnp.transpose(x, (0, 2, 3, 1)).astype(jnp.bfloat16)

    w_b0c0, s_b0c0, o_b0c0 = _prep(params["b0c0"], eps)
    w_b0c1, s_b0c1, o_b0c1 = _prep(params["b0c1"], eps)
    w_b1c0, s_b1c0, o_b1c0 = _prep(params["b1c0"], eps)
    w_b1c1, s_b1c1, o_b1c1 = _prep(params["b1c1"], eps)
    w_b1c2, s_b1c2, o_b1c2 = _prep(params["b1c2"], eps)
    w_b1c3, s_b1c3, o_b1c3 = _prep(params["b1c3"], eps)

    c0 = w_b0c0.shape[1]
    c1 = w_b0c1.shape[1]
    assert w_b1c0.shape[1] == c0 and w_b1c3.shape[1] == c1
    ho, wo = h - 2, w - 2

    # Fuse the two 1x1 convs on the output-channel axis (weights are tiny).
    w01 = jnp.concatenate([w_b0c0, w_b1c0], axis=-1)       # (Cin, 2*C0)
    s01 = jnp.concatenate([s_b0c0, s_b1c0], axis=-1)
    b01 = jnp.concatenate([o_b0c0, o_b1c0], axis=-1)

    kernel = _make_mixed4a_kernel(h, w, c0, c1)

    def full2d(a):
        return pl.BlockSpec(a.shape, lambda nn: (0, 0))

    in_specs = [
        pl.BlockSpec((1, h, w, c_in), lambda nn: (nn, 0, 0, 0)),
        full2d(w01), full2d(s01), full2d(b01),
        full2d(w_b1c1), full2d(s_b1c1), full2d(o_b1c1),
        full2d(w_b1c2), full2d(s_b1c2), full2d(o_b1c2),
        full2d(w_b0c1), full2d(s_b0c1), full2d(o_b0c1),
        full2d(w_b1c3), full2d(s_b1c3), full2d(o_b1c3),
    ]

    out_nhwc = pl.pallas_call(
        kernel,
        out_shape=jax.ShapeDtypeStruct((n, ho, wo, 2 * c1), jnp.float32),
        grid_spec=pltpu.PrefetchScalarGridSpec(
            num_scalar_prefetch=0,
            grid=(n,),
            in_specs=in_specs,
            out_specs=pl.BlockSpec((1, ho, wo, 2 * c1),
                                   lambda nn: (nn, 0, 0, 0)),
            scratch_shapes=[
                pltpu.VMEM((h, w, 7 * c0), jnp.bfloat16),    # 1x7 / 7x1 taps
                pltpu.VMEM((ho, wo, 9 * c0), jnp.bfloat16),  # 3x3 taps
            ]),
        compiler_params=pltpu.CompilerParams(
            dimension_semantics=("parallel",),
            vmem_limit_bytes=32 * 1024 * 1024),
    )(x_nhwc, w01, s01, b01,
      w_b1c1, s_b1c1, o_b1c1,
      w_b1c2, s_b1c2, o_b1c2,
      w_b0c1, s_b0c1, o_b0c1,
      w_b1c3, s_b1c3, o_b1c3)

    # Channel concat is already the kernel's output layout; just go back NCHW.
    return jnp.transpose(out_nhwc, (0, 3, 1, 2))


# -----------------------------------------------------------------------------
# Pure-JAX reference (matches the PyTorch module, inference mode).
# -----------------------------------------------------------------------------
def _conv_bn_relu_ref(x, layer, padding, eps=1e-3):
    w, gamma, beta, mean, var = layer
    y = lax.conv_general_dilated(
        x, w, window_strides=(1, 1), padding=padding,
        dimension_numbers=("NCHW", "OIHW", "NCHW"),
        precision=lax.Precision.HIGHEST)
    scale = gamma / jnp.sqrt(var + eps)
    bias = beta - mean * scale
    return jnp.maximum(y * scale[None, :, None, None]
                       + bias[None, :, None, None], 0.0)


def mixed_4a_ref(x, params, eps=1e-3):
    x0 = _conv_bn_relu_ref(x, params["b0c0"], ((0, 0), (0, 0)), eps)
    x0 = _conv_bn_relu_ref(x0, params["b0c1"], ((0, 0), (0, 0)), eps)
    x1 = _conv_bn_relu_ref(x, params["b1c0"], ((0, 0), (0, 0)), eps)
    x1 = _conv_bn_relu_ref(x1, params["b1c1"], ((0, 0), (3, 3)), eps)
    x1 = _conv_bn_relu_ref(x1, params["b1c2"], ((3, 3), (0, 0)), eps)
    x1 = _conv_bn_relu_ref(x1, params["b1c3"], ((0, 0), (0, 0)), eps)
    return jnp.concatenate([x0, x1], axis=1)


def _make_conv_params(key, c_in, c_out, kh, kw):
    kws, kg, kb, km, kv = jax.random.split(key, 5)
    fan_in = c_in * kh * kw
    w = jax.random.normal(kws, (c_out, c_in, kh, kw), jnp.float32) * jnp.sqrt(2.0 / fan_in)
    gamma = 1.0 + 0.1 * jax.random.normal(kg, (c_out,), jnp.float32)
    beta = 0.1 * jax.random.normal(kb, (c_out,), jnp.float32)
    mean = 0.1 * jax.random.normal(km, (c_out,), jnp.float32)
    var = 0.5 + 0.5 * jnp.abs(jax.random.normal(kv, (c_out,), jnp.float32))
    return (w, gamma, beta, mean, var)


if __name__ == "__main__":
    # Small shapes consistent with the module (ratio = 1/8):
    # C0 = int(64/8) = 8, C1 = int(96/8) = 12; input N=2, Cin=4, H=W=16;
    # output (2, 24, 14, 14).
    N, C_IN, H, W = 2, 4, 16, 16
    C0, C1 = 8, 12

    key = jax.random.PRNGKey(0)
    kx, k0, k1, k2, k3, k4, k5 = jax.random.split(key, 7)
    x = jax.random.normal(kx, (N, C_IN, H, W), jnp.float32)
    params = {
        "b0c0": _make_conv_params(k0, C_IN, C0, 1, 1),
        "b0c1": _make_conv_params(k1, C0, C1, 3, 3),
        "b1c0": _make_conv_params(k2, C_IN, C0, 1, 1),
        "b1c1": _make_conv_params(k3, C0, C0, 1, 7),
        "b1c2": _make_conv_params(k4, C0, C0, 7, 1),
        "b1c3": _make_conv_params(k5, C0, C1, 3, 3),
    }

    out = jax.block_until_ready(mixed_4a(x, params))
    ref = jax.block_until_ready(mixed_4a_ref(x, params))

    assert out.shape == (N, 2 * C1, H - 2, W - 2), out.shape
    # bf16 MXU inputs / bf16 in-VMEM intermediates + f32 accumulation vs an
    # f32 HIGHEST reference over a 4-conv-deep branch -> normalized max error.
    max_err = float(jnp.max(jnp.abs(out - ref)))
    ref_scale = float(jnp.max(jnp.abs(ref)))
    assert max_err <= 5e-2 * max(ref_scale, 1.0), (max_err, ref_scale)

    print("KERNEL_OK")
</pallas_src>

<mosaic_0001>
module attributes {stable_mosaic.version = 11 : i64} {
  func.func @kernel(%arg0: i32, %arg1: memref<1x16x16x4xbf16, #tpu.memory_space<vmem>>, %arg2: memref<4x16xbf16, #tpu.memory_space<vmem>>, %arg3: memref<1x16xf32, #tpu.memory_space<vmem>>, %arg4: memref<1x16xf32, #tpu.memory_space<vmem>>, %arg5: memref<56x8xbf16, #tpu.memory_space<vmem>>, %arg6: memref<1x8xf32, #tpu.memory_space<vmem>>, %arg7: memref<1x8xf32, #tpu.memory_space<vmem>>, %arg8: memref<56x8xbf16, #tpu.memory_space<vmem>>, %arg9: memref<1x8xf32, #tpu.memory_space<vmem>>, %arg10: memref<1x8xf32, #tpu.memory_space<vmem>>, %arg11: memref<72x12xbf16, #tpu.memory_space<vmem>>, %arg12: memref<1x12xf32, #tpu.memory_space<vmem>>, %arg13: memref<1x12xf32, #tpu.memory_space<vmem>>, %arg14: memref<72x12xbf16, #tpu.memory_space<vmem>>, %arg15: memref<1x12xf32, #tpu.memory_space<vmem>>, %arg16: memref<1x12xf32, #tpu.memory_space<vmem>>, %arg17: memref<1x14x14x24xf32, #tpu.memory_space<vmem>>, %arg18: memref<16x16x56xbf16, #tpu.memory_space<vmem>>, %arg19: memref<14x14x72xbf16, #tpu.memory_space<vmem>>) attributes {dimension_semantics = [#tpu.dimension_semantics<parallel>], iteration_bounds = array<i64: 2>, scalar_prefetch = 0 : i64, scratch_operands = 2 : i64, tpu.core_type = #tpu.core_type<tc>, window_params = [{transform_indices = @transform_0, window_bounds = array<i64: 1, 16, 16, 4>}, {pipeline_mode = #tpu.pipeline_mode<synchronous>, transform_indices = @transform_1, window_bounds = array<i64: 4, 16>}, {pipeline_mode = #tpu.pipeline_mode<synchronous>, transform_indices = @transform_2, window_bounds = array<i64: 1, 16>}, {pipeline_mode = #tpu.pipeline_mode<synchronous>, transform_indices = @transform_3, window_bounds = array<i64: 1, 16>}, {pipeline_mode = #tpu.pipeline_mode<synchronous>, transform_indices = @transform_4, window_bounds = array<i64: 56, 8>}, {pipeline_mode = #tpu.pipeline_mode<synchronous>, transform_indices = @transform_5, window_bounds = array<i64: 1, 8>}, {pipeline_mode = #tpu.pipeline_mode<synchronous>, transform_indices = @transform_6, window_bounds = array<i64: 1, 8>}, {pipeline_mode = #tpu.pipeline_mode<synchronous>, transform_indices = @transform_7, window_bounds = array<i64: 56, 8>}, {pipeline_mode = #tpu.pipeline_mode<synchronous>, transform_indices = @transform_8, window_bounds = array<i64: 1, 8>}, {pipeline_mode = #tpu.pipeline_mode<synchronous>, transform_indices = @transform_9, window_bounds = array<i64: 1, 8>}, {pipeline_mode = #tpu.pipeline_mode<synchronous>, transform_indices = @transform_10, window_bounds = array<i64: 72, 12>}, {pipeline_mode = #tpu.pipeline_mode<synchronous>, transform_indices = @transform_11, window_bounds = array<i64: 1, 12>}, {pipeline_mode = #tpu.pipeline_mode<synchronous>, transform_indices = @transform_12, window_bounds = array<i64: 1, 12>}, {pipeline_mode = #tpu.pipeline_mode<synchronous>, transform_indices = @transform_13, window_bounds = array<i64: 72, 12>}, {pipeline_mode = #tpu.pipeline_mode<synchronous>, transform_indices = @transform_14, window_bounds = array<i64: 1, 12>}, {pipeline_mode = #tpu.pipeline_mode<synchronous>, transform_indices = @transform_15, window_bounds = array<i64: 1, 12>}, {transform_indices = @transform_16, window_bounds = array<i64: 1, 14, 14, 24>}]} {
    %c0 = arith.constant 0 : index
    %c0_0 = arith.constant 0 : index
    %c0_1 = arith.constant 0 : index
    %c0_2 = arith.constant 0 : index
    %0 = vector.load %arg1[%c0, %c0_0, %c0_1, %c0_2] : memref<1x16x16x4xbf16, #tpu.memory_space<vmem>>, vector<1x16x16x4xbf16>
    %1 = vector.shape_cast %0 : vector<1x16x16x4xbf16> to vector<16x16x4xbf16>
    %2 = vector.shape_cast %1 : vector<16x16x4xbf16> to vector<256x4xbf16>
    %c0_3 = arith.constant 0 : index
    %c0_4 = arith.constant 0 : index
    %3 = vector.load %arg2[%c0_3, %c0_4] : memref<4x16xbf16, #tpu.memory_space<vmem>>, vector<4x16xbf16>
    %cst = arith.constant dense<0.000000e+00> : vector<256x16xf32>
    %4 = tpu.matmul %2, %3, %cst {dimension_numbers = #tpu.dot_dimension_numbers<[1], [0], [0], [1], [0, 0, 1, 1], [], []>} : vector<256x4xbf16>, vector<4x16xbf16>, vector<256x16xf32> -> vector<256x16xf32>
    %c0_5 = arith.constant 0 : index
    %c0_6 = arith.constant 0 : index
    %5 = vector.load %arg3[%c0_5, %c0_6] : memref<1x16xf32, #tpu.memory_space<vmem>>, vector<1x16xf32>
    %6 = vector.broadcast %5 : vector<1x16xf32> to vector<256x16xf32>
    %7 = arith.mulf %4, %6 : vector<256x16xf32>
    %c0_7 = arith.constant 0 : index
    %c0_8 = arith.constant 0 : index
    %8 = vector.load %arg4[%c0_7, %c0_8] : memref<1x16xf32, #tpu.memory_space<vmem>>, vector<1x16xf32>
    %9 = vector.broadcast %8 : vector<1x16xf32> to vector<256x16xf32>
    %10 = arith.addf %7, %9 : vector<256x16xf32>
    %cst_9 = arith.constant 0.000000e+00 : f32
    %11 = vector.broadcast %cst_9 : f32 to vector<256x16xf32>
    %12 = arith.maximumf %10, %11 : vector<256x16xf32>
    %13 = arith.truncf %12 : vector<256x16xf32> to vector<256x16xbf16>
    %14 = vector.extract_strided_slice %13 {offsets = [0, 0], sizes = [256, 8], strides = [1, 1]} : vector<256x16xbf16> to vector<256x8xbf16>
    %15 = vector.shape_cast %14 : vector<256x8xbf16> to vector<16x16x8xbf16>
    %16 = vector.extract_strided_slice %13 {offsets = [0, 8], sizes = [256, 8], strides = [1, 1]} : vector<256x16xbf16> to vector<256x8xbf16>
    %17 = vector.shape_cast %16 : vector<256x8xbf16> to vector<16x16x8xbf16>
    %cst_10 = arith.constant 0.000000e+00 : bf16
    %18 = vector.broadcast %cst_10 : bf16 to vector<16x16x56xbf16>
    %c0_11 = arith.constant 0 : index
    %c0_12 = arith.constant 0 : index
    %c0_13 = arith.constant 0 : index
    %19 = vector.load %arg18[%c0_11, %c0_12, %c0_13] : memref<16x16x56xbf16, #tpu.memory_space<vmem>>, vector<16x16x56xbf16>
    tpu.vector_store %arg18[%c0_11, %c0_12, %c0_13], %18 {strides = array<i32>} : memref<16x16x56xbf16, #tpu.memory_space<vmem>>, vector<16x16x56xbf16>,
    %20 = vector.extract_strided_slice %17 {offsets = [0, 0, 0], sizes = [16, 13, 8], strides = [1, 1, 1]} : vector<16x16x8xbf16> to vector<16x13x8xbf16>
    %c0_14 = arith.constant 0 : index
    %c3 = arith.constant 3 : index
    %c0_15 = arith.constant 0 : index
    %21 = vector.load %arg18[%c0_14, %c3, %c0_15] : memref<16x16x56xbf16, #tpu.memory_space<vmem>>, vector<16x13x8xbf16>
    tpu.vector_store %arg18[%c0_14, %c3, %c0_15], %20 {strides = array<i32>} : memref<16x16x56xbf16, #tpu.memory_space<vmem>>, vector<16x13x8xbf16>,
    %22 = vector.extract_strided_slice %17 {offsets = [0, 0, 0], sizes = [16, 14, 8], strides = [1, 1, 1]} : vector<16x16x8xbf16> to vector<16x14x8xbf16>
    %c0_16 = arith.constant 0 : index
    %c2 = arith.constant 2 : index
    %c8 = arith.constant 8 : index
    %23 = vector.load %arg18[%c0_16, %c2, %c8] : memref<16x16x56xbf16, #tpu.memory_space<vmem>>, vector<16x14x8xbf16>
    tpu.vector_store %arg18[%c0_16, %c2, %c8], %22 {strides = array<i32>} : memref<16x16x56xbf16, #tpu.memory_space<vmem>>, vector<16x14x8xbf16>,
    %24 = vector.extract_strided_slice %17 {offsets = [0, 0, 0], sizes = [16, 15, 8], strides = [1, 1, 1]} : vector<16x16x8xbf16> to vector<16x15x8xbf16>
    %c0_17 = arith.constant 0 : index
    %c1 = arith.constant 1 : index
    %c16 = arith.constant 16 : index
    %25 = vector.load %arg18[%c0_17, %c1, %c16] : memref<16x16x56xbf16, #tpu.memory_space<vmem>>, vector<16x15x8xbf16>
    tpu.vector_store %arg18[%c0_17, %c1, %c16], %24 {strides = array<i32>} : memref<16x16x56xbf16, #tpu.memory_space<vmem>>, vector<16x15x8xbf16>,
    %c0_18 = arith.constant 0 : index
    %c0_19 = arith.constant 0 : index
    %c24 = arith.constant 24 : index
    %26 = vector.load %arg18[%c0_18, %c0_19, %c24] : memref<16x16x56xbf16, #tpu.memory_space<vmem>>, vector<16x16x8xbf16>
    tpu.vector_store %arg18[%c0_18, %c0_19, %c24], %17 {strides = array<i32>} : memref<16x16x56xbf16, #tpu.memory_space<vmem>>, vector<16x16x8xbf16>,
    %27 = vector.extract_strided_slice %17 {offsets = [0, 1, 0], sizes = [16, 15, 8], strides = [1, 1, 1]} : vector<16x16x8xbf16> to vector<16x15x8xbf16>
    %c0_20 = arith.constant 0 : index
    %c0_21 = arith.constant 0 : index
    %c32 = arith.constant 32 : index
    %28 = vector.load %arg18[%c0_20, %c0_21, %c32] : memref<16x16x56xbf16, #tpu.memory_space<vmem>>, vector<16x15x8xbf16>
    tpu.vector_store %arg18[%c0_20, %c0_21, %c32], %27 {strides = array<i32>} : memref<16x16x56xbf16, #tpu.memory_space<vmem>>, vector<16x15x8xbf16>,
    %29 = vector.extract_strided_slice %17 {offsets = [0, 2, 0], sizes = [16, 14, 8], strides = [1, 1, 1]} : vector<16x16x8xbf16> to vector<16x14x8xbf16>
    %c0_22 = arith.constant 0 : index
    %c0_23 = arith.constant 0 : index
    %c40 = arith.constant 40 : index
    %30 = vector.load %arg18[%c0_22, %c0_23, %c40] : memref<16x16x56xbf16, #tpu.memory_space<vmem>>, vector<16x14x8xbf16>
    tpu.vector_store %arg18[%c0_22, %c0_23, %c40], %29 {strides = array<i32>} : memref<16x16x56xbf16, #tpu.memory_space<vmem>>, vector<16x14x8xbf16>,
    %31 = vector.extract_strided_slice %17 {offsets = [0, 3, 0], sizes = [16, 13, 8], strides = [1, 1, 1]} : vector<16x16x8xbf16> to vector<16x13x8xbf16>
    %c0_24 = arith.constant 0 : index
    %c0_25 = arith.constant 0 : index
    %c48 = arith.constant 48 : index
    %32 = vector.load %arg18[%c0_24, %c0_25, %c48] : memref<16x16x56xbf16, #tpu.memory_space<vmem>>, vector<16x13x8xbf16>
    tpu.vector_store %arg18[%c0_24, %c0_25, %c48], %31 {strides = array<i32>} : memref<16x16x56xbf16, #tpu.memory_space<vmem>>, vector<16x13x8xbf16>,
    %c0_26 = arith.constant 0 : index
    %c0_27 = arith.constant 0 : index
    %c0_28 = arith.constant 0 : index
    %33 = vector.load %arg18[%c0_26, %c0_27, %c0_28] : memref<16x16x56xbf16, #tpu.memory_space<vmem>>, vector<16x16x56xbf16>
    %34 = vector.shape_cast %33 : vector<16x16x56xbf16> to vector<256x56xbf16>
    %c0_29 = arith.constant 0 : index
    %c0_30 = arith.constant 0 : index
    %35 = vector.load %arg5[%c0_29, %c0_30] : memref<56x8xbf16, #tpu.memory_space<vmem>>, vector<56x8xbf16>
    %cst_31 = arith.constant dense<0.000000e+00> : vector<256x8xf32>
    %36 = tpu.matmul %34, %35, %cst_31 {dimension_numbers = #tpu.dot_dimension_numbers<[1], [0], [0], [1], [0, 0, 1, 1], [], []>} : vector<256x56xbf16>, vector<56x8xbf16>, vector<256x8xf32> -> vector<256x8xf32>
    %c0_32 = arith.constant 0 : index
    %c0_33 = arith.constant 0 : index
    %37 = vector.load %arg6[%c0_32, %c0_33] : memref<1x8xf32, #tpu.memory_space<vmem>>, vector<1x8xf32>
    %38 = vector.broadcast %37 : vector<1x8xf32> to vector<256x8xf32>
    %39 = arith.mulf %36, %38 : vector<256x8xf32>
    %c0_34 = arith.constant 0 : index
    %c0_35 = arith.constant 0 : index
    %40 = vector.load %arg7[%c0_34, %c0_35] : memref<1x8xf32, #tpu.memory_space<vmem>>, vector<1x8xf32>
    %41 = vector.broadcast %40 : vector<1x8xf32> to vector<256x8xf32>
    %42 = arith.addf %39, %41 : vector<256x8xf32>
    %cst_36 = arith.constant 0.000000e+00 : f32
    %43 = vector.broadcast %cst_36 : f32 to vector<256x8xf32>
    %44 = arith.maximumf %42, %43 : vector<256x8xf32>
    %45 = arith.truncf %44 : vector<256x8xf32> to vector<256x8xbf16>
    %46 = vector.shape_cast %45 : vector<256x8xbf16> to vector<16x16x8xbf16>
    %cst_37 = arith.constant 0.000000e+00 : bf16
    %47 = vector.broadcast %cst_37 : bf16 to vector<16x16x56xbf16>
    %c0_38 = arith.constant 0 : index
    %c0_39 = arith.constant 0 : index
    %c0_40 = arith.constant 0 : index
    %48 = vector.load %arg18[%c0_38, %c0_39, %c0_40] : memref<16x16x56xbf16, #tpu.memory_space<vmem>>, vector<16x16x56xbf16>
    tpu.vector_store %arg18[%c0_38, %c0_39, %c0_40], %47 {strides = array<i32>} : memref<16x16x56xbf16, #tpu.memory_space<vmem>>, vector<16x16x56xbf16>,
    %49 = vector.extract_strided_slice %46 {offsets = [0, 0, 0], sizes = [13, 16, 8], strides = [1, 1, 1]} : vector<16x16x8xbf16> to vector<13x16x8xbf16>
    %c3_41 = arith.constant 3 : index
    %c0_42 = arith.constant 0 : index
    %c0_43 = arith.constant 0 : index
    %50 = vector.load %arg18[%c3_41, %c0_42, %c0_43] : memref<16x16x56xbf16, #tpu.memory_space<vmem>>, vector<13x16x8xbf16>
    tpu.vector_store %arg18[%c3_41, %c0_42, %c0_43], %49 {strides = array<i32>} : memref<16x16x56xbf16, #tpu.memory_space<vmem>>, vector<13x16x8xbf16>,
    %51 = vector.extract_strided_slice %46 {offsets = [0, 0, 0], sizes = [14, 16, 8], strides = [1, 1, 1]} : vector<16x16x8xbf16> to vector<14x16x8xbf16>
    %c2_44 = arith.constant 2 : index
    %c0_45 = arith.constant 0 : index
    %c8_46 = arith.constant 8 : index
    %52 = vector.load %arg18[%c2_44, %c0_45, %c8_46] : memref<16x16x56xbf16, #tpu.memory_space<vmem>>, vector<14x16x8xbf16>
    tpu.vector_store %arg18[%c2_44, %c0_45, %c8_46], %51 {strides = array<i32>} : memref<16x16x56xbf16, #tpu.memory_space<vmem>>, vector<14x16x8xbf16>,
    %53 = vector.extract_strided_slice %46 {offsets = [0, 0, 0], sizes = [15, 16, 8], strides = [1, 1, 1]} : vector<16x16x8xbf16> to vector<15x16x8xbf16>
    %c1_47 = arith.constant 1 : index
    %c0_48 = arith.constant 0 : index
    %c16_49 = arith.constant 16 : index
    %54 = vector.load %arg18[%c1_47, %c0_48, %c16_49] : memref<16x16x56xbf16, #tpu.memory_space<vmem>>, vector<15x16x8xbf16>
    tpu.vector_store %arg18[%c1_47, %c0_48, %c16_49], %53 {strides = array<i32>} : memref<16x16x56xbf16, #tpu.memory_space<vmem>>, vector<15x16x8xbf16>,
    %c0_50 = arith.constant 0 : index
    %c0_51 = arith.constant 0 : index
    %c24_52 = arith.constant 24 : index
    %55 = vector.load %arg18[%c0_50, %c0_51, %c24_52] : memref<16x16x56xbf16, #tpu.memory_space<vmem>>, vector<16x16x8xbf16>
    tpu.vector_store %arg18[%c0_50, %c0_51, %c24_52], %46 {strides = array<i32>} : memref<16x16x56xbf16, #tpu.memory_space<vmem>>, vector<16x16x8xbf16>,
    %56 = vector.extract_strided_slice %46 {offsets = [1, 0, 0], sizes = [15, 16, 8], strides = [1, 1, 1]} : vector<16x16x8xbf16> to vector<15x16x8xbf16>
    %c0_53 = arith.constant 0 : index
    %c0_54 = arith.constant 0 : index
    %c32_55 = arith.constant 32 : index
    %57 = vector.load %arg18[%c0_53, %c0_54, %c32_55] : memref<16x16x56xbf16, #tpu.memory_space<vmem>>, vector<15x16x8xbf16>
    tpu.vector_store %arg18[%c0_53, %c0_54, %c32_55], %56 {strides = array<i32>} : memref<16x16x56xbf16, #tpu.memory_space<vmem>>, vector<15x16x8xbf16>,
    %58 = vector.extract_strided_slice %46 {offsets = [2, 0, 0], sizes = [14, 16, 8], strides = [1, 1, 1]} : vector<16x16x8xbf16> to vector<14x16x8xbf16>
    %c0_56 = arith.constant 0 : index
    %c0_57 = arith.constant 0 : index
    %c40_58 = arith.constant 40 : index
    %59 = vector.load %arg18[%c0_56, %c0_57, %c40_58] : memref<16x16x56xbf16, #tpu.memory_space<vmem>>, vector<14x16x8xbf16>
    tpu.vector_store %arg18[%c0_56, %c0_57, %c40_58], %58 {strides = array<i32>} : memref<16x16x56xbf16, #tpu.memory_space<vmem>>, vector<14x16x8xbf16>,
    %60 = vector.extract_strided_slice %46 {offsets = [3, 0, 0], sizes = [13, 16, 8], strides = [1, 1, 1]} : vector<16x16x8xbf16> to vector<13x16x8xbf16>
    %c0_59 = arith.constant 0 : index
    %c0_60 = arith.constant 0 : index
    %c48_61 = arith.constant 48 : index
    %61 = vector.load %arg18[%c0_59, %c0_60, %c48_61] : memref<16x16x56xbf16, #tpu.memory_space<vmem>>, vector<13x16x8xbf16>
    tpu.vector_store %arg18[%c0_59, %c0_60, %c48_61], %60 {strides = array<i32>} : memref<16x16x56xbf16, #tpu.memory_space<vmem>>, vector<13x16x8xbf16>,
    %c0_62 = arith.constant 0 : index
    %c0_63 = arith.constant 0 : index
    %c0_64 = arith.constant 0 : index
    %62 = vector.load %arg18[%c0_62, %c0_63, %c0_64] : memref<16x16x56xbf16, #tpu.memory_space<vmem>>, vector<16x16x56xbf16>
    %63 = vector.shape_cast %62 : vector<16x16x56xbf16> to vector<256x56xbf16>
    %c0_65 = arith.constant 0 : index
    %c0_66 = arith.constant 0 : index
    %64 = vector.load %arg8[%c0_65, %c0_66] : memref<56x8xbf16, #tpu.memory_space<vmem>>, vector<56x8xbf16>
    %cst_67 = arith.constant dense<0.000000e+00> : vector<256x8xf32>
    %65 = tpu.matmul %63, %64, %cst_67 {dimension_numbers = #tpu.dot_dimension_numbers<[1], [0], [0], [1], [0, 0, 1, 1], [], []>} : vector<256x56xbf16>, vector<56x8xbf16>, vector<256x8xf32> -> vector<256x8xf32>
    %c0_68 = arith.constant 0 : index
    %c0_69 = arith.constant 0 : index
    %66 = vector.load %arg9[%c0_68, %c0_69] : memref<1x8xf32, #tpu.memory_space<vmem>>, vector<1x8xf32>
    %67 = vector.broadcast %66 : vector<1x8xf32> to vector<256x8xf32>
    %68 = arith.mulf %65, %67 : vector<256x8xf32>
    %c0_70 = arith.constant 0 : index
    %c0_71 = arith.constant 0 : index
    %69 = vector.load %arg10[%c0_70, %c0_71] : memref<1x8xf32, #tpu.memory_space<vmem>>, vector<1x8xf32>
    %70 = vector.broadcast %69 : vector<1x8xf32> to vector<256x8xf32>
    %71 = arith.addf %68, %70 : vector<256x8xf32>
    %cst_72 = arith.constant 0.000000e+00 : f32
    %72 = vector.broadcast %cst_72 : f32 to vector<256x8xf32>
    %73 = arith.maximumf %71, %72 : vector<256x8xf32>
    %74 = arith.truncf %73 : vector<256x8xf32> to vector<256x8xbf16>
    %75 = vector.shape_cast %74 : vector<256x8xbf16> to vector<16x16x8xbf16>
    %76 = vector.extract_strided_slice %15 {offsets = [0, 0, 0], sizes = [14, 14, 8], strides = [1, 1, 1]} : vector<16x16x8xbf16> to vector<14x14x8xbf16>
    %c0_73 = arith.constant 0 : index
    %c0_74 = arith.constant 0 : index
    %c0_75 = arith.constant 0 : index
    %77 = vector.load %arg19[%c0_73, %c0_74, %c0_75] : memref<14x14x72xbf16, #tpu.memory_space<vmem>>, vector<14x14x8xbf16>
    tpu.vector_store %arg19[%c0_73, %c0_74, %c0_75], %76 {strides = array<i32>} : memref<14x14x72xbf16, #tpu.memory_space<vmem>>, vector<14x14x8xbf16>,
    %78 = vector.extract_strided_slice %15 {offsets = [0, 1, 0], sizes = [14, 14, 8], strides = [1, 1, 1]} : vector<16x16x8xbf16> to vector<14x14x8xbf16>
    %c0_76 = arith.constant 0 : index
    %c0_77 = arith.constant 0 : index
    %c8_78 = arith.constant 8 : index
    %79 = vector.load %arg19[%c0_76, %c0_77, %c8_78] : memref<14x14x72xbf16, #tpu.memory_space<vmem>>, vector<14x14x8xbf16>
    tpu.vector_store %arg19[%c0_76, %c0_77, %c8_78], %78 {strides = array<i32>} : memref<14x14x72xbf16, #tpu.memory_space<vmem>>, vector<14x14x8xbf16>,
    %80 = vector.extract_strided_slice %15 {offsets = [0, 2, 0], sizes = [14, 14, 8], strides = [1, 1, 1]} : vector<16x16x8xbf16> to vector<14x14x8xbf16>
    %c0_79 = arith.constant 0 : index
    %c0_80 = arith.constant 0 : index
    %c16_81 = arith.constant 16 : index
    %81 = vector.load %arg19[%c0_79, %c0_80, %c16_81] : memref<14x14x72xbf16, #tpu.memory_space<vmem>>, vector<14x14x8xbf16>
    tpu.vector_store %arg19[%c0_79, %c0_80, %c16_81], %80 {strides = array<i32>} : memref<14x14x72xbf16, #tpu.memory_space<vmem>>, vector<14x14x8xbf16>,
    %82 = vector.extract_strided_slice %15 {offsets = [1, 0, 0], sizes = [14, 14, 8], strides = [1, 1, 1]} : vector<16x16x8xbf16> to vector<14x14x8xbf16>
    %c0_82 = arith.constant 0 : index
    %c0_83 = arith.constant 0 : index
    %c24_84 = arith.constant 24 : index
    %83 = vector.load %arg19[%c0_82, %c0_83, %c24_84] : memref<14x14x72xbf16, #tpu.memory_space<vmem>>, vector<14x14x8xbf16>
    tpu.vector_store %arg19[%c0_82, %c0_83, %c24_84], %82 {strides = array<i32>} : memref<14x14x72xbf16, #tpu.memory_space<vmem>>, vector<14x14x8xbf16>,
    %84 = vector.extract_strided_slice %15 {offsets = [1, 1, 0], sizes = [14, 14, 8], strides = [1, 1, 1]} : vector<16x16x8xbf16> to vector<14x14x8xbf16>
    %c0_85 = arith.constant 0 : index
    %c0_86 = arith.constant 0 : index
    %c32_87 = arith.constant 32 : index
    %85 = vector.load %arg19[%c0_85, %c0_86, %c32_87] : memref<14x14x72xbf16, #tpu.memory_space<vmem>>, vector<14x14x8xbf16>
    tpu.vector_store %arg19[%c0_85, %c0_86, %c32_87], %84 {strides = array<i32>} : memref<14x14x72xbf16, #tpu.memory_space<vmem>>, vector<14x14x8xbf16>,
    %86 = vector.extract_strided_slice %15 {offsets = [1, 2, 0], sizes = [14, 14, 8], strides = [1, 1, 1]} : vector<16x16x8xbf16> to vector<14x14x8xbf16>
    %c0_88 = arith.constant 0 : index
    %c0_89 = arith.constant 0 : index
    %c40_90 = arith.constant 40 : index
    %87 = vector.load %arg19[%c0_88, %c0_89, %c40_90] : memref<14x14x72xbf16, #tpu.memory_space<vmem>>, vector<14x14x8xbf16>
    tpu.vector_store %arg19[%c0_88, %c0_89, %c40_90], %86 {strides = array<i32>} : memref<14x14x72xbf16, #tpu.memory_space<vmem>>, vector<14x14x8xbf16>,
    %88 = vector.extract_strided_slice %15 {offsets = [2, 0, 0], sizes = [14, 14, 8], strides = [1, 1, 1]} : vector<16x16x8xbf16> to vector<14x14x8xbf16>
    %c0_91 = arith.constant 0 : index
    %c0_92 = arith.constant 0 : index
    %c48_93 = arith.constant 48 : index
    %89 = vector.load %arg19[%c0_91, %c0_92, %c48_93] : memref<14x14x72xbf16, #tpu.memory_space<vmem>>, vector<14x14x8xbf16>
    tpu.vector_store %arg19[%c0_91, %c0_92, %c48_93], %88 {strides = array<i32>} : memref<14x14x72xbf16, #tpu.memory_space<vmem>>, vector<14x14x8xbf16>,
    %90 = vector.extract_strided_slice %15 {offsets = [2, 1, 0], sizes = [14, 14, 8], strides = [1, 1, 1]} : vector<16x16x8xbf16> to vector<14x14x8xbf16>
    %c0_94 = arith.constant 0 : index
    %c0_95 = arith.constant 0 : index
    %c56 = arith.constant 56 : index
    %91 = vector.load %arg19[%c0_94, %c0_95, %c56] : memref<14x14x72xbf16, #tpu.memory_space<vmem>>, vector<14x14x8xbf16>
    tpu.vector_store %arg19[%c0_94, %c0_95, %c56], %90 {strides = array<i32>} : memref<14x14x72xbf16, #tpu.memory_space<vmem>>, vector<14x14x8xbf16>,
    %92 = vector.extract_strided_slice %15 {offsets = [2, 2, 0], sizes = [14, 14, 8], strides = [1, 1, 1]} : vector<16x16x8xbf16> to vector<14x14x8xbf16>
    %c0_96 = arith.constant 0 : index
    %c0_97 = arith.constant 0 : index
    %c64 = arith.constant 64 : index
    %93 = vector.load %arg19[%c0_96, %c0_97, %c64] : memref<14x14x72xbf16, #tpu.memory_space<vmem>>, vector<14x14x8xbf16>
    tpu.vector_store %arg19[%c0_96, %c0_97, %c64], %92 {strides = array<i32>} : memref<14x14x72xbf16, #tpu.memory_space<vmem>>, vector<14x14x8xbf16>,
    %c0_98 = arith.constant 0 : index
    %c0_99 = arith.constant 0 : index
    %c0_100 = arith.constant 0 : index
    %94 = vector.load %arg19[%c0_98, %c0_99, %c0_100] : memref<14x14x72xbf16, #tpu.memory_space<vmem>>, vector<14x14x72xbf16>
    %95 = vector.shape_cast %94 : vector<14x14x72xbf16> to vector<196x72xbf16>
    %c0_101 = arith.constant 0 : index
    %c0_102 = arith.constant 0 : index
    %96 = vector.load %arg11[%c0_101, %c0_102] : memref<72x12xbf16, #tpu.memory_space<vmem>>, vector<72x12xbf16>
    %cst_103 = arith.constant dense<0.000000e+00> : vector<196x12xf32>
    %97 = tpu.matmul %95, %96, %cst_103 {dimension_numbers = #tpu.dot_dimension_numbers<[1], [0], [0], [1], [0, 0, 1, 1], [], []>} : vector<196x72xbf16>, vector<72x12xbf16>, vector<196x12xf32> -> vector<196x12xf32>
    %c0_104 = arith.constant 0 : index
    %c0_105 = arith.constant 0 : index
    %98 = vector.load %arg12[%c0_104, %c0_105] : memref<1x12xf32, #tpu.memory_space<vmem>>, vector<1x12xf32>
    %99 = vector.broadcast %98 : vector<1x12xf32> to vector<196x12xf32>
    %100 = arith.mulf %97, %99 : vector<196x12xf32>
    %c0_106 = arith.constant 0 : index
    %c0_107 = arith.constant 0 : index
    %101 = vector.load %arg13[%c0_106, %c0_107] : memref<1x12xf32, #tpu.memory_space<vmem>>, vector<1x12xf32>
    %102 = vector.broadcast %101 : vector<1x12xf32> to vector<196x12xf32>
    %103 = arith.addf %100, %102 : vector<196x12xf32>
    %cst_108 = arith.constant 0.000000e+00 : f32
    %104 = vector.broadcast %cst_108 : f32 to vector<196x12xf32>
    %105 = arith.maximumf %103, %104 : vector<196x12xf32>
    %106 = vector.shape_cast %105 : vector<196x12xf32> to vector<14x14x12xf32>
    %c0_109 = arith.constant 0 : index
    %c0_110 = arith.constant 0 : index
    %c0_111 = arith.constant 0 : index
    %c0_112 = arith.constant 0 : index
    %107 = vector.load %arg17[%c0_109, %c0_110, %c0_111, %c0_112] : memref<1x14x14x24xf32, #tpu.memory_space<vmem>>, vector<1x14x14x12xf32>
    %108 = vector.shape_cast %107 : vector<1x14x14x12xf32> to vector<14x14x12xf32>
    %109 = vector.shape_cast %106 : vector<14x14x12xf32> to vector<1x14x14x12xf32>
    tpu.vector_store %arg17[%c0_109, %c0_110, %c0_111, %c0_112], %109 {strides = array<i32>} : memref<1x14x14x24xf32, #tpu.memory_space<vmem>>, vector<1x14x14x12xf32>,
    %110 = vector.extract_strided_slice %75 {offsets = [0, 0, 0], sizes = [14, 14, 8], strides = [1, 1, 1]} : vector<16x16x8xbf16> to vector<14x14x8xbf16>
    %c0_113 = arith.constant 0 : index
    %c0_114 = arith.constant 0 : index
    %c0_115 = arith.constant 0 : index
    %111 = vector.load %arg19[%c0_113, %c0_114, %c0_115] : memref<14x14x72xbf16, #tpu.memory_space<vmem>>, vector<14x14x8xbf16>
    tpu.vector_store %arg19[%c0_113, %c0_114, %c0_115], %110 {strides = array<i32>} : memref<14x14x72xbf16, #tpu.memory_space<vmem>>, vector<14x14x8xbf16>,
    %112 = vector.extract_strided_slice %75 {offsets = [0, 1, 0], sizes = [14, 14, 8], strides = [1, 1, 1]} : vector<16x16x8xbf16> to vector<14x14x8xbf16>
    %c0_116 = arith.constant 0 : index
    %c0_117 = arith.constant 0 : index
    %c8_118 = arith.constant 8 : index
    %113 = vector.load %arg19[%c0_116, %c0_117, %c8_118] : memref<14x14x72xbf16, #tpu.memory_space<vmem>>, vector<14x14x8xbf16>
    tpu.vector_store %arg19[%c0_116, %c0_117, %c8_118], %112 {strides = array<i32>} : memref<14x14x72xbf16, #tpu.memory_space<vmem>>, vector<14x14x8xbf16>,
    %114 = vector.extract_strided_slice %75 {offsets = [0, 2, 0], sizes = [14, 14, 8], strides = [1, 1, 1]} : vector<16x16x8xbf16> to vector<14x14x8xbf16>
    %c0_119 = arith.constant 0 : index
    %c0_120 = arith.constant 0 : index
    %c16_121 = arith.constant 16 : index
    %115 = vector.load %arg19[%c0_119, %c0_120, %c16_121] : memref<14x14x72xbf16, #tpu.memory_space<vmem>>, vector<14x14x8xbf16>
    tpu.vector_store %arg19[%c0_119, %c0_120, %c16_121], %114 {strides = array<i32>} : memref<14x14x72xbf16, #tpu.memory_space<vmem>>, vector<14x14x8xbf16>,
    %116 = vector.extract_strided_slice %75 {offsets = [1, 0, 0], sizes = [14, 14, 8], strides = [1, 1, 1]} : vector<16x16x8xbf16> to vector<14x14x8xbf16>
    %c0_122 = arith.constant 0 : index
    %c0_123 = arith.constant 0 : index
    %c24_124 = arith.constant 24 : index
    %117 = vector.load %arg19[%c0_122, %c0_123, %c24_124] : memref<14x14x72xbf16, #tpu.memory_space<vmem>>, vector<14x14x8xbf16>
    tpu.vector_store %arg19[%c0_122, %c0_123, %c24_124], %116 {strides = array<i32>} : memref<14x14x72xbf16, #tpu.memory_space<vmem>>, vector<14x14x8xbf16>,
    %118 = vector.extract_strided_slice %75 {offsets = [1, 1, 0], sizes = [14, 14, 8], strides = [1, 1, 1]} : vector<16x16x8xbf16> to vector<14x14x8xbf16>
    %c0_125 = arith.constant 0 : index
    %c0_126 = arith.constant 0 : index
    %c32_127 = arith.constant 32 : index
    %119 = vector.load %arg19[%c0_125, %c0_126, %c32_127] : memref<14x14x72xbf16, #tpu.memory_space<vmem>>, vector<14x14x8xbf16>
    tpu.vector_store %arg19[%c0_125, %c0_126, %c32_127], %118 {strides = array<i32>} : memref<14x14x72xbf16, #tpu.memory_space<vmem>>, vector<14x14x8xbf16>,
    %120 = vector.extract_strided_slice %75 {offsets = [1, 2, 0], sizes = [14, 14, 8], strides = [1, 1, 1]} : vector<16x16x8xbf16> to vector<14x14x8xbf16>
    %c0_128 = arith.constant 0 : index
    %c0_129 = arith.constant 0 : index
    %c40_130 = arith.constant 40 : index
    %121 = vector.load %arg19[%c0_128, %c0_129, %c40_130] : memref<14x14x72xbf16, #tpu.memory_space<vmem>>, vector<14x14x8xbf16>
    tpu.vector_store %arg19[%c0_128, %c0_129, %c40_130], %120 {strides = array<i32>} : memref<14x14x72xbf16, #tpu.memory_space<vmem>>, vector<14x14x8xbf16>,
    %122 = vector.extract_strided_slice %75 {offsets = [2, 0, 0], sizes = [14, 14, 8], strides = [1, 1, 1]} : vector<16x16x8xbf16> to vector<14x14x8xbf16>
    %c0_131 = arith.constant 0 : index
    %c0_132 = arith.constant 0 : index
    %c48_133 = arith.constant 48 : index
    %123 = vector.load %arg19[%c0_131, %c0_132, %c48_133] : memref<14x14x72xbf16, #tpu.memory_space<vmem>>, vector<14x14x8xbf16>
    tpu.vector_store %arg19[%c0_131, %c0_132, %c48_133], %122 {strides = array<i32>} : memref<14x14x72xbf16, #tpu.memory_space<vmem>>, vector<14x14x8xbf16>,
    %124 = vector.extract_strided_slice %75 {offsets = [2, 1, 0], sizes = [14, 14, 8], strides = [1, 1, 1]} : vector<16x16x8xbf16> to vector<14x14x8xbf16>
    %c0_134 = arith.constant 0 : index
    %c0_135 = arith.constant 0 : index
    %c56_136 = arith.constant 56 : index
    %125 = vector.load %arg19[%c0_134, %c0_135, %c56_136] : memref<14x14x72xbf16, #tpu.memory_space<vmem>>, vector<14x14x8xbf16>
    tpu.vector_store %arg19[%c0_134, %c0_135, %c56_136], %124 {strides = array<i32>} : memref<14x14x72xbf16, #tpu.memory_space<vmem>>, vector<14x14x8xbf16>,
    %126 = vector.extract_strided_slice %75 {offsets = [2, 2, 0], sizes = [14, 14, 8], strides = [1, 1, 1]} : vector<16x16x8xbf16> to vector<14x14x8xbf16>
    %c0_137 = arith.constant 0 : index
    %c0_138 = arith.constant 0 : index
    %c64_139 = arith.constant 64 : index
    %127 = vector.load %arg19[%c0_137, %c0_138, %c64_139] : memref<14x14x72xbf16, #tpu.memory_space<vmem>>, vector<14x14x8xbf16>
    tpu.vector_store %arg19[%c0_137, %c0_138, %c64_139], %126 {strides = array<i32>} : memref<14x14x72xbf16, #tpu.memory_space<vmem>>, vector<14x14x8xbf16>,
    %c0_140 = arith.constant 0 : index
    %c0_141 = arith.constant 0 : index
    %c0_142 = arith.constant 0 : index
    %128 = vector.load %arg19[%c0_140, %c0_141, %c0_142] : memref<14x14x72xbf16, #tpu.memory_space<vmem>>, vector<14x14x72xbf16>
    %129 = vector.shape_cast %128 : vector<14x14x72xbf16> to vector<196x72xbf16>
    %c0_143 = arith.constant 0 : index
    %c0_144 = arith.constant 0 : index
    %130 = vector.load %arg14[%c0_143, %c0_144] : memref<72x12xbf16, #tpu.memory_space<vmem>>, vector<72x12xbf16>
    %cst_145 = arith.constant dense<0.000000e+00> : vector<196x12xf32>
    %131 = tpu.matmul %129, %130, %cst_145 {dimension_numbers = #tpu.dot_dimension_numbers<[1], [0], [0], [1], [0, 0, 1, 1], [], []>} : vector<196x72xbf16>, vector<72x12xbf16>, vector<196x12xf32> -> vector<196x12xf32>
    %c0_146 = arith.constant 0 : index
    %c0_147 = arith.constant 0 : index
    %132 = vector.load %arg15[%c0_146, %c0_147] : memref<1x12xf32, #tpu.memory_space<vmem>>, vector<1x12xf32>
    %133 = vector.broadcast %132 : vector<1x12xf32> to vector<196x12xf32>
    %134 = arith.mulf %131, %133 : vector<196x12xf32>
    %c0_148 = arith.constant 0 : index
    %c0_149 = arith.constant 0 : index
    %135 = vector.load %arg16[%c0_148, %c0_149] : memref<1x12xf32, #tpu.memory_space<vmem>>, vector<1x12xf32>
    %136 = vector.broadcast %135 : vector<1x12xf32> to vector<196x12xf32>
    %137 = arith.addf %134, %136 : vector<196x12xf32>
    %cst_150 = arith.constant 0.000000e+00 : f32
    %138 = vector.broadcast %cst_150 : f32 to vector<196x12xf32>
    %139 = arith.maximumf %137, %138 : vector<196x12xf32>
    %140 = vector.shape_cast %139 : vector<196x12xf32> to vector<14x14x12xf32>
    %c0_151 = arith.constant 0 : index
    %c0_152 = arith.constant 0 : index
    %c0_153 = arith.constant 0 : index
    %c12 = arith.constant 12 : index
    %141 = vector.load %arg17[%c0_151, %c0_152, %c0_153, %c12] : memref<1x14x14x24xf32, #tpu.memory_space<vmem>>, vector<1x14x14x12xf32>
    %142 = vector.shape_cast %141 : vector<1x14x14x12xf32> to vector<14x14x12xf32>
    %143 = vector.shape_cast %140 : vector<14x14x12xf32> to vector<1x14x14x12xf32>
    tpu.vector_store %arg17[%c0_151, %c0_152, %c0_153, %c12], %143 {strides = array<i32>} : memref<1x14x14x24xf32, #tpu.memory_space<vmem>>, vector<1x14x14x12xf32>,
    return
  }
  func.func @transform_0(%arg0: i32) -> (i32, i32, i32, i32) {
    %c0_i32 = arith.constant 0 : i32
    %c0_i32_0 = arith.constant 0 : i32
    %c0_i32_1 = arith.constant 0 : i32
    %c0_i32_2 = arith.constant 0 : i32
    return %arg0, %c0_i32, %c0_i32_0, %c0_i32_1 : i32, i32, i32, i32
  }
  func.func @transform_1(%arg0: i32) -> (i32, i32) {
    %c0_i32 = arith.constant 0 : i32
    %c0_i32_0 = arith.constant 0 : i32
    %c0_i32_1 = arith.constant 0 : i32
    return %c0_i32, %c0_i32_0 : i32, i32
  }
  func.func @transform_2(%arg0: i32) -> (i32, i32) {
    %c0_i32 = arith.constant 0 : i32
    %c0_i32_0 = arith.constant 0 : i32
    %c0_i32_1 = arith.constant 0 : i32
    return %c0_i32, %c0_i32_0 : i32, i32
  }
  func.func @transform_3(%arg0: i32) -> (i32, i32) {
    %c0_i32 = arith.constant 0 : i32
    %c0_i32_0 = arith.constant 0 : i32
    %c0_i32_1 = arith.constant 0 : i32
    return %c0_i32, %c0_i32_0 : i32, i32
  }
  func.func @transform_4(%arg0: i32) -> (i32, i32) {
    %c0_i32 = arith.constant 0 : i32
    %c0_i32_0 = arith.constant 0 : i32
    %c0_i32_1 = arith.constant 0 : i32
    return %c0_i32, %c0_i32_0 : i32, i32
  }
  func.func @transform_5(%arg0: i32) -> (i32, i32) {
    %c0_i32 = arith.constant 0 : i32
    %c0_i32_0 = arith.constant 0 : i32
    %c0_i32_1 = arith.constant 0 : i32
    return %c0_i32, %c0_i32_0 : i32, i32
  }
  func.func @transform_6(%arg0: i32) -> (i32, i32) {
    %c0_i32 = arith.constant 0 : i32
    %c0_i32_0 = arith.constant 0 : i32
    %c0_i32_1 = arith.constant 0 : i32
    return %c0_i32, %c0_i32_0 : i32, i32
  }
  func.func @transform_7(%arg0: i32) -> (i32, i32) {
    %c0_i32 = arith.constant 0 : i32
    %c0_i32_0 = arith.constant 0 : i32
    %c0_i32_1 = arith.constant 0 : i32
    return %c0_i32, %c0_i32_0 : i32, i32
  }
  func.func @transform_8(%arg0: i32) -> (i32, i32) {
    %c0_i32 = arith.constant 0 : i32
    %c0_i32_0 = arith.constant 0 : i32
    %c0_i32_1 = arith.constant 0 : i32
    return %c0_i32, %c0_i32_0 : i32, i32
  }
  func.func @transform_9(%arg0: i32) -> (i32, i32) {
    %c0_i32 = arith.constant 0 : i32
    %c0_i32_0 = arith.constant 0 : i32
    %c0_i32_1 = arith.constant 0 : i32
    return %c0_i32, %c0_i32_0 : i32, i32
  }
  func.func @transform_10(%arg0: i32) -> (i32, i32) {
    %c0_i32 = arith.constant 0 : i32
    %c0_i32_0 = arith.constant 0 : i32
    %c0_i32_1 = arith.constant 0 : i32
    return %c0_i32, %c0_i32_0 : i32, i32
  }
  func.func @transform_11(%arg0: i32) -> (i32, i32) {
    %c0_i32 = arith.constant 0 : i32
    %c0_i32_0 = arith.constant 0 : i32
    %c0_i32_1 = arith.constant 0 : i32
    return %c0_i32, %c0_i32_0 : i32, i32
  }
  func.func @transform_12(%arg0: i32) -> (i32, i32) {
    %c0_i32 = arith.constant 0 : i32
    %c0_i32_0 = arith.constant 0 : i32
    %c0_i32_1 = arith.constant 0 : i32
    return %c0_i32, %c0_i32_0 : i32, i32
  }
  func.func @transform_13(%arg0: i32) -> (i32, i32) {
    %c0_i32 = arith.constant 0 : i32
    %c0_i32_0 = arith.constant 0 : i32
    %c0_i32_1 = arith.constant 0 : i32
    return %c0_i32, %c0_i32_0 : i32, i32
  }
  func.func @transform_14(%arg0: i32) -> (i32, i32) {
    %c0_i32 = arith.constant 0 : i32
    %c0_i32_0 = arith.constant 0 : i32
    %c0_i32_1 = arith.constant 0 : i32
    return %c0_i32, %c0_i32_0 : i32, i32
  }
  func.func @transform_15(%arg0: i32) -> (i32, i32) {
    %c0_i32 = arith.constant 0 : i32
    %c0_i32_0 = arith.constant 0 : i32
    %c0_i32_1 = arith.constant 0 : i32
    return %c0_i32, %c0_i32_0 : i32, i32
  }
  func.func @transform_16(%arg0: i32) -> (i32, i32, i32, i32) {
    %c0_i32 = arith.constant 0 : i32
    %c0_i32_0 = arith.constant 0 : i32
    %c0_i32_1 = arith.constant 0 : i32
    %c0_i32_2 = arith.constant 0 : i32
    return %arg0, %c0_i32, %c0_i32_0, %c0_i32_1 : i32, i32, i32, i32
  }
}

</mosaic_0001>

<llo_original>
// kernel: tpu_custom_call.1
$region0: #{tpu_custom_call.1}
  #allocation0 [shape = 'u32[]', space=smem, size = 0x4, offset = 0x4, fixed_abs, tag = 'smem constant byte address 0x4 - core index']
  #allocation1 [shape = 'u32[144,128]{1,0:T(1,128)}', space=vmem, size = 0x12000, scoped, tag = 'internal scratch']
  #allocation2 [shape = 'bf16[16,16,56]{2,1,0:T(16,128)(2,1)}', space=vmem, size = 0x10000, scoped, tag = 'scratch operand']
  #allocation3 [shape = 'bf16[14,14,72]{2,1,0:T(8,128)(2,1)}', space=vmem, size = 0xe000, scoped, tag = 'scratch operand']
  %s0 = inlined_call_operand.vmem [shape: bf16[2,16,16,4], index: 0, kind: input, shape index: {}]
  %s1 = inlined_call_operand.vmem [shape: bf16[4,16], index: 1, kind: input, shape index: {}]
  %s2 = inlined_call_operand.vmem [shape: f32[1,16], index: 2, kind: input, shape index: {}]
  %s3 = inlined_call_operand.vmem [shape: f32[1,16], index: 3, kind: input, shape index: {}]
  %s4 = inlined_call_operand.vmem [shape: bf16[56,8], index: 4, kind: input, shape index: {}]
  %s5 = inlined_call_operand.vmem [shape: f32[1,8], index: 5, kind: input, shape index: {}]
  %s6 = inlined_call_operand.vmem [shape: f32[1,8], index: 6, kind: input, shape index: {}]
  %s7 = inlined_call_operand.vmem [shape: bf16[56,8], index: 7, kind: input, shape index: {}]
  %s8 = inlined_call_operand.vmem [shape: f32[1,8], index: 8, kind: input, shape index: {}]
  %s9 = inlined_call_operand.vmem [shape: f32[1,8], index: 9, kind: input, shape index: {}]
  %s10 = inlined_call_operand.vmem [shape: bf16[72,12], index: 10, kind: input, shape index: {}]
  %s11 = inlined_call_operand.vmem [shape: f32[1,12], index: 11, kind: input, shape index: {}]
  %s12 = inlined_call_operand.vmem [shape: f32[1,12], index: 12, kind: input, shape index: {}]
  %s13 = inlined_call_operand.vmem [shape: bf16[72,12], index: 13, kind: input, shape index: {}]
  %s14 = inlined_call_operand.vmem [shape: f32[1,12], index: 14, kind: input, shape index: {}]
  %s15 = inlined_call_operand.vmem [shape: f32[1,12], index: 15, kind: input, shape index: {}]
  %s16 = inlined_call_operand.vmem [shape: f32[2,14,14,24], index: 16, kind: output, shape index: {}]
  %s17 = sld [smem:[#allocation0]]
  $region97: #{tpu_custom_call.1} parent=0
    _
  %s19 = ssub.s32 1, %s17
  %s20 = scalar_select 0, %s19, %s17
  loop: start=0, step=1, limit=4
  $region2: #{tpu_custom_call.1} parent=0 // loop_pre_header
    _
  $region3: #{tpu_custom_call.1} parent=0 // loop_header
    %s22 = sphi 0, %s26
    %p23 = scmp.ge.s32.totalorder %s22, 4
    %s32 = sphi 0, %s34
    %s35 = sphi 0, %s32
    %s36 = sphi 0, %s35
    %s52 = sphi 0, %s36
    %s56 = sphi 0, %s56
    %s58 = sphi 0, %s56
    %s59 = sphi 0, %s58
    %s73 = sphi 0, %s59
    %s77 = sphi 0, %s77
    %s79 = sphi 0, %s77
    %s80 = sphi 0, %s79
    %s94 = sphi 0, %s80
    %s98 = sphi 0, %s98
    %s100 = sphi 0, %s98
    %s101 = sphi 0, %s100
    %s115 = sphi 0, %s101
    %s119 = sphi 0, %s119
    %s121 = sphi 0, %s119
    %s122 = sphi 0, %s121
    %s136 = sphi 0, %s122
    %s140 = sphi 0, %s140
    %s142 = sphi 0, %s140
    %s143 = sphi 0, %s142
    %s157 = sphi 0, %s143
    %s161 = sphi 0, %s161
    %s163 = sphi 0, %s161
    %s164 = sphi 0, %s163
    %s178 = sphi 0, %s164
    %s182 = sphi 0, %s182
    %s184 = sphi 0, %s182
    %s185 = sphi 0, %s184
    %s199 = sphi 0, %s185
    %s203 = sphi 0, %s203
    %s205 = sphi 0, %s203
    %s206 = sphi 0, %s205
    %s220 = sphi 0, %s206
    %s224 = sphi 0, %s224
    %s226 = sphi 0, %s224
    %s227 = sphi 0, %s226
    %s241 = sphi 0, %s227
    %s245 = sphi 0, %s245
    %s247 = sphi 0, %s245
    %s248 = sphi 0, %s247
    %s262 = sphi 0, %s248
    %s266 = sphi 0, %s266
    %s268 = sphi 0, %s266
    %s269 = sphi 0, %s268
    %s283 = sphi 0, %s269
    %s287 = sphi 0, %s287
    %s289 = sphi 0, %s287
    %s290 = sphi 0, %s289
    %s304 = sphi 0, %s290
    %s308 = sphi 0, %s308
    %s310 = sphi 0, %s308
    %s311 = sphi 0, %s310
    %s325 = sphi 0, %s311
    %s329 = sphi 0, %s329
    %s331 = sphi 0, %s329
    %s332 = sphi 0, %s331
    %s346 = sphi 0, %s332
    %s350 = sphi 0, %s350
    %s352 = sphi 0, %s350
    %s353 = sphi 0, %s352
    %s367 = sphi 0, %s353
    %s373 = sphi 0, %s375
    %s376 = sphi 0, %s373
    %s377 = sphi 0, %s376
    %s393 = sphi 0, %s377
  $region4: #{tpu_custom_call.1} parent=0 // loop_header_branch
    %25 = sbr.rel (%p23) target = $region8
  $region5: #{tpu_custom_call.1} parent=0 // loop_body
    %s27 = ssub.s32 %s22, 1
    %s28 = ssub.s32 %s22, 2
    %s29 = sadd.s32 %s22, 1
    %s30 = ssub.s32 %s22, %s29
    %p31 = scmp.eq.s32.totalorder %s30, 0
    %s33 = sadd.s32 %s32, 1
    %s34 = scalar_select %p31, %s32, %s33
    %p37 = pneg %p31
    %p38 = scmp.eq.s32.totalorder %s22, 1
    %p39 = por %p37, %p38
    %p40 = scmp.ne.s32.totalorder %s32, %s35
    %p41 = scmp.eq.s32.totalorder %s22, 0
    %p42 = por %p40, %p41
    %p43 = scmp.ne.s32.totalorder %s32, %s35
    %p44 = scmp.eq.s32.totalorder %s27, 1
    %p45 = por %p43, %p44
    %p46 = scmp.ne.s32.totalorder %s35, %s36
    %p47 = scmp.eq.s32.totalorder %s27, 0
    %p48 = por %p46, %p47
    %p49 = scmp.ne.s32.totalorder %s35, %s36
    %p50 = scmp.eq.s32.totalorder %s28, 1
    %p51 = por %p49, %p50
    %p53 = scmp.ne.s32.totalorder %s36, %s52
    %p54 = scmp.eq.s32.totalorder %s28, 0
    %p55 = por %p53, %p54
    %s57 = sadd.s32 %s56, 1
    %p60 = scmp.eq.s32.totalorder %s22, 1
    %p61 = scmp.ne.s32.totalorder %s56, %s58
    %p62 = scmp.eq.s32.totalorder %s22, 0
    %p63 = por %p61, %p62
    %p64 = scmp.ne.s32.totalorder %s56, %s58
    %p65 = scmp.eq.s32.totalorder %s27, 1
    %p66 = por %p64, %p65
    %p67 = scmp.ne.s32.totalorder %s58, %s59
    %p68 = scmp.eq.s32.totalorder %s27, 0
    %p69 = por %p67, %p68
    %p70 = scmp.ne.s32.totalorder %s58, %s59
    %p71 = scmp.eq.s32.totalorder %s28, 1
    %p72 = por %p70, %p71
    %p74 = scmp.ne.s32.totalorder %s59, %s73
    %p75 = scmp.eq.s32.totalorder %s28, 0
    %p76 = por %p74, %p75
    %s78 = sadd.s32 %s77, 1
    %p81 = scmp.eq.s32.totalorder %s22, 1
    %p82 = scmp.ne.s32.totalorder %s77, %s79
    %p83 = scmp.eq.s32.totalorder %s22, 0
    %p84 = por %p82, %p83
    %p85 = scmp.ne.s32.totalorder %s77, %s79
    %p86 = scmp.eq.s32.totalorder %s27, 1
    %p87 = por %p85, %p86
    %p88 = scmp.ne.s32.totalorder %s79, %s80
    %p89 = scmp.eq.s32.totalorder %s27, 0
    %p90 = por %p88, %p89
    %p91 = scmp.ne.s32.totalorder %s79, %s80
    %p92 = scmp.eq.s32.totalorder %s28, 1
    %p93 = por %p91, %p92
    %p95 = scmp.ne.s32.totalorder %s80, %s94
    %p96 = scmp.eq.s32.totalorder %s28, 0
    %p97 = por %p95, %p96
    %s99 = sadd.s32 %s98, 1
    %p102 = scmp.eq.s32.totalorder %s22, 1
    %p103 = scmp.ne.s32.totalorder %s98, %s100
    %p104 = scmp.eq.s32.totalorder %s22, 0
    %p105 = por %p103, %p104
    %p106 = scmp.ne.s32.totalorder %s98, %s100
    %p107 = scmp.eq.s32.totalorder %s27, 1
    %p108 = por %p106, %p107
    %p109 = scmp.ne.s32.totalorder %s100, %s101
    %p110 = scmp.eq.s32.totalorder %s27, 0
    %p111 = por %p109, %p110
    %p112 = scmp.ne.s32.totalorder %s100, %s101
    %p113 = scmp.eq.s32.totalorder %s28, 1
    %p114 = por %p112, %p113
    %p116 = scmp.ne.s32.totalorder %s101, %s115
    %p117 = scmp.eq.s32.totalorder %s28, 0
    %p118 = por %p116, %p117
    %s120 = sadd.s32 %s119, 1
    %p123 = scmp.eq.s32.totalorder %s22, 1
    %p124 = scmp.ne.s32.totalorder %s119, %s121
    %p125 = scmp.eq.s32.totalorder %s22, 0
    %p126 = por %p124, %p125
    %p127 = scmp.ne.s32.totalorder %s119, %s121
    %p128 = scmp.eq.s32.totalorder %s27, 1
    %p129 = por %p127, %p128
    %p130 = scmp.ne.s32.totalorder %s121, %s122
    %p131 = scmp.eq.s32.totalorder %s27, 0
    %p132 = por %p130, %p131
    %p133 = scmp.ne.s32.totalorder %s121, %s122
    %p134 = scmp.eq.s32.totalorder %s28, 1
    %p135 = por %p133, %p134
    %p137 = scmp.ne.s32.totalorder %s122, %s136
    %p138 = scmp.eq.s32.totalorder %s28, 0
    %p139 = por %p137, %p138
    %s141 = sadd.s32 %s140, 1
    %p144 = scmp.eq.s32.totalorder %s22, 1
    %p145 = scmp.ne.s32.totalorder %s140, %s142
    %p146 = scmp.eq.s32.totalorder %s22, 0
    %p147 = por %p145, %p146
    %p148 = scmp.ne.s32.totalorder %s140, %s142
    %p149 = scmp.eq.s32.totalorder %s27, 1
    %p150 = por %p148, %p149
    %p151 = scmp.ne.s32.totalorder %s142, %s143
    %p152 = scmp.eq.s32.totalorder %s27, 0
    %p153 = por %p151, %p152
    %p154 = scmp.ne.s32.totalorder %s142, %s143
    %p155 = scmp.eq.s32.totalorder %s28, 1
    %p156 = por %p154, %p155
    %p158 = scmp.ne.s32.totalorder %s143, %s157
    %p159 = scmp.eq.s32.totalorder %s28, 0
    %p160 = por %p158, %p159
    %s162 = sadd.s32 %s161, 1
    %p165 = scmp.eq.s32.totalorder %s22, 1
    %p166 = scmp.ne.s32.totalorder %s161, %s163
    %p167 = scmp.eq.s32.totalorder %s22, 0
    %p168 = por %p166, %p167
    %p169 = scmp.ne.s32.totalorder %s161, %s163
    %p170 = scmp.eq.s32.totalorder %s27, 1
    %p171 = por %p169, %p170
    %p172 = scmp.ne.s32.totalorder %s163, %s164
    %p173 = scmp.eq.s32.totalorder %s27, 0
    %p174 = por %p172, %p173
    %p175 = scmp.ne.s32.totalorder %s163, %s164
    %p176 = scmp.eq.s32.totalorder %s28, 1
    %p177 = por %p175, %p176
    %p179 = scmp.ne.s32.totalorder %s164, %s178
    %p180 = scmp.eq.s32.totalorder %s28, 0
    %p181 = por %p179, %p180
    %s183 = sadd.s32 %s182, 1
    %p186 = scmp.eq.s32.totalorder %s22, 1
    %p187 = scmp.ne.s32.totalorder %s182, %s184
    %p188 = scmp.eq.s32.totalorder %s22, 0
    %p189 = por %p187, %p188
    %p190 = scmp.ne.s32.totalorder %s182, %s184
    %p191 = scmp.eq.s32.totalorder %s27, 1
    %p192 = por %p190, %p191
    %p193 = scmp.ne.s32.totalorder %s184, %s185
    %p194 = scmp.eq.s32.totalorder %s27, 0
    %p195 = por %p193, %p194
    %p196 = scmp.ne.s32.totalorder %s184, %s185
    %p197 = scmp.eq.s32.totalorder %s28, 1
    %p198 = por %p196, %p197
    %p200 = scmp.ne.s32.totalorder %s185, %s199
    %p201 = scmp.eq.s32.totalorder %s28, 0
    %p202 = por %p200, %p201
    %s204 = sadd.s32 %s203, 1
    %p207 = scmp.eq.s32.totalorder %s22, 1
    %p208 = scmp.ne.s32.totalorder %s203, %s205
    %p209 = scmp.eq.s32.totalorder %s22, 0
    %p210 = por %p208, %p209
    %p211 = scmp.ne.s32.totalorder %s203, %s205
    %p212 = scmp.eq.s32.totalorder %s27, 1
    %p213 = por %p211, %p212
    %p214 = scmp.ne.s32.totalorder %s205, %s206
    %p215 = scmp.eq.s32.totalorder %s27, 0
    %p216 = por %p214, %p215
    %p217 = scmp.ne.s32.totalorder %s205, %s206
    %p218 = scmp.eq.s32.totalorder %s28, 1
    %p219 = por %p217, %p218
    %p221 = scmp.ne.s32.totalorder %s206, %s220
    %p222 = scmp.eq.s32.totalorder %s28, 0
    %p223 = por %p221, %p222
    %s225 = sadd.s32 %s224, 1
    %p228 = scmp.eq.s32.totalorder %s22, 1
    %p229 = scmp.ne.s32.totalorder %s224, %s226
    %p230 = scmp.eq.s32.totalorder %s22, 0
    %p231 = por %p229, %p230
    %p232 = scmp.ne.s32.totalorder %s224, %s226
    %p233 = scmp.eq.s32.totalorder %s27, 1
    %p234 = por %p232, %p233
    %p235 = scmp.ne.s32.totalorder %s226, %s227
    %p236 = scmp.eq.s32.totalorder %s27, 0
    %p237 = por %p235, %p236
    %p238 = scmp.ne.s32.totalorder %s226, %s227
    %p239 = scmp.eq.s32.totalorder %s28, 1
    %p240 = por %p238, %p239
    %p242 = scmp.ne.s32.totalorder %s227, %s241
    %p243 = scmp.eq.s32.totalorder %s28, 0
    %p244 = por %p242, %p243
    %s246 = sadd.s32 %s245, 1
    %p249 = scmp.eq.s32.totalorder %s22, 1
    %p250 = scmp.ne.s32.totalorder %s245, %s247
    %p251 = scmp.eq.s32.totalorder %s22, 0
    %p252 = por %p250, %p251
    %p253 = scmp.ne.s32.totalorder %s245, %s247
    %p254 = scmp.eq.s32.totalorder %s27, 1
    %p255 = por %p253, %p254
    %p256 = scmp.ne.s32.totalorder %s247, %s248
    %p257 = scmp.eq.s32.totalorder %s27, 0
    %p258 = por %p256, %p257
    %p259 = scmp.ne.s32.totalorder %s247, %s248
    %p260 = scmp.eq.s32.totalorder %s28, 1
    %p261 = por %p259, %p260
    %p263 = scmp.ne.s32.totalorder %s248, %s262
    %p264 = scmp.eq.s32.totalorder %s28, 0
    %p265 = por %p263, %p264
    %s267 = sadd.s32 %s266, 1
    %p270 = scmp.eq.s32.totalorder %s22, 1
    %p271 = scmp.ne.s32.totalorder %s266, %s268
    %p272 = scmp.eq.s32.totalorder %s22, 0
    %p273 = por %p271, %p272
    %p274 = scmp.ne.s32.totalorder %s266, %s268
    %p275 = scmp.eq.s32.totalorder %s27, 1
    %p276 = por %p274, %p275
    %p277 = scmp.ne.s32.totalorder %s268, %s269
    %p278 = scmp.eq.s32.totalorder %s27, 0
    %p279 = por %p277, %p278
    %p280 = scmp.ne.s32.totalorder %s268, %s269
    %p281 = scmp.eq.s32.totalorder %s28, 1
    %p282 = por %p280, %p281
    %p284 = scmp.ne.s32.totalorder %s269, %s283
    %p285 = scmp.eq.s32.totalorder %s28, 0
    %p286 = por %p284, %p285
    %s288 = sadd.s32 %s287, 1
    %p291 = scmp.eq.s32.totalorder %s22, 1
    %p292 = scmp.ne.s32.totalorder %s287, %s289
    %p293 = scmp.eq.s32.totalorder %s22, 0
    %p294 = por %p292, %p293
    %p295 = scmp.ne.s32.totalorder %s287, %s289
    %p296 = scmp.eq.s32.totalorder %s27, 1
    %p297 = por %p295, %p296
    %p298 = scmp.ne.s32.totalorder %s289, %s290
    %p299 = scmp.eq.s32.totalorder %s27, 0
    %p300 = por %p298, %p299
    %p301 = scmp.ne.s32.totalorder %s289, %s290
    %p302 = scmp.eq.s32.totalorder %s28, 1
    %p303 = por %p301, %p302
    %p305 = scmp.ne.s32.totalorder %s290, %s304
    %p306 = scmp.eq.s32.totalorder %s28, 0
    %p307 = por %p305, %p306
    %s309 = sadd.s32 %s308, 1
    %p312 = scmp.eq.s32.totalorder %s22, 1
    %p313 = scmp.ne.s32.totalorder %s308, %s310
    %p314 = scmp.eq.s32.totalorder %s22, 0
    %p315 = por %p313, %p314
    %p316 = scmp.ne.s32.totalorder %s308, %s310
    %p317 = scmp.eq.s32.totalorder %s27, 1
    %p318 = por %p316, %p317
    %p319 = scmp.ne.s32.totalorder %s310, %s311
    %p320 = scmp.eq.s32.totalorder %s27, 0
    %p321 = por %p319, %p320
    %p322 = scmp.ne.s32.totalorder %s310, %s311
    %p323 = scmp.eq.s32.totalorder %s28, 1
    %p324 = por %p322, %p323
    %p326 = scmp.ne.s32.totalorder %s311, %s325
    %p327 = scmp.eq.s32.totalorder %s28, 0
    %p328 = por %p326, %p327
    %s330 = sadd.s32 %s329, 1
    %p333 = scmp.eq.s32.totalorder %s22, 1
    %p334 = scmp.ne.s32.totalorder %s329, %s331
    %p335 = scmp.eq.s32.totalorder %s22, 0
    %p336 = por %p334, %p335
    %p337 = scmp.ne.s32.totalorder %s329, %s331
    %p338 = scmp.eq.s32.totalorder %s27, 1
    %p339 = por %p337, %p338
    %p340 = scmp.ne.s32.totalorder %s331, %s332
    %p341 = scmp.eq.s32.totalorder %s27, 0
    %p342 = por %p340, %p341
    %p343 = scmp.ne.s32.totalorder %s331, %s332
    %p344 = scmp.eq.s32.totalorder %s28, 1
    %p345 = por %p343, %p344
    %p347 = scmp.ne.s32.totalorder %s332, %s346
    %p348 = scmp.eq.s32.totalorder %s28, 0
    %p349 = por %p347, %p348
    %s351 = sadd.s32 %s350, 1
    %p354 = scmp.eq.s32.totalorder %s22, 1
    %p355 = scmp.ne.s32.totalorder %s350, %s352
    %p356 = scmp.eq.s32.totalorder %s22, 0
    %p357 = por %p355, %p356
    %p358 = scmp.ne.s32.totalorder %s350, %s352
    %p359 = scmp.eq.s32.totalorder %s27, 1
    %p360 = por %p358, %p359
    %p361 = scmp.ne.s32.totalorder %s352, %s353
    %p362 = scmp.eq.s32.totalorder %s27, 0
    %p363 = por %p361, %p362
    %p364 = scmp.ne.s32.totalorder %s352, %s353
    %p365 = scmp.eq.s32.totalorder %s28, 1
    %p366 = por %p364, %p365
    %p368 = scmp.ne.s32.totalorder %s353, %s367
    %p369 = scmp.eq.s32.totalorder %s28, 0
    %p370 = por %p368, %p369
    %s371 = ssub.s32 %s22, %s29
    %p372 = scmp.eq.s32.totalorder %s371, 0
    %s374 = sadd.s32 %s373, 1
    %s375 = scalar_select %p372, %s373, %s374
    %p378 = pneg %p372
    %p379 = scmp.eq.s32.totalorder %s22, 1
    %p380 = por %p378, %p379
    %p381 = scmp.ne.s32.totalorder %s373, %s376
    %p382 = scmp.eq.s32.totalorder %s22, 0
    %p383 = por %p381, %p382
    %p384 = scmp.ne.s32.totalorder %s373, %s376
    %p385 = scmp.eq.s32.totalorder %s27, 1
    %p386 = por %p384, %p385
    %p387 = scmp.ne.s32.totalorder %s376, %s377
    %p388 = scmp.eq.s32.totalorder %s27, 0
    %p389 = por %p387, %p388
    %p390 = scmp.ne.s32.totalorder %s376, %s377
    %p391 = scmp.eq.s32.totalorder %s28, 1
    %p392 = por %p390, %p391
    %p394 = scmp.ne.s32.totalorder %s377, %s393
    %p395 = scmp.eq.s32.totalorder %s28, 0
    %p396 = por %p394, %p395
    %p397 = scmp.le.s32.totalorder 1, %s22
    %p398 = scmp.lt.s32.totalorder %s22, 3
    %p399 = pnand %p397, %p398
    %p400 = pneg %p399
    // Predicated region
    $region9: #{tpu_custom_call.1} parent=5 // pred_check
      _
    $region10: #{tpu_custom_call.1} parent=5 // pred_check_branch
      %402 = sbr.rel (%p399) target = $region12
    $region11: #{tpu_custom_call.1} parent=5 // pred_region
      %s403 = ssub.s32 %s22, 1
      // Predicated region
      $region13: #{tpu_custom_call.1} parent=11 // pred_check
        %p404 = pneg %p69
      $region14: #{tpu_custom_call.1} parent=11 // pred_check_branch
        %406 = sbr.rel (%p404) target = $region16
      $region15: #{tpu_custom_call.1} parent=11 // pred_region
        _
      $region16: #{tpu_custom_call.1} parent=11 // pred_fallthru
        _
      // Predicated region
      $region17: #{tpu_custom_call.1} parent=11 // pred_check
        %p407 = pneg %p90
      $region18: #{tpu_custom_call.1} parent=11 // pred_check_branch
        %409 = sbr.rel (%p407) target = $region20
      $region19: #{tpu_custom_call.1} parent=11 // pred_region
        _
      $region20: #{tpu_custom_call.1} parent=11 // pred_fallthru
        _
      // Predicated region
      $region21: #{tpu_custom_call.1} parent=11 // pred_check
        %p410 = pneg %p111
      $region22: #{tpu_custom_call.1} parent=11 // pred_check_branch
        %412 = sbr.rel (%p410) target = $region24
      $region23: #{tpu_custom_call.1} parent=11 // pred_region
        _
      $region24: #{tpu_custom_call.1} parent=11 // pred_fallthru
        _
      // Predicated region
      $region25: #{tpu_custom_call.1} parent=11 // pred_check
        %p413 = pneg %p132
      $region26: #{tpu_custom_call.1} parent=11 // pred_check_branch
        %415 = sbr.rel (%p413) target = $region28
      $region27: #{tpu_custom_call.1} parent=11 // pred_region
        _
      $region28: #{tpu_custom_call.1} parent=11 // pred_fallthru
        _
      // Predicated region
      $region29: #{tpu_custom_call.1} parent=11 // pred_check
        %p416 = pneg %p153
      $region30: #{tpu_custom_call.1} parent=11 // pred_check_branch
        %418 = sbr.rel (%p416) target = $region32
      $region31: #{tpu_custom_call.1} parent=11 // pred_region
        _
      $region32: #{tpu_custom_call.1} parent=11 // pred_fallthru
        _
      // Predicated region
      $region33: #{tpu_custom_call.1} parent=11 // pred_check
        %p419 = pneg %p174
      $region34: #{tpu_custom_call.1} parent=11 // pred_check_branch
        %421 = sbr.rel (%p419) target = $region36
      $region35: #{tpu_custom_call.1} parent=11 // pred_region
        _
      $region36: #{tpu_custom_call.1} parent=11 // pred_fallthru
        _
      // Predicated region
      $region37: #{tpu_custom_call.1} parent=11 // pred_check
        %p422 = pneg %p195
      $region38: #{tpu_custom_call.1} parent=11 // pred_check_branch
        %424 = sbr.rel (%p422) target = $region40
      $region39: #{tpu_custom_call.1} parent=11 // pred_region
        _
      $region40: #{tpu_custom_call.1} parent=11 // pred_fallthru
        _
      // Predicated region
      $region41: #{tpu_custom_call.1} parent=11 // pred_check
        %p425 = pneg %p216
      $region42: #{tpu_custom_call.1} parent=11 // pred_check_branch
        %427 = sbr.rel (%p425) target = $region44
      $region43: #{tpu_custom_call.1} parent=11 // pred_region
        _
      $region44: #{tpu_custom_call.1} parent=11 // pred_fallthru
        _
      // Predicated region
      $region45: #{tpu_custom_call.1} parent=11 // pred_check
        %p428 = pneg %p237
      $region46: #{tpu_custom_call.1} parent=11 // pred_check_branch
        %430 = sbr.rel (%p428) target = $region48
      $region47: #{tpu_custom_call.1} parent=11 // pred_region
        _
      $region48: #{tpu_custom_call.1} parent=11 // pred_fallthru
        _
      // Predicated region
      $region49: #{tpu_custom_call.1} parent=11 // pred_check
        %p431 = pneg %p258
      $region50: #{tpu_custom_call.1} parent=11 // pred_check_branch
        %433 = sbr.rel (%p431) target = $region52
      $region51: #{tpu_custom_call.1} parent=11 // pred_region
        _
      $region52: #{tpu_custom_call.1} parent=11 // pred_fallthru
        _
      // Predicated region
      $region53: #{tpu_custom_call.1} parent=11 // pred_check
        %p434 = pneg %p279
      $region54: #{tpu_custom_call.1} parent=11 // pred_check_branch
        %436 = sbr.rel (%p434) target = $region56
      $region55: #{tpu_custom_call.1} parent=11 // pred_region
        _
      $region56: #{tpu_custom_call.1} parent=11 // pred_fallthru
        _
      // Predicated region
      $region57: #{tpu_custom_call.1} parent=11 // pred_check
        %p437 = pneg %p300
      $region58: #{tpu_custom_call.1} parent=11 // pred_check_branch
        %439 = sbr.rel (%p437) target = $region60
      $region59: #{tpu_custom_call.1} parent=11 // pred_region
        _
      $region60: #{tpu_custom_call.1} parent=11 // pred_fallthru
        _
      // Predicated region
      $region61: #{tpu_custom_call.1} parent=11 // pred_check
        %p440 = pneg %p321
      $region62: #{tpu_custom_call.1} parent=11 // pred_check_branch
        %442 = sbr.rel (%p440) target = $region64
      $region63: #{tpu_custom_call.1} parent=11 // pred_region
        _
      $region64: #{tpu_custom_call.1} parent=11 // pred_fallthru
        _
      // Predicated region
      $region65: #{tpu_custom_call.1} parent=11 // pred_check
        %p443 = pneg %p342
      $region66: #{tpu_custom_call.1} parent=11 // pred_check_branch
        %445 = sbr.rel (%p443) target = $region68
      $region67: #{tpu_custom_call.1} parent=11 // pred_region
        _
      $region68: #{tpu_custom_call.1} parent=11 // pred_fallthru
        _
      // Predicated region
      $region69: #{tpu_custom_call.1} parent=11 // pred_check
        %p446 = pneg %p363
      $region70: #{tpu_custom_call.1} parent=11 // pred_check_branch
        %448 = sbr.rel (%p446) target = $region72
      $region71: #{tpu_custom_call.1} parent=11 // pred_region
        _
      $region72: #{tpu_custom_call.1} parent=11 // pred_fallthru
        _
    $region12: #{tpu_custom_call.1} parent=5 // pred_fallthru
      _
    %p449 = scmp.lt.s32.totalorder %s22, 2
    // Predicated region
    $region73: #{tpu_custom_call.1} parent=5 // pred_check
      %p450 = pneg %p449
    $region74: #{tpu_custom_call.1} parent=5 // pred_check_branch
      %452 = sbr.rel (%p450) target = $region76
    $region75: #{tpu_custom_call.1} parent=5 // pred_region
      // Predicated region
      $region77: #{tpu_custom_call.1} parent=75 // pred_check
        %p453 = pneg %p42
      $region78: #{tpu_custom_call.1} parent=75 // pred_check_branch
        %455 = sbr.rel (%p453) target = $region80
      $region79: #{tpu_custom_call.1} parent=75 // pred_region
        %p456 = scmp.lt.s32.totalorder %s22, 1
        %s457 = scalar_select %p456, %s22, 1
        %s458 = smul.addr %s457, 32
        %s459 = smul.addr %s458, 4
        %s460 = scalar_lea.vmem %s0, %s459
      $region80: #{tpu_custom_call.1} parent=75 // pred_fallthru
        _
    $region76: #{tpu_custom_call.1} parent=5 // pred_fallthru
      _
    %p461 = scmp.le.s32.totalorder 1, %s22
    %p462 = scmp.lt.s32.totalorder %s22, 3
    %p463 = pnand %p461, %p462
    %p464 = pneg %p463
    // Predicated region
    $region81: #{tpu_custom_call.1} parent=5 // pred_check
      _
    $region82: #{tpu_custom_call.1} parent=5 // pred_check_branch
      %466 = sbr.rel (%p463) target = $region84
    $region83: #{tpu_custom_call.1} parent=5 // pred_region
      %s467 = ssub.s32 %s22, 1
      %p468 = scmp.lt.s32.totalorder %s27, 1
      %s469 = scalar_select %p468, %s27, 1
      %s470 = smul.addr %s469, 32
      %s471 = smul.addr %s470, 4
      %s472 = scalar_lea.vmem %s0, %s471
      %p473 = pneg %p48
      %p474 = pneg %p45
      %p475 = pneg %p69
      %p476 = pneg %p66
      %p477 = pneg %p90
      %p478 = pneg %p87
      %p479 = pneg %p111
      %p480 = pneg %p108
      %p481 = pneg %p132
      %p482 = pneg %p129
      %p483 = pneg %p153
      %p484 = pneg %p150
      %p485 = pneg %p174
      %p486 = pneg %p171
      %p487 = pneg %p195
      %p488 = pneg %p192
      %p489 = pneg %p216
      %p490 = pneg %p213
      %p491 = pneg %p237
      %p492 = pneg %p234
      %p493 = pneg %p258
      %p494 = pneg %p255
      %p495 = pneg %p279
      %p496 = pneg %p276
      %p497 = pneg %p300
      %p498 = pneg %p297
      %p499 = pneg %p321
      %p500 = pneg %p318
      %p501 = pneg %p342
      %p502 = pneg %p339
      %p503 = pneg %p363
      %p504 = pneg %p360
      %p505 = pneg %p389
      %p506 = pneg %p386
      %p507 = scmp.lt.s32.totalorder %s27, 1
      %s508 = scalar_select %p507, %s27, 1
      %s509 = smul.addr %s508, 28
      %s510 = smul.addr %s509, 8
      %s511 = scalar_lea.vmem %s16, %s510
      %p512 = scmp.lt.s32.totalorder %s27, 1
      %s513 = scalar_select %p512, %s27, 1
      %s514 = smul.addr %s513, 32
      %s515 = smul.addr %s514, 4
      %s516 = scalar_lea.vmem %s0, %s515
      %p517 = scmp.lt.s32.totalorder %s27, 1
      %s518 = scalar_select %p517, %s27, 1
      %s519 = smul.addr %s518, 28
      %s520 = smul.addr %s519, 8
      %s521 = scalar_lea.vmem %s16, %s520
      %v523 = vld [vmem:[%s516] sm:$0xf]
      %v524 = vld [vmem:[%s516 + $0x4] sm:$0xf]
      %v525 = vld [vmem:[%s516 + $0x8] sm:$0xf]
      %v526 = vld [vmem:[%s516 + $0xc] sm:$0xf]
      %v527 = vld [vmem:[%s516 + $0x10] sm:$0xf]
      %v528 = vld [vmem:[%s516 + $0x14] sm:$0xf]
      %v529 = vld [vmem:[%s516 + $0x18] sm:$0xf]
      %v530 = vld [vmem:[%s516 + $0x1c] sm:$0xf]
      %v531 = vld [vmem:[%s516 + $0x20] sm:$0xf]
      %v532 = vld [vmem:[%s516 + $0x24] sm:$0xf]
      %v533 = vld [vmem:[%s516 + $0x28] sm:$0xf]
      %v534 = vld [vmem:[%s516 + $0x2c] sm:$0xf]
      %v535 = vld [vmem:[%s516 + $0x30] sm:$0xf]
      %v536 = vld [vmem:[%s516 + $0x34] sm:$0xf]
      %v537 = vld [vmem:[%s516 + $0x38] sm:$0xf]
      %v538 = vld [vmem:[%s516 + $0x3c] sm:$0xf]
      %v539 = vld [vmem:[%s516 + $0x40] sm:$0xf]
      %v540 = vld [vmem:[%s516 + $0x44] sm:$0xf]
      %v541 = vld [vmem:[%s516 + $0x48] sm:$0xf]
      %v542 = vld [vmem:[%s516 + $0x4c] sm:$0xf]
      %v543 = vld [vmem:[%s516 + $0x50] sm:$0xf]
      %v544 = vld [vmem:[%s516 + $0x54] sm:$0xf]
      %v545 = vld [vmem:[%s516 + $0x58] sm:$0xf]
      %v546 = vld [vmem:[%s516 + $0x5c] sm:$0xf]
      %v547 = vld [vmem:[%s516 + $0x60] sm:$0xf]
      %v548 = vld [vmem:[%s516 + $0x64] sm:$0xf]
      %v549 = vld [vmem:[%s516 + $0x68] sm:$0xf]
      %v550 = vld [vmem:[%s516 + $0x6c] sm:$0xf]
      %v551 = vld [vmem:[%s516 + $0x70] sm:$0xf]
      %v552 = vld [vmem:[%s516 + $0x74] sm:$0xf]
      %v553 = vld [vmem:[%s516 + $0x78] sm:$0xf]
      %v554 = vld [vmem:[%s516 + $0x7c] sm:$0xf]
      %v555 = vld [vmem:[%s1] sm:$0x3]
      %v588 = vunpack.c.l.b16 %v523
      %v589 = vunpack.c.l.b16 %v524
      %v590 = vunpack.c.l.b16 %v525
      %v591 = vunpack.c.l.b16 %v526
      %v592 = vunpack.c.l.b16 %v527
      %v593 = vunpack.c.l.b16 %v528
      %v594 = vunpack.c.l.b16 %v529
      %v595 = vunpack.c.l.b16 %v530
      %v596 = vunpack.c.l.b16 %v531
      %v597 = vunpack.c.l.b16 %v532
      %v598 = vunpack.c.l.b16 %v533
      %v599 = vunpack.c.l.b16 %v534
      %v600 = vunpack.c.l.b16 %v535
      %v601 = vunpack.c.l.b16 %v536
      %v602 = vunpack.c.l.b16 %v537
      %v603 = vunpack.c.l.b16 %v538
      %v604 = vunpack.c.l.b16 %v539
      %v605 = vunpack.c.l.b16 %v540
      %v606 = vunpack.c.l.b16 %v541
      %v607 = vunpack.c.l.b16 %v542
      %v608 = vunpack.c.l.b16 %v543
      %v609 = vunpack.c.l.b16 %v544
      %v610 = vunpack.c.l.b16 %v545
      %v611 = vunpack.c.l.b16 %v546
      %v612 = vunpack.c.l.b16 %v547
      %v613 = vunpack.c.l.b16 %v548
      %v614 = vunpack.c.l.b16 %v549
      %v615 = vunpack.c.l.b16 %v550
      %v616 = vunpack.c.l.b16 %v551
      %v617 = vunpack.c.l.b16 %v552
      %v618 = vunpack.c.l.b16 %v553
      %v619 = vunpack.c.l.b16 %v554
      %v620 = vpack.c.b16 %v589, %v588
      %v621 = vpack.c.b16 %v591, %v590
      %v622 = vpack.c.b16 %v593, %v592
      %v623 = vpack.c.b16 %v595, %v594
      %v624 = vpack.c.b16 %v597, %v596
      %v625 = vpack.c.b16 %v599, %v598
      %v626 = vpack.c.b16 %v601, %v600
      %v627 = vpack.c.b16 %v603, %v602
      %v628 = vpack.c.b16 %v605, %v604
      %v629 = vpack.c.b16 %v607, %v606
      %v630 = vpack.c.b16 %v609, %v608
      %v631 = vpack.c.b16 %v611, %v610
      %v632 = vpack.c.b16 %v613, %v612
      %v633 = vpack.c.b16 %v615, %v614
      %v634 = vpack.c.b16 %v617, %v616
      %v635 = vpack.c.b16 %v619, %v618
      %vm636 = vcmask 31744
      %v638 = vsel %vm636, %v620, 0
      %v641 = vsel %vm636, %v621, 0
      %v644 = vsel %vm636, %v622, 0
      %v647 = vsel %vm636, %v623, 0
      %v650 = vsel %vm636, %v624, 0
      %v653 = vsel %vm636, %v625, 0
      %v656 = vsel %vm636, %v626, 0
      %v659 = vsel %vm636, %v627, 0
      %v662 = vsel %vm636, %v628, 0
      %v665 = vsel %vm636, %v629, 0
      %v668 = vsel %vm636, %v630, 0
      %v671 = vsel %vm636, %v631, 0
      %v674 = vsel %vm636, %v632, 0
      %v677 = vsel %vm636, %v633, 0
      %v680 = vsel %vm636, %v634, 0
      %v683 = vsel %vm636, %v635, 0
      %vm685 = vcmask 1041408
      %v687 = vsel %vm685, %v555, 0
      %689 = vmatprep.subr.bf16.mxu0 0
      %690 = vmatpush1.bf16.msra.mxu0 %v687
      %691 = vmatprep.subr.bf16.mxu0 0
      %692 = vmatpush1.bf16.msra.mxu0 0
      %693 = vmatprep.subr.bf16.mxu0 0
      %694 = vmatpush1.bf16.msra.mxu0 0
      %695 = vmatprep.subr.bf16.mxu0 0
      %696 = vmatpush1.bf16.msra.mxu0 0
      %697 = vmatprep.subr.bf16.mxu0 0
      %698 = vmatpush1.bf16.msra.mxu0 0
      %699 = vmatprep.subr.bf16.mxu0 0
      %700 = vmatpush1.bf16.msra.mxu0 0
      %701 = vmatprep.subr.bf16.mxu0 0
      %702 = vmatpush1.bf16.msra.mxu0 0
      %703 = vmatprep.subr.bf16.mxu0 0
      %704 = vmatpush1.bf16.msra.mxu0 0
      %705 = vmatprep.subr.bf16.mxu0 0
      %706 = vmatpush1.bf16.msra.mxu0 0
      %707 = vmatprep.subr.bf16.mxu0 0
      %708 = vmatpush1.bf16.msra.mxu0 0
      %709 = vmatprep.subr.bf16.mxu0 0
      %710 = vmatpush1.bf16.msra.mxu0 0
      %711 = vmatprep.subr.bf16.mxu0 0
      %712 = vmatpush1.bf16.msra.mxu0 0
      %713 = vmatprep.subr.bf16.mxu0 0
      %714 = vmatpush1.bf16.msra.mxu0 0
      %715 = vmatprep.subr.bf16.mxu0 0
      %716 = vmatpush1.bf16.msra.mxu0 0
      %717 = vmatprep.subr.bf16.mxu0 0
      %718 = vmatpush1.bf16.msra.mxu0 0
      %719 = vmatprep.subr.bf16.mxu0 0
      %720 = vmatpush1.bf16.msra.mxu0 0
      %721 = vmatprep.mubr.bf16.mxu0 0
      %722 = vmatmul.mubr.bf16.gmra.mrb[0].mxu0 %v638
      %v723 = vpop.f32.mrb[0].mxu0
      %v724 = vadd.f32 0.0, %v723
      %v725 = vpop.f32.mrb[0].mxu0
      %v726 = vpop.f32.mrb[0].mxu0
      %v727 = vadd.f32 0.0, %v726
      %v728 = vpop.f32.mrb[0].mxu0
      %729 = vmatprep.mubr.bf16.mxu0 0
      %730 = vmatmul.mubr.bf16.gmra.mrb[0].mxu0 %v641
      %v731 = vpop.f32.mrb[0].mxu0
      %v732 = vadd.f32 0.0, %v731
      %v733 = vpop.f32.mrb[0].mxu0
      %v734 = vpop.f32.mrb[0].mxu0
      %v735 = vadd.f32 0.0, %v734
      %v736 = vpop.f32.mrb[0].mxu0
      %737 = vmatprep.mubr.bf16.mxu0 0
      %738 = vmatmul.mubr.bf16.gmra.mrb[0].mxu0 %v644
      %v739 = vpop.f32.mrb[0].mxu0
      %v740 = vadd.f32 0.0, %v739
      %v741 = vpop.f32.mrb[0].mxu0
      %v742 = vpop.f32.mrb[0].mxu0
      %v743 = vadd.f32 0.0, %v742
      %v744 = vpop.f32.mrb[0].mxu0
      %745 = vmatprep.mubr.bf16.mxu0 0
      %746 = vmatmul.mubr.bf16.gmra.mrb[0].mxu0 %v647
      %v747 = vpop.f32.mrb[0].mxu0
      %v748 = vadd.f32 0.0, %v747
      %v749 = vpop.f32.mrb[0].mxu0
      %v750 = vpop.f32.mrb[0].mxu0
      %v751 = vadd.f32 0.0, %v750
      %v752 = vpop.f32.mrb[0].mxu0
      %753 = vmatprep.mubr.bf16.mxu0 0
      %754 = vmatmul.mubr.bf16.gmra.mrb[0].mxu0 %v650
      %v755 = vpop.f32.mrb[0].mxu0
      %v756 = vadd.f32 0.0, %v755
      %v757 = vpop.f32.mrb[0].mxu0
      %v758 = vpop.f32.mrb[0].mxu0
      %v759 = vadd.f32 0.0, %v758
      %v760 = vpop.f32.mrb[0].mxu0
      %761 = vmatprep.mubr.bf16.mxu0 0
      %762 = vmatmul.mubr.bf16.gmra.mrb[0].mxu0 %v653
      %v763 = vpop.f32.mrb[0].mxu0
      %v764 = vadd.f32 0.0, %v763
      %v765 = vpop.f32.mrb[0].mxu0
      %v766 = vpop.f32.mrb[0].mxu0
      %v767 = vadd.f32 0.0, %v766
      %v768 = vpop.f32.mrb[0].mxu0
      %769 = vmatprep.mubr.bf16.mxu0 0
      %770 = vmatmul.mubr.bf16.gmra.mrb[0].mxu0 %v656
      %v771 = vpop.f32.mrb[0].mxu0
      %v772 = vadd.f32 0.0, %v771
      %v773 = vpop.f32.mrb[0].mxu0
      %v774 = vpop.f32.mrb[0].mxu0
      %v775 = vadd.f32 0.0, %v774
      %v776 = vpop.f32.mrb[0].mxu0
      %777 = vmatprep.mubr.bf16.mxu0 0
      %778 = vmatmul.mubr.bf16.gmra.mrb[0].mxu0 %v659
      %v779 = vpop.f32.mrb[0].mxu0
      %v780 = vadd.f32 0.0, %v779
      %v781 = vpop.f32.mrb[0].mxu0
      %v782 = vpop.f32.mrb[0].mxu0
      %v783 = vadd.f32 0.0, %v782
      %v784 = vpop.f32.mrb[0].mxu0
      %785 = vmatprep.mubr.bf16.mxu0 0
      %786 = vmatmul.mubr.bf16.gmra.mrb[0].mxu0 %v662
      %v787 = vpop.f32.mrb[0].mxu0
      %v788 = vadd.f32 0.0, %v787
      %v789 = vpop.f32.mrb[0].mxu0
      %v790 = vpop.f32.mrb[0].mxu0
      %v791 = vadd.f32 0.0, %v790
      %v792 = vpop.f32.mrb[0].mxu0
      %793 = vmatprep.mubr.bf16.mxu0 0
      %794 = vmatmul.mubr.bf16.gmra.mrb[0].mxu0 %v665
      %v795 = vpop.f32.mrb[0].mxu0
      %v796 = vadd.f32 0.0, %v795
      %v797 = vpop.f32.mrb[0].mxu0
      %v798 = vpop.f32.mrb[0].mxu0
      %v799 = vadd.f32 0.0, %v798
      %v800 = vpop.f32.mrb[0].mxu0
      %801 = vmatprep.mubr.bf16.mxu0 0
      %802 = vmatmul.mubr.bf16.gmra.mrb[0].mxu0 %v668
      %v803 = vpop.f32.mrb[0].mxu0
      %v804 = vadd.f32 0.0, %v803
      %v805 = vpop.f32.mrb[0].mxu0
      %v806 = vpop.f32.mrb[0].mxu0
      %v807 = vadd.f32 0.0, %v806
      %v808 = vpop.f32.mrb[0].mxu0
      %809 = vmatprep.mubr.bf16.mxu0 0
      %810 = vmatmul.mubr.bf16.gmra.mrb[0].mxu0 %v671
      %v811 = vpop.f32.mrb[0].mxu0
      %v812 = vadd.f32 0.0, %v811
      %v813 = vpop.f32.mrb[0].mxu0
      %v814 = vpop.f32.mrb[0].mxu0
      %v815 = vadd.f32 0.0, %v814
      %v816 = vpop.f32.mrb[0].mxu0
      %817 = vmatprep.mubr.bf16.mxu0 0
      %818 = vmatmul.mubr.bf16.gmra.mrb[0].mxu0 %v674
      %v819 = vpop.f32.mrb[0].mxu0
      %v820 = vadd.f32 0.0, %v819
      %v821 = vpop.f32.mrb[0].mxu0
      %v822 = vpop.f32.mrb[0].mxu0
      %v823 = vadd.f32 0.0, %v822
      %v824 = vpop.f32.mrb[0].mxu0
      %825 = vmatprep.mubr.bf16.mxu0 0
      %826 = vmatmul.mubr.bf16.gmra.mrb[0].mxu0 %v677
      %v827 = vpop.f32.mrb[0].mxu0
      %v828 = vadd.f32 0.0, %v827
      %v829 = vpop.f32.mrb[0].mxu0
      %v830 = vpop.f32.mrb[0].mxu0
      %v831 = vadd.f32 0.0, %v830
      %v832 = vpop.f32.mrb[0].mxu0
      %833 = vmatprep.mubr.bf16.mxu0 0
      %834 = vmatmul.mubr.bf16.gmra.mrb[0].mxu0 %v680
      %v835 = vpop.f32.mrb[0].mxu0
      %v836 = vadd.f32 0.0, %v835
      %v837 = vpop.f32.mrb[0].mxu0
      %v838 = vpop.f32.mrb[0].mxu0
      %v839 = vadd.f32 0.0, %v838
      %v840 = vpop.f32.mrb[0].mxu0
      %841 = vmatprep.mubr.bf16.mxu0 0
      %842 = vmatmul.mubr.bf16.gmra.mrb[0].mxu0 %v683
      %v843 = vpop.f32.mrb[0].mxu0
      %v844 = vadd.f32 0.0, %v843
      %v845 = vpop.f32.mrb[0].mxu0
      %v846 = vpop.f32.mrb[0].mxu0
      %v847 = vadd.f32 0.0, %v846
      %v848 = vpop.f32.mrb[0].mxu0
      %849 = vdwg.mxu0
      %v850 = vld [vmem:[%s2] sm:$0x1]
      %v852 = vlaneseq
      %v853 = vshrl.u32 %v852, 7
      %v854 = vsub.s32 0, %v853
      %v855 = vrot.slane %v850, %v854
      %v857 = vmul.f32 %v724, %v855
      %v858 = vmul.f32 %v727, %v855
      %v859 = vmul.f32 %v732, %v855
      %v860 = vmul.f32 %v735, %v855
      %v861 = vmul.f32 %v740, %v855
      %v862 = vmul.f32 %v743, %v855
      %v863 = vmul.f32 %v748, %v855
      %v864 = vmul.f32 %v751, %v855
      %v865 = vmul.f32 %v756, %v855
      %v866 = vmul.f32 %v759, %v855
      %v867 = vmul.f32 %v764, %v855
      %v868 = vmul.f32 %v767, %v855
      %v869 = vmul.f32 %v772, %v855
      %v870 = vmul.f32 %v775, %v855
      %v871 = vmul.f32 %v780, %v855
      %v872 = vmul.f32 %v783, %v855
      %v873 = vmul.f32 %v788, %v855
      %v874 = vmul.f32 %v791, %v855
      %v875 = vmul.f32 %v796, %v855
      %v876 = vmul.f32 %v799, %v855
      %v877 = vmul.f32 %v804, %v855
      %v878 = vmul.f32 %v807, %v855
      %v879 = vmul.f32 %v812, %v855
      %v880 = vmul.f32 %v815, %v855
      %v881 = vmul.f32 %v820, %v855
      %v882 = vmul.f32 %v823, %v855
      %v883 = vmul.f32 %v828, %v855
      %v884 = vmul.f32 %v831, %v855
      %v885 = vmul.f32 %v836, %v855
      %v886 = vmul.f32 %v839, %v855
      %v887 = vmul.f32 %v844, %v855
      %v888 = vmul.f32 %v847, %v855
      %v889 = vld [vmem:[%s3] sm:$0x1]
      %v891 = vlaneseq
      %v892 = vshrl.u32 %v891, 7
      %v893 = vsub.s32 0, %v892
      %v894 = vrot.slane %v889, %v893
      %v896 = vadd.f32 %v857, %v894
      %v897 = vadd.f32 %v858, %v894
      %v898 = vadd.f32 %v859, %v894
      %v899 = vadd.f32 %v860, %v894
      %v900 = vadd.f32 %v861, %v894
      %v901 = vadd.f32 %v862, %v894
      %v902 = vadd.f32 %v863, %v894
      %v903 = vadd.f32 %v864, %v894
      %v904 = vadd.f32 %v865, %v894
      %v905 = vadd.f32 %v866, %v894
      %v906 = vadd.f32 %v867, %v894
      %v907 = vadd.f32 %v868, %v894
      %v908 = vadd.f32 %v869, %v894
      %v909 = vadd.f32 %v870, %v894
      %v910 = vadd.f32 %v871, %v894
      %v911 = vadd.f32 %v872, %v894
      %v912 = vadd.f32 %v873, %v894
      %v913 = vadd.f32 %v874, %v894
      %v914 = vadd.f32 %v875, %v894
      %v915 = vadd.f32 %v876, %v894
      %v916 = vadd.f32 %v877, %v894
      %v917 = vadd.f32 %v878, %v894
      %v918 = vadd.f32 %v879, %v894
      %v919 = vadd.f32 %v880, %v894
      %v920 = vadd.f32 %v881, %v894
      %v921 = vadd.f32 %v882, %v894
      %v922 = vadd.f32 %v883, %v894
      %v923 = vadd.f32 %v884, %v894
      %v924 = vadd.f32 %v885, %v894
      %v925 = vadd.f32 %v886, %v894
      %v926 = vadd.f32 %v887, %v894
      %v927 = vadd.f32 %v888, %v894
      %v928 = vmax.f32 %v896, 0.0
      %v929 = vmax.f32 %v897, 0.0
      %v930 = vmax.f32 %v898, 0.0
      %v931 = vmax.f32 %v899, 0.0
      %v932 = vmax.f32 %v900, 0.0
      %v933 = vmax.f32 %v901, 0.0
      %v934 = vmax.f32 %v902, 0.0
      %v935 = vmax.f32 %v903, 0.0
      %v936 = vmax.f32 %v904, 0.0
      %v937 = vmax.f32 %v905, 0.0
      %v938 = vmax.f32 %v906, 0.0
      %v939 = vmax.f32 %v907, 0.0
      %v940 = vmax.f32 %v908, 0.0
      %v941 = vmax.f32 %v909, 0.0
      %v942 = vmax.f32 %v910, 0.0
      %v943 = vmax.f32 %v911, 0.0
      %v944 = vmax.f32 %v912, 0.0
      %v945 = vmax.f32 %v913, 0.0
      %v946 = vmax.f32 %v914, 0.0
      %v947 = vmax.f32 %v915, 0.0
      %v948 = vmax.f32 %v916, 0.0
      %v949 = vmax.f32 %v917, 0.0
      %v950 = vmax.f32 %v918, 0.0
      %v951 = vmax.f32 %v919, 0.0
      %v952 = vmax.f32 %v920, 0.0
      %v953 = vmax.f32 %v921, 0.0
      %v954 = vmax.f32 %v922, 0.0
      %v955 = vmax.f32 %v923, 0.0
      %v956 = vmax.f32 %v924, 0.0
      %v957 = vmax.f32 %v925, 0.0
      %v958 = vmax.f32 %v926, 0.0
      %v959 = vmax.f32 %v927, 0.0
      %v960 = vpack.c.bf16 %v929, %v928
      %v961 = vpack.c.bf16 %v931, %v930
      %v962 = vpack.c.bf16 %v933, %v932
      %v963 = vpack.c.bf16 %v935, %v934
      %v964 = vpack.c.bf16 %v937, %v936
      %v965 = vpack.c.bf16 %v939, %v938
      %v966 = vpack.c.bf16 %v941, %v940
      %v967 = vpack.c.bf16 %v943, %v942
      %v968 = vpack.c.bf16 %v945, %v944
      %v969 = vpack.c.bf16 %v947, %v946
      %v970 = vpack.c.bf16 %v949, %v948
      %v971 = vpack.c.bf16 %v951, %v950
      %v972 = vpack.c.bf16 %v953, %v952
      %v973 = vpack.c.bf16 %v955, %v954
      %v974 = vpack.c.bf16 %v957, %v956
      %v975 = vpack.c.bf16 %v959, %v958
      %vm976 = vcmask 457728
      %977 = vst.msk [vmem:[#allocation2] sm:$0xff] %vm976, 0
      %978 = vst.msk [vmem:[#allocation2 + $0x8] sm:$0xff] %vm976, 0
      %979 = vst.msk [vmem:[#allocation2 + $0x10] sm:$0xff] %vm976, 0
      %980 = vst.msk [vmem:[#allocation2 + $0x18] sm:$0xff] %vm976, 0
      %981 = vst.msk [vmem:[#allocation2 + $0x20] sm:$0xff] %vm976, 0
      %982 = vst.msk [vmem:[#allocation2 + $0x28] sm:$0xff] %vm976, 0
      %983 = vst.msk [vmem:[#allocation2 + $0x30] sm:$0xff] %vm976, 0
      %984 = vst.msk [vmem:[#allocation2 + $0x38] sm:$0xff] %vm976, 0
      %985 = vst.msk [vmem:[#allocation2 + $0x40] sm:$0xff] %vm976, 0
      %986 = vst.msk [vmem:[#allocation2 + $0x48] sm:$0xff] %vm976, 0
      %987 = vst.msk [vmem:[#allocation2 + $0x50] sm:$0xff] %vm976, 0
      %988 = vst.msk [vmem:[#allocation2 + $0x58] sm:$0xff] %vm976, 0
      %989 = vst.msk [vmem:[#allocation2 + $0x60] sm:$0xff] %vm976, 0
      %990 = vst.msk [vmem:[#allocation2 + $0x68] sm:$0xff] %vm976, 0
      %991 = vst.msk [vmem:[#allocation2 + $0x70] sm:$0xff] %vm976, 0
      %992 = vst.msk [vmem:[#allocation2 + $0x78] sm:$0xff] %vm976, 0
      %v994 = vshrl.u32 %v960, 16
      %v996 = vrot.slane %v994, 6
      %v997 = vshll.u32 %v960, 16
      %v999 = vrot.slane %v997, 7
      %v1000 = vor.u32 %v996, %v999
      %v1002 = vshrl.u32 %v961, 16
      %v1004 = vrot.slane %v1002, 6
      %v1005 = vshll.u32 %v961, 16
      %v1007 = vrot.slane %v1005, 7
      %v1008 = vor.u32 %v1004, %v1007
      %v1010 = vshrl.u32 %v962, 16
      %v1012 = vrot.slane %v1010, 6
      %v1013 = vshll.u32 %v962, 16
      %v1015 = vrot.slane %v1013, 7
      %v1016 = vor.u32 %v1012, %v1015
      %v1018 = vshrl.u32 %v963, 16
      %v1020 = vrot.slane %v1018, 6
      %v1021 = vshll.u32 %v963, 16
      %v1023 = vrot.slane %v1021, 7
      %v1024 = vor.u32 %v1020, %v1023
      %v1026 = vshrl.u32 %v964, 16
      %v1028 = vrot.slane %v1026, 6
      %v1029 = vshll.u32 %v964, 16
      %v1031 = vrot.slane %v1029, 7
      %v1032 = vor.u32 %v1028, %v1031
      %v1034 = vshrl.u32 %v965, 16
      %v1036 = vrot.slane %v1034, 6
      %v1037 = vshll.u32 %v965, 16
      %v1039 = vrot.slane %v1037, 7
      %v1040 = vor.u32 %v1036, %v1039
      %v1042 = vshrl.u32 %v966, 16
      %v1044 = vrot.slane %v1042, 6
      %v1045 = vshll.u32 %v966, 16
      %v1047 = vrot.slane %v1045, 7
      %v1048 = vor.u32 %v1044, %v1047
      %v1050 = vshrl.u32 %v967, 16
      %v1052 = vrot.slane %v1050, 6
      %v1053 = vshll.u32 %v967, 16
      %v1055 = vrot.slane %v1053, 7
      %v1056 = vor.u32 %v1052, %v1055
      %v1058 = vshrl.u32 %v968, 16
      %v1060 = vrot.slane %v1058, 6
      %v1061 = vshll.u32 %v968, 16
      %v1063 = vrot.slane %v1061, 7
      %v1064 = vor.u32 %v1060, %v1063
      %v1066 = vshrl.u32 %v969, 16
      %v1068 = vrot.slane %v1066, 6
      %v1069 = vshll.u32 %v969, 16
      %v1071 = vrot.slane %v1069, 7
      %v1072 = vor.u32 %v1068, %v1071
      %v1074 = vshrl.u32 %v970, 16
      %v1076 = vrot.slane %v1074, 6
      %v1077 = vshll.u32 %v970, 16
      %v1079 = vrot.slane %v1077, 7
      %v1080 = vor.u32 %v1076, %v1079
      %v1082 = vshrl.u32 %v971, 16
      %v1084 = vrot.slane %v1082, 6
      %v1085 = vshll.u32 %v971, 16
      %v1087 = vrot.slane %v1085, 7
      %v1088 = vor.u32 %v1084, %v1087
      %v1090 = vshrl.u32 %v972, 16
      %v1092 = vrot.slane %v1090, 6
      %v1093 = vshll.u32 %v972, 16
      %v1095 = vrot.slane %v1093, 7
      %v1096 = vor.u32 %v1092, %v1095
      %v1098 = vshrl.u32 %v973, 16
      %v1100 = vrot.slane %v1098, 6
      %v1101 = vshll.u32 %v973, 16
      %v1103 = vrot.slane %v1101, 7
      %v1104 = vor.u32 %v1100, %v1103
      %v1106 = vshrl.u32 %v974, 16
      %v1108 = vrot.slane %v1106, 6
      %v1109 = vshll.u32 %v974, 16
      %v1111 = vrot.slane %v1109, 7
      %v1112 = vor.u32 %v1108, %v1111
      %v1114 = vshrl.u32 %v975, 16
      %v1116 = vrot.slane %v1114, 6
      %v1117 = vshll.u32 %v975, 16
      %v1119 = vrot.slane %v1117, 7
      %v1120 = vor.u32 %v1116, %v1119
      %1121 = vrot.lane.b32.xlu0 %v1000, 120
      %v1122 = vpop.permute.xlu0 %1121
      %1123 = vrot.lane.b32.xlu0 %v1008, 120
      %v1124 = vpop.permute.xlu0 %1123
      %1125 = vrot.lane.b32.xlu0 %v1016, 120
      %v1126 = vpop.permute.xlu0 %1125
      %1127 = vrot.lane.b32.xlu0 %v1024, 120
      %v1128 = vpop.permute.xlu0 %1127
      %1129 = vrot.lane.b32.xlu0 %v1032, 120
      %v1130 = vpop.permute.xlu0 %1129
      %1131 = vrot.lane.b32.xlu0 %v1040, 120
      %v1132 = vpop.permute.xlu0 %1131
      %1133 = vrot.lane.b32.xlu0 %v1048, 120
      %v1134 = vpop.permute.xlu0 %1133
      %1135 = vrot.lane.b32.xlu0 %v1056, 120
      %v1136 = vpop.permute.xlu0 %1135
      %1137 = vrot.lane.b32.xlu0 %v1064, 120
      %v1138 = vpop.permute.xlu0 %1137
      %1139 = vrot.lane.b32.xlu0 %v1072, 120
      %v1140 = vpop.permute.xlu0 %1139
      %1141 = vrot.lane.b32.xlu0 %v1080, 120
      %v1142 = vpop.permute.xlu0 %1141
      %1143 = vrot.lane.b32.xlu0 %v1088, 120
      %v1144 = vpop.permute.xlu0 %1143
      %1145 = vrot.lane.b32.xlu0 %v1096, 120
      %v1146 = vpop.permute.xlu0 %1145
      %1147 = vrot.lane.b32.xlu0 %v1104, 120
      %v1148 = vpop.permute.xlu0 %1147
      %1149 = vrot.lane.b32.xlu0 %v1112, 120
      %v1150 = vpop.permute.xlu0 %1149
      %1151 = vrot.lane.b32.xlu0 %v1120, 120
      %v1152 = vpop.permute.xlu0 %1151
      %vm1169 = vcmask 64513
      %vm1170 = vsmask.f32 7942
      %vm1171 = vmand %vm1169, %vm1170
      %v1172 = vld [vmem:[#allocation2] sm:$0xfe]
      %v1173 = vsel %vm1171, %v1122, %v1172
      %1174 = vst [vmem:[#allocation2] sm:$0xfe] %v1173
      %v1175 = vld [vmem:[#allocation2 + $0x8] sm:$0xfe]
      %v1176 = vsel %vm1171, %v1124, %v1175
      %1177 = vst [vmem:[#allocation2 + $0x8] sm:$0xfe] %v1176
      %v1178 = vld [vmem:[#allocation2 + $0x10] sm:$0xfe]
      %v1179 = vsel %vm1171, %v1126, %v1178
      %1180 = vst [vmem:[#allocation2 + $0x10] sm:$0xfe] %v1179
      %v1181 = vld [vmem:[#allocation2 + $0x18] sm:$0xfe]
      %v1182 = vsel %vm1171, %v1128, %v1181
      %1183 = vst [vmem:[#allocation2 + $0x18] sm:$0xfe] %v1182
      %v1184 = vld [vmem:[#allocation2 + $0x20] sm:$0xfe]
      %v1185 = vsel %vm1171, %v1130, %v1184
      %1186 = vst [vmem:[#allocation2 + $0x20] sm:$0xfe] %v1185
      %v1187 = vld [vmem:[#allocation2 + $0x28] sm:$0xfe]
      %v1188 = vsel %vm1171, %v1132, %v1187
      %1189 = vst [vmem:[#allocation2 + $0x28] sm:$0xfe] %v1188
      %v1190 = vld [vmem:[#allocation2 + $0x30] sm:$0xfe]
      %v1191 = vsel %vm1171, %v1134, %v1190
      %1192 = vst [vmem:[#allocation2 + $0x30] sm:$0xfe] %v1191
      %v1193 = vld [vmem:[#allocation2 + $0x38] sm:$0xfe]
      %v1194 = vsel %vm1171, %v1136, %v1193
      %1195 = vst [vmem:[#allocation2 + $0x38] sm:$0xfe] %v1194
      %v1196 = vld [vmem:[#allocation2 + $0x40] sm:$0xfe]
      %v1197 = vsel %vm1171, %v1138, %v1196
      %1198 = vst [vmem:[#allocation2 + $0x40] sm:$0xfe] %v1197
      %v1199 = vld [vmem:[#allocation2 + $0x48] sm:$0xfe]
      %v1200 = vsel %vm1171, %v1140, %v1199
      %1201 = vst [vmem:[#allocation2 + $0x48] sm:$0xfe] %v1200
      %v1202 = vld [vmem:[#allocation2 + $0x50] sm:$0xfe]
      %v1203 = vsel %vm1171, %v1142, %v1202
      %1204 = vst [vmem:[#allocation2 + $0x50] sm:$0xfe] %v1203
      %v1205 = vld [vmem:[#allocation2 + $0x58] sm:$0xfe]
      %v1206 = vsel %vm1171, %v1144, %v1205
      %1207 = vst [vmem:[#allocation2 + $0x58] sm:$0xfe] %v1206
      %v1208 = vld [vmem:[#allocation2 + $0x60] sm:$0xfe]
      %v1209 = vsel %vm1171, %v1146, %v1208
      %1210 = vst [vmem:[#allocation2 + $0x60] sm:$0xfe] %v1209
      %v1211 = vld [vmem:[#allocation2 + $0x68] sm:$0xfe]
      %v1212 = vsel %vm1171, %v1148, %v1211
      %1213 = vst [vmem:[#allocation2 + $0x68] sm:$0xfe] %v1212
      %v1214 = vld [vmem:[#allocation2 + $0x70] sm:$0xfe]
      %v1215 = vsel %vm1171, %v1150, %v1214
      %1216 = vst [vmem:[#allocation2 + $0x70] sm:$0xfe] %v1215
      %v1217 = vld [vmem:[#allocation2 + $0x78] sm:$0xfe]
      %v1218 = vsel %vm1171, %v1152, %v1217
      %1219 = vst [vmem:[#allocation2 + $0x78] sm:$0xfe] %v1218
      %v1236 = vrot.slane %v960, 7
      %v1237 = vrot.slane %v961, 7
      %v1238 = vrot.slane %v962, 7
      %v1239 = vrot.slane %v963, 7
      %v1240 = vrot.slane %v964, 7
      %v1241 = vrot.slane %v965, 7
      %v1242 = vrot.slane %v966, 7
      %v1243 = vrot.slane %v967, 7
      %v1244 = vrot.slane %v968, 7
      %v1245 = vrot.slane %v969, 7
      %v1246 = vrot.slane %v970, 7
      %v1247 = vrot.slane %v971, 7
      %v1248 = vrot.slane %v972, 7
      %v1249 = vrot.slane %v973, 7
      %v1250 = vrot.slane %v974, 7
      %v1251 = vrot.slane %v975, 7
      %vm1268 = vcmask 130113
      %1269 = vst.msk [vmem:[#allocation2] sm:$0xfe] %vm1268, %v1236
      %1270 = vst.msk [vmem:[#allocation2 + $0x8] sm:$0xfe] %vm1268, %v1237
      %1271 = vst.msk [vmem:[#allocation2 + $0x10] sm:$0xfe] %vm1268, %v1238
      %1272 = vst.msk [vmem:[#allocation2 + $0x18] sm:$0xfe] %vm1268, %v1239
      %1273 = vst.msk [vmem:[#allocation2 + $0x20] sm:$0xfe] %vm1268, %v1240
      %1274 = vst.msk [vmem:[#allocation2 + $0x28] sm:$0xfe] %vm1268, %v1241
      %1275 = vst.msk [vmem:[#allocation2 + $0x30] sm:$0xfe] %vm1268, %v1242
      %1276 = vst.msk [vmem:[#allocation2 + $0x38] sm:$0xfe] %vm1268, %v1243
      %1277 = vst.msk [vmem:[#allocation2 + $0x40] sm:$0xfe] %vm1268, %v1244
      %1278 = vst.msk [vmem:[#allocation2 + $0x48] sm:$0xfe] %vm1268, %v1245
      %1279 = vst.msk [vmem:[#allocation2 + $0x50] sm:$0xfe] %vm1268, %v1246
      %1280 = vst.msk [vmem:[#allocation2 + $0x58] sm:$0xfe] %vm1268, %v1247
      %1281 = vst.msk [vmem:[#allocation2 + $0x60] sm:$0xfe] %vm1268, %v1248
      %1282 = vst.msk [vmem:[#allocation2 + $0x68] sm:$0xfe] %vm1268, %v1249
      %1283 = vst.msk [vmem:[#allocation2 + $0x70] sm:$0xfe] %vm1268, %v1250
      %1284 = vst.msk [vmem:[#allocation2 + $0x78] sm:$0xfe] %vm1268, %v1251
      %v1285 = vrot.slane %v994, 7
      %v1286 = vor.u32 %v1285, %v997
      %v1287 = vrot.slane %v1002, 7
      %v1288 = vor.u32 %v1287, %v1005
      %v1289 = vrot.slane %v1010, 7
      %v1290 = vor.u32 %v1289, %v1013
      %v1291 = vrot.slane %v1018, 7
      %v1292 = vor.u32 %v1291, %v1021
      %v1293 = vrot.slane %v1026, 7
      %v1294 = vor.u32 %v1293, %v1029
      %v1295 = vrot.slane %v1034, 7
      %v1296 = vor.u32 %v1295, %v1037
      %v1297 = vrot.slane %v1042, 7
      %v1298 = vor.u32 %v1297, %v1045
      %v1299 = vrot.slane %v1050, 7
      %v1300 = vor.u32 %v1299, %v1053
      %v1301 = vrot.slane %v1058, 7
      %v1302 = vor.u32 %v1301, %v1061
      %v1303 = vrot.slane %v1066, 7
      %v1304 = vor.u32 %v1303, %v1069
      %v1305 = vrot.slane %v1074, 7
      %v1306 = vor.u32 %v1305, %v1077
      %v1307 = vrot.slane %v1082, 7
      %v1308 = vor.u32 %v1307, %v1085
      %v1309 = vrot.slane %v1090, 7
      %v1310 = vor.u32 %v1309, %v1093
      %v1311 = vrot.slane %v1098, 7
      %v1312 = vor.u32 %v1311, %v1101
      %v1313 = vrot.slane %v1106, 7
      %v1314 = vor.u32 %v1313, %v1109
      %v1315 = vrot.slane %v1114, 7
      %v1316 = vor.u32 %v1315, %v1117
      %1317 = vrot.lane.b32.xlu0 %v1286, 8
      %v1318 = vpop.permute.xlu0 %1317
      %1319 = vrot.lane.b32.xlu0 %v1288, 8
      %v1320 = vpop.permute.xlu0 %1319
      %1321 = vrot.lane.b32.xlu0 %v1290, 8
      %v1322 = vpop.permute.xlu0 %1321
      %1323 = vrot.lane.b32.xlu0 %v1292, 8
      %v1324 = vpop.permute.xlu0 %1323
      %1325 = vrot.lane.b32.xlu0 %v1294, 8
      %v1326 = vpop.permute.xlu0 %1325
      %1327 = vrot.lane.b32.xlu0 %v1296, 8
      %v1328 = vpop.permute.xlu0 %1327
      %1329 = vrot.lane.b32.xlu0 %v1298, 8
      %v1330 = vpop.permute.xlu0 %1329
      %1331 = vrot.lane.b32.xlu0 %v1300, 8
      %v1332 = vpop.permute.xlu0 %1331
      %1333 = vrot.lane.b32.xlu0 %v1302, 8
      %v1334 = vpop.permute.xlu0 %1333
      %1335 = vrot.lane.b32.xlu0 %v1304, 8
      %v1336 = vpop.permute.xlu0 %1335
      %1337 = vrot.lane.b32.xlu0 %v1306, 8
      %v1338 = vpop.permute.xlu0 %1337
      %1339 = vrot.lane.b32.xlu0 %v1308, 8
      %v1340 = vpop.permute.xlu0 %1339
      %1341 = vrot.lane.b32.xlu0 %v1310, 8
      %v1342 = vpop.permute.xlu0 %1341
      %1343 = vrot.lane.b32.xlu0 %v1312, 8
      %v1344 = vpop.permute.xlu0 %1343
      %1345 = vrot.lane.b32.xlu0 %v1314, 8
      %v1346 = vpop.permute.xlu0 %1345
      %1347 = vrot.lane.b32.xlu0 %v1316, 8
      %v1348 = vpop.permute.xlu0 %1347
      %vm1365 = vcmask 195712
      %vm1366 = vsmask.f32 7938
      %vm1367 = vmand %vm1365, %vm1366
      %v1368 = vld [vmem:[#allocation2] sm:$0xff]
      %v1369 = vsel %vm1367, %v1318, %v1368
      %1370 = vst [vmem:[#allocation2] sm:$0xff] %v1369
      %v1371 = vld [vmem:[#allocation2 + $0x8] sm:$0xff]
      %v1372 = vsel %vm1367, %v1320, %v1371
      %1373 = vst [vmem:[#allocation2 + $0x8] sm:$0xff] %v1372
      %v1374 = vld [vmem:[#allocation2 + $0x10] sm:$0xff]
      %v1375 = vsel %vm1367, %v1322, %v1374
      %1376 = vst [vmem:[#allocation2 + $0x10] sm:$0xff] %v1375
      %v1377 = vld [vmem:[#allocation2 + $0x18] sm:$0xff]
      %v1378 = vsel %vm1367, %v1324, %v1377
      %1379 = vst [vmem:[#allocation2 + $0x18] sm:$0xff] %v1378
      %v1380 = vld [vmem:[#allocation2 + $0x20] sm:$0xff]
      %v1381 = vsel %vm1367, %v1326, %v1380
      %1382 = vst [vmem:[#allocation2 + $0x20] sm:$0xff] %v1381
      %v1383 = vld [vmem:[#allocation2 + $0x28] sm:$0xff]
      %v1384 = vsel %vm1367, %v1328, %v1383
      %1385 = vst [vmem:[#allocation2 + $0x28] sm:$0xff] %v1384
      %v1386 = vld [vmem:[#allocation2 + $0x30] sm:$0xff]
      %v1387 = vsel %vm1367, %v1330, %v1386
      %1388 = vst [vmem:[#allocation2 + $0x30] sm:$0xff] %v1387
      %v1389 = vld [vmem:[#allocation2 + $0x38] sm:$0xff]
      %v1390 = vsel %vm1367, %v1332, %v1389
      %1391 = vst [vmem:[#allocation2 + $0x38] sm:$0xff] %v1390
      %v1392 = vld [vmem:[#allocation2 + $0x40] sm:$0xff]
      %v1393 = vsel %vm1367, %v1334, %v1392
      %1394 = vst [vmem:[#allocation2 + $0x40] sm:$0xff] %v1393
      %v1395 = vld [vmem:[#allocation2 + $0x48] sm:$0xff]
      %v1396 = vsel %vm1367, %v1336, %v1395
      %1397 = vst [vmem:[#allocation2 + $0x48] sm:$0xff] %v1396
      %v1398 = vld [vmem:[#allocation2 + $0x50] sm:$0xff]
      %v1399 = vsel %vm1367, %v1338, %v1398
      %1400 = vst [vmem:[#allocation2 + $0x50] sm:$0xff] %v1399
      %v1401 = vld [vmem:[#allocation2 + $0x58] sm:$0xff]
      %v1402 = vsel %vm1367, %v1340, %v1401
      %1403 = vst [vmem:[#allocation2 + $0x58] sm:$0xff] %v1402
      %v1404 = vld [vmem:[#allocation2 + $0x60] sm:$0xff]
      %v1405 = vsel %vm1367, %v1342, %v1404
      %1406 = vst [vmem:[#allocation2 + $0x60] sm:$0xff] %v1405
      %v1407 = vld [vmem:[#allocation2 + $0x68] sm:$0xff]
      %v1408 = vsel %vm1367, %v1344, %v1407
      %1409 = vst [vmem:[#allocation2 + $0x68] sm:$0xff] %v1408
      %v1410 = vld [vmem:[#allocation2 + $0x70] sm:$0xff]
      %v1411 = vsel %vm1367, %v1346, %v1410
      %1412 = vst [vmem:[#allocation2 + $0x70] sm:$0xff] %v1411
      %v1413 = vld [vmem:[#allocation2 + $0x78] sm:$0xff]
      %v1414 = vsel %vm1367, %v1348, %v1413
      %1415 = vst [vmem:[#allocation2 + $0x78] sm:$0xff] %v1414
      %1416 = vrot.lane.b32.xlu0 %v960, 16
      %v1417 = vpop.permute.xlu0 %1416
      %1418 = vrot.lane.b32.xlu0 %v961, 16
      %v1419 = vpop.permute.xlu0 %1418
      %1420 = vrot.lane.b32.xlu0 %v962, 16
      %v1421 = vpop.permute.xlu0 %1420
      %1422 = vrot.lane.b32.xlu0 %v963, 16
      %v1423 = vpop.permute.xlu0 %1422
      %1424 = vrot.lane.b32.xlu0 %v964, 16
      %v1425 = vpop.permute.xlu0 %1424
      %1426 = vrot.lane.b32.xlu0 %v965, 16
      %v1427 = vpop.permute.xlu0 %1426
      %1428 = vrot.lane.b32.xlu0 %v966, 16
      %v1429 = vpop.permute.xlu0 %1428
      %1430 = vrot.lane.b32.xlu0 %v967, 16
      %v1431 = vpop.permute.xlu0 %1430
      %1432 = vrot.lane.b32.xlu0 %v968, 16
      %v1433 = vpop.permute.xlu0 %1432
      %1434 = vrot.lane.b32.xlu0 %v969, 16
      %v1435 = vpop.permute.xlu0 %1434
      %1436 = vrot.lane.b32.xlu0 %v970, 16
      %v1437 = vpop.permute.xlu0 %1436
      %1438 = vrot.lane.b32.xlu0 %v971, 16
      %v1439 = vpop.permute.xlu0 %1438
      %1440 = vrot.lane.b32.xlu0 %v972, 16
      %v1441 = vpop.permute.xlu0 %1440
      %1442 = vrot.lane.b32.xlu0 %v973, 16
      %v1443 = vpop.permute.xlu0 %1442
      %1444 = vrot.lane.b32.xlu0 %v974, 16
      %v1445 = vpop.permute.xlu0 %1444
      %1446 = vrot.lane.b32.xlu0 %v975, 16
      %v1447 = vpop.permute.xlu0 %1446
      %vm1464 = vcmask 261312
      %1465 = vst.msk [vmem:[#allocation2] sm:$0xff] %vm1464, %v1417
      %1466 = vst.msk [vmem:[#allocation2 + $0x8] sm:$0xff] %vm1464, %v1419
      %1467 = vst.msk [vmem:[#allocation2 + $0x10] sm:$0xff] %vm1464, %v1421
      %1468 = vst.msk [vmem:[#allocation2 + $0x18] sm:$0xff] %vm1464, %v1423
      %1469 = vst.msk [vmem:[#allocation2 + $0x20] sm:$0xff] %vm1464, %v1425
      %1470 = vst.msk [vmem:[#allocation2 + $0x28] sm:$0xff] %vm1464, %v1427
      %1471 = vst.msk [vmem:[#allocation2 + $0x30] sm:$0xff] %vm1464, %v1429
      %1472 = vst.msk [vmem:[#allocation2 + $0x38] sm:$0xff] %vm1464, %v1431
      %1473 = vst.msk [vmem:[#allocation2 + $0x40] sm:$0xff] %vm1464, %v1433
      %1474 = vst.msk [vmem:[#allocation2 + $0x48] sm:$0xff] %vm1464, %v1435
      %1475 = vst.msk [vmem:[#allocation2 + $0x50] sm:$0xff] %vm1464, %v1437
      %1476 = vst.msk [vmem:[#allocation2 + $0x58] sm:$0xff] %vm1464, %v1439
      %1477 = vst.msk [vmem:[#allocation2 + $0x60] sm:$0xff] %vm1464, %v1441
      %1478 = vst.msk [vmem:[#allocation2 + $0x68] sm:$0xff] %vm1464, %v1443
      %1479 = vst.msk [vmem:[#allocation2 + $0x70] sm:$0xff] %vm1464, %v1445
      %1480 = vst.msk [vmem:[#allocation2 + $0x78] sm:$0xff] %vm1464, %v1447
      %v1481 = vrot.slane %v997, 1
      %v1482 = vor.u32 %v994, %v1481
      %v1483 = vrot.slane %v1005, 1
      %v1484 = vor.u32 %v1002, %v1483
      %v1485 = vrot.slane %v1013, 1
      %v1486 = vor.u32 %v1010, %v1485
      %v1487 = vrot.slane %v1021, 1
      %v1488 = vor.u32 %v1018, %v1487
      %v1489 = vrot.slane %v1029, 1
      %v1490 = vor.u32 %v1026, %v1489
      %v1491 = vrot.slane %v1037, 1
      %v1492 = vor.u32 %v1034, %v1491
      %v1493 = vrot.slane %v1045, 1
      %v1494 = vor.u32 %v1042, %v1493
      %v1495 = vrot.slane %v1053, 1
      %v1496 = vor.u32 %v1050, %v1495
      %v1497 = vrot.slane %v1061, 1
      %v1498 = vor.u32 %v1058, %v1497
      %v1499 = vrot.slane %v1069, 1
      %v1500 = vor.u32 %v1066, %v1499
      %v1501 = vrot.slane %v1077, 1
      %v1502 = vor.u32 %v1074, %v1501
      %v1503 = vrot.slane %v1085, 1
      %v1504 = vor.u32 %v1082, %v1503
      %v1505 = vrot.slane %v1093, 1
      %v1506 = vor.u32 %v1090, %v1505
      %v1507 = vrot.slane %v1101, 1
      %v1508 = vor.u32 %v1098, %v1507
      %v1509 = vrot.slane %v1109, 1
      %v1510 = vor.u32 %v1106, %v1509
      %v1511 = vrot.slane %v1117, 1
      %v1512 = vor.u32 %v1114, %v1511
      %1513 = vrot.lane.b32.xlu0 %v1482, 24
      %v1514 = vpop.permute.xlu0 %1513
      %1515 = vrot.lane.b32.xlu0 %v1484, 24
      %v1516 = vpop.permute.xlu0 %1515
      %1517 = vrot.lane.b32.xlu0 %v1486, 24
      %v1518 = vpop.permute.xlu0 %1517
      %1519 = vrot.lane.b32.xlu0 %v1488, 24
      %v1520 = vpop.permute.xlu0 %1519
      %1521 = vrot.lane.b32.xlu0 %v1490, 24
      %v1522 = vpop.permute.xlu0 %1521
      %1523 = vrot.lane.b32.xlu0 %v1492, 24
      %v1524 = vpop.permute.xlu0 %1523
      %1525 = vrot.lane.b32.xlu0 %v1494, 24
      %v1526 = vpop.permute.xlu0 %1525
      %1527 = vrot.lane.b32.xlu0 %v1496, 24
      %v1528 = vpop.permute.xlu0 %1527
      %1529 = vrot.lane.b32.xlu0 %v1498, 24
      %v1530 = vpop.permute.xlu0 %1529
      %1531 = vrot.lane.b32.xlu0 %v1500, 24
      %v1532 = vpop.permute.xlu0 %1531
      %1533 = vrot.lane.b32.xlu0 %v1502, 24
      %v1534 = vpop.permute.xlu0 %1533
      %1535 = vrot.lane.b32.xlu0 %v1504, 24
      %v1536 = vpop.permute.xlu0 %1535
      %1537 = vrot.lane.b32.xlu0 %v1506, 24
      %v1538 = vpop.permute.xlu0 %1537
      %1539 = vrot.lane.b32.xlu0 %v1508, 24
      %v1540 = vpop.permute.xlu0 %1539
      %1541 = vrot.lane.b32.xlu0 %v1510, 24
      %v1542 = vpop.permute.xlu0 %1541
      %1543 = vrot.lane.b32.xlu0 %v1512, 24
      %v1544 = vpop.permute.xlu0 %1543
      %vm1561 = vcmask 326912
      %vm1562 = vsmask.f32 7424
      %vm1563 = vmand %vm1561, %vm1562
      %v1564 = vld [vmem:[#allocation2] sm:$0xff]
      %v1565 = vsel %vm1563, %v1514, %v1564
      %1566 = vst [vmem:[#allocation2] sm:$0xff] %v1565
      %v1567 = vld [vmem:[#allocation2 + $0x8] sm:$0xff]
      %v1568 = vsel %vm1563, %v1516, %v1567
      %1569 = vst [vmem:[#allocation2 + $0x8] sm:$0xff] %v1568
      %v1570 = vld [vmem:[#allocation2 + $0x10] sm:$0xff]
      %v1571 = vsel %vm1563, %v1518, %v1570
      %1572 = vst [vmem:[#allocation2 + $0x10] sm:$0xff] %v1571
      %v1573 = vld [vmem:[#allocation2 + $0x18] sm:$0xff]
      %v1574 = vsel %vm1563, %v1520, %v1573
      %1575 = vst [vmem:[#allocation2 + $0x18] sm:$0xff] %v1574
      %v1576 = vld [vmem:[#allocation2 + $0x20] sm:$0xff]
      %v1577 = vsel %vm1563, %v1522, %v1576
      %1578 = vst [vmem:[#allocation2 + $0x20] sm:$0xff] %v1577
      %v1579 = vld [vmem:[#allocation2 + $0x28] sm:$0xff]
      %v1580 = vsel %vm1563, %v1524, %v1579
      %1581 = vst [vmem:[#allocation2 + $0x28] sm:$0xff] %v1580
      %v1582 = vld [vmem:[#allocation2 + $0x30] sm:$0xff]
      %v1583 = vsel %vm1563, %v1526, %v1582
      %1584 = vst [vmem:[#allocation2 + $0x30] sm:$0xff] %v1583
      %v1585 = vld [vmem:[#allocation2 + $0x38] sm:$0xff]
      %v1586 = vsel %vm1563, %v1528, %v1585
      %1587 = vst [vmem:[#allocation2 + $0x38] sm:$0xff] %v1586
      %v1588 = vld [vmem:[#allocation2 + $0x40] sm:$0xff]
      %v1589 = vsel %vm1563, %v1530, %v1588
      %1590 = vst [vmem:[#allocation2 + $0x40] sm:$0xff] %v1589
      %v1591 = vld [vmem:[#allocation2 + $0x48] sm:$0xff]
      %v1592 = vsel %vm1563, %v1532, %v1591
      %1593 = vst [vmem:[#allocation2 + $0x48] sm:$0xff] %v1592
      %v1594 = vld [vmem:[#allocation2 + $0x50] sm:$0xff]
      %v1595 = vsel %vm1563, %v1534, %v1594
      %1596 = vst [vmem:[#allocation2 + $0x50] sm:$0xff] %v1595
      %v1597 = vld [vmem:[#allocation2 + $0x58] sm:$0xff]
      %v1598 = vsel %vm1563, %v1536, %v1597
      %1599 = vst [vmem:[#allocation2 + $0x58] sm:$0xff] %v1598
      %v1600 = vld [vmem:[#allocation2 + $0x60] sm:$0xff]
      %v1601 = vsel %vm1563, %v1538, %v1600
      %1602 = vst [vmem:[#allocation2 + $0x60] sm:$0xff] %v1601
      %v1603 = vld [vmem:[#allocation2 + $0x68] sm:$0xff]
      %v1604 = vsel %vm1563, %v1540, %v1603
      %1605 = vst [vmem:[#allocation2 + $0x68] sm:$0xff] %v1604
      %v1606 = vld [vmem:[#allocation2 + $0x70] sm:$0xff]
      %v1607 = vsel %vm1563, %v1542, %v1606
      %1608 = vst [vmem:[#allocation2 + $0x70] sm:$0xff] %v1607
      %v1609 = vld [vmem:[#allocation2 + $0x78] sm:$0xff]
      %v1610 = vsel %vm1563, %v1544, %v1609
      %1611 = vst [vmem:[#allocation2 + $0x78] sm:$0xff] %v1610
      %v1612 = vrot.slane %v960, 1
      %v1613 = vrot.slane %v961, 1
      %v1614 = vrot.slane %v962, 1
      %v1615 = vrot.slane %v963, 1
      %v1616 = vrot.slane %v964, 1
      %v1617 = vrot.slane %v965, 1
      %v1618 = vrot.slane %v966, 1
      %v1619 = vrot.slane %v967, 1
      %v1620 = vrot.slane %v968, 1
      %v1621 = vrot.slane %v969, 1
      %v1622 = vrot.slane %v970, 1
      %v1623 = vrot.slane %v971, 1
      %v1624 = vrot.slane %v972, 1
      %v1625 = vrot.slane %v973, 1
      %v1626 = vrot.slane %v974, 1
      %v1627 = vrot.slane %v975, 1
      %1628 = vrot.lane.b32.xlu0 %v1612, 32
      %v1629 = vpop.permute.xlu0 %1628
      %1630 = vrot.lane.b32.xlu0 %v1613, 32
      %v1631 = vpop.permute.xlu0 %1630
      %1632 = vrot.lane.b32.xlu0 %v1614, 32
      %v1633 = vpop.permute.xlu0 %1632
      %1634 = vrot.lane.b32.xlu0 %v1615, 32
      %v1635 = vpop.permute.xlu0 %1634
      %1636 = vrot.lane.b32.xlu0 %v1616, 32
      %v1637 = vpop.permute.xlu0 %1636
      %1638 = vrot.lane.b32.xlu0 %v1617, 32
      %v1639 = vpop.permute.xlu0 %1638
      %1640 = vrot.lane.b32.xlu0 %v1618, 32
      %v1641 = vpop.permute.xlu0 %1640
      %1642 = vrot.lane.b32.xlu0 %v1619, 32
      %v1643 = vpop.permute.xlu0 %1642
      %1644 = vrot.lane.b32.xlu0 %v1620, 32
      %v1645 = vpop.permute.xlu0 %1644
      %1646 = vrot.lane.b32.xlu0 %v1621, 32
      %v1647 = vpop.permute.xlu0 %1646
      %1648 = vrot.lane.b32.xlu0 %v1622, 32
      %v1649 = vpop.permute.xlu0 %1648
      %1650 = vrot.lane.b32.xlu0 %v1623, 32
      %v1651 = vpop.permute.xlu0 %1650
      %1652 = vrot.lane.b32.xlu0 %v1624, 32
      %v1653 = vpop.permute.xlu0 %1652
      %1654 = vrot.lane.b32.xlu0 %v1625, 32
      %v1655 = vpop.permute.xlu0 %1654
      %1656 = vrot.lane.b32.xlu0 %v1626, 32
      %v1657 = vpop.permute.xlu0 %1656
      %1658 = vrot.lane.b32.xlu0 %v1627, 32
      %v1659 = vpop.permute.xlu0 %1658
      %vm1676 = vcmask 391488
      %1677 = vst.msk [vmem:[#allocation2] sm:$0x7f] %vm1676, %v1629
      %1678 = vst.msk [vmem:[#allocation2 + $0x8] sm:$0x7f] %vm1676, %v1631
      %1679 = vst.msk [vmem:[#allocation2 + $0x10] sm:$0x7f] %vm1676, %v1633
      %1680 = vst.msk [vmem:[#allocation2 + $0x18] sm:$0x7f] %vm1676, %v1635
      %1681 = vst.msk [vmem:[#allocation2 + $0x20] sm:$0x7f] %vm1676, %v1637
      %1682 = vst.msk [vmem:[#allocation2 + $0x28] sm:$0x7f] %vm1676, %v1639
      %1683 = vst.msk [vmem:[#allocation2 + $0x30] sm:$0x7f] %vm1676, %v1641
      %1684 = vst.msk [vmem:[#allocation2 + $0x38] sm:$0x7f] %vm1676, %v1643
      %1685 = vst.msk [vmem:[#allocation2 + $0x40] sm:$0x7f] %vm1676, %v1645
      %1686 = vst.msk [vmem:[#allocation2 + $0x48] sm:$0x7f] %vm1676, %v1647
      %1687 = vst.msk [vmem:[#allocation2 + $0x50] sm:$0x7f] %vm1676, %v1649
      %1688 = vst.msk [vmem:[#allocation2 + $0x58] sm:$0x7f] %vm1676, %v1651
      %1689 = vst.msk [vmem:[#allocation2 + $0x60] sm:$0x7f] %vm1676, %v1653
      %1690 = vst.msk [vmem:[#allocation2 + $0x68] sm:$0x7f] %vm1676, %v1655
      %1691 = vst.msk [vmem:[#allocation2 + $0x70] sm:$0x7f] %vm1676, %v1657
      %1692 = vst.msk [vmem:[#allocation2 + $0x78] sm:$0x7f] %vm1676, %v1659
      %v1693 = vrot.slane %v994, 1
      %v1694 = vrot.slane %v997, 2
      %v1695 = vor.u32 %v1693, %v1694
      %v1696 = vrot.slane %v1002, 1
      %v1697 = vrot.slane %v1005, 2
      %v1698 = vor.u32 %v1696, %v1697
      %v1699 = vrot.slane %v1010, 1
      %v1700 = vrot.slane %v1013, 2
      %v1701 = vor.u32 %v1699, %v1700
      %v1702 = vrot.slane %v1018, 1
      %v1703 = vrot.slane %v1021, 2
      %v1704 = vor.u32 %v1702, %v1703
      %v1705 = vrot.slane %v1026, 1
      %v1706 = vrot.slane %v1029, 2
      %v1707 = vor.u32 %v1705, %v1706
      %v1708 = vrot.slane %v1034, 1
      %v1709 = vrot.slane %v1037, 2
      %v1710 = vor.u32 %v1708, %v1709
      %v1711 = vrot.slane %v1042, 1
      %v1712 = vrot.slane %v1045, 2
      %v1713 = vor.u32 %v1711, %v1712
      %v1714 = vrot.slane %v1050, 1
      %v1715 = vrot.slane %v1053, 2
      %v1716 = vor.u32 %v1714, %v1715
      %v1717 = vrot.slane %v1058, 1
      %v1718 = vrot.slane %v1061, 2
      %v1719 = vor.u32 %v1717, %v1718
      %v1720 = vrot.slane %v1066, 1
      %v1721 = vrot.slane %v1069, 2
      %v1722 = vor.u32 %v1720, %v1721
      %v1723 = vrot.slane %v1074, 1
      %v1724 = vrot.slane %v1077, 2
      %v1725 = vor.u32 %v1723, %v1724
      %v1726 = vrot.slane %v1082, 1
      %v1727 = vrot.slane %v1085, 2
      %v1728 = vor.u32 %v1726, %v1727
      %v1729 = vrot.slane %v1090, 1
      %v1730 = vrot.slane %v1093, 2
      %v1731 = vor.u32 %v1729, %v1730
      %v1732 = vrot.slane %v1098, 1
      %v1733 = vrot.slane %v1101, 2
      %v1734 = vor.u32 %v1732, %v1733
      %v1735 = vrot.slane %v1106, 1
      %v1736 = vrot.slane %v1109, 2
      %v1737 = vor.u32 %v1735, %v1736
      %v1738 = vrot.slane %v1114, 1
      %v1739 = vrot.slane %v1117, 2
      %v1740 = vor.u32 %v1738, %v1739
      %1741 = vrot.lane.b32.xlu0 %v1695, 40
      %v1742 = vpop.permute.xlu0 %1741
      %1743 = vrot.lane.b32.xlu0 %v1698, 40
      %v1744 = vpop.permute.xlu0 %1743
      %1745 = vrot.lane.b32.xlu0 %v1701, 40
      %v1746 = vpop.permute.xlu0 %1745
      %1747 = vrot.lane.b32.xlu0 %v1704, 40
      %v1748 = vpop.permute.xlu0 %1747
      %1749 = vrot.lane.b32.xlu0 %v1707, 40
      %v1750 = vpop.permute.xlu0 %1749
      %1751 = vrot.lane.b32.xlu0 %v1710, 40
      %v1752 = vpop.permute.xlu0 %1751
      %1753 = vrot.lane.b32.xlu0 %v1713, 40
      %v1754 = vpop.permute.xlu0 %1753
      %1755 = vrot.lane.b32.xlu0 %v1716, 40
      %v1756 = vpop.permute.xlu0 %1755
      %1757 = vrot.lane.b32.xlu0 %v1719, 40
      %v1758 = vpop.permute.xlu0 %1757
      %1759 = vrot.lane.b32.xlu0 %v1722, 40
      %v1760 = vpop.permute.xlu0 %1759
      %1761 = vrot.lane.b32.xlu0 %v1725, 40
      %v1762 = vpop.permute.xlu0 %1761
      %1763 = vrot.lane.b32.xlu0 %v1728, 40
      %v1764 = vpop.permute.xlu0 %1763
      %1765 = vrot.lane.b32.xlu0 %v1731, 40
      %v1766 = vpop.permute.xlu0 %1765
      %1767 = vrot.lane.b32.xlu0 %v1734, 40
      %v1768 = vpop.permute.xlu0 %1767
      %1769 = vrot.lane.b32.xlu0 %v1737, 40
      %v1770 = vpop.permute.xlu0 %1769
      %1771 = vrot.lane.b32.xlu0 %v1740, 40
      %v1772 = vpop.permute.xlu0 %1771
      %vm1789 = vcmask 457088
      %vm1790 = vsmask.f32 6400
      %vm1791 = vmand %vm1789, %vm1790
      %v1792 = vld [vmem:[#allocation2] sm:$0x7f]
      %v1793 = vsel %vm1791, %v1742, %v1792
      %1794 = vst [vmem:[#allocation2] sm:$0x7f] %v1793
      %v1795 = vld [vmem:[#allocation2 + $0x8] sm:$0x7f]
      %v1796 = vsel %vm1791, %v1744, %v1795
      %1797 = vst [vmem:[#allocation2 + $0x8] sm:$0x7f] %v1796
      %v1798 = vld [vmem:[#allocation2 + $0x10] sm:$0x7f]
      %v1799 = vsel %vm1791, %v1746, %v1798
      %1800 = vst [vmem:[#allocation2 + $0x10] sm:$0x7f] %v1799
      %v1801 = vld [vmem:[#allocation2 + $0x18] sm:$0x7f]
      %v1802 = vsel %vm1791, %v1748, %v1801
      %1803 = vst [vmem:[#allocation2 + $0x18] sm:$0x7f] %v1802
      %v1804 = vld [vmem:[#allocation2 + $0x20] sm:$0x7f]
      %v1805 = vsel %vm1791, %v1750, %v1804
      %1806 = vst [vmem:[#allocation2 + $0x20] sm:$0x7f] %v1805
      %v1807 = vld [vmem:[#allocation2 + $0x28] sm:$0x7f]
      %v1808 = vsel %vm1791, %v1752, %v1807
      %1809 = vst [vmem:[#allocation2 + $0x28] sm:$0x7f] %v1808
      %v1810 = vld [vmem:[#allocation2 + $0x30] sm:$0x7f]
      %v1811 = vsel %vm1791, %v1754, %v1810
      %1812 = vst [vmem:[#allocation2 + $0x30] sm:$0x7f] %v1811
      %v1813 = vld [vmem:[#allocation2 + $0x38] sm:$0x7f]
      %v1814 = vsel %vm1791, %v1756, %v1813
      %1815 = vst [vmem:[#allocation2 + $0x38] sm:$0x7f] %v1814
      %v1816 = vld [vmem:[#allocation2 + $0x40] sm:$0x7f]
      %v1817 = vsel %vm1791, %v1758, %v1816
      %1818 = vst [vmem:[#allocation2 + $0x40] sm:$0x7f] %v1817
      %v1819 = vld [vmem:[#allocation2 + $0x48] sm:$0x7f]
      %v1820 = vsel %vm1791, %v1760, %v1819
      %1821 = vst [vmem:[#allocation2 + $0x48] sm:$0x7f] %v1820
      %v1822 = vld [vmem:[#allocation2 + $0x50] sm:$0x7f]
      %v1823 = vsel %vm1791, %v1762, %v1822
      %1824 = vst [vmem:[#allocation2 + $0x50] sm:$0x7f] %v1823
      %v1825 = vld [vmem:[#allocation2 + $0x58] sm:$0x7f]
      %v1826 = vsel %vm1791, %v1764, %v1825
      %1827 = vst [vmem:[#allocation2 + $0x58] sm:$0x7f] %v1826
      %v1828 = vld [vmem:[#allocation2 + $0x60] sm:$0x7f]
      %v1829 = vsel %vm1791, %v1766, %v1828
      %1830 = vst [vmem:[#allocation2 + $0x60] sm:$0x7f] %v1829
      %v1831 = vld [vmem:[#allocation2 + $0x68] sm:$0x7f]
      %v1832 = vsel %vm1791, %v1768, %v1831
      %1833 = vst [vmem:[#allocation2 + $0x68] sm:$0x7f] %v1832
      %v1834 = vld [vmem:[#allocation2 + $0x70] sm:$0x7f]
      %v1835 = vsel %vm1791, %v1770, %v1834
      %1836 = vst [vmem:[#allocation2 + $0x70] sm:$0x7f] %v1835
      %v1837 = vld [vmem:[#allocation2 + $0x78] sm:$0x7f]
      %v1838 = vsel %vm1791, %v1772, %v1837
      %1839 = vst [vmem:[#allocation2 + $0x78] sm:$0x7f] %v1838
      %v1840 = vld [vmem:[#allocation2] sm:$0xff]
      %v1841 = vld [vmem:[#allocation2 + $0x8] sm:$0xff]
      %v1842 = vld [vmem:[#allocation2 + $0x10] sm:$0xff]
      %v1843 = vld [vmem:[#allocation2 + $0x18] sm:$0xff]
      %v1844 = vld [vmem:[#allocation2 + $0x20] sm:$0xff]
      %v1845 = vld [vmem:[#allocation2 + $0x28] sm:$0xff]
      %v1846 = vld [vmem:[#allocation2 + $0x30] sm:$0xff]
      %v1847 = vld [vmem:[#allocation2 + $0x38] sm:$0xff]
      %v1848 = vld [vmem:[#allocation2 + $0x40] sm:$0xff]
      %v1849 = vld [vmem:[#allocation2 + $0x48] sm:$0xff]
      %v1850 = vld [vmem:[#allocation2 + $0x50] sm:$0xff]
      %v1851 = vld [vmem:[#allocation2 + $0x58] sm:$0xff]
      %v1852 = vld [vmem:[#allocation2 + $0x60] sm:$0xff]
      %v1853 = vld [vmem:[#allocation2 + $0x68] sm:$0xff]
      %v1854 = vld [vmem:[#allocation2 + $0x70] sm:$0xff]
      %v1855 = vld [vmem:[#allocation2 + $0x78] sm:$0xff]
      %v1856 = vld [vmem:[%s4] sm:$0xf]
      %v1857 = vld [vmem:[%s4 + $0x4] sm:$0xf]
      %v1858 = vld [vmem:[%s4 + $0x8] sm:$0xf]
      %v1859 = vld [vmem:[%s4 + $0xc] sm:$0xf]
      %v1860 = vld [vmem:[%s4 + $0x10] sm:$0xf]
      %v1861 = vld [vmem:[%s4 + $0x14] sm:$0xf]
      %v1862 = vld [vmem:[%s4 + $0x18] sm:$0xf]
      %v1870 = vunpack.c.l.b16 %v1856
      %v1871 = vunpack.c.l.b16 %v1857
      %v1872 = vunpack.c.l.b16 %v1858
      %v1873 = vunpack.c.l.b16 %v1859
      %v1874 = vunpack.c.l.b16 %v1860
      %v1875 = vunpack.c.l.b16 %v1861
      %v1876 = vunpack.c.l.b16 %v1862
      %v1877 = vpack.c.b16 %v1871, %v1870
      %v1878 = vpack.c.b16 %v1873, %v1872
      %v1879 = vpack.c.b16 %v1875, %v1874
      %v1880 = vpack.c.b16 %v1876, %v1876
      %v1885 = vsel %vm976, %v1840, 0
      %v1888 = vsel %vm976, %v1841, 0
      %v1891 = vsel %vm976, %v1842, 0
      %v1894 = vsel %vm976, %v1843, 0
      %v1897 = vsel %vm976, %v1844, 0
      %v1900 = vsel %vm976, %v1845, 0
      %v1903 = vsel %vm976, %v1846, 0
      %v1906 = vsel %vm976, %v1847, 0
      %v1909 = vsel %vm976, %v1848, 0
      %v1912 = vsel %vm976, %v1849, 0
      %v1915 = vsel %vm976, %v1850, 0
      %v1918 = vsel %vm976, %v1851, 0
      %v1921 = vsel %vm976, %v1852, 0
      %v1924 = vsel %vm976, %v1853, 0
      %v1927 = vsel %vm976, %v1854, 0
      %v1930 = vsel %vm976, %v1855, 0
      %vm1932 = vcmask 1043456
      %v1934 = vsel %vm1932, %v1880, 0
      %1936 = vmatprep.subr.bf16.mxu0 0
      %1937 = vmatpush1.bf16.msra.mxu0 %v1877
      %1938 = vmatprep.subr.bf16.mxu0 0
      %1939 = vmatpush1.bf16.msra.mxu0 %v1878
      %1940 = vmatprep.subr.bf16.mxu0 0
      %1941 = vmatpush1.bf16.msra.mxu0 %v1879
      %1942 = vmatprep.subr.bf16.mxu0 0
      %1943 = vmatpush1.bf16.msra.mxu0 %v1934
      %1944 = vmatprep.subr.bf16.mxu0 0
      %1945 = vmatpush1.bf16.msra.mxu0 0
      %1946 = vmatprep.subr.bf16.mxu0 0
      %1947 = vmatpush1.bf16.msra.mxu0 0
      %1948 = vmatprep.subr.bf16.mxu0 0
      %1949 = vmatpush1.bf16.msra.mxu0 0
      %1950 = vmatprep.subr.bf16.mxu0 0
      %1951 = vmatpush1.bf16.msra.mxu0 0
      %1952 = vmatprep.subr.bf16.mxu0 0
      %1953 = vmatpush1.bf16.msra.mxu0 0
      %1954 = vmatprep.subr.bf16.mxu0 0
      %1955 = vmatpush1.bf16.msra.mxu0 0
      %1956 = vmatprep.subr.bf16.mxu0 0
      %1957 = vmatpush1.bf16.msra.mxu0 0
      %1958 = vmatprep.subr.bf16.mxu0 0
      %1959 = vmatpush1.bf16.msra.mxu0 0
      %1960 = vmatprep.subr.bf16.mxu0 0
      %1961 = vmatpush1.bf16.msra.mxu0 0
      %1962 = vmatprep.subr.bf16.mxu0 0
      %1963 = vmatpush1.bf16.msra.mxu0 0
      %1964 = vmatprep.subr.bf16.mxu0 0
      %1965 = vmatpush1.bf16.msra.mxu0 0
      %1966 = vmatprep.subr.bf16.mxu0 0
      %1967 = vmatpush1.bf16.msra.mxu0 0
      %1968 = vmatprep.mubr.bf16.mxu0 0
      %1969 = vmatmul.mubr.bf16.gmra.mrb[0].mxu0 %v1885
      %v1970 = vpop.f32.mrb[0].mxu0
      %v1971 = vadd.f32 0.0, %v1970
      %v1972 = vpop.f32.mrb[0].mxu0
      %v1973 = vpop.f32.mrb[0].mxu0
      %v1974 = vadd.f32 0.0, %v1973
      %v1975 = vpop.f32.mrb[0].mxu0
      %1976 = vmatprep.mubr.bf16.mxu0 0
      %1977 = vmatmul.mubr.bf16.gmra.mrb[0].mxu0 %v1888
      %v1978 = vpop.f32.mrb[0].mxu0
      %v1979 = vadd.f32 0.0, %v1978
      %v1980 = vpop.f32.mrb[0].mxu0
      %v1981 = vpop.f32.mrb[0].mxu0
      %v1982 = vadd.f32 0.0, %v1981
      %v1983 = vpop.f32.mrb[0].mxu0
      %1984 = vmatprep.mubr.bf16.mxu0 0
      %1985 = vmatmul.mubr.bf16.gmra.mrb[0].mxu0 %v1891
      %v1986 = vpop.f32.mrb[0].mxu0
      %v1987 = vadd.f32 0.0, %v1986
      %v1988 = vpop.f32.mrb[0].mxu0
      %v1989 = vpop.f32.mrb[0].mxu0
      %v1990 = vadd.f32 0.0, %v1989
      %v1991 = vpop.f32.mrb[0].mxu0
      %1992 = vmatprep.mubr.bf16.mxu0 0
      %1993 = vmatmul.mubr.bf16.gmra.mrb[0].mxu0 %v1894
      %v1994 = vpop.f32.mrb[0].mxu0
      %v1995 = vadd.f32 0.0, %v1994
      %v1996 = vpop.f32.mrb[0].mxu0
      %v1997 = vpop.f32.mrb[0].mxu0
      %v1998 = vadd.f32 0.0, %v1997
      %v1999 = vpop.f32.mrb[0].mxu0
      %2000 = vmatprep.mubr.bf16.mxu0 0
      %2001 = vmatmul.mubr.bf16.gmra.mrb[0].mxu0 %v1897
      %v2002 = vpop.f32.mrb[0].mxu0
      %v2003 = vadd.f32 0.0, %v2002
      %v2004 = vpop.f32.mrb[0].mxu0
      %v2005 = vpop.f32.mrb[0].mxu0
      %v2006 = vadd.f32 0.0, %v2005
      %v2007 = vpop.f32.mrb[0].mxu0
      %2008 = vmatprep.mubr.bf16.mxu0 0
      %2009 = vmatmul.mubr.bf16.gmra.mrb[0].mxu0 %v1900
      %v2010 = vpop.f32.mrb[0].mxu0
      %v2011 = vadd.f32 0.0, %v2010
      %v2012 = vpop.f32.mrb[0].mxu0
      %v2013 = vpop.f32.mrb[0].mxu0
      %v2014 = vadd.f32 0.0, %v2013
      %v2015 = vpop.f32.mrb[0].mxu0
      %2016 = vmatprep.mubr.bf16.mxu0 0
      %2017 = vmatmul.mubr.bf16.gmra.mrb[0].mxu0 %v1903
      %v2018 = vpop.f32.mrb[0].mxu0
      %v2019 = vadd.f32 0.0, %v2018
      %v2020 = vpop.f32.mrb[0].mxu0
      %v2021 = vpop.f32.mrb[0].mxu0
      %v2022 = vadd.f32 0.0, %v2021
      %v2023 = vpop.f32.mrb[0].mxu0
      %2024 = vmatprep.mubr.bf16.mxu0 0
      %2025 = vmatmul.mubr.bf16.gmra.mrb[0].mxu0 %v1906
      %v2026 = vpop.f32.mrb[0].mxu0
      %v2027 = vadd.f32 0.0, %v2026
      %v2028 = vpop.f32.mrb[0].mxu0
      %v2029 = vpop.f32.mrb[0].mxu0
      %v2030 = vadd.f32 0.0, %v2029
      %v2031 = vpop.f32.mrb[0].mxu0
      %2032 = vmatprep.mubr.bf16.mxu0 0
      %2033 = vmatmul.mubr.bf16.gmra.mrb[0].mxu0 %v1909
      %v2034 = vpop.f32.mrb[0].mxu0
      %v2035 = vadd.f32 0.0, %v2034
      %v2036 = vpop.f32.mrb[0].mxu0
      %v2037 = vpop.f32.mrb[0].mxu0
      %v2038 = vadd.f32 0.0, %v2037
      %v2039 = vpop.f32.mrb[0].mxu0
      %2040 = vmatprep.mubr.bf16.mxu0 0
      %2041 = vmatmul.mubr.bf16.gmra.mrb[0].mxu0 %v1912
      %v2042 = vpop.f32.mrb[0].mxu0
      %v2043 = vadd.f32 0.0, %v2042
      %v2044 = vpop.f32.mrb[0].mxu0
      %v2045 = vpop.f32.mrb[0].mxu0
      %v2046 = vadd.f32 0.0, %v2045
      %v2047 = vpop.f32.mrb[0].mxu0
      %2048 = vmatprep.mubr.bf16.mxu0 0
      %2049 = vmatmul.mubr.bf16.gmra.mrb[0].mxu0 %v1915
      %v2050 = vpop.f32.mrb[0].mxu0
      %v2051 = vadd.f32 0.0, %v2050
      %v2052 = vpop.f32.mrb[0].mxu0
      %v2053 = vpop.f32.mrb[0].mxu0
      %v2054 = vadd.f32 0.0, %v2053
      %v2055 = vpop.f32.mrb[0].mxu0
      %2056 = vmatprep.mubr.bf16.mxu0 0
      %2057 = vmatmul.mubr.bf16.gmra.mrb[0].mxu0 %v1918
      %v2058 = vpop.f32.mrb[0].mxu0
      %v2059 = vadd.f32 0.0, %v2058
      %v2060 = vpop.f32.mrb[0].mxu0
      %v2061 = vpop.f32.mrb[0].mxu0
      %v2062 = vadd.f32 0.0, %v2061
      %v2063 = vpop.f32.mrb[0].mxu0
      %2064 = vmatprep.mubr.bf16.mxu0 0
      %2065 = vmatmul.mubr.bf16.gmra.mrb[0].mxu0 %v1921
      %v2066 = vpop.f32.mrb[0].mxu0
      %v2067 = vadd.f32 0.0, %v2066
      %v2068 = vpop.f32.mrb[0].mxu0
      %v2069 = vpop.f32.mrb[0].mxu0
      %v2070 = vadd.f32 0.0, %v2069
      %v2071 = vpop.f32.mrb[0].mxu0
      %2072 = vmatprep.mubr.bf16.mxu0 0
      %2073 = vmatmul.mubr.bf16.gmra.mrb[0].mxu0 %v1924
      %v2074 = vpop.f32.mrb[0].mxu0
      %v2075 = vadd.f32 0.0, %v2074
      %v2076 = vpop.f32.mrb[0].mxu0
      %v2077 = vpop.f32.mrb[0].mxu0
      %v2078 = vadd.f32 0.0, %v2077
      %v2079 = vpop.f32.mrb[0].mxu0
      %2080 = vmatprep.mubr.bf16.mxu0 0
      %2081 = vmatmul.mubr.bf16.gmra.mrb[0].mxu0 %v1927
      %v2082 = vpop.f32.mrb[0].mxu0
      %v2083 = vadd.f32 0.0, %v2082
      %v2084 = vpop.f32.mrb[0].mxu0
      %v2085 = vpop.f32.mrb[0].mxu0
      %v2086 = vadd.f32 0.0, %v2085
      %v2087 = vpop.f32.mrb[0].mxu0
      %2088 = vmatprep.mubr.bf16.mxu0 0
      %2089 = vmatmul.mubr.bf16.gmra.mrb[0].mxu0 %v1930
      %v2090 = vpop.f32.mrb[0].mxu0
      %v2091 = vadd.f32 0.0, %v2090
      %v2092 = vpop.f32.mrb[0].mxu0
      %v2093 = vpop.f32.mrb[0].mxu0
      %v2094 = vadd.f32 0.0, %v2093
      %v2095 = vpop.f32.mrb[0].mxu0
      %2096 = vdwg.mxu0
      %v2097 = vld [vmem:[%s5] sm:$0x1]
      %v2099 = vlaneseq
      %v2100 = vshrl.u32 %v2099, 7
      %v2101 = vsub.s32 0, %v2100
      %v2102 = vrot.slane %v2097, %v2101
      %v2104 = vmul.f32 %v1971, %v2102
      %v2105 = vmul.f32 %v1974, %v2102
      %v2106 = vmul.f32 %v1979, %v2102
      %v2107 = vmul.f32 %v1982, %v2102
      %v2108 = vmul.f32 %v1987, %v2102
      %v2109 = vmul.f32 %v1990, %v2102
      %v2110 = vmul.f32 %v1995, %v2102
      %v2111 = vmul.f32 %v1998, %v2102
      %v2112 = vmul.f32 %v2003, %v2102
      %v2113 = vmul.f32 %v2006, %v2102
      %v2114 = vmul.f32 %v2011, %v2102
      %v2115 = vmul.f32 %v2014, %v2102
      %v2116 = vmul.f32 %v2019, %v2102
      %v2117 = vmul.f32 %v2022, %v2102
      %v2118 = vmul.f32 %v2027, %v2102
      %v2119 = vmul.f32 %v2030, %v2102
      %v2120 = vmul.f32 %v2035, %v2102
      %v2121 = vmul.f32 %v2038, %v2102
      %v2122 = vmul.f32 %v2043, %v2102
      %v2123 = vmul.f32 %v2046, %v2102
      %v2124 = vmul.f32 %v2051, %v2102
      %v2125 = vmul.f32 %v2054, %v2102
      %v2126 = vmul.f32 %v2059, %v2102
      %v2127 = vmul.f32 %v2062, %v2102
      %v2128 = vmul.f32 %v2067, %v2102
      %v2129 = vmul.f32 %v2070, %v2102
      %v2130 = vmul.f32 %v2075, %v2102
      %v2131 = vmul.f32 %v2078, %v2102
      %v2132 = vmul.f32 %v2083, %v2102
      %v2133 = vmul.f32 %v2086, %v2102
      %v2134 = vmul.f32 %v2091, %v2102
      %v2135 = vmul.f32 %v2094, %v2102
      %v2136 = vld [vmem:[%s6] sm:$0x1]
      %v2138 = vlaneseq
      %v2139 = vshrl.u32 %v2138, 7
      %v2140 = vsub.s32 0, %v2139
      %v2141 = vrot.slane %v2136, %v2140
      %v2143 = vadd.f32 %v2104, %v2141
      %v2144 = vadd.f32 %v2105, %v2141
      %v2145 = vadd.f32 %v2106, %v2141
      %v2146 = vadd.f32 %v2107, %v2141
      %v2147 = vadd.f32 %v2108, %v2141
      %v2148 = vadd.f32 %v2109, %v2141
      %v2149 = vadd.f32 %v2110, %v2141
      %v2150 = vadd.f32 %v2111, %v2141
      %v2151 = vadd.f32 %v2112, %v2141
      %v2152 = vadd.f32 %v2113, %v2141
      %v2153 = vadd.f32 %v2114, %v2141
      %v2154 = vadd.f32 %v2115, %v2141
      %v2155 = vadd.f32 %v2116, %v2141
      %v2156 = vadd.f32 %v2117, %v2141
      %v2157 = vadd.f32 %v2118, %v2141
      %v2158 = vadd.f32 %v2119, %v2141
      %v2159 = vadd.f32 %v2120, %v2141
      %v2160 = vadd.f32 %v2121, %v2141
      %v2161 = vadd.f32 %v2122, %v2141
      %v2162 = vadd.f32 %v2123, %v2141
      %v2163 = vadd.f32 %v2124, %v2141
      %v2164 = vadd.f32 %v2125, %v2141
      %v2165 = vadd.f32 %v2126, %v2141
      %v2166 = vadd.f32 %v2127, %v2141
      %v2167 = vadd.f32 %v2128, %v2141
      %v2168 = vadd.f32 %v2129, %v2141
      %v2169 = vadd.f32 %v2130, %v2141
      %v2170 = vadd.f32 %v2131, %v2141
      %v2171 = vadd.f32 %v2132, %v2141
      %v2172 = vadd.f32 %v2133, %v2141
      %v2173 = vadd.f32 %v2134, %v2141
      %v2174 = vadd.f32 %v2135, %v2141
      %v2175 = vmax.f32 %v2143, 0.0
      %v2176 = vmax.f32 %v2144, 0.0
      %v2177 = vmax.f32 %v2145, 0.0
      %v2178 = vmax.f32 %v2146, 0.0
      %v2179 = vmax.f32 %v2147, 0.0
      %v2180 = vmax.f32 %v2148, 0.0
      %v2181 = vmax.f32 %v2149, 0.0
      %v2182 = vmax.f32 %v2150, 0.0
      %v2183 = vmax.f32 %v2151, 0.0
      %v2184 = vmax.f32 %v2152, 0.0
      %v2185 = vmax.f32 %v2153, 0.0
      %v2186 = vmax.f32 %v2154, 0.0
      %v2187 = vmax.f32 %v2155, 0.0
      %v2188 = vmax.f32 %v2156, 0.0
      %v2189 = vmax.f32 %v2157, 0.0
      %v2190 = vmax.f32 %v2158, 0.0
      %v2191 = vmax.f32 %v2159, 0.0
      %v2192 = vmax.f32 %v2160, 0.0
      %v2193 = vmax.f32 %v2161, 0.0
      %v2194 = vmax.f32 %v2162, 0.0
      %v2195 = vmax.f32 %v2163, 0.0
      %v2196 = vmax.f32 %v2164, 0.0
      %v2197 = vmax.f32 %v2165, 0.0
      %v2198 = vmax.f32 %v2166, 0.0
      %v2199 = vmax.f32 %v2167, 0.0
      %v2200 = vmax.f32 %v2168, 0.0
      %v2201 = vmax.f32 %v2169, 0.0
      %v2202 = vmax.f32 %v2170, 0.0
      %v2203 = vmax.f32 %v2171, 0.0
      %v2204 = vmax.f32 %v2172, 0.0
      %v2205 = vmax.f32 %v2173, 0.0
      %v2206 = vmax.f32 %v2174, 0.0
      %v2207 = vpack.c.bf16 %v2176, %v2175
      %v2208 = vpack.c.bf16 %v2178, %v2177
      %v2209 = vpack.c.bf16 %v2180, %v2179
      %v2210 = vpack.c.bf16 %v2182, %v2181
      %v2211 = vpack.c.bf16 %v2184, %v2183
      %v2212 = vpack.c.bf16 %v2186, %v2185
      %v2213 = vpack.c.bf16 %v2188, %v2187
      %v2214 = vpack.c.bf16 %v2190, %v2189
      %v2215 = vpack.c.bf16 %v2192, %v2191
      %v2216 = vpack.c.bf16 %v2194, %v2193
      %v2217 = vpack.c.bf16 %v2196, %v2195
      %v2218 = vpack.c.bf16 %v2198, %v2197
      %v2219 = vpack.c.bf16 %v2200, %v2199
      %v2220 = vpack.c.bf16 %v2202, %v2201
      %v2221 = vpack.c.bf16 %v2204, %v2203
      %v2222 = vpack.c.bf16 %v2206, %v2205
      %2223 = vst.msk [vmem:[#allocation2] sm:$0xff] %vm976, 0
      %2224 = vst.msk [vmem:[#allocation2 + $0x8] sm:$0xff] %vm976, 0
      %2225 = vst.msk [vmem:[#allocation2 + $0x10] sm:$0xff] %vm976, 0
      %2226 = vst.msk [vmem:[#allocation2 + $0x18] sm:$0xff] %vm976, 0
      %2227 = vst.msk [vmem:[#allocation2 + $0x20] sm:$0xff] %vm976, 0
      %2228 = vst.msk [vmem:[#allocation2 + $0x28] sm:$0xff] %vm976, 0
      %2229 = vst.msk [vmem:[#allocation2 + $0x30] sm:$0xff] %vm976, 0
      %2230 = vst.msk [vmem:[#allocation2 + $0x38] sm:$0xff] %vm976, 0
      %2231 = vst.msk [vmem:[#allocation2 + $0x40] sm:$0xff] %vm976, 0
      %2232 = vst.msk [vmem:[#allocation2 + $0x48] sm:$0xff] %vm976, 0
      %2233 = vst.msk [vmem:[#allocation2 + $0x50] sm:$0xff] %vm976, 0
      %2234 = vst.msk [vmem:[#allocation2 + $0x58] sm:$0xff] %vm976, 0
      %2235 = vst.msk [vmem:[#allocation2 + $0x60] sm:$0xff] %vm976, 0
      %2236 = vst.msk [vmem:[#allocation2 + $0x68] sm:$0xff] %vm976, 0
      %2237 = vst.msk [vmem:[#allocation2 + $0x70] sm:$0xff] %vm976, 0
      %2238 = vst.msk [vmem:[#allocation2 + $0x78] sm:$0xff] %vm976, 0
      %s2239 = scalar_lea.vmem [#allocation2], 24
      %vm2240 = vcmask 64512
      %2241 = vst.msk [vmem:[%s2239] sm:$0xff] %vm2240, %v2207
      %2242 = vst.msk [vmem:[%s2239 + $0x8] sm:$0xff] %vm2240, %v2208
      %2243 = vst.msk [vmem:[%s2239 + $0x10] sm:$0xff] %vm2240, %v2209
      %2244 = vst.msk [vmem:[%s2239 + $0x18] sm:$0xff] %vm2240, %v2210
      %2245 = vst.msk [vmem:[%s2239 + $0x20] sm:$0xff] %vm2240, %v2211
      %2246 = vst.msk [vmem:[%s2239 + $0x28] sm:$0xff] %vm2240, %v2212
      %2247 = vst.msk [vmem:[%s2239 + $0x30] sm:$0xff] %vm2240, %v2213
      %2248 = vst.msk [vmem:[%s2239 + $0x38] sm:$0xff] %vm2240, %v2214
      %2249 = vst.msk [vmem:[%s2239 + $0x40] sm:$0xff] %vm2240, %v2215
      %2250 = vst.msk [vmem:[%s2239 + $0x48] sm:$0xff] %vm2240, %v2216
      %2251 = vst.msk [vmem:[%s2239 + $0x50] sm:$0xff] %vm2240, %v2217
      %2252 = vst.msk [vmem:[%s2239 + $0x58] sm:$0xff] %vm2240, %v2218
      %2253 = vst.msk [vmem:[%s2239 + $0x60] sm:$0xff] %vm2240, %v2219
      %2268 = vrot.lane.b32.xlu0 %v2207, 8
      %v2269 = vpop.permute.xlu0 %2268
      %2270 = vrot.lane.b32.xlu0 %v2208, 8
      %v2271 = vpop.permute.xlu0 %2270
      %2272 = vrot.lane.b32.xlu0 %v2209, 8
      %v2273 = vpop.permute.xlu0 %2272
      %2274 = vrot.lane.b32.xlu0 %v2210, 8
      %v2275 = vpop.permute.xlu0 %2274
      %2276 = vrot.lane.b32.xlu0 %v2211, 8
      %v2277 = vpop.permute.xlu0 %2276
      %2278 = vrot.lane.b32.xlu0 %v2212, 8
      %v2279 = vpop.permute.xlu0 %2278
      %2280 = vrot.lane.b32.xlu0 %v2213, 8
      %v2281 = vpop.permute.xlu0 %2280
      %2282 = vrot.lane.b32.xlu0 %v2214, 8
      %v2283 = vpop.permute.xlu0 %2282
      %2284 = vrot.lane.b32.xlu0 %v2215, 8
      %v2285 = vpop.permute.xlu0 %2284
      %2286 = vrot.lane.b32.xlu0 %v2216, 8
      %v2287 = vpop.permute.xlu0 %2286
      %2288 = vrot.lane.b32.xlu0 %v2217, 8
      %v2289 = vpop.permute.xlu0 %2288
      %2290 = vrot.lane.b32.xlu0 %v2218, 8
      %v2291 = vpop.permute.xlu0 %2290
      %2292 = vrot.lane.b32.xlu0 %v2219, 8
      %v2293 = vpop.permute.xlu0 %2292
      %2294 = vrot.lane.b32.xlu0 %v2220, 8
      %v2295 = vpop.permute.xlu0 %2294
      %s2310 = scalar_lea.vmem [#allocation2], 16
      %vm2311 = vcmask 130112
      %2312 = vst.msk [vmem:[%s2310] sm:$0xff] %vm2311, %v2269
      %2313 = vst.msk [vmem:[%s2310 + $0x8] sm:$0xff] %vm2311, %v2271
      %2314 = vst.msk [vmem:[%s2310 + $0x10] sm:$0xff] %vm2311, %v2273
      %2315 = vst.msk [vmem:[%s2310 + $0x18] sm:$0xff] %vm2311, %v2275
      %2316 = vst.msk [vmem:[%s2310 + $0x20] sm:$0xff] %vm2311, %v2277
      %2317 = vst.msk [vmem:[%s2310 + $0x28] sm:$0xff] %vm2311, %v2279
      %2318 = vst.msk [vmem:[%s2310 + $0x30] sm:$0xff] %vm2311, %v2281
      %2319 = vst.msk [vmem:[%s2310 + $0x38] sm:$0xff] %vm2311, %v2283
      %2320 = vst.msk [vmem:[%s2310 + $0x40] sm:$0xff] %vm2311, %v2285
      %2321 = vst.msk [vmem:[%s2310 + $0x48] sm:$0xff] %vm2311, %v2287
      %2322 = vst.msk [vmem:[%s2310 + $0x50] sm:$0xff] %vm2311, %v2289
      %2323 = vst.msk [vmem:[%s2310 + $0x58] sm:$0xff] %vm2311, %v2291
      %2324 = vst.msk [vmem:[%s2310 + $0x60] sm:$0xff] %vm2311, %v2293
      %2325 = vst.msk [vmem:[%s2310 + $0x68] sm:$0xff] %vm2311, %v2295
      %2327 = vrot.lane.b32.xlu0 %v2207, 16
      %v2328 = vpop.permute.xlu0 %2327
      %2329 = vrot.lane.b32.xlu0 %v2208, 16
      %v2330 = vpop.permute.xlu0 %2329
      %2331 = vrot.lane.b32.xlu0 %v2209, 16
      %v2332 = vpop.permute.xlu0 %2331
      %2333 = vrot.lane.b32.xlu0 %v2210, 16
      %v2334 = vpop.permute.xlu0 %2333
      %2335 = vrot.lane.b32.xlu0 %v2211, 16
      %v2336 = vpop.permute.xlu0 %2335
      %2337 = vrot.lane.b32.xlu0 %v2212, 16
      %v2338 = vpop.permute.xlu0 %2337
      %2339 = vrot.lane.b32.xlu0 %v2213, 16
      %v2340 = vpop.permute.xlu0 %2339
      %2341 = vrot.lane.b32.xlu0 %v2214, 16
      %v2342 = vpop.permute.xlu0 %2341
      %2343 = vrot.lane.b32.xlu0 %v2215, 16
      %v2344 = vpop.permute.xlu0 %2343
      %2345 = vrot.lane.b32.xlu0 %v2216, 16
      %v2346 = vpop.permute.xlu0 %2345
      %2347 = vrot.lane.b32.xlu0 %v2217, 16
      %v2348 = vpop.permute.xlu0 %2347
      %2349 = vrot.lane.b32.xlu0 %v2218, 16
      %v2350 = vpop.permute.xlu0 %2349
      %2351 = vrot.lane.b32.xlu0 %v2219, 16
      %v2352 = vpop.permute.xlu0 %2351
      %2353 = vrot.lane.b32.xlu0 %v2220, 16
      %v2354 = vpop.permute.xlu0 %2353
      %2355 = vrot.lane.b32.xlu0 %v2221, 16
      %v2356 = vpop.permute.xlu0 %2355
      %s2372 = scalar_lea.vmem [#allocation2], 8
      %vm2373 = vcmask 195712
      %2374 = vst.msk [vmem:[%s2372] sm:$0xff] %vm2373, %v2328
      %2375 = vst.msk [vmem:[%s2372 + $0x8] sm:$0xff] %vm2373, %v2330
      %2376 = vst.msk [vmem:[%s2372 + $0x10] sm:$0xff] %vm2373, %v2332
      %2377 = vst.msk [vmem:[%s2372 + $0x18] sm:$0xff] %vm2373, %v2334
      %2378 = vst.msk [vmem:[%s2372 + $0x20] sm:$0xff] %vm2373, %v2336
      %2379 = vst.msk [vmem:[%s2372 + $0x28] sm:$0xff] %vm2373, %v2338
      %2380 = vst.msk [vmem:[%s2372 + $0x30] sm:$0xff] %vm2373, %v2340
      %2381 = vst.msk [vmem:[%s2372 + $0x38] sm:$0xff] %vm2373, %v2342
      %2382 = vst.msk [vmem:[%s2372 + $0x40] sm:$0xff] %vm2373, %v2344
      %2383 = vst.msk [vmem:[%s2372 + $0x48] sm:$0xff] %vm2373, %v2346
      %2384 = vst.msk [vmem:[%s2372 + $0x50] sm:$0xff] %vm2373, %v2348
      %2385 = vst.msk [vmem:[%s2372 + $0x58] sm:$0xff] %vm2373, %v2350
      %2386 = vst.msk [vmem:[%s2372 + $0x60] sm:$0xff] %vm2373, %v2352
      %2387 = vst.msk [vmem:[%s2372 + $0x68] sm:$0xff] %vm2373, %v2354
      %2388 = vst.msk [vmem:[%s2372 + $0x70] sm:$0xff] %vm2373, %v2356
      %2390 = vrot.lane.b32.xlu0 %v2207, 24
      %v2391 = vpop.permute.xlu0 %2390
      %2392 = vrot.lane.b32.xlu0 %v2208, 24
      %v2393 = vpop.permute.xlu0 %2392
      %2394 = vrot.lane.b32.xlu0 %v2209, 24
      %v2395 = vpop.permute.xlu0 %2394
      %2396 = vrot.lane.b32.xlu0 %v2210, 24
      %v2397 = vpop.permute.xlu0 %2396
      %2398 = vrot.lane.b32.xlu0 %v2211, 24
      %v2399 = vpop.permute.xlu0 %2398
      %2400 = vrot.lane.b32.xlu0 %v2212, 24
      %v2401 = vpop.permute.xlu0 %2400
      %2402 = vrot.lane.b32.xlu0 %v2213, 24
      %v2403 = vpop.permute.xlu0 %2402
      %2404 = vrot.lane.b32.xlu0 %v2214, 24
      %v2405 = vpop.permute.xlu0 %2404
      %2406 = vrot.lane.b32.xlu0 %v2215, 24
      %v2407 = vpop.permute.xlu0 %2406
      %2408 = vrot.lane.b32.xlu0 %v2216, 24
      %v2409 = vpop.permute.xlu0 %2408
      %2410 = vrot.lane.b32.xlu0 %v2217, 24
      %v2411 = vpop.permute.xlu0 %2410
      %2412 = vrot.lane.b32.xlu0 %v2218, 24
      %v2413 = vpop.permute.xlu0 %2412
      %2414 = vrot.lane.b32.xlu0 %v2219, 24
      %v2415 = vpop.permute.xlu0 %2414
      %2416 = vrot.lane.b32.xlu0 %v2220, 24
      %v2417 = vpop.permute.xlu0 %2416
      %2418 = vrot.lane.b32.xlu0 %v2221, 24
      %v2419 = vpop.permute.xlu0 %2418
      %2420 = vrot.lane.b32.xlu0 %v2222, 24
      %v2421 = vpop.permute.xlu0 %2420
      %2438 = vst.msk [vmem:[#allocation2] sm:$0xff] %vm1464, %v2391
      %2439 = vst.msk [vmem:[#allocation2 + $0x8] sm:$0xff] %vm1464, %v2393
      %2440 = vst.msk [vmem:[#allocation2 + $0x10] sm:$0xff] %vm1464, %v2395
      %2441 = vst.msk [vmem:[#allocation2 + $0x18] sm:$0xff] %vm1464, %v2397
      %2442 = vst.msk [vmem:[#allocation2 + $0x20] sm:$0xff] %vm1464, %v2399
      %2443 = vst.msk [vmem:[#allocation2 + $0x28] sm:$0xff] %vm1464, %v2401
      %2444 = vst.msk [vmem:[#allocation2 + $0x30] sm:$0xff] %vm1464, %v2403
      %2445 = vst.msk [vmem:[#allocation2 + $0x38] sm:$0xff] %vm1464, %v2405
      %2446 = vst.msk [vmem:[#allocation2 + $0x40] sm:$0xff] %vm1464, %v2407
      %2447 = vst.msk [vmem:[#allocation2 + $0x48] sm:$0xff] %vm1464, %v2409
      %2448 = vst.msk [vmem:[#allocation2 + $0x50] sm:$0xff] %vm1464, %v2411
      %2449 = vst.msk [vmem:[#allocation2 + $0x58] sm:$0xff] %vm1464, %v2413
      %2450 = vst.msk [vmem:[#allocation2 + $0x60] sm:$0xff] %vm1464, %v2415
      %2451 = vst.msk [vmem:[#allocation2 + $0x68] sm:$0xff] %vm1464, %v2417
      %2452 = vst.msk [vmem:[#allocation2 + $0x70] sm:$0xff] %vm1464, %v2419
      %2453 = vst.msk [vmem:[#allocation2 + $0x78] sm:$0xff] %vm1464, %v2421
      %2454 = vrot.lane.b32.xlu0 %v2208, 32
      %v2455 = vpop.permute.xlu0 %2454
      %2456 = vrot.lane.b32.xlu0 %v2209, 32
      %v2457 = vpop.permute.xlu0 %2456
      %2458 = vrot.lane.b32.xlu0 %v2210, 32
      %v2459 = vpop.permute.xlu0 %2458
      %2460 = vrot.lane.b32.xlu0 %v2211, 32
      %v2461 = vpop.permute.xlu0 %2460
      %2462 = vrot.lane.b32.xlu0 %v2212, 32
      %v2463 = vpop.permute.xlu0 %2462
      %2464 = vrot.lane.b32.xlu0 %v2213, 32
      %v2465 = vpop.permute.xlu0 %2464
      %2466 = vrot.lane.b32.xlu0 %v2214, 32
      %v2467 = vpop.permute.xlu0 %2466
      %2468 = vrot.lane.b32.xlu0 %v2215, 32
      %v2469 = vpop.permute.xlu0 %2468
      %2470 = vrot.lane.b32.xlu0 %v2216, 32
      %v2471 = vpop.permute.xlu0 %2470
      %2472 = vrot.lane.b32.xlu0 %v2217, 32
      %v2473 = vpop.permute.xlu0 %2472
      %2474 = vrot.lane.b32.xlu0 %v2218, 32
      %v2475 = vpop.permute.xlu0 %2474
      %2476 = vrot.lane.b32.xlu0 %v2219, 32
      %v2477 = vpop.permute.xlu0 %2476
      %2478 = vrot.lane.b32.xlu0 %v2220, 32
      %v2479 = vpop.permute.xlu0 %2478
      %2480 = vrot.lane.b32.xlu0 %v2221, 32
      %v2481 = vpop.permute.xlu0 %2480
      %2482 = vrot.lane.b32.xlu0 %v2222, 32
      %v2483 = vpop.permute.xlu0 %2482
      %vm2499 = vcmask 326912
      %2500 = vst.msk [vmem:[#allocation2] sm:$0xff] %vm2499, %v2455
      %2501 = vst.msk [vmem:[#allocation2 + $0x8] sm:$0xff] %vm2499, %v2457
      %2502 = vst.msk [vmem:[#allocation2 + $0x10] sm:$0xff] %vm2499, %v2459
      %2503 = vst.msk [vmem:[#allocation2 + $0x18] sm:$0xff] %vm2499, %v2461
      %2504 = vst.msk [vmem:[#allocation2 + $0x20] sm:$0xff] %vm2499, %v2463
      %2505 = vst.msk [vmem:[#allocation2 + $0x28] sm:$0xff] %vm2499, %v2465
      %2506 = vst.msk [vmem:[#allocation2 + $0x30] sm:$0xff] %vm2499, %v2467
      %2507 = vst.msk [vmem:[#allocation2 + $0x38] sm:$0xff] %vm2499, %v2469
      %2508 = vst.msk [vmem:[#allocation2 + $0x40] sm:$0xff] %vm2499, %v2471
      %2509 = vst.msk [vmem:[#allocation2 + $0x48] sm:$0xff] %vm2499, %v2473
      %2510 = vst.msk [vmem:[#allocation2 + $0x50] sm:$0xff] %vm2499, %v2475
      %2511 = vst.msk [vmem:[#allocation2 + $0x58] sm:$0xff] %vm2499, %v2477
      %2512 = vst.msk [vmem:[#allocation2 + $0x60] sm:$0xff] %vm2499, %v2479
      %2513 = vst.msk [vmem:[#allocation2 + $0x68] sm:$0xff] %vm2499, %v2481
      %2514 = vst.msk [vmem:[#allocation2 + $0x70] sm:$0xff] %vm2499, %v2483
      %2515 = vrot.lane.b32.xlu0 %v2209, 40
      %v2516 = vpop.permute.xlu0 %2515
      %2517 = vrot.lane.b32.xlu0 %v2210, 40
      %v2518 = vpop.permute.xlu0 %2517
      %2519 = vrot.lane.b32.xlu0 %v2211, 40
      %v2520 = vpop.permute.xlu0 %2519
      %2521 = vrot.lane.b32.xlu0 %v2212, 40
      %v2522 = vpop.permute.xlu0 %2521
      %2523 = vrot.lane.b32.xlu0 %v2213, 40
      %v2524 = vpop.permute.xlu0 %2523
      %2525 = vrot.lane.b32.xlu0 %v2214, 40
      %v2526 = vpop.permute.xlu0 %2525
      %2527 = vrot.lane.b32.xlu0 %v2215, 40
      %v2528 = vpop.permute.xlu0 %2527
      %2529 = vrot.lane.b32.xlu0 %v2216, 40
      %v2530 = vpop.permute.xlu0 %2529
      %2531 = vrot.lane.b32.xlu0 %v2217, 40
      %v2532 = vpop.permute.xlu0 %2531
      %2533 = vrot.lane.b32.xlu0 %v2218, 40
      %v2534 = vpop.permute.xlu0 %2533
      %2535 = vrot.lane.b32.xlu0 %v2219, 40
      %v2536 = vpop.permute.xlu0 %2535
      %2537 = vrot.lane.b32.xlu0 %v2220, 40
      %v2538 = vpop.permute.xlu0 %2537
      %2539 = vrot.lane.b32.xlu0 %v2221, 40
      %v2540 = vpop.permute.xlu0 %2539
      %2541 = vrot.lane.b32.xlu0 %v2222, 40
      %v2542 = vpop.permute.xlu0 %2541
      %vm2557 = vcmask 392512
      %2558 = vst.msk [vmem:[#allocation2] sm:$0xff] %vm2557, %v2516
      %2559 = vst.msk [vmem:[#allocation2 + $0x8] sm:$0xff] %vm2557, %v2518
      %2560 = vst.msk [vmem:[#allocation2 + $0x10] sm:$0xff] %vm2557, %v2520
      %2561 = vst.msk [vmem:[#allocation2 + $0x18] sm:$0xff] %vm2557, %v2522
      %2562 = vst.msk [vmem:[#allocation2 + $0x20] sm:$0xff] %vm2557, %v2524
      %2563 = vst.msk [vmem:[#allocation2 + $0x28] sm:$0xff] %vm2557, %v2526
      %2564 = vst.msk [vmem:[#allocation2 + $0x30] sm:$0xff] %vm2557, %v2528
      %2565 = vst.msk [vmem:[#allocation2 + $0x38] sm:$0xff] %vm2557, %v2530
      %2566 = vst.msk [vmem:[#allocation2 + $0x40] sm:$0xff] %vm2557, %v2532
      %2567 = vst.msk [vmem:[#allocation2 + $0x48] sm:$0xff] %vm2557, %v2534
      %2568 = vst.msk [vmem:[#allocation2 + $0x50] sm:$0xff] %vm2557, %v2536
      %2569 = vst.msk [vmem:[#allocation2 + $0x58] sm:$0xff] %vm2557, %v2538
      %2570 = vst.msk [vmem:[#allocation2 + $0x60] sm:$0xff] %vm2557, %v2540
      %2571 = vst.msk [vmem:[#allocation2 + $0x68] sm:$0xff] %vm2557, %v2542
      %2572 = vrot.lane.b32.xlu0 %v2210, 48
      %v2573 = vpop.permute.xlu0 %2572
      %2574 = vrot.lane.b32.xlu0 %v2211, 48
      %v2575 = vpop.permute.xlu0 %2574
      %2576 = vrot.lane.b32.xlu0 %v2212, 48
      %v2577 = vpop.permute.xlu0 %2576
      %2578 = vrot.lane.b32.xlu0 %v2213, 48
      %v2579 = vpop.permute.xlu0 %2578
      %2580 = vrot.lane.b32.xlu0 %v2214, 48
      %v2581 = vpop.permute.xlu0 %2580
      %2582 = vrot.lane.b32.xlu0 %v2215, 48
      %v2583 = vpop.permute.xlu0 %2582
      %2584 = vrot.lane.b32.xlu0 %v2216, 48
      %v2585 = vpop.permute.xlu0 %2584
      %2586 = vrot.lane.b32.xlu0 %v2217, 48
      %v2587 = vpop.permute.xlu0 %2586
      %2588 = vrot.lane.b32.xlu0 %v2218, 48
      %v2589 = vpop.permute.xlu0 %2588
      %2590 = vrot.lane.b32.xlu0 %v2219, 48
      %v2591 = vpop.permute.xlu0 %2590
      %2592 = vrot.lane.b32.xlu0 %v2220, 48
      %v2593 = vpop.permute.xlu0 %2592
      %2594 = vrot.lane.b32.xlu0 %v2221, 48
      %v2595 = vpop.permute.xlu0 %2594
      %2596 = vrot.lane.b32.xlu0 %v2222, 48
      %v2597 = vpop.permute.xlu0 %2596
      %vm2611 = vcmask 458112
      %2612 = vst.msk [vmem:[#allocation2] sm:$0xff] %vm2611, %v2573
      %2613 = vst.msk [vmem:[#allocation2 + $0x8] sm:$0xff] %vm2611, %v2575
      %2614 = vst.msk [vmem:[#allocation2 + $0x10] sm:$0xff] %vm2611, %v2577
      %2615 = vst.msk [vmem:[#allocation2 + $0x18] sm:$0xff] %vm2611, %v2579
      %2616 = vst.msk [vmem:[#allocation2 + $0x20] sm:$0xff] %vm2611, %v2581
      %2617 = vst.msk [vmem:[#allocation2 + $0x28] sm:$0xff] %vm2611, %v2583
      %2618 = vst.msk [vmem:[#allocation2 + $0x30] sm:$0xff] %vm2611, %v2585
      %2619 = vst.msk [vmem:[#allocation2 + $0x38] sm:$0xff] %vm2611, %v2587
      %2620 = vst.msk [vmem:[#allocation2 + $0x40] sm:$0xff] %vm2611, %v2589
      %2621 = vst.msk [vmem:[#allocation2 + $0x48] sm:$0xff] %vm2611, %v2591
      %2622 = vst.msk [vmem:[#allocation2 + $0x50] sm:$0xff] %vm2611, %v2593
      %2623 = vst.msk [vmem:[#allocation2 + $0x58] sm:$0xff] %vm2611, %v2595
      %2624 = vst.msk [vmem:[#allocation2 + $0x60] sm:$0xff] %vm2611, %v2597
      %v2625 = vld [vmem:[#allocation2] sm:$0xff]
      %v2626 = vld [vmem:[#allocation2 + $0x8] sm:$0xff]
      %v2627 = vld [vmem:[#allocation2 + $0x10] sm:$0xff]
      %v2628 = vld [vmem:[#allocation2 + $0x18] sm:$0xff]
      %v2629 = vld [vmem:[#allocation2 + $0x20] sm:$0xff]
      %v2630 = vld [vmem:[#allocation2 + $0x28] sm:$0xff]
      %v2631 = vld [vmem:[#allocation2 + $0x30] sm:$0xff]
      %v2632 = vld [vmem:[#allocation2 + $0x38] sm:$0xff]
      %v2633 = vld [vmem:[#allocation2 + $0x40] sm:$0xff]
      %v2634 = vld [vmem:[#allocation2 + $0x48] sm:$0xff]
      %v2635 = vld [vmem:[#allocation2 + $0x50] sm:$0xff]
      %v2636 = vld [vmem:[#allocation2 + $0x58] sm:$0xff]
      %v2637 = vld [vmem:[#allocation2 + $0x60] sm:$0xff]
      %v2638 = vld [vmem:[#allocation2 + $0x68] sm:$0xff]
      %v2639 = vld [vmem:[#allocation2 + $0x70] sm:$0xff]
      %v2640 = vld [vmem:[#allocation2 + $0x78] sm:$0xff]
      %v2641 = vld [vmem:[%s7] sm:$0xf]
      %v2642 = vld [vmem:[%s7 + $0x4] sm:$0xf]
      %v2643 = vld [vmem:[%s7 + $0x8] sm:$0xf]
      %v2644 = vld [vmem:[%s7 + $0xc] sm:$0xf]
      %v2645 = vld [vmem:[%s7 + $0x10] sm:$0xf]
      %v2646 = vld [vmem:[%s7 + $0x14] sm:$0xf]
      %v2647 = vld [vmem:[%s7 + $0x18] sm:$0xf]
      %v2655 = vunpack.c.l.b16 %v2641
      %v2656 = vunpack.c.l.b16 %v2642
      %v2657 = vunpack.c.l.b16 %v2643
      %v2658 = vunpack.c.l.b16 %v2644
      %v2659 = vunpack.c.l.b16 %v2645
      %v2660 = vunpack.c.l.b16 %v2646
      %v2661 = vunpack.c.l.b16 %v2647
      %v2662 = vpack.c.b16 %v2656, %v2655
      %v2663 = vpack.c.b16 %v2658, %v2657
      %v2664 = vpack.c.b16 %v2660, %v2659
      %v2665 = vpack.c.b16 %v2661, %v2661
      %v2670 = vsel %vm976, %v2625, 0
      %v2673 = vsel %vm976, %v2626, 0
      %v2676 = vsel %vm976, %v2627, 0
      %v2679 = vsel %vm976, %v2628, 0
      %v2682 = vsel %vm976, %v2629, 0
      %v2685 = vsel %vm976, %v2630, 0
      %v2688 = vsel %vm976, %v2631, 0
      %v2691 = vsel %vm976, %v2632, 0
      %v2694 = vsel %vm976, %v2633, 0
      %v2697 = vsel %vm976, %v2634, 0
      %v2700 = vsel %vm976, %v2635, 0
      %v2703 = vsel %vm976, %v2636, 0
      %v2706 = vsel %vm976, %v2637, 0
      %v2709 = vsel %vm976, %v2638, 0
      %v2712 = vsel %vm976, %v2639, 0
      %v2715 = vsel %vm976, %v2640, 0
      %v2718 = vsel %vm1932, %v2665, 0
      %2720 = vmatprep.subr.bf16.mxu0 0
      %2721 = vmatpush1.bf16.msra.mxu0 %v2662
      %2722 = vmatprep.subr.bf16.mxu0 0
      %2723 = vmatpush1.bf16.msra.mxu0 %v2663
      %2724 = vmatprep.subr.bf16.mxu0 0
      %2725 = vmatpush1.bf16.msra.mxu0 %v2664
      %2726 = vmatprep.subr.bf16.mxu0 0
      %2727 = vmatpush1.bf16.msra.mxu0 %v2718
      %2728 = vmatprep.subr.bf16.mxu0 0
      %2729 = vmatpush1.bf16.msra.mxu0 0
      %2730 = vmatprep.subr.bf16.mxu0 0
      %2731 = vmatpush1.bf16.msra.mxu0 0
      %2732 = vmatprep.subr.bf16.mxu0 0
      %2733 = vmatpush1.bf16.msra.mxu0 0
      %2734 = vmatprep.subr.bf16.mxu0 0
      %2735 = vmatpush1.bf16.msra.mxu0 0
      %2736 = vmatprep.subr.bf16.mxu0 0
      %2737 = vmatpush1.bf16.msra.mxu0 0
      %2738 = vmatprep.subr.bf16.mxu0 0
      %2739 = vmatpush1.bf16.msra.mxu0 0
      %2740 = vmatprep.subr.bf16.mxu0 0
      %2741 = vmatpush1.bf16.msra.mxu0 0
      %2742 = vmatprep.subr.bf16.mxu0 0
      %2743 = vmatpush1.bf16.msra.mxu0 0
      %2744 = vmatprep.subr.bf16.mxu0 0
      %2745 = vmatpush1.bf16.msra.mxu0 0
      %2746 = vmatprep.subr.bf16.mxu0 0
      %2747 = vmatpush1.bf16.msra.mxu0 0
      %2748 = vmatprep.subr.bf16.mxu0 0
      %2749 = vmatpush1.bf16.msra.mxu0 0
      %2750 = vmatprep.subr.bf16.mxu0 0
      %2751 = vmatpush1.bf16.msra.mxu0 0
      %2752 = vmatprep.mubr.bf16.mxu0 0
      %2753 = vmatmul.mubr.bf16.gmra.mrb[0].mxu0 %v2670
      %v2754 = vpop.f32.mrb[0].mxu0
      %v2755 = vadd.f32 0.0, %v2754
      %v2756 = vpop.f32.mrb[0].mxu0
      %v2757 = vpop.f32.mrb[0].mxu0
      %v2758 = vadd.f32 0.0, %v2757
      %v2759 = vpop.f32.mrb[0].mxu0
      %2760 = vmatprep.mubr.bf16.mxu0 0
      %2761 = vmatmul.mubr.bf16.gmra.mrb[0].mxu0 %v2673
      %v2762 = vpop.f32.mrb[0].mxu0
      %v2763 = vadd.f32 0.0, %v2762
      %v2764 = vpop.f32.mrb[0].mxu0
      %v2765 = vpop.f32.mrb[0].mxu0
      %v2766 = vadd.f32 0.0, %v2765
      %v2767 = vpop.f32.mrb[0].mxu0
      %2768 = vmatprep.mubr.bf16.mxu0 0
      %2769 = vmatmul.mubr.bf16.gmra.mrb[0].mxu0 %v2676
      %v2770 = vpop.f32.mrb[0].mxu0
      %v2771 = vadd.f32 0.0, %v2770
      %v2772 = vpop.f32.mrb[0].mxu0
      %v2773 = vpop.f32.mrb[0].mxu0
      %v2774 = vadd.f32 0.0, %v2773
      %v2775 = vpop.f32.mrb[0].mxu0
      %2776 = vmatprep.mubr.bf16.mxu0 0
      %2777 = vmatmul.mubr.bf16.gmra.mrb[0].mxu0 %v2679
      %v2778 = vpop.f32.mrb[0].mxu0
      %v2779 = vadd.f32 0.0, %v2778
      %v2780 = vpop.f32.mrb[0].mxu0
      %v2781 = vpop.f32.mrb[0].mxu0
      %v2782 = vadd.f32 0.0, %v2781
      %v2783 = vpop.f32.mrb[0].mxu0
      %2784 = vmatprep.mubr.bf16.mxu0 0
      %2785 = vmatmul.mubr.bf16.gmra.mrb[0].mxu0 %v2682
      %v2786 = vpop.f32.mrb[0].mxu0
      %v2787 = vadd.f32 0.0, %v2786
      %v2788 = vpop.f32.mrb[0].mxu0
      %v2789 = vpop.f32.mrb[0].mxu0
      %v2790 = vadd.f32 0.0, %v2789
      %v2791 = vpop.f32.mrb[0].mxu0
      %2792 = vmatprep.mubr.bf16.mxu0 0
      %2793 = vmatmul.mubr.bf16.gmra.mrb[0].mxu0 %v2685
      %v2794 = vpop.f32.mrb[0].mxu0
      %v2795 = vadd.f32 0.0, %v2794
      %v2796 = vpop.f32.mrb[0].mxu0
      %v2797 = vpop.f32.mrb[0].mxu0
      %v2798 = vadd.f32 0.0, %v2797
      %v2799 = vpop.f32.mrb[0].mxu0
      %2800 = vmatprep.mubr.bf16.mxu0 0
      %2801 = vmatmul.mubr.bf16.gmra.mrb[0].mxu0 %v2688
      %v2802 = vpop.f32.mrb[0].mxu0
      %v2803 = vadd.f32 0.0, %v2802
      %v2804 = vpop.f32.mrb[0].mxu0
      %v2805 = vpop.f32.mrb[0].mxu0
      %v2806 = vadd.f32 0.0, %v2805
      %v2807 = vpop.f32.mrb[0].mxu0
      %2808 = vmatprep.mubr.bf16.mxu0 0
      %2809 = vmatmul.mubr.bf16.gmra.mrb[0].mxu0 %v2691
      %v2810 = vpop.f32.mrb[0].mxu0
      %v2811 = vadd.f32 0.0, %v2810
      %v2812 = vpop.f32.mrb[0].mxu0
      %v2813 = vpop.f32.mrb[0].mxu0
      %v2814 = vadd.f32 0.0, %v2813
      %v2815 = vpop.f32.mrb[0].mxu0
      %2816 = vmatprep.mubr.bf16.mxu0 0
      %2817 = vmatmul.mubr.bf16.gmra.mrb[0].mxu0 %v2694
      %v2818 = vpop.f32.mrb[0].mxu0
      %v2819 = vadd.f32 0.0, %v2818
      %v2820 = vpop.f32.mrb[0].mxu0
      %v2821 = vpop.f32.mrb[0].mxu0
      %v2822 = vadd.f32 0.0, %v2821
      %v2823 = vpop.f32.mrb[0].mxu0
      %2824 = vmatprep.mubr.bf16.mxu0 0
      %2825 = vmatmul.mubr.bf16.gmra.mrb[0].mxu0 %v2697
      %v2826 = vpop.f32.mrb[0].mxu0
      %v2827 = vadd.f32 0.0, %v2826
      %v2828 = vpop.f32.mrb[0].mxu0
      %v2829 = vpop.f32.mrb[0].mxu0
      %v2830 = vadd.f32 0.0, %v2829
      %v2831 = vpop.f32.mrb[0].mxu0
      %2832 = vmatprep.mubr.bf16.mxu0 0
      %2833 = vmatmul.mubr.bf16.gmra.mrb[0].mxu0 %v2700
      %v2834 = vpop.f32.mrb[0].mxu0
      %v2835 = vadd.f32 0.0, %v2834
      %v2836 = vpop.f32.mrb[0].mxu0
      %v2837 = vpop.f32.mrb[0].mxu0
      %v2838 = vadd.f32 0.0, %v2837
      %v2839 = vpop.f32.mrb[0].mxu0
      %2840 = vmatprep.mubr.bf16.mxu0 0
      %2841 = vmatmul.mubr.bf16.gmra.mrb[0].mxu0 %v2703
      %v2842 = vpop.f32.mrb[0].mxu0
      %v2843 = vadd.f32 0.0, %v2842
      %v2844 = vpop.f32.mrb[0].mxu0
      %v2845 = vpop.f32.mrb[0].mxu0
      %v2846 = vadd.f32 0.0, %v2845
      %v2847 = vpop.f32.mrb[0].mxu0
      %2848 = vmatprep.mubr.bf16.mxu0 0
      %2849 = vmatmul.mubr.bf16.gmra.mrb[0].mxu0 %v2706
      %v2850 = vpop.f32.mrb[0].mxu0
      %v2851 = vadd.f32 0.0, %v2850
      %v2852 = vpop.f32.mrb[0].mxu0
      %v2853 = vpop.f32.mrb[0].mxu0
      %v2854 = vadd.f32 0.0, %v2853
      %v2855 = vpop.f32.mrb[0].mxu0
      %2856 = vmatprep.mubr.bf16.mxu0 0
      %2857 = vmatmul.mubr.bf16.gmra.mrb[0].mxu0 %v2709
      %v2858 = vpop.f32.mrb[0].mxu0
      %v2859 = vadd.f32 0.0, %v2858
      %v2860 = vpop.f32.mrb[0].mxu0
      %v2861 = vpop.f32.mrb[0].mxu0
      %v2862 = vadd.f32 0.0, %v2861
      %v2863 = vpop.f32.mrb[0].mxu0
      %2864 = vmatprep.mubr.bf16.mxu0 0
      %2865 = vmatmul.mubr.bf16.gmra.mrb[0].mxu0 %v2712
      %v2866 = vpop.f32.mrb[0].mxu0
      %v2867 = vadd.f32 0.0, %v2866
      %v2868 = vpop.f32.mrb[0].mxu0
      %v2869 = vpop.f32.mrb[0].mxu0
      %v2870 = vadd.f32 0.0, %v2869
      %v2871 = vpop.f32.mrb[0].mxu0
      %2872 = vmatprep.mubr.bf16.mxu0 0
      %2873 = vmatmul.mubr.bf16.gmra.mrb[0].mxu0 %v2715
      %v2874 = vpop.f32.mrb[0].mxu0
      %v2875 = vadd.f32 0.0, %v2874
      %v2876 = vpop.f32.mrb[0].mxu0
      %v2877 = vpop.f32.mrb[0].mxu0
      %v2878 = vadd.f32 0.0, %v2877
      %v2879 = vpop.f32.mrb[0].mxu0
      %2880 = vdwg.mxu0
      %v2881 = vld [vmem:[%s8] sm:$0x1]
      %v2883 = vlaneseq
      %v2884 = vshrl.u32 %v2883, 7
      %v2885 = vsub.s32 0, %v2884
      %v2886 = vrot.slane %v2881, %v2885
      %v2888 = vmul.f32 %v2755, %v2886
      %v2889 = vmul.f32 %v2758, %v2886
      %v2890 = vmul.f32 %v2763, %v2886
      %v2891 = vmul.f32 %v2766, %v2886
      %v2892 = vmul.f32 %v2771, %v2886
      %v2893 = vmul.f32 %v2774, %v2886
      %v2894 = vmul.f32 %v2779, %v2886
      %v2895 = vmul.f32 %v2782, %v2886
      %v2896 = vmul.f32 %v2787, %v2886
      %v2897 = vmul.f32 %v2790, %v2886
      %v2898 = vmul.f32 %v2795, %v2886
      %v2899 = vmul.f32 %v2798, %v2886
      %v2900 = vmul.f32 %v2803, %v2886
      %v2901 = vmul.f32 %v2806, %v2886
      %v2902 = vmul.f32 %v2811, %v2886
      %v2903 = vmul.f32 %v2814, %v2886
      %v2904 = vmul.f32 %v2819, %v2886
      %v2905 = vmul.f32 %v2822, %v2886
      %v2906 = vmul.f32 %v2827, %v2886
      %v2907 = vmul.f32 %v2830, %v2886
      %v2908 = vmul.f32 %v2835, %v2886
      %v2909 = vmul.f32 %v2838, %v2886
      %v2910 = vmul.f32 %v2843, %v2886
      %v2911 = vmul.f32 %v2846, %v2886
      %v2912 = vmul.f32 %v2851, %v2886
      %v2913 = vmul.f32 %v2854, %v2886
      %v2914 = vmul.f32 %v2859, %v2886
      %v2915 = vmul.f32 %v2862, %v2886
      %v2916 = vmul.f32 %v2867, %v2886
      %v2917 = vmul.f32 %v2870, %v2886
      %v2918 = vmul.f32 %v2875, %v2886
      %v2919 = vmul.f32 %v2878, %v2886
      %v2920 = vld [vmem:[%s9] sm:$0x1]
      %v2922 = vlaneseq
      %v2923 = vshrl.u32 %v2922, 7
      %v2924 = vsub.s32 0, %v2923
      %v2925 = vrot.slane %v2920, %v2924
      %v2927 = vadd.f32 %v2888, %v2925
      %v2928 = vadd.f32 %v2889, %v2925
      %v2929 = vadd.f32 %v2890, %v2925
      %v2930 = vadd.f32 %v2891, %v2925
      %v2931 = vadd.f32 %v2892, %v2925
      %v2932 = vadd.f32 %v2893, %v2925
      %v2933 = vadd.f32 %v2894, %v2925
      %v2934 = vadd.f32 %v2895, %v2925
      %v2935 = vadd.f32 %v2896, %v2925
      %v2936 = vadd.f32 %v2897, %v2925
      %v2937 = vadd.f32 %v2898, %v2925
      %v2938 = vadd.f32 %v2899, %v2925
      %v2939 = vadd.f32 %v2900, %v2925
      %v2940 = vadd.f32 %v2901, %v2925
      %v2941 = vadd.f32 %v2902, %v2925
      %v2942 = vadd.f32 %v2903, %v2925
      %v2943 = vadd.f32 %v2904, %v2925
      %v2944 = vadd.f32 %v2905, %v2925
      %v2945 = vadd.f32 %v2906, %v2925
      %v2946 = vadd.f32 %v2907, %v2925
      %v2947 = vadd.f32 %v2908, %v2925
      %v2948 = vadd.f32 %v2909, %v2925
      %v2949 = vadd.f32 %v2910, %v2925
      %v2950 = vadd.f32 %v2911, %v2925
      %v2951 = vadd.f32 %v2912, %v2925
      %v2952 = vadd.f32 %v2913, %v2925
      %v2953 = vadd.f32 %v2914, %v2925
      %v2954 = vadd.f32 %v2915, %v2925
      %v2955 = vadd.f32 %v2916, %v2925
      %v2956 = vadd.f32 %v2917, %v2925
      %v2957 = vadd.f32 %v2918, %v2925
      %v2958 = vadd.f32 %v2919, %v2925
      %v2959 = vmax.f32 %v2927, 0.0
      %v2960 = vmax.f32 %v2928, 0.0
      %v2961 = vmax.f32 %v2929, 0.0
      %v2962 = vmax.f32 %v2930, 0.0
      %v2963 = vmax.f32 %v2931, 0.0
      %v2964 = vmax.f32 %v2932, 0.0
      %v2965 = vmax.f32 %v2933, 0.0
      %v2966 = vmax.f32 %v2934, 0.0
      %v2967 = vmax.f32 %v2935, 0.0
      %v2968 = vmax.f32 %v2936, 0.0
      %v2969 = vmax.f32 %v2937, 0.0
      %v2970 = vmax.f32 %v2938, 0.0
      %v2971 = vmax.f32 %v2939, 0.0
      %v2972 = vmax.f32 %v2940, 0.0
      %v2973 = vmax.f32 %v2941, 0.0
      %v2974 = vmax.f32 %v2942, 0.0
      %v2975 = vmax.f32 %v2943, 0.0
      %v2976 = vmax.f32 %v2944, 0.0
      %v2977 = vmax.f32 %v2945, 0.0
      %v2978 = vmax.f32 %v2946, 0.0
      %v2979 = vmax.f32 %v2947, 0.0
      %v2980 = vmax.f32 %v2948, 0.0
      %v2981 = vmax.f32 %v2949, 0.0
      %v2982 = vmax.f32 %v2950, 0.0
      %v2983 = vmax.f32 %v2951, 0.0
      %v2984 = vmax.f32 %v2952, 0.0
      %v2985 = vmax.f32 %v2953, 0.0
      %v2986 = vmax.f32 %v2954, 0.0
      %v2987 = vmax.f32 %v2955, 0.0
      %v2988 = vmax.f32 %v2956, 0.0
      %v2989 = vmax.f32 %v2957, 0.0
      %v2990 = vmax.f32 %v2958, 0.0
      %v2991 = vpack.c.bf16 %v2960, %v2959
      %v2992 = vpack.c.bf16 %v2962, %v2961
      %v2993 = vpack.c.bf16 %v2964, %v2963
      %v2994 = vpack.c.bf16 %v2966, %v2965
      %v2995 = vpack.c.bf16 %v2968, %v2967
      %v2996 = vpack.c.bf16 %v2970, %v2969
      %v2997 = vpack.c.bf16 %v2972, %v2971
      %v2998 = vpack.c.bf16 %v2974, %v2973
      %v2999 = vpack.c.bf16 %v2976, %v2975
      %v3000 = vpack.c.bf16 %v2978, %v2977
      %v3001 = vpack.c.bf16 %v2980, %v2979
      %v3002 = vpack.c.bf16 %v2982, %v2981
      %v3003 = vpack.c.bf16 %v2984, %v2983
      %v3004 = vpack.c.bf16 %v2986, %v2985
      %v3005 = vpack.c.bf16 %v2988, %v2987
      %v3006 = vpack.c.bf16 %v2990, %v2989
      %v3007 = vunpack.c.l.b16 %v960
      %v3008 = vunpack.c.h.b16 %v960
      %v3009 = vunpack.c.l.b16 %v961
      %v3010 = vunpack.c.h.b16 %v961
      %v3011 = vunpack.c.l.b16 %v962
      %v3012 = vunpack.c.h.b16 %v962
      %v3013 = vunpack.c.l.b16 %v963
      %v3014 = vunpack.c.h.b16 %v963
      %v3015 = vunpack.c.l.b16 %v964
      %v3016 = vunpack.c.h.b16 %v964
      %v3017 = vunpack.c.l.b16 %v965
      %v3018 = vunpack.c.h.b16 %v965
      %v3019 = vunpack.c.l.b16 %v966
      %v3020 = vunpack.c.h.b16 %v966
      %v3021 = vunpack.c.l.b16 %v967
      %v3022 = vunpack.c.h.b16 %v967
      %v3023 = vunpack.c.l.b16 %v968
      %v3024 = vunpack.c.h.b16 %v968
      %v3025 = vunpack.c.l.b16 %v969
      %v3026 = vunpack.c.h.b16 %v969
      %v3027 = vunpack.c.l.b16 %v970
      %v3028 = vunpack.c.h.b16 %v970
      %v3029 = vunpack.c.l.b16 %v971
      %v3030 = vunpack.c.h.b16 %v971
      %v3031 = vunpack.c.l.b16 %v972
      %v3032 = vunpack.c.h.b16 %v972
      %v3033 = vunpack.c.l.b16 %v973
      %v3034 = vunpack.c.h.b16 %v973
      %v3035 = vpack.c.b16 %v3007, %v3007
      %v3036 = vpack.c.b16 %v3008, %v3008
      %v3037 = vpack.c.b16 %v3009, %v3009
      %v3038 = vpack.c.b16 %v3010, %v3010
      %v3039 = vpack.c.b16 %v3011, %v3011
      %v3040 = vpack.c.b16 %v3012, %v3012
      %v3041 = vpack.c.b16 %v3013, %v3013
      %v3042 = vpack.c.b16 %v3014, %v3014
      %v3043 = vpack.c.b16 %v3015, %v3015
      %v3044 = vpack.c.b16 %v3016, %v3016
      %v3045 = vpack.c.b16 %v3017, %v3017
      %v3046 = vpack.c.b16 %v3018, %v3018
      %v3047 = vpack.c.b16 %v3019, %v3019
      %v3048 = vpack.c.b16 %v3020, %v3020
      %v3049 = vpack.c.b16 %v3021, %v3021
      %v3050 = vpack.c.b16 %v3022, %v3022
      %v3051 = vpack.c.b16 %v3023, %v3023
      %v3052 = vpack.c.b16 %v3024, %v3024
      %v3053 = vpack.c.b16 %v3025, %v3025
      %v3054 = vpack.c.b16 %v3026, %v3026
      %v3055 = vpack.c.b16 %v3027, %v3027
      %v3056 = vpack.c.b16 %v3028, %v3028
      %v3057 = vpack.c.b16 %v3029, %v3029
      %v3058 = vpack.c.b16 %v3030, %v3030
      %v3059 = vpack.c.b16 %v3031, %v3031
      %v3060 = vpack.c.b16 %v3032, %v3032
      %v3061 = vpack.c.b16 %v3033, %v3033
      %v3062 = vpack.c.b16 %v3034, %v3034
      %vm3091 = vcmask 60416
      %3092 = vst.msk [vmem:[#allocation3] sm:$0xf] %vm3091, %v3035
      %vm3093 = vcmask 59392
      %3094 = vst.msk [vmem:[#allocation3 + $0x4] sm:$0x7] %vm3093, %v3036
      %3095 = vst.msk [vmem:[#allocation3 + $0x8] sm:$0xf] %vm3091, %v3037
      %3096 = vst.msk [vmem:[#allocation3 + $0xc] sm:$0x7] %vm3093, %v3038
      %3097 = vst.msk [vmem:[#allocation3 + $0x10] sm:$0xf] %vm3091, %v3039
      %3098 = vst.msk [vmem:[#allocation3 + $0x14] sm:$0x7] %vm3093, %v3040
      %3099 = vst.msk [vmem:[#allocation3 + $0x18] sm:$0xf] %vm3091, %v3041
      %3100 = vst.msk [vmem:[#allocation3 + $0x1c] sm:$0x7] %vm3093, %v3042
      %3101 = vst.msk [vmem:[#allocation3 + $0x20] sm:$0xf] %vm3091, %v3043
      %3102 = vst.msk [vmem:[#allocation3 + $0x24] sm:$0x7] %vm3093, %v3044
      %3103 = vst.msk [vmem:[#allocation3 + $0x28] sm:$0xf] %vm3091, %v3045
      %3104 = vst.msk [vmem:[#allocation3 + $0x2c] sm:$0x7] %vm3093, %v3046
      %3105 = vst.msk [vmem:[#allocation3 + $0x30] sm:$0xf] %vm3091, %v3047
      %3106 = vst.msk [vmem:[#allocation3 + $0x34] sm:$0x7] %vm3093, %v3048
      %3107 = vst.msk [vmem:[#allocation3 + $0x38] sm:$0xf] %vm3091, %v3049
      %3108 = vst.msk [vmem:[#allocation3 + $0x3c] sm:$0x7] %vm3093, %v3050
      %3109 = vst.msk [vmem:[#allocation3 + $0x40] sm:$0xf] %vm3091, %v3051
      %3110 = vst.msk [vmem:[#allocation3 + $0x44] sm:$0x7] %vm3093, %v3052
      %3111 = vst.msk [vmem:[#allocation3 + $0x48] sm:$0xf] %vm3091, %v3053
      %3112 = vst.msk [vmem:[#allocation3 + $0x4c] sm:$0x7] %vm3093, %v3054
      %3113 = vst.msk [vmem:[#allocation3 + $0x50] sm:$0xf] %vm3091, %v3055
      %3114 = vst.msk [vmem:[#allocation3 + $0x54] sm:$0x7] %vm3093, %v3056
      %3115 = vst.msk [vmem:[#allocation3 + $0x58] sm:$0xf] %vm3091, %v3057
      %3116 = vst.msk [vmem:[#allocation3 + $0x5c] sm:$0x7] %vm3093, %v3058
      %3117 = vst.msk [vmem:[#allocation3 + $0x60] sm:$0xf] %vm3091, %v3059
      %3118 = vst.msk [vmem:[#allocation3 + $0x64] sm:$0x7] %vm3093, %v3060
      %3119 = vst.msk [vmem:[#allocation3 + $0x68] sm:$0xf] %vm3091, %v3061
      %3120 = vst.msk [vmem:[#allocation3 + $0x6c] sm:$0x7] %vm3093, %v3062
      %vm3121 = vsmask.f32 3328
      %vm3122 = vsmask.f32 7440
      %vm3123 = vmor %vm3121, %vm3122
      %v3125 = vshrl.u32 %v3035, 16
      %v3127 = vrot.slane %v3125, 4
      %v3128 = vshll.u32 %v3035, 16
      %v3130 = vrot.slane %v3128, 5
      %v3131 = vor.u32 %v3127, %v3130
      %v3132 = vrot.slane %v3131, 4
      %v3134 = vshll.u32 %v3036, 16
      %v3136 = vrot.slane %v3134, 5
      %v3137 = vsel %vm3123, %v3132, %v3136
      %v3138 = vshrl.u32 %v3036, 16
      %v3140 = vrot.slane %v3138, 4
      %v3141 = vor.u32 %v3140, %v3136
      %v3142 = vrot.slane %v3141, 4
      %v3144 = vshrl.u32 %v3037, 16
      %v3146 = vrot.slane %v3144, 4
      %v3147 = vshll.u32 %v3037, 16
      %v3149 = vrot.slane %v3147, 5
      %v3150 = vor.u32 %v3146, %v3149
      %v3151 = vrot.slane %v3150, 4
      %v3153 = vshll.u32 %v3038, 16
      %v3155 = vrot.slane %v3153, 5
      %v3156 = vsel %vm3123, %v3151, %v3155
      %v3157 = vshrl.u32 %v3038, 16
      %v3159 = vrot.slane %v3157, 4
      %v3160 = vor.u32 %v3159, %v3155
      %v3161 = vrot.slane %v3160, 4
      %v3163 = vshrl.u32 %v3039, 16
      %v3165 = vrot.slane %v3163, 4
      %v3166 = vshll.u32 %v3039, 16
      %v3168 = vrot.slane %v3166, 5
      %v3169 = vor.u32 %v3165, %v3168
      %v3170 = vrot.slane %v3169, 4
      %v3172 = vshll.u32 %v3040, 16
      %v3174 = vrot.slane %v3172, 5
      %v3175 = vsel %vm3123, %v3170, %v3174
      %v3176 = vshrl.u32 %v3040, 16
      %v3178 = vrot.slane %v3176, 4
      %v3179 = vor.u32 %v3178, %v3174
      %v3180 = vrot.slane %v3179, 4
      %v3182 = vshrl.u32 %v3041, 16
      %v3184 = vrot.slane %v3182, 4
      %v3185 = vshll.u32 %v3041, 16
      %v3187 = vrot.slane %v3185, 5
      %v3188 = vor.u32 %v3184, %v3187
      %v3189 = vrot.slane %v3188, 4
      %v3191 = vshll.u32 %v3042, 16
      %v3193 = vrot.slane %v3191, 5
      %v3194 = vsel %vm3123, %v3189, %v3193
      %v3195 = vshrl.u32 %v3042, 16
      %v3197 = vrot.slane %v3195, 4
      %v3198 = vor.u32 %v3197, %v3193
      %v3199 = vrot.slane %v3198, 4
      %v3201 = vshrl.u32 %v3043, 16
      %v3203 = vrot.slane %v3201, 4
      %v3204 = vshll.u32 %v3043, 16
      %v3206 = vrot.slane %v3204, 5
      %v3207 = vor.u32 %v3203, %v3206
      %v3208 = vrot.slane %v3207, 4
      %v3210 = vshll.u32 %v3044, 16
      %v3212 = vrot.slane %v3210, 5
      %v3213 = vsel %vm3123, %v3208, %v3212
      %v3214 = vshrl.u32 %v3044, 16
      %v3216 = vrot.slane %v3214, 4
      %v3217 = vor.u32 %v3216, %v3212
      %v3218 = vrot.slane %v3217, 4
      %v3220 = vshrl.u32 %v3045, 16
      %v3222 = vrot.slane %v3220, 4
      %v3223 = vshll.u32 %v3045, 16
      %v3225 = vrot.slane %v3223, 5
      %v3226 = vor.u32 %v3222, %v3225
      %v3227 = vrot.slane %v3226, 4
      %v3229 = vshll.u32 %v3046, 16
      %v3231 = vrot.slane %v3229, 5
      %v3232 = vsel %vm3123, %v3227, %v3231
      %v3233 = vshrl.u32 %v3046, 16
      %v3235 = vrot.slane %v3233, 4
      %v3236 = vor.u32 %v3235, %v3231
      %v3237 = vrot.slane %v3236, 4
      %v3239 = vshrl.u32 %v3047, 16
      %v3241 = vrot.slane %v3239, 4
      %v3242 = vshll.u32 %v3047, 16
      %v3244 = vrot.slane %v3242, 5
      %v3245 = vor.u32 %v3241, %v3244
      %v3246 = vrot.slane %v3245, 4
      %v3248 = vshll.u32 %v3048, 16
      %v3250 = vrot.slane %v3248, 5
      %v3251 = vsel %vm3123, %v3246, %v3250
      %v3252 = vshrl.u32 %v3048, 16
      %v3254 = vrot.slane %v3252, 4
      %v3255 = vor.u32 %v3254, %v3250
      %v3256 = vrot.slane %v3255, 4
      %v3258 = vshrl.u32 %v3049, 16
      %v3260 = vrot.slane %v3258, 4
      %v3261 = vshll.u32 %v3049, 16
      %v3263 = vrot.slane %v3261, 5
      %v3264 = vor.u32 %v3260, %v3263
      %v3265 = vrot.slane %v3264, 4
      %v3267 = vshll.u32 %v3050, 16
      %v3269 = vrot.slane %v3267, 5
      %v3270 = vsel %vm3123, %v3265, %v3269
      %v3271 = vshrl.u32 %v3050, 16
      %v3273 = vrot.slane %v3271, 4
      %v3274 = vor.u32 %v3273, %v3269
      %v3275 = vrot.slane %v3274, 4
      %v3277 = vshrl.u32 %v3051, 16
      %v3279 = vrot.slane %v3277, 4
      %v3280 = vshll.u32 %v3051, 16
      %v3282 = vrot.slane %v3280, 5
      %v3283 = vor.u32 %v3279, %v3282
      %v3284 = vrot.slane %v3283, 4
      %v3286 = vshll.u32 %v3052, 16
      %v3288 = vrot.slane %v3286, 5
      %v3289 = vsel %vm3123, %v3284, %v3288
      %v3290 = vshrl.u32 %v3052, 16
      %v3292 = vrot.slane %v3290, 4
      %v3293 = vor.u32 %v3292, %v3288
      %v3294 = vrot.slane %v3293, 4
      %v3296 = vshrl.u32 %v3053, 16
      %v3298 = vrot.slane %v3296, 4
      %v3299 = vshll.u32 %v3053, 16
      %v3301 = vrot.slane %v3299, 5
      %v3302 = vor.u32 %v3298, %v3301
      %v3303 = vrot.slane %v3302, 4
      %v3305 = vshll.u32 %v3054, 16
      %v3307 = vrot.slane %v3305, 5
      %v3308 = vsel %vm3123, %v3303, %v3307
      %v3309 = vshrl.u32 %v3054, 16
      %v3311 = vrot.slane %v3309, 4
      %v3312 = vor.u32 %v3311, %v3307
      %v3313 = vrot.slane %v3312, 4
      %v3315 = vshrl.u32 %v3055, 16
      %v3317 = vrot.slane %v3315, 4
      %v3318 = vshll.u32 %v3055, 16
      %v3320 = vrot.slane %v3318, 5
      %v3321 = vor.u32 %v3317, %v3320
      %v3322 = vrot.slane %v3321, 4
      %v3324 = vshll.u32 %v3056, 16
      %v3326 = vrot.slane %v3324, 5
      %v3327 = vsel %vm3123, %v3322, %v3326
      %v3328 = vshrl.u32 %v3056, 16
      %v3330 = vrot.slane %v3328, 4
      %v3331 = vor.u32 %v3330, %v3326
      %v3332 = vrot.slane %v3331, 4
      %v3334 = vshrl.u32 %v3057, 16
      %v3336 = vrot.slane %v3334, 4
      %v3337 = vshll.u32 %v3057, 16
      %v3339 = vrot.slane %v3337, 5
      %v3340 = vor.u32 %v3336, %v3339
      %v3341 = vrot.slane %v3340, 4
      %v3343 = vshll.u32 %v3058, 16
      %v3345 = vrot.slane %v3343, 5
      %v3346 = vsel %vm3123, %v3341, %v3345
      %v3347 = vshrl.u32 %v3058, 16
      %v3349 = vrot.slane %v3347, 4
      %v3350 = vor.u32 %v3349, %v3345
      %v3351 = vrot.slane %v3350, 4
      %v3353 = vshrl.u32 %v3059, 16
      %v3355 = vrot.slane %v3353, 4
      %v3356 = vshll.u32 %v3059, 16
      %v3358 = vrot.slane %v3356, 5
      %v3359 = vor.u32 %v3355, %v3358
      %v3360 = vrot.slane %v3359, 4
      %v3362 = vshll.u32 %v3060, 16
      %v3364 = vrot.slane %v3362, 5
      %v3365 = vsel %vm3123, %v3360, %v3364
      %v3366 = vshrl.u32 %v3060, 16
      %v3368 = vrot.slane %v3366, 4
      %v3369 = vor.u32 %v3368, %v3364
      %v3370 = vrot.slane %v3369, 4
      %v3372 = vshrl.u32 %v3061, 16
      %v3374 = vrot.slane %v3372, 4
      %v3375 = vshll.u32 %v3061, 16
      %v3377 = vrot.slane %v3375, 5
      %v3378 = vor.u32 %v3374, %v3377
      %v3379 = vrot.slane %v3378, 4
      %v3381 = vshll.u32 %v3062, 16
      %v3383 = vrot.slane %v3381, 5
      %v3384 = vsel %vm3123, %v3379, %v3383
      %v3385 = vshrl.u32 %v3062, 16
      %v3387 = vrot.slane %v3385, 4
      %v3388 = vor.u32 %v3387, %v3383
      %v3389 = vrot.slane %v3388, 4
      %3390 = vrot.lane.b32.xlu0 %v3137, 8
      %v3391 = vpop.permute.xlu0 %3390
      %3392 = vrot.lane.b32.xlu0 %v3142, 8
      %v3393 = vpop.permute.xlu0 %3392
      %3394 = vrot.lane.b32.xlu0 %v3156, 8
      %v3395 = vpop.permute.xlu0 %3394
      %3396 = vrot.lane.b32.xlu0 %v3161, 8
      %v3397 = vpop.permute.xlu0 %3396
      %3398 = vrot.lane.b32.xlu0 %v3175, 8
      %v3399 = vpop.permute.xlu0 %3398
      %3400 = vrot.lane.b32.xlu0 %v3180, 8
      %v3401 = vpop.permute.xlu0 %3400
      %3402 = vrot.lane.b32.xlu0 %v3194, 8
      %v3403 = vpop.permute.xlu0 %3402
      %3404 = vrot.lane.b32.xlu0 %v3199, 8
      %v3405 = vpop.permute.xlu0 %3404
      %3406 = vrot.lane.b32.xlu0 %v3213, 8
      %v3407 = vpop.permute.xlu0 %3406
      %3408 = vrot.lane.b32.xlu0 %v3218, 8
      %v3409 = vpop.permute.xlu0 %3408
      %3410 = vrot.lane.b32.xlu0 %v3232, 8
      %v3411 = vpop.permute.xlu0 %3410
      %3412 = vrot.lane.b32.xlu0 %v3237, 8
      %v3413 = vpop.permute.xlu0 %3412
      %3414 = vrot.lane.b32.xlu0 %v3251, 8
      %v3415 = vpop.permute.xlu0 %3414
      %3416 = vrot.lane.b32.xlu0 %v3256, 8
      %v3417 = vpop.permute.xlu0 %3416
      %3418 = vrot.lane.b32.xlu0 %v3270, 8
      %v3419 = vpop.permute.xlu0 %3418
      %3420 = vrot.lane.b32.xlu0 %v3275, 8
      %v3421 = vpop.permute.xlu0 %3420
      %3422 = vrot.lane.b32.xlu0 %v3289, 8
      %v3423 = vpop.permute.xlu0 %3422
      %3424 = vrot.lane.b32.xlu0 %v3294, 8
      %v3425 = vpop.permute.xlu0 %3424
      %3426 = vrot.lane.b32.xlu0 %v3308, 8
      %v3427 = vpop.permute.xlu0 %3426
      %3428 = vrot.lane.b32.xlu0 %v3313, 8
      %v3429 = vpop.permute.xlu0 %3428
      %3430 = vrot.lane.b32.xlu0 %v3327, 8
      %v3431 = vpop.permute.xlu0 %3430
      %3432 = vrot.lane.b32.xlu0 %v3332, 8
      %v3433 = vpop.permute.xlu0 %3432
      %3434 = vrot.lane.b32.xlu0 %v3346, 8
      %v3435 = vpop.permute.xlu0 %3434
      %3436 = vrot.lane.b32.xlu0 %v3351, 8
      %v3437 = vpop.permute.xlu0 %3436
      %3438 = vrot.lane.b32.xlu0 %v3365, 8
      %v3439 = vpop.permute.xlu0 %3438
      %3440 = vrot.lane.b32.xlu0 %v3370, 8
      %v3441 = vpop.permute.xlu0 %3440
      %3442 = vrot.lane.b32.xlu0 %v3384, 8
      %v3443 = vpop.permute.xlu0 %3442
      %3444 = vrot.lane.b32.xlu0 %v3389, 8
      %v3445 = vpop.permute.xlu0 %3444
      %vm3474 = vcmask 126016
      %3475 = vst.msk [vmem:[#allocation3] sm:$0xf] %vm3474, %v3391
      %vm3476 = vcmask 124992
      %3477 = vst.msk [vmem:[#allocation3 + $0x4] sm:$0x7] %vm3476, %v3393
      %3478 = vst.msk [vmem:[#allocation3 + $0x8] sm:$0xf] %vm3474, %v3395
      %3479 = vst.msk [vmem:[#allocation3 + $0xc] sm:$0x7] %vm3476, %v3397
      %3480 = vst.msk [vmem:[#allocation3 + $0x10] sm:$0xf] %vm3474, %v3399
      %3481 = vst.msk [vmem:[#allocation3 + $0x14] sm:$0x7] %vm3476, %v3401
      %3482 = vst.msk [vmem:[#allocation3 + $0x18] sm:$0xf] %vm3474, %v3403
      %3483 = vst.msk [vmem:[#allocation3 + $0x1c] sm:$0x7] %vm3476, %v3405
      %3484 = vst.msk [vmem:[#allocation3 + $0x20] sm:$0xf] %vm3474, %v3407
      %3485 = vst.msk [vmem:[#allocation3 + $0x24] sm:$0x7] %vm3476, %v3409
      %3486 = vst.msk [vmem:[#allocation3 + $0x28] sm:$0xf] %vm3474, %v3411
      %3487 = vst.msk [vmem:[#allocation3 + $0x2c] sm:$0x7] %vm3476, %v3413
      %3488 = vst.msk [vmem:[#allocation3 + $0x30] sm:$0xf] %vm3474, %v3415
      %3489 = vst.msk [vmem:[#allocation3 + $0x34] sm:$0x7] %vm3476, %v3417
      %3490 = vst.msk [vmem:[#allocation3 + $0x38] sm:$0xf] %vm3474, %v3419
      %3491 = vst.msk [vmem:[#allocation3 + $0x3c] sm:$0x7] %vm3476, %v3421
      %3492 = vst.msk [vmem:[#allocation3 + $0x40] sm:$0xf] %vm3474, %v3423
      %3493 = vst.msk [vmem:[#allocation3 + $0x44] sm:$0x7] %vm3476, %v3425
      %3494 = vst.msk [vmem:[#allocation3 + $0x48] sm:$0xf] %vm3474, %v3427
      %3495 = vst.msk [vmem:[#allocation3 + $0x4c] sm:$0x7] %vm3476, %v3429
      %3496 = vst.msk [vmem:[#allocation3 + $0x50] sm:$0xf] %vm3474, %v3431
      %3497 = vst.msk [vmem:[#allocation3 + $0x54] sm:$0x7] %vm3476, %v3433
      %3498 = vst.msk [vmem:[#allocation3 + $0x58] sm:$0xf] %vm3474, %v3435
      %3499 = vst.msk [vmem:[#allocation3 + $0x5c] sm:$0x7] %vm3476, %v3437
      %3500 = vst.msk [vmem:[#allocation3 + $0x60] sm:$0xf] %vm3474, %v3439
      %3501 = vst.msk [vmem:[#allocation3 + $0x64] sm:$0x7] %vm3476, %v3441
      %3502 = vst.msk [vmem:[#allocation3 + $0x68] sm:$0xf] %vm3474, %v3443
      %3503 = vst.msk [vmem:[#allocation3 + $0x6c] sm:$0x7] %vm3476, %v3445
      %vm3504 = vcmask 1042432
      %vm3505 = vcmask 1046532
      %vm3506 = vmor %vm3504, %vm3505
      %v3507 = vrot.slane %v3035, 5
      %v3508 = vrot.slane %v3507, 4
      %v3509 = vrot.slane %v3036, 5
      %v3510 = vsel %vm3506, %v3508, %v3509
      %v3511 = vrot.slane %v3509, 4
      %v3512 = vrot.slane %v3037, 5
      %v3513 = vrot.slane %v3512, 4
      %v3514 = vrot.slane %v3038, 5
      %v3515 = vsel %vm3506, %v3513, %v3514
      %v3516 = vrot.slane %v3514, 4
      %v3517 = vrot.slane %v3039, 5
      %v3518 = vrot.slane %v3517, 4
      %v3519 = vrot.slane %v3040, 5
      %v3520 = vsel %vm3506, %v3518, %v3519
      %v3521 = vrot.slane %v3519, 4
      %v3522 = vrot.slane %v3041, 5
      %v3523 = vrot.slane %v3522, 4
      %v3524 = vrot.slane %v3042, 5
      %v3525 = vsel %vm3506, %v3523, %v3524
      %v3526 = vrot.slane %v3524, 4
      %v3527 = vrot.slane %v3043, 5
      %v3528 = vrot.slane %v3527, 4
      %v3529 = vrot.slane %v3044, 5
      %v3530 = vsel %vm3506, %v3528, %v3529
      %v3531 = vrot.slane %v3529, 4
      %v3532 = vrot.slane %v3045, 5
      %v3533 = vrot.slane %v3532, 4
      %v3534 = vrot.slane %v3046, 5
      %v3535 = vsel %vm3506, %v3533, %v3534
      %v3536 = vrot.slane %v3534, 4
      %v3537 = vrot.slane %v3047, 5
      %v3538 = vrot.slane %v3537, 4
      %v3539 = vrot.slane %v3048, 5
      %v3540 = vsel %vm3506, %v3538, %v3539
      %v3541 = vrot.slane %v3539, 4
      %v3542 = vrot.slane %v3049, 5
      %v3543 = vrot.slane %v3542, 4
      %v3544 = vrot.slane %v3050, 5
      %v3545 = vsel %vm3506, %v3543, %v3544
      %v3546 = vrot.slane %v3544, 4
      %v3547 = vrot.slane %v3051, 5
      %v3548 = vrot.slane %v3547, 4
      %v3549 = vrot.slane %v3052, 5
      %v3550 = vsel %vm3506, %v3548, %v3549
      %v3551 = vrot.slane %v3549, 4
      %v3552 = vrot.slane %v3053, 5
      %v3553 = vrot.slane %v3552, 4
      %v3554 = vrot.slane %v3054, 5
      %v3555 = vsel %vm3506, %v3553, %v3554
      %v3556 = vrot.slane %v3554, 4
      %v3557 = vrot.slane %v3055, 5
      %v3558 = vrot.slane %v3557, 4
      %v3559 = vrot.slane %v3056, 5
      %v3560 = vsel %vm3506, %v3558, %v3559
      %v3561 = vrot.slane %v3559, 4
      %v3562 = vrot.slane %v3057, 5
      %v3563 = vrot.slane %v3562, 4
      %v3564 = vrot.slane %v3058, 5
      %v3565 = vsel %vm3506, %v3563, %v3564
      %v3566 = vrot.slane %v3564, 4
      %v3567 = vrot.slane %v3059, 5
      %v3568 = vrot.slane %v3567, 4
      %v3569 = vrot.slane %v3060, 5
      %v3570 = vsel %vm3506, %v3568, %v3569
      %v3571 = vrot.slane %v3569, 4
      %v3572 = vrot.slane %v3061, 5
      %v3573 = vrot.slane %v3572, 4
      %v3574 = vrot.slane %v3062, 5
      %v3575 = vsel %vm3506, %v3573, %v3574
      %v3576 = vrot.slane %v3574, 4
      %3577 = vrot.lane.b32.xlu0 %v3510, 16
      %v3578 = vpop.permute.xlu0 %3577
      %3579 = vrot.lane.b32.xlu0 %v3511, 16
      %v3580 = vpop.permute.xlu0 %3579
      %3581 = vrot.lane.b32.xlu0 %v3515, 16
      %v3582 = vpop.permute.xlu0 %3581
      %3583 = vrot.lane.b32.xlu0 %v3516, 16
      %v3584 = vpop.permute.xlu0 %3583
      %3585 = vrot.lane.b32.xlu0 %v3520, 16
      %v3586 = vpop.permute.xlu0 %3585
      %3587 = vrot.lane.b32.xlu0 %v3521, 16
      %v3588 = vpop.permute.xlu0 %3587
      %3589 = vrot.lane.b32.xlu0 %v3525, 16
      %v3590 = vpop.permute.xlu0 %3589
      %3591 = vrot.lane.b32.xlu0 %v3526, 16
      %v3592 = vpop.permute.xlu0 %3591
      %3593 = vrot.lane.b32.xlu0 %v3530, 16
      %v3594 = vpop.permute.xlu0 %3593
      %3595 = vrot.lane.b32.xlu0 %v3531, 16
      %v3596 = vpop.permute.xlu0 %3595
      %3597 = vrot.lane.b32.xlu0 %v3535, 16
      %v3598 = vpop.permute.xlu0 %3597
      %3599 = vrot.lane.b32.xlu0 %v3536, 16
      %v3600 = vpop.permute.xlu0 %3599
      %3601 = vrot.lane.b32.xlu0 %v3540, 16
      %v3602 = vpop.permute.xlu0 %3601
      %3603 = vrot.lane.b32.xlu0 %v3541, 16
      %v3604 = vpop.permute.xlu0 %3603
      %3605 = vrot.lane.b32.xlu0 %v3545, 16
      %v3606 = vpop.permute.xlu0 %3605
      %3607 = vrot.lane.b32.xlu0 %v3546, 16
      %v3608 = vpop.permute.xlu0 %3607
      %3609 = vrot.lane.b32.xlu0 %v3550, 16
      %v3610 = vpop.permute.xlu0 %3609
      %3611 = vrot.lane.b32.xlu0 %v3551, 16
      %v3612 = vpop.permute.xlu0 %3611
      %3613 = vrot.lane.b32.xlu0 %v3555, 16
      %v3614 = vpop.permute.xlu0 %3613
      %3615 = vrot.lane.b32.xlu0 %v3556, 16
      %v3616 = vpop.permute.xlu0 %3615
      %3617 = vrot.lane.b32.xlu0 %v3560, 16
      %v3618 = vpop.permute.xlu0 %3617
      %3619 = vrot.lane.b32.xlu0 %v3561, 16
      %v3620 = vpop.permute.xlu0 %3619
      %3621 = vrot.lane.b32.xlu0 %v3565, 16
      %v3622 = vpop.permute.xlu0 %3621
      %3623 = vrot.lane.b32.xlu0 %v3566, 16
      %v3624 = vpop.permute.xlu0 %3623
      %3625 = vrot.lane.b32.xlu0 %v3570, 16
      %v3626 = vpop.permute.xlu0 %3625
      %3627 = vrot.lane.b32.xlu0 %v3571, 16
      %v3628 = vpop.permute.xlu0 %3627
      %3629 = vrot.lane.b32.xlu0 %v3575, 16
      %v3630 = vpop.permute.xlu0 %3629
      %3631 = vrot.lane.b32.xlu0 %v3576, 16
      %v3632 = vpop.permute.xlu0 %3631
      %vm3661 = vcmask 191616
      %3662 = vst.msk [vmem:[#allocation3] sm:$0xf] %vm3661, %v3578
      %vm3663 = vcmask 190592
      %3664 = vst.msk [vmem:[#allocation3 + $0x4] sm:$0x7] %vm3663, %v3580
      %3665 = vst.msk [vmem:[#allocation3 + $0x8] sm:$0xf] %vm3661, %v3582
      %3666 = vst.msk [vmem:[#allocation3 + $0xc] sm:$0x7] %vm3663, %v3584
      %3667 = vst.msk [vmem:[#allocation3 + $0x10] sm:$0xf] %vm3661, %v3586
      %3668 = vst.msk [vmem:[#allocation3 + $0x14] sm:$0x7] %vm3663, %v3588
      %3669 = vst.msk [vmem:[#allocation3 + $0x18] sm:$0xf] %vm3661, %v3590
      %3670 = vst.msk [vmem:[#allocation3 + $0x1c] sm:$0x7] %vm3663, %v3592
      %3671 = vst.msk [vmem:[#allocation3 + $0x20] sm:$0xf] %vm3661, %v3594
      %3672 = vst.msk [vmem:[#allocation3 + $0x24] sm:$0x7] %vm3663, %v3596
      %3673 = vst.msk [vmem:[#allocation3 + $0x28] sm:$0xf] %vm3661, %v3598
      %3674 = vst.msk [vmem:[#allocation3 + $0x2c] sm:$0x7] %vm3663, %v3600
      %3675 = vst.msk [vmem:[#allocation3 + $0x30] sm:$0xf] %vm3661, %v3602
      %3676 = vst.msk [vmem:[#allocation3 + $0x34] sm:$0x7] %vm3663, %v3604
      %3677 = vst.msk [vmem:[#allocation3 + $0x38] sm:$0xf] %vm3661, %v3606
      %3678 = vst.msk [vmem:[#allocation3 + $0x3c] sm:$0x7] %vm3663, %v3608
      %3679 = vst.msk [vmem:[#allocation3 + $0x40] sm:$0xf] %vm3661, %v3610
      %3680 = vst.msk [vmem:[#allocation3 + $0x44] sm:$0x7] %vm3663, %v3612
      %3681 = vst.msk [vmem:[#allocation3 + $0x48] sm:$0xf] %vm3661, %v3614
      %3682 = vst.msk [vmem:[#allocation3 + $0x4c] sm:$0x7] %vm3663, %v3616
      %3683 = vst.msk [vmem:[#allocation3 + $0x50] sm:$0xf] %vm3661, %v3618
      %3684 = vst.msk [vmem:[#allocation3 + $0x54] sm:$0x7] %vm3663, %v3620
      %3685 = vst.msk [vmem:[#allocation3 + $0x58] sm:$0xf] %vm3661, %v3622
      %3686 = vst.msk [vmem:[#allocation3 + $0x5c] sm:$0x7] %vm3663, %v3624
      %3687 = vst.msk [vmem:[#allocation3 + $0x60] sm:$0xf] %vm3661, %v3626
      %3688 = vst.msk [vmem:[#allocation3 + $0x64] sm:$0x7] %vm3663, %v3628
      %3689 = vst.msk [vmem:[#allocation3 + $0x68] sm:$0xf] %vm3661, %v3630
      %3690 = vst.msk [vmem:[#allocation3 + $0x6c] sm:$0x7] %vm3663, %v3632
      %v3691 = vunpack.c.l.b16 %v974
      %v3692 = vunpack.c.h.b16 %v974
      %v3693 = vpack.c.b16 %v3691, %v3691
      %v3694 = vpack.c.b16 %v3692, %v3692
      %3695 = vrot.lane.b32.xlu0 %v3037, 24
      %v3696 = vpop.permute.xlu0 %3695
      %3697 = vrot.lane.b32.xlu0 %v3038, 24
      %v3698 = vpop.permute.xlu0 %3697
      %3699 = vrot.lane.b32.xlu0 %v3039, 24
      %v3700 = vpop.permute.xlu0 %3699
      %3701 = vrot.lane.b32.xlu0 %v3040, 24
      %v3702 = vpop.permute.xlu0 %3701
      %3703 = vrot.lane.b32.xlu0 %v3041, 24
      %v3704 = vpop.permute.xlu0 %3703
      %3705 = vrot.lane.b32.xlu0 %v3042, 24
      %v3706 = vpop.permute.xlu0 %3705
      %3707 = vrot.lane.b32.xlu0 %v3043, 24
      %v3708 = vpop.permute.xlu0 %3707
      %3709 = vrot.lane.b32.xlu0 %v3044, 24
      %v3710 = vpop.permute.xlu0 %3709
      %3711 = vrot.lane.b32.xlu0 %v3045, 24
      %v3712 = vpop.permute.xlu0 %3711
      %3713 = vrot.lane.b32.xlu0 %v3046, 24
      %v3714 = vpop.permute.xlu0 %3713
      %3715 = vrot.lane.b32.xlu0 %v3047, 24
      %v3716 = vpop.permute.xlu0 %3715
      %3717 = vrot.lane.b32.xlu0 %v3048, 24
      %v3718 = vpop.permute.xlu0 %3717
      %3719 = vrot.lane.b32.xlu0 %v3049, 24
      %v3720 = vpop.permute.xlu0 %3719
      %3721 = vrot.lane.b32.xlu0 %v3050, 24
      %v3722 = vpop.permute.xlu0 %3721
      %3723 = vrot.lane.b32.xlu0 %v3051, 24
      %v3724 = vpop.permute.xlu0 %3723
      %3725 = vrot.lane.b32.xlu0 %v3052, 24
      %v3726 = vpop.permute.xlu0 %3725
      %3727 = vrot.lane.b32.xlu0 %v3053, 24
      %v3728 = vpop.permute.xlu0 %3727
      %3729 = vrot.lane.b32.xlu0 %v3054, 24
      %v3730 = vpop.permute.xlu0 %3729
      %3731 = vrot.lane.b32.xlu0 %v3055, 24
      %v3732 = vpop.permute.xlu0 %3731
      %3733 = vrot.lane.b32.xlu0 %v3056, 24
      %v3734 = vpop.permute.xlu0 %3733
      %3735 = vrot.lane.b32.xlu0 %v3057, 24
      %v3736 = vpop.permute.xlu0 %3735
      %3737 = vrot.lane.b32.xlu0 %v3058, 24
      %v3738 = vpop.permute.xlu0 %3737
      %3739 = vrot.lane.b32.xlu0 %v3059, 24
      %v3740 = vpop.permute.xlu0 %3739
      %3741 = vrot.lane.b32.xlu0 %v3060, 24
      %v3742 = vpop.permute.xlu0 %3741
      %3743 = vrot.lane.b32.xlu0 %v3061, 24
      %v3744 = vpop.permute.xlu0 %3743
      %3745 = vrot.lane.b32.xlu0 %v3062, 24
      %v3746 = vpop.permute.xlu0 %3745
      %3747 = vrot.lane.b32.xlu0 %v3693, 24
      %v3748 = vpop.permute.xlu0 %3747
      %3749 = vrot.lane.b32.xlu0 %v3694, 24
      %v3750 = vpop.permute.xlu0 %3749
      %vm3779 = vcmask 257216
      %3780 = vst.msk [vmem:[#allocation3] sm:$0xf] %vm3779, %v3696
      %vm3781 = vcmask 256192
      %3782 = vst.msk [vmem:[#allocation3 + $0x4] sm:$0x7] %vm3781, %v3698
      %3783 = vst.msk [vmem:[#allocation3 + $0x8] sm:$0xf] %vm3779, %v3700
      %3784 = vst.msk [vmem:[#allocation3 + $0xc] sm:$0x7] %vm3781, %v3702
      %3785 = vst.msk [vmem:[#allocation3 + $0x10] sm:$0xf] %vm3779, %v3704
      %3786 = vst.msk [vmem:[#allocation3 + $0x14] sm:$0x7] %vm3781, %v3706
      %3787 = vst.msk [vmem:[#allocation3 + $0x18] sm:$0xf] %vm3779, %v3708
      %3788 = vst.msk [vmem:[#allocation3 + $0x1c] sm:$0x7] %vm3781, %v3710
      %3789 = vst.msk [vmem:[#allocation3 + $0x20] sm:$0xf] %vm3779, %v3712
      %3790 = vst.msk [vmem:[#allocation3 + $0x24] sm:$0x7] %vm3781, %v3714
      %3791 = vst.msk [vmem:[#allocation3 + $0x28] sm:$0xf] %vm3779, %v3716
      %3792 = vst.msk [vmem:[#allocation3 + $0x2c] sm:$0x7] %vm3781, %v3718
      %3793 = vst.msk [vmem:[#allocation3 + $0x30] sm:$0xf] %vm3779, %v3720
      %3794 = vst.msk [vmem:[#allocation3 + $0x34] sm:$0x7] %vm3781, %v3722
      %3795 = vst.msk [vmem:[#allocation3 + $0x38] sm:$0xf] %vm3779, %v3724
      %3796 = vst.msk [vmem:[#allocation3 + $0x3c] sm:$0x7] %vm3781, %v3726
      %3797 = vst.msk [vmem:[#allocation3 + $0x40] sm:$0xf] %vm3779, %v3728
      %3798 = vst.msk [vmem:[#allocation3 + $0x44] sm:$0x7] %vm3781, %v3730
      %3799 = vst.msk [vmem:[#allocation3 + $0x48] sm:$0xf] %vm3779, %v3732
      %3800 = vst.msk [vmem:[#allocation3 + $0x4c] sm:$0x7] %vm3781, %v3734
      %3801 = vst.msk [vmem:[#allocation3 + $0x50] sm:$0xf] %vm3779, %v3736
      %3802 = vst.msk [vmem:[#allocation3 + $0x54] sm:$0x7] %vm3781, %v3738
      %3803 = vst.msk [vmem:[#allocation3 + $0x58] sm:$0xf] %vm3779, %v3740
      %3804 = vst.msk [vmem:[#allocation3 + $0x5c] sm:$0x7] %vm3781, %v3742
      %3805 = vst.msk [vmem:[#allocation3 + $0x60] sm:$0xf] %vm3779, %v3744
      %3806 = vst.msk [vmem:[#allocation3 + $0x64] sm:$0x7] %vm3781, %v3746
      %3807 = vst.msk [vmem:[#allocation3 + $0x68] sm:$0xf] %vm3779, %v3748
      %3808 = vst.msk [vmem:[#allocation3 + $0x6c] sm:$0x7] %vm3781, %v3750
      %v3810 = vshrl.u32 %v3693, 16
      %v3812 = vrot.slane %v3810, 4
      %v3813 = vshll.u32 %v3693, 16
      %v3815 = vrot.slane %v3813, 5
      %v3816 = vor.u32 %v3812, %v3815
      %v3817 = vrot.slane %v3816, 4
      %v3819 = vshll.u32 %v3694, 16
      %v3821 = vrot.slane %v3819, 5
      %v3822 = vsel %vm3123, %v3817, %v3821
      %v3823 = vshrl.u32 %v3694, 16
      %v3825 = vrot.slane %v3823, 4
      %v3826 = vor.u32 %v3825, %v3821
      %v3827 = vrot.slane %v3826, 4
      %3828 = vrot.lane.b32.xlu0 %v3156, 32
      %v3829 = vpop.permute.xlu0 %3828
      %3830 = vrot.lane.b32.xlu0 %v3161, 32
      %v3831 = vpop.permute.xlu0 %3830
      %3832 = vrot.lane.b32.xlu0 %v3175, 32
      %v3833 = vpop.permute.xlu0 %3832
      %3834 = vrot.lane.b32.xlu0 %v3180, 32
      %v3835 = vpop.permute.xlu0 %3834
      %3836 = vrot.lane.b32.xlu0 %v3194, 32
      %v3837 = vpop.permute.xlu0 %3836
      %3838 = vrot.lane.b32.xlu0 %v3199, 32
      %v3839 = vpop.permute.xlu0 %3838
      %3840 = vrot.lane.b32.xlu0 %v3213, 32
      %v3841 = vpop.permute.xlu0 %3840
      %3842 = vrot.lane.b32.xlu0 %v3218, 32
      %v3843 = vpop.permute.xlu0 %3842
      %3844 = vrot.lane.b32.xlu0 %v3232, 32
      %v3845 = vpop.permute.xlu0 %3844
      %3846 = vrot.lane.b32.xlu0 %v3237, 32
      %v3847 = vpop.permute.xlu0 %3846
      %3848 = vrot.lane.b32.xlu0 %v3251, 32
      %v3849 = vpop.permute.xlu0 %3848
      %3850 = vrot.lane.b32.xlu0 %v3256, 32
      %v3851 = vpop.permute.xlu0 %3850
      %3852 = vrot.lane.b32.xlu0 %v3270, 32
      %v3853 = vpop.permute.xlu0 %3852
      %3854 = vrot.lane.b32.xlu0 %v3275, 32
      %v3855 = vpop.permute.xlu0 %3854
      %3856 = vrot.lane.b32.xlu0 %v3289, 32
      %v3857 = vpop.permute.xlu0 %3856
      %3858 = vrot.lane.b32.xlu0 %v3294, 32
      %v3859 = vpop.permute.xlu0 %3858
      %3860 = vrot.lane.b32.xlu0 %v3308, 32
      %v3861 = vpop.permute.xlu0 %3860
      %3862 = vrot.lane.b32.xlu0 %v3313, 32
      %v3863 = vpop.permute.xlu0 %3862
      %3864 = vrot.lane.b32.xlu0 %v3327, 32
      %v3865 = vpop.permute.xlu0 %3864
      %3866 = vrot.lane.b32.xlu0 %v3332, 32
      %v3867 = vpop.permute.xlu0 %3866
      %3868 = vrot.lane.b32.xlu0 %v3346, 32
      %v3869 = vpop.permute.xlu0 %3868
      %3870 = vrot.lane.b32.xlu0 %v3351, 32
      %v3871 = vpop.permute.xlu0 %3870
      %3872 = vrot.lane.b32.xlu0 %v3365, 32
      %v3873 = vpop.permute.xlu0 %3872
      %3874 = vrot.lane.b32.xlu0 %v3370, 32
      %v3875 = vpop.permute.xlu0 %3874
      %3876 = vrot.lane.b32.xlu0 %v3384, 32
      %v3877 = vpop.permute.xlu0 %3876
      %3878 = vrot.lane.b32.xlu0 %v3389, 32
      %v3879 = vpop.permute.xlu0 %3878
      %3880 = vrot.lane.b32.xlu0 %v3822, 32
      %v3881 = vpop.permute.xlu0 %3880
      %3882 = vrot.lane.b32.xlu0 %v3827, 32
      %v3883 = vpop.permute.xlu0 %3882
      %vm3912 = vcmask 322816
      %3913 = vst.msk [vmem:[#allocation3] sm:$0xf] %vm3912, %v3829
      %vm3914 = vcmask 321792
      %3915 = vst.msk [vmem:[#allocation3 + $0x4] sm:$0x7] %vm3914, %v3831
      %3916 = vst.msk [vmem:[#allocation3 + $0x8] sm:$0xf] %vm3912, %v3833
      %3917 = vst.msk [vmem:[#allocation3 + $0xc] sm:$0x7] %vm3914, %v3835
      %3918 = vst.msk [vmem:[#allocation3 + $0x10] sm:$0xf] %vm3912, %v3837
      %3919 = vst.msk [vmem:[#allocation3 + $0x14] sm:$0x7] %vm3914, %v3839
      %3920 = vst.msk [vmem:[#allocation3 + $0x18] sm:$0xf] %vm3912, %v3841
      %3921 = vst.msk [vmem:[#allocation3 + $0x1c] sm:$0x7] %vm3914, %v3843
      %3922 = vst.msk [vmem:[#allocation3 + $0x20] sm:$0xf] %vm3912, %v3845
      %3923 = vst.msk [vmem:[#allocation3 + $0x24] sm:$0x7] %vm3914, %v3847
      %3924 = vst.msk [vmem:[#allocation3 + $0x28] sm:$0xf] %vm3912, %v3849
      %3925 = vst.msk [vmem:[#allocation3 + $0x2c] sm:$0x7] %vm3914, %v3851
      %3926 = vst.msk [vmem:[#allocation3 + $0x30] sm:$0xf] %vm3912, %v3853
      %3927 = vst.msk [vmem:[#allocation3 + $0x34] sm:$0x7] %vm3914, %v3855
      %3928 = vst.msk [vmem:[#allocation3 + $0x38] sm:$0xf] %vm3912, %v3857
      %3929 = vst.msk [vmem:[#allocation3 + $0x3c] sm:$0x7] %vm3914, %v3859
      %3930 = vst.msk [vmem:[#allocation3 + $0x40] sm:$0xf] %vm3912, %v3861
      %3931 = vst.msk [vmem:[#allocation3 + $0x44] sm:$0x7] %vm3914, %v3863
      %3932 = vst.msk [vmem:[#allocation3 + $0x48] sm:$0xf] %vm3912, %v3865
      %3933 = vst.msk [vmem:[#allocation3 + $0x4c] sm:$0x7] %vm3914, %v3867
      %3934 = vst.msk [vmem:[#allocation3 + $0x50] sm:$0xf] %vm3912, %v3869
      %3935 = vst.msk [vmem:[#allocation3 + $0x54] sm:$0x7] %vm3914, %v3871
      %3936 = vst.msk [vmem:[#allocation3 + $0x58] sm:$0xf] %vm3912, %v3873
      %3937 = vst.msk [vmem:[#allocation3 + $0x5c] sm:$0x7] %vm3914, %v3875
      %3938 = vst.msk [vmem:[#allocation3 + $0x60] sm:$0xf] %vm3912, %v3877
      %3939 = vst.msk [vmem:[#allocation3 + $0x64] sm:$0x7] %vm3914, %v3879
      %3940 = vst.msk [vmem:[#allocation3 + $0x68] sm:$0xf] %vm3912, %v3881
      %3941 = vst.msk [vmem:[#allocation3 + $0x6c] sm:$0x7] %vm3914, %v3883
      %v3942 = vrot.slane %v3693, 5
      %v3943 = vrot.slane %v3942, 4
      %v3944 = vrot.slane %v3694, 5
      %v3945 = vsel %vm3506, %v3943, %v3944
      %v3946 = vrot.slane %v3944, 4
      %3947 = vrot.lane.b32.xlu0 %v3515, 40
      %v3948 = vpop.permute.xlu0 %3947
      %3949 = vrot.lane.b32.xlu0 %v3516, 40
      %v3950 = vpop.permute.xlu0 %3949
      %3951 = vrot.lane.b32.xlu0 %v3520, 40
      %v3952 = vpop.permute.xlu0 %3951
      %3953 = vrot.lane.b32.xlu0 %v3521, 40
      %v3954 = vpop.permute.xlu0 %3953
      %3955 = vrot.lane.b32.xlu0 %v3525, 40
      %v3956 = vpop.permute.xlu0 %3955
      %3957 = vrot.lane.b32.xlu0 %v3526, 40
      %v3958 = vpop.permute.xlu0 %3957
      %3959 = vrot.lane.b32.xlu0 %v3530, 40
      %v3960 = vpop.permute.xlu0 %3959
      %3961 = vrot.lane.b32.xlu0 %v3531, 40
      %v3962 = vpop.permute.xlu0 %3961
      %3963 = vrot.lane.b32.xlu0 %v3535, 40
      %v3964 = vpop.permute.xlu0 %3963
      %3965 = vrot.lane.b32.xlu0 %v3536, 40
      %v3966 = vpop.permute.xlu0 %3965
      %3967 = vrot.lane.b32.xlu0 %v3540, 40
      %v3968 = vpop.permute.xlu0 %3967
      %3969 = vrot.lane.b32.xlu0 %v3541, 40
      %v3970 = vpop.permute.xlu0 %3969
      %3971 = vrot.lane.b32.xlu0 %v3545, 40
      %v3972 = vpop.permute.xlu0 %3971
      %3973 = vrot.lane.b32.xlu0 %v3546, 40
      %v3974 = vpop.permute.xlu0 %3973
      %3975 = vrot.lane.b32.xlu0 %v3550, 40
      %v3976 = vpop.permute.xlu0 %3975
      %3977 = vrot.lane.b32.xlu0 %v3551, 40
      %v3978 = vpop.permute.xlu0 %3977
      %3979 = vrot.lane.b32.xlu0 %v3555, 40
      %v3980 = vpop.permute.xlu0 %3979
      %3981 = vrot.lane.b32.xlu0 %v3556, 40
      %v3982 = vpop.permute.xlu0 %3981
      %3983 = vrot.lane.b32.xlu0 %v3560, 40
      %v3984 = vpop.permute.xlu0 %3983
      %3985 = vrot.lane.b32.xlu0 %v3561, 40
      %v3986 = vpop.permute.xlu0 %3985
      %3987 = vrot.lane.b32.xlu0 %v3565, 40
      %v3988 = vpop.permute.xlu0 %3987
      %3989 = vrot.lane.b32.xlu0 %v3566, 40
      %v3990 = vpop.permute.xlu0 %3989
      %3991 = vrot.lane.b32.xlu0 %v3570, 40
      %v3992 = vpop.permute.xlu0 %3991
      %3993 = vrot.lane.b32.xlu0 %v3571, 40
      %v3994 = vpop.permute.xlu0 %3993
      %3995 = vrot.lane.b32.xlu0 %v3575, 40
      %v3996 = vpop.permute.xlu0 %3995
      %3997 = vrot.lane.b32.xlu0 %v3576, 40
      %v3998 = vpop.permute.xlu0 %3997
      %3999 = vrot.lane.b32.xlu0 %v3945, 40
      %v4000 = vpop.permute.xlu0 %3999
      %4001 = vrot.lane.b32.xlu0 %v3946, 40
      %v4002 = vpop.permute.xlu0 %4001
      %vm4031 = vcmask 388416
      %4032 = vst.msk [vmem:[#allocation3] sm:$0xf] %vm4031, %v3948
      %vm4033 = vcmask 387392
      %4034 = vst.msk [vmem:[#allocation3 + $0x4] sm:$0x7] %vm4033, %v3950
      %4035 = vst.msk [vmem:[#allocation3 + $0x8] sm:$0xf] %vm4031, %v3952
      %4036 = vst.msk [vmem:[#allocation3 + $0xc] sm:$0x7] %vm4033, %v3954
      %4037 = vst.msk [vmem:[#allocation3 + $0x10] sm:$0xf] %vm4031, %v3956
      %4038 = vst.msk [vmem:[#allocation3 + $0x14] sm:$0x7] %vm4033, %v3958
      %4039 = vst.msk [vmem:[#allocation3 + $0x18] sm:$0xf] %vm4031, %v3960
      %4040 = vst.msk [vmem:[#allocation3 + $0x1c] sm:$0x7] %vm4033, %v3962
      %4041 = vst.msk [vmem:[#allocation3 + $0x20] sm:$0xf] %vm4031, %v3964
      %4042 = vst.msk [vmem:[#allocation3 + $0x24] sm:$0x7] %vm4033, %v3966
      %4043 = vst.msk [vmem:[#allocation3 + $0x28] sm:$0xf] %vm4031, %v3968
      %4044 = vst.msk [vmem:[#allocation3 + $0x2c] sm:$0x7] %vm4033, %v3970
      %4045 = vst.msk [vmem:[#allocation3 + $0x30] sm:$0xf] %vm4031, %v3972
      %4046 = vst.msk [vmem:[#allocation3 + $0x34] sm:$0x7] %vm4033, %v3974
      %4047 = vst.msk [vmem:[#allocation3 + $0x38] sm:$0xf] %vm4031, %v3976
      %4048 = vst.msk [vmem:[#allocation3 + $0x3c] sm:$0x7] %vm4033, %v3978
      %4049 = vst.msk [vmem:[#allocation3 + $0x40] sm:$0xf] %vm4031, %v3980
      %4050 = vst.msk [vmem:[#allocation3 + $0x44] sm:$0x7] %vm4033, %v3982
      %4051 = vst.msk [vmem:[#allocation3 + $0x48] sm:$0xf] %vm4031, %v3984
      %4052 = vst.msk [vmem:[#allocation3 + $0x4c] sm:$0x7] %vm4033, %v3986
      %4053 = vst.msk [vmem:[#allocation3 + $0x50] sm:$0xf] %vm4031, %v3988
      %4054 = vst.msk [vmem:[#allocation3 + $0x54] sm:$0x7] %vm4033, %v3990
      %4055 = vst.msk [vmem:[#allocation3 + $0x58] sm:$0xf] %vm4031, %v3992
      %4056 = vst.msk [vmem:[#allocation3 + $0x5c] sm:$0x7] %vm4033, %v3994
      %4057 = vst.msk [vmem:[#allocation3 + $0x60] sm:$0xf] %vm4031, %v3996
      %4058 = vst.msk [vmem:[#allocation3 + $0x64] sm:$0x7] %vm4033, %v3998
      %4059 = vst.msk [vmem:[#allocation3 + $0x68] sm:$0xf] %vm4031, %v4000
      %4060 = vst.msk [vmem:[#allocation3 + $0x6c] sm:$0x7] %vm4033, %v4002
      %v4061 = vunpack.c.l.b16 %v975
      %v4062 = vunpack.c.h.b16 %v975
      %v4063 = vpack.c.b16 %v4061, %v4061
      %v4064 = vpack.c.b16 %v4062, %v4062
      %4065 = vrot.lane.b32.xlu0 %v3039, 48
      %v4066 = vpop.permute.xlu0 %4065
      %4067 = vrot.lane.b32.xlu0 %v3040, 48
      %v4068 = vpop.permute.xlu0 %4067
      %4069 = vrot.lane.b32.xlu0 %v3041, 48
      %v4070 = vpop.permute.xlu0 %4069
      %4071 = vrot.lane.b32.xlu0 %v3042, 48
      %v4072 = vpop.permute.xlu0 %4071
      %4073 = vrot.lane.b32.xlu0 %v3043, 48
      %v4074 = vpop.permute.xlu0 %4073
      %4075 = vrot.lane.b32.xlu0 %v3044, 48
      %v4076 = vpop.permute.xlu0 %4075
      %4077 = vrot.lane.b32.xlu0 %v3045, 48
      %v4078 = vpop.permute.xlu0 %4077
      %4079 = vrot.lane.b32.xlu0 %v3046, 48
      %v4080 = vpop.permute.xlu0 %4079
      %4081 = vrot.lane.b32.xlu0 %v3047, 48
      %v4082 = vpop.permute.xlu0 %4081
      %4083 = vrot.lane.b32.xlu0 %v3048, 48
      %v4084 = vpop.permute.xlu0 %4083
      %4085 = vrot.lane.b32.xlu0 %v3049, 48
      %v4086 = vpop.permute.xlu0 %4085
      %4087 = vrot.lane.b32.xlu0 %v3050, 48
      %v4088 = vpop.permute.xlu0 %4087
      %4089 = vrot.lane.b32.xlu0 %v3051, 48
      %v4090 = vpop.permute.xlu0 %4089
      %4091 = vrot.lane.b32.xlu0 %v3052, 48
      %v4092 = vpop.permute.xlu0 %4091
      %4093 = vrot.lane.b32.xlu0 %v3053, 48
      %v4094 = vpop.permute.xlu0 %4093
      %4095 = vrot.lane.b32.xlu0 %v3054, 48
      %v4096 = vpop.permute.xlu0 %4095
      %4097 = vrot.lane.b32.xlu0 %v3055, 48
      %v4098 = vpop.permute.xlu0 %4097
      %4099 = vrot.lane.b32.xlu0 %v3056, 48
      %v4100 = vpop.permute.xlu0 %4099
      %4101 = vrot.lane.b32.xlu0 %v3057, 48
      %v4102 = vpop.permute.xlu0 %4101
      %4103 = vrot.lane.b32.xlu0 %v3058, 48
      %v4104 = vpop.permute.xlu0 %4103
      %4105 = vrot.lane.b32.xlu0 %v3059, 48
      %v4106 = vpop.permute.xlu0 %4105
      %4107 = vrot.lane.b32.xlu0 %v3060, 48
      %v4108 = vpop.permute.xlu0 %4107
      %4109 = vrot.lane.b32.xlu0 %v3061, 48
      %v4110 = vpop.permute.xlu0 %4109
      %4111 = vrot.lane.b32.xlu0 %v3062, 48
      %v4112 = vpop.permute.xlu0 %4111
      %4113 = vrot.lane.b32.xlu0 %v3693, 48
      %v4114 = vpop.permute.xlu0 %4113
      %4115 = vrot.lane.b32.xlu0 %v3694, 48
      %v4116 = vpop.permute.xlu0 %4115
      %4117 = vrot.lane.b32.xlu0 %v4063, 48
      %v4118 = vpop.permute.xlu0 %4117
      %4119 = vrot.lane.b32.xlu0 %v4064, 48
      %v4120 = vpop.permute.xlu0 %4119
      %vm4149 = vcmask 454016
      %4150 = vst.msk [vmem:[#allocation3] sm:$0xf] %vm4149, %v4066
      %vm4151 = vcmask 452992
      %4152 = vst.msk [vmem:[#allocation3 + $0x4] sm:$0x7] %vm4151, %v4068
      %4153 = vst.msk [vmem:[#allocation3 + $0x8] sm:$0xf] %vm4149, %v4070
      %4154 = vst.msk [vmem:[#allocation3 + $0xc] sm:$0x7] %vm4151, %v4072
      %4155 = vst.msk [vmem:[#allocation3 + $0x10] sm:$0xf] %vm4149, %v4074
      %4156 = vst.msk [vmem:[#allocation3 + $0x14] sm:$0x7] %vm4151, %v4076
      %4157 = vst.msk [vmem:[#allocation3 + $0x18] sm:$0xf] %vm4149, %v4078
      %4158 = vst.msk [vmem:[#allocation3 + $0x1c] sm:$0x7] %vm4151, %v4080
      %4159 = vst.msk [vmem:[#allocation3 + $0x20] sm:$0xf] %vm4149, %v4082
      %4160 = vst.msk [vmem:[#allocation3 + $0x24] sm:$0x7] %vm4151, %v4084
      %4161 = vst.msk [vmem:[#allocation3 + $0x28] sm:$0xf] %vm4149, %v4086
      %4162 = vst.msk [vmem:[#allocation3 + $0x2c] sm:$0x7] %vm4151, %v4088
      %4163 = vst.msk [vmem:[#allocation3 + $0x30] sm:$0xf] %vm4149, %v4090
      %4164 = vst.msk [vmem:[#allocation3 + $0x34] sm:$0x7] %vm4151, %v4092
      %4165 = vst.msk [vmem:[#allocation3 + $0x38] sm:$0xf] %vm4149, %v4094
      %4166 = vst.msk [vmem:[#allocation3 + $0x3c] sm:$0x7] %vm4151, %v4096
      %4167 = vst.msk [vmem:[#allocation3 + $0x40] sm:$0xf] %vm4149, %v4098
      %4168 = vst.msk [vmem:[#allocation3 + $0x44] sm:$0x7] %vm4151, %v4100
      %4169 = vst.msk [vmem:[#allocation3 + $0x48] sm:$0xf] %vm4149, %v4102
      %4170 = vst.msk [vmem:[#allocation3 + $0x4c] sm:$0x7] %vm4151, %v4104
      %4171 = vst.msk [vmem:[#allocation3 + $0x50] sm:$0xf] %vm4149, %v4106
      %4172 = vst.msk [vmem:[#allocation3 + $0x54] sm:$0x7] %vm4151, %v4108
      %4173 = vst.msk [vmem:[#allocation3 + $0x58] sm:$0xf] %vm4149, %v4110
      %4174 = vst.msk [vmem:[#allocation3 + $0x5c] sm:$0x7] %vm4151, %v4112
      %4175 = vst.msk [vmem:[#allocation3 + $0x60] sm:$0xf] %vm4149, %v4114
      %4176 = vst.msk [vmem:[#allocation3 + $0x64] sm:$0x7] %vm4151, %v4116
      %4177 = vst.msk [vmem:[#allocation3 + $0x68] sm:$0xf] %vm4149, %v4118
      %4178 = vst.msk [vmem:[#allocation3 + $0x6c] sm:$0x7] %vm4151, %v4120
      %v4180 = vshrl.u32 %v4063, 16
      %v4182 = vrot.slane %v4180, 4
      %v4183 = vshll.u32 %v4063, 16
      %v4185 = vrot.slane %v4183, 5
      %v4186 = vor.u32 %v4182, %v4185
      %v4187 = vrot.slane %v4186, 4
      %v4189 = vshll.u32 %v4064, 16
      %v4191 = vrot.slane %v4189, 5
      %v4192 = vsel %vm3123, %v4187, %v4191
      %v4193 = vshrl.u32 %v4064, 16
      %v4195 = vrot.slane %v4193, 4
      %v4196 = vor.u32 %v4195, %v4191
      %v4197 = vrot.slane %v4196, 4
      %4198 = vrot.lane.b32.xlu0 %v3175, 56
      %v4199 = vpop.permute.xlu0 %4198
      %4200 = vrot.lane.b32.xlu0 %v3180, 56
      %v4201 = vpop.permute.xlu0 %4200
      %4202 = vrot.lane.b32.xlu0 %v3194, 56
      %v4203 = vpop.permute.xlu0 %4202
      %4204 = vrot.lane.b32.xlu0 %v3199, 56
      %v4205 = vpop.permute.xlu0 %4204
      %4206 = vrot.lane.b32.xlu0 %v3213, 56
      %v4207 = vpop.permute.xlu0 %4206
      %4208 = vrot.lane.b32.xlu0 %v3218, 56
      %v4209 = vpop.permute.xlu0 %4208
      %4210 = vrot.lane.b32.xlu0 %v3232, 56
      %v4211 = vpop.permute.xlu0 %4210
      %4212 = vrot.lane.b32.xlu0 %v3237, 56
      %v4213 = vpop.permute.xlu0 %4212
      %4214 = vrot.lane.b32.xlu0 %v3251, 56
      %v4215 = vpop.permute.xlu0 %4214
      %4216 = vrot.lane.b32.xlu0 %v3256, 56
      %v4217 = vpop.permute.xlu0 %4216
      %4218 = vrot.lane.b32.xlu0 %v3270, 56
      %v4219 = vpop.permute.xlu0 %4218
      %4220 = vrot.lane.b32.xlu0 %v3275, 56
      %v4221 = vpop.permute.xlu0 %4220
      %4222 = vrot.lane.b32.xlu0 %v3289, 56
      %v4223 = vpop.permute.xlu0 %4222
      %4224 = vrot.lane.b32.xlu0 %v3294, 56
      %v4225 = vpop.permute.xlu0 %4224
      %4226 = vrot.lane.b32.xlu0 %v3308, 56
      %v4227 = vpop.permute.xlu0 %4226
      %4228 = vrot.lane.b32.xlu0 %v3313, 56
      %v4229 = vpop.permute.xlu0 %4228
      %4230 = vrot.lane.b32.xlu0 %v3327, 56
      %v4231 = vpop.permute.xlu0 %4230
      %4232 = vrot.lane.b32.xlu0 %v3332, 56
      %v4233 = vpop.permute.xlu0 %4232
      %4234 = vrot.lane.b32.xlu0 %v3346, 56
      %v4235 = vpop.permute.xlu0 %4234
      %4236 = vrot.lane.b32.xlu0 %v3351, 56
      %v4237 = vpop.permute.xlu0 %4236
      %4238 = vrot.lane.b32.xlu0 %v3365, 56
      %v4239 = vpop.permute.xlu0 %4238
      %4240 = vrot.lane.b32.xlu0 %v3370, 56
      %v4241 = vpop.permute.xlu0 %4240
      %4242 = vrot.lane.b32.xlu0 %v3384, 56
      %v4243 = vpop.permute.xlu0 %4242
      %4244 = vrot.lane.b32.xlu0 %v3389, 56
      %v4245 = vpop.permute.xlu0 %4244
      %4246 = vrot.lane.b32.xlu0 %v3822, 56
      %v4247 = vpop.permute.xlu0 %4246
      %4248 = vrot.lane.b32.xlu0 %v3827, 56
      %v4249 = vpop.permute.xlu0 %4248
      %4250 = vrot.lane.b32.xlu0 %v4192, 56
      %v4251 = vpop.permute.xlu0 %4250
      %4252 = vrot.lane.b32.xlu0 %v4197, 56
      %v4253 = vpop.permute.xlu0 %4252
      %vm4282 = vcmask 519616
      %4283 = vst.msk [vmem:[#allocation3] sm:$0xf] %vm4282, %v4199
      %vm4284 = vcmask 518592
      %4285 = vst.msk [vmem:[#allocation3 + $0x4] sm:$0x7] %vm4284, %v4201
      %4286 = vst.msk [vmem:[#allocation3 + $0x8] sm:$0xf] %vm4282, %v4203
      %4287 = vst.msk [vmem:[#allocation3 + $0xc] sm:$0x7] %vm4284, %v4205
      %4288 = vst.msk [vmem:[#allocation3 + $0x10] sm:$0xf] %vm4282, %v4207
      %4289 = vst.msk [vmem:[#allocation3 + $0x14] sm:$0x7] %vm4284, %v4209
      %4290 = vst.msk [vmem:[#allocation3 + $0x18] sm:$0xf] %vm4282, %v4211
      %4291 = vst.msk [vmem:[#allocation3 + $0x1c] sm:$0x7] %vm4284, %v4213
      %4292 = vst.msk [vmem:[#allocation3 + $0x20] sm:$0xf] %vm4282, %v4215
      %4293 = vst.msk [vmem:[#allocation3 + $0x24] sm:$0x7] %vm4284, %v4217
      %4294 = vst.msk [vmem:[#allocation3 + $0x28] sm:$0xf] %vm4282, %v4219
      %4295 = vst.msk [vmem:[#allocation3 + $0x2c] sm:$0x7] %vm4284, %v4221
      %4296 = vst.msk [vmem:[#allocation3 + $0x30] sm:$0xf] %vm4282, %v4223
      %4297 = vst.msk [vmem:[#allocation3 + $0x34] sm:$0x7] %vm4284, %v4225
      %4298 = vst.msk [vmem:[#allocation3 + $0x38] sm:$0xf] %vm4282, %v4227
      %4299 = vst.msk [vmem:[#allocation3 + $0x3c] sm:$0x7] %vm4284, %v4229
      %4300 = vst.msk [vmem:[#allocation3 + $0x40] sm:$0xf] %vm4282, %v4231
      %4301 = vst.msk [vmem:[#allocation3 + $0x44] sm:$0x7] %vm4284, %v4233
      %4302 = vst.msk [vmem:[#allocation3 + $0x48] sm:$0xf] %vm4282, %v4235
      %4303 = vst.msk [vmem:[#allocation3 + $0x4c] sm:$0x7] %vm4284, %v4237
      %4304 = vst.msk [vmem:[#allocation3 + $0x50] sm:$0xf] %vm4282, %v4239
      %4305 = vst.msk [vmem:[#allocation3 + $0x54] sm:$0x7] %vm4284, %v4241
      %4306 = vst.msk [vmem:[#allocation3 + $0x58] sm:$0xf] %vm4282, %v4243
      %4307 = vst.msk [vmem:[#allocation3 + $0x5c] sm:$0x7] %vm4284, %v4245
      %4308 = vst.msk [vmem:[#allocation3 + $0x60] sm:$0xf] %vm4282, %v4247
      %4309 = vst.msk [vmem:[#allocation3 + $0x64] sm:$0x7] %vm4284, %v4249
      %4310 = vst.msk [vmem:[#allocation3 + $0x68] sm:$0xf] %vm4282, %v4251
      %4311 = vst.msk [vmem:[#allocation3 + $0x6c] sm:$0x7] %vm4284, %v4253
      %v4312 = vrot.slane %v4063, 5
      %v4313 = vrot.slane %v4312, 4
      %v4314 = vrot.slane %v4064, 5
      %v4315 = vsel %vm3506, %v4313, %v4314
      %v4316 = vrot.slane %v4314, 4
      %4317 = vrot.lane.b32.xlu0 %v3520, 64
      %v4318 = vpop.permute.xlu0 %4317
      %4319 = vrot.lane.b32.xlu0 %v3521, 64
      %v4320 = vpop.permute.xlu0 %4319
      %4321 = vrot.lane.b32.xlu0 %v3525, 64
      %v4322 = vpop.permute.xlu0 %4321
      %4323 = vrot.lane.b32.xlu0 %v3526, 64
      %v4324 = vpop.permute.xlu0 %4323
      %4325 = vrot.lane.b32.xlu0 %v3530, 64
      %v4326 = vpop.permute.xlu0 %4325
      %4327 = vrot.lane.b32.xlu0 %v3531, 64
      %v4328 = vpop.permute.xlu0 %4327
      %4329 = vrot.lane.b32.xlu0 %v3535, 64
      %v4330 = vpop.permute.xlu0 %4329
      %4331 = vrot.lane.b32.xlu0 %v3536, 64
      %v4332 = vpop.permute.xlu0 %4331
      %4333 = vrot.lane.b32.xlu0 %v3540, 64
      %v4334 = vpop.permute.xlu0 %4333
      %4335 = vrot.lane.b32.xlu0 %v3541, 64
      %v4336 = vpop.permute.xlu0 %4335
      %4337 = vrot.lane.b32.xlu0 %v3545, 64
      %v4338 = vpop.permute.xlu0 %4337
      %4339 = vrot.lane.b32.xlu0 %v3546, 64
      %v4340 = vpop.permute.xlu0 %4339
      %4341 = vrot.lane.b32.xlu0 %v3550, 64
      %v4342 = vpop.permute.xlu0 %4341
      %4343 = vrot.lane.b32.xlu0 %v3551, 64
      %v4344 = vpop.permute.xlu0 %4343
      %4345 = vrot.lane.b32.xlu0 %v3555, 64
      %v4346 = vpop.permute.xlu0 %4345
      %4347 = vrot.lane.b32.xlu0 %v3556, 64
      %v4348 = vpop.permute.xlu0 %4347
      %4349 = vrot.lane.b32.xlu0 %v3560, 64
      %v4350 = vpop.permute.xlu0 %4349
      %4351 = vrot.lane.b32.xlu0 %v3561, 64
      %v4352 = vpop.permute.xlu0 %4351
      %4353 = vrot.lane.b32.xlu0 %v3565, 64
      %v4354 = vpop.permute.xlu0 %4353
      %4355 = vrot.lane.b32.xlu0 %v3566, 64
      %v4356 = vpop.permute.xlu0 %4355
      %4357 = vrot.lane.b32.xlu0 %v3570, 64
      %v4358 = vpop.permute.xlu0 %4357
      %4359 = vrot.lane.b32.xlu0 %v3571, 64
      %v4360 = vpop.permute.xlu0 %4359
      %4361 = vrot.lane.b32.xlu0 %v3575, 64
      %v4362 = vpop.permute.xlu0 %4361
      %4363 = vrot.lane.b32.xlu0 %v3576, 64
      %v4364 = vpop.permute.xlu0 %4363
      %4365 = vrot.lane.b32.xlu0 %v3945, 64
      %v4366 = vpop.permute.xlu0 %4365
      %4367 = vrot.lane.b32.xlu0 %v3946, 64
      %v4368 = vpop.permute.xlu0 %4367
      %4369 = vrot.lane.b32.xlu0 %v4315, 64
      %v4370 = vpop.permute.xlu0 %4369
      %4371 = vrot.lane.b32.xlu0 %v4316, 64
      %v4372 = vpop.permute.xlu0 %4371
      %vm4401 = vcmask 585216
      %4402 = vst.msk [vmem:[#allocation3] sm:$0xf] %vm4401, %v4318
      %vm4403 = vcmask 584192
      %4404 = vst.msk [vmem:[#allocation3 + $0x4] sm:$0x7] %vm4403, %v4320
      %4405 = vst.msk [vmem:[#allocation3 + $0x8] sm:$0xf] %vm4401, %v4322
      %4406 = vst.msk [vmem:[#allocation3 + $0xc] sm:$0x7] %vm4403, %v4324
      %4407 = vst.msk [vmem:[#allocation3 + $0x10] sm:$0xf] %vm4401, %v4326
      %4408 = vst.msk [vmem:[#allocation3 + $0x14] sm:$0x7] %vm4403, %v4328
      %4409 = vst.msk [vmem:[#allocation3 + $0x18] sm:$0xf] %vm4401, %v4330
      %4410 = vst.msk [vmem:[#allocation3 + $0x1c] sm:$0x7] %vm4403, %v4332
      %4411 = vst.msk [vmem:[#allocation3 + $0x20] sm:$0xf] %vm4401, %v4334
      %4412 = vst.msk [vmem:[#allocation3 + $0x24] sm:$0x7] %vm4403, %v4336
      %4413 = vst.msk [vmem:[#allocation3 + $0x28] sm:$0xf] %vm4401, %v4338
      %4414 = vst.msk [vmem:[#allocation3 + $0x2c] sm:$0x7] %vm4403, %v4340
      %4415 = vst.msk [vmem:[#allocation3 + $0x30] sm:$0xf] %vm4401, %v4342
      %4416 = vst.msk [vmem:[#allocation3 + $0x34] sm:$0x7] %vm4403, %v4344
      %4417 = vst.msk [vmem:[#allocation3 + $0x38] sm:$0xf] %vm4401, %v4346
      %4418 = vst.msk [vmem:[#allocation3 + $0x3c] sm:$0x7] %vm4403, %v4348
      %4419 = vst.msk [vmem:[#allocation3 + $0x40] sm:$0xf] %vm4401, %v4350
      %4420 = vst.msk [vmem:[#allocation3 + $0x44] sm:$0x7] %vm4403, %v4352
      %4421 = vst.msk [vmem:[#allocation3 + $0x48] sm:$0xf] %vm4401, %v4354
      %4422 = vst.msk [vmem:[#allocation3 + $0x4c] sm:$0x7] %vm4403, %v4356
      %4423 = vst.msk [vmem:[#allocation3 + $0x50] sm:$0xf] %vm4401, %v4358
      %4424 = vst.msk [vmem:[#allocation3 + $0x54] sm:$0x7] %vm4403, %v4360
      %4425 = vst.msk [vmem:[#allocation3 + $0x58] sm:$0xf] %vm4401, %v4362
      %4426 = vst.msk [vmem:[#allocation3 + $0x5c] sm:$0x7] %vm4403, %v4364
      %4427 = vst.msk [vmem:[#allocation3 + $0x60] sm:$0xf] %vm4401, %v4366
      %4428 = vst.msk [vmem:[#allocation3 + $0x64] sm:$0x7] %vm4403, %v4368
      %4429 = vst.msk [vmem:[#allocation3 + $0x68] sm:$0xf] %vm4401, %v4370
      %4430 = vst.msk [vmem:[#allocation3 + $0x6c] sm:$0x7] %vm4403, %v4372
      %v4431 = vld [vmem:[#allocation3] sm:$0xf]
      %v4432 = vld [vmem:[#allocation3 + $0x4] sm:$0x7]
      %v4433 = vld [vmem:[#allocation3 + $0x8] sm:$0xf]
      %v4434 = vld [vmem:[#allocation3 + $0xc] sm:$0x7]
      %v4435 = vld [vmem:[#allocation3 + $0x10] sm:$0xf]
      %v4436 = vld [vmem:[#allocation3 + $0x14] sm:$0x7]
      %v4437 = vld [vmem:[#allocation3 + $0x18] sm:$0xf]
      %v4438 = vld [vmem:[#allocation3 + $0x1c] sm:$0x7]
      %v4439 = vld [vmem:[#allocation3 + $0x20] sm:$0xf]
      %v4440 = vld [vmem:[#allocation3 + $0x24] sm:$0x7]
      %v4441 = vld [vmem:[#allocation3 + $0x28] sm:$0xf]
      %v4442 = vld [vmem:[#allocation3 + $0x2c] sm:$0x7]
      %v4443 = vld [vmem:[#allocation3 + $0x30] sm:$0xf]
      %v4444 = vld [vmem:[#allocation3 + $0x34] sm:$0x7]
      %v4445 = vld [vmem:[#allocation3 + $0x38] sm:$0xf]
      %v4446 = vld [vmem:[#allocation3 + $0x3c] sm:$0x7]
      %v4447 = vld [vmem:[#allocation3 + $0x40] sm:$0xf]
      %v4448 = vld [vmem:[#allocation3 + $0x44] sm:$0x7]
      %v4449 = vld [vmem:[#allocation3 + $0x48] sm:$0xf]
      %v4450 = vld [vmem:[#allocation3 + $0x4c] sm:$0x7]
      %v4451 = vld [vmem:[#allocation3 + $0x50] sm:$0xf]
      %v4452 = vld [vmem:[#allocation3 + $0x54] sm:$0x7]
      %v4453 = vld [vmem:[#allocation3 + $0x58] sm:$0xf]
      %v4454 = vld [vmem:[#allocation3 + $0x5c] sm:$0x7]
      %v4455 = vld [vmem:[#allocation3 + $0x60] sm:$0xf]
      %v4456 = vld [vmem:[#allocation3 + $0x64] sm:$0x7]
      %v4457 = vld [vmem:[#allocation3 + $0x68] sm:$0xf]
      %v4458 = vld [vmem:[#allocation3 + $0x6c] sm:$0x7]
      %v4488 = vunpack.c.l.s4 1966171168
      %v4489 = vunpack.c.0.s8 %v4488
      %v4490 = vlaneseq
      %v4491 = vshrl.u32 %v4490, 7
      %v4492 = vsub.s32 %v4489, %v4491
      %v4493 = vrot.slane %v4431, %v4492
      %v4494 = vcombine.high %v4493, %v4493
      %v4496 = vunpack.c.l.s4 1966171168
      %v4497 = vunpack.c.0.s8 %v4496
      %v4498 = vlaneseq
      %v4499 = vshrl.u32 %v4498, 7
      %v4500 = vsub.s32 %v4497, %v4499
      %v4501 = vrot.slane %v4493, %v4500
      %v4503 = vunpack.c.l.s4 1966171168
      %v4504 = vunpack.c.0.s8 %v4503
      %v4505 = vlaneseq
      %v4506 = vshrl.u32 %v4505, 7
      %v4507 = vsub.s32 %v4504, %v4506
      %v4508 = vrot.slane %v4494, %v4507
      %v4509 = vcombine.high %v4501, %v4501
      %v4510 = vcombine.high %v4508, %v4508
      %v4512 = vunpack.c.l.s4 1966171168
      %v4513 = vunpack.c.0.s8 %v4512
      %v4514 = vlaneseq
      %v4515 = vshrl.u32 %v4514, 7
      %v4516 = vsub.s32 %v4513, %v4515
      %v4517 = vrot.slane %v4432, %v4516
      %v4518 = vcombine.high %v4517, %v4517
      %v4520 = vunpack.c.l.s4 1966171168
      %v4521 = vunpack.c.0.s8 %v4520
      %v4522 = vlaneseq
      %v4523 = vshrl.u32 %v4522, 7
      %v4524 = vsub.s32 %v4521, %v4523
      %v4525 = vrot.slane %v4517, %v4524
      %v4527 = vunpack.c.l.s4 1966171168
      %v4528 = vunpack.c.0.s8 %v4527
      %v4529 = vlaneseq
      %v4530 = vshrl.u32 %v4529, 7
      %v4531 = vsub.s32 %v4528, %v4530
      %v4532 = vrot.slane %v4518, %v4531
      %v4533 = vcombine.high %v4525, %v4525
      %v4535 = vunpack.c.l.s4 1966171168
      %v4536 = vunpack.c.0.s8 %v4535
      %v4537 = vlaneseq
      %v4538 = vshrl.u32 %v4537, 7
      %v4539 = vsub.s32 %v4536, %v4538
      %v4540 = vrot.slane %v4433, %v4539
      %v4541 = vcombine.high %v4540, %v4540
      %v4543 = vunpack.c.l.s4 1966171168
      %v4544 = vunpack.c.0.s8 %v4543
      %v4545 = vlaneseq
      %v4546 = vshrl.u32 %v4545, 7
      %v4547 = vsub.s32 %v4544, %v4546
      %v4548 = vrot.slane %v4540, %v4547
      %v4550 = vunpack.c.l.s4 1966171168
      %v4551 = vunpack.c.0.s8 %v4550
      %v4552 = vlaneseq
      %v4553 = vshrl.u32 %v4552, 7
      %v4554 = vsub.s32 %v4551, %v4553
      %v4555 = vrot.slane %v4541, %v4554
      %v4556 = vcombine.high %v4548, %v4548
      %v4557 = vcombine.high %v4555, %v4555
      %v4559 = vunpack.c.l.s4 1966171168
      %v4560 = vunpack.c.0.s8 %v4559
      %v4561 = vlaneseq
      %v4562 = vshrl.u32 %v4561, 7
      %v4563 = vsub.s32 %v4560, %v4562
      %v4564 = vrot.slane %v4434, %v4563
      %v4565 = vcombine.high %v4564, %v4564
      %v4567 = vunpack.c.l.s4 1966171168
      %v4568 = vunpack.c.0.s8 %v4567
      %v4569 = vlaneseq
      %v4570 = vshrl.u32 %v4569, 7
      %v4571 = vsub.s32 %v4568, %v4570
      %v4572 = vrot.slane %v4564, %v4571
      %v4574 = vunpack.c.l.s4 1966171168
      %v4575 = vunpack.c.0.s8 %v4574
      %v4576 = vlaneseq
      %v4577 = vshrl.u32 %v4576, 7
      %v4578 = vsub.s32 %v4575, %v4577
      %v4579 = vrot.slane %v4565, %v4578
      %v4580 = vcombine.high %v4572, %v4572
      %v4582 = vunpack.c.l.s4 1966171168
      %v4583 = vunpack.c.0.s8 %v4582
      %v4584 = vlaneseq
      %v4585 = vshrl.u32 %v4584, 7
      %v4586 = vsub.s32 %v4583, %v4585
      %v4587 = vrot.slane %v4435, %v4586
      %v4588 = vcombine.high %v4587, %v4587
      %v4590 = vunpack.c.l.s4 1966171168
      %v4591 = vunpack.c.0.s8 %v4590
      %v4592 = vlaneseq
      %v4593 = vshrl.u32 %v4592, 7
      %v4594 = vsub.s32 %v4591, %v4593
      %v4595 = vrot.slane %v4587, %v4594
      %v4597 = vunpack.c.l.s4 1966171168
      %v4598 = vunpack.c.0.s8 %v4597
      %v4599 = vlaneseq
      %v4600 = vshrl.u32 %v4599, 7
      %v4601 = vsub.s32 %v4598, %v4600
      %v4602 = vrot.slane %v4588, %v4601
      %v4603 = vcombine.high %v4595, %v4595
      %v4604 = vcombine.high %v4602, %v4602
      %v4606 = vunpack.c.l.s4 1966171168
      %v4607 = vunpack.c.0.s8 %v4606
      %v4608 = vlaneseq
      %v4609 = vshrl.u32 %v4608, 7
      %v4610 = vsub.s32 %v4607, %v4609
      %v4611 = vrot.slane %v4436, %v4610
      %v4612 = vcombine.high %v4611, %v4611
      %v4614 = vunpack.c.l.s4 1966171168
      %v4615 = vunpack.c.0.s8 %v4614
      %v4616 = vlaneseq
      %v4617 = vshrl.u32 %v4616, 7
      %v4618 = vsub.s32 %v4615, %v4617
      %v4619 = vrot.slane %v4611, %v4618
      %v4621 = vunpack.c.l.s4 1966171168
      %v4622 = vunpack.c.0.s8 %v4621
      %v4623 = vlaneseq
      %v4624 = vshrl.u32 %v4623, 7
      %v4625 = vsub.s32 %v4622, %v4624
      %v4626 = vrot.slane %v4612, %v4625
      %v4627 = vcombine.high %v4619, %v4619
      %v4629 = vunpack.c.l.s4 1966171168
      %v4630 = vunpack.c.0.s8 %v4629
      %v4631 = vlaneseq
      %v4632 = vshrl.u32 %v4631, 7
      %v4633 = vsub.s32 %v4630, %v4632
      %v4634 = vrot.slane %v4437, %v4633
      %v4635 = vcombine.high %v4634, %v4634
      %v4637 = vunpack.c.l.s4 1966171168
      %v4638 = vunpack.c.0.s8 %v4637
      %v4639 = vlaneseq
      %v4640 = vshrl.u32 %v4639, 7
      %v4641 = vsub.s32 %v4638, %v4640
      %v4642 = vrot.slane %v4634, %v4641
      %v4644 = vunpack.c.l.s4 1966171168
      %v4645 = vunpack.c.0.s8 %v4644
      %v4646 = vlaneseq
      %v4647 = vshrl.u32 %v4646, 7
      %v4648 = vsub.s32 %v4645, %v4647
      %v4649 = vrot.slane %v4635, %v4648
      %v4650 = vcombine.high %v4642, %v4642
      %v4651 = vcombine.high %v4649, %v4649
      %v4653 = vunpack.c.l.s4 1966171168
      %v4654 = vunpack.c.0.s8 %v4653
      %v4655 = vlaneseq
      %v4656 = vshrl.u32 %v4655, 7
      %v4657 = vsub.s32 %v4654, %v4656
      %v4658 = vrot.slane %v4438, %v4657
      %v4659 = vcombine.high %v4658, %v4658
      %v4661 = vunpack.c.l.s4 1966171168
      %v4662 = vunpack.c.0.s8 %v4661
      %v4663 = vlaneseq
      %v4664 = vshrl.u32 %v4663, 7
      %v4665 = vsub.s32 %v4662, %v4664
      %v4666 = vrot.slane %v4658, %v4665
      %v4668 = vunpack.c.l.s4 1966171168
      %v4669 = vunpack.c.0.s8 %v4668
      %v4670 = vlaneseq
      %v4671 = vshrl.u32 %v4670, 7
      %v4672 = vsub.s32 %v4669, %v4671
      %v4673 = vrot.slane %v4659, %v4672
      %v4674 = vcombine.high %v4666, %v4666
      %v4676 = vunpack.c.l.s4 1966171168
      %v4677 = vunpack.c.0.s8 %v4676
      %v4678 = vlaneseq
      %v4679 = vshrl.u32 %v4678, 7
      %v4680 = vsub.s32 %v4677, %v4679
      %v4681 = vrot.slane %v4439, %v4680
      %v4682 = vcombine.high %v4681, %v4681
      %v4684 = vunpack.c.l.s4 1966171168
      %v4685 = vunpack.c.0.s8 %v4684
      %v4686 = vlaneseq
      %v4687 = vshrl.u32 %v4686, 7
      %v4688 = vsub.s32 %v4685, %v4687
      %v4689 = vrot.slane %v4681, %v4688
      %v4691 = vunpack.c.l.s4 1966171168
      %v4692 = vunpack.c.0.s8 %v4691
      %v4693 = vlaneseq
      %v4694 = vshrl.u32 %v4693, 7
      %v4695 = vsub.s32 %v4692, %v4694
      %v4696 = vrot.slane %v4682, %v4695
      %v4697 = vcombine.high %v4689, %v4689
      %v4698 = vcombine.high %v4696, %v4696
      %v4700 = vunpack.c.l.s4 1966171168
      %v4701 = vunpack.c.0.s8 %v4700
      %v4702 = vlaneseq
      %v4703 = vshrl.u32 %v4702, 7
      %v4704 = vsub.s32 %v4701, %v4703
      %v4705 = vrot.slane %v4440, %v4704
      %v4706 = vcombine.high %v4705, %v4705
      %v4708 = vunpack.c.l.s4 1966171168
      %v4709 = vunpack.c.0.s8 %v4708
      %v4710 = vlaneseq
      %v4711 = vshrl.u32 %v4710, 7
      %v4712 = vsub.s32 %v4709, %v4711
      %v4713 = vrot.slane %v4705, %v4712
      %v4715 = vunpack.c.l.s4 1966171168
      %v4716 = vunpack.c.0.s8 %v4715
      %v4717 = vlaneseq
      %v4718 = vshrl.u32 %v4717, 7
      %v4719 = vsub.s32 %v4716, %v4718
      %v4720 = vrot.slane %v4706, %v4719
      %v4721 = vcombine.high %v4713, %v4713
      %v4723 = vunpack.c.l.s4 1966171168
      %v4724 = vunpack.c.0.s8 %v4723
      %v4725 = vlaneseq
      %v4726 = vshrl.u32 %v4725, 7
      %v4727 = vsub.s32 %v4724, %v4726
      %v4728 = vrot.slane %v4441, %v4727
      %v4729 = vcombine.high %v4728, %v4728
      %v4731 = vunpack.c.l.s4 1966171168
      %v4732 = vunpack.c.0.s8 %v4731
      %v4733 = vlaneseq
      %v4734 = vshrl.u32 %v4733, 7
      %v4735 = vsub.s32 %v4732, %v4734
      %v4736 = vrot.slane %v4728, %v4735
      %v4738 = vunpack.c.l.s4 1966171168
      %v4739 = vunpack.c.0.s8 %v4738
      %v4740 = vlaneseq
      %v4741 = vshrl.u32 %v4740, 7
      %v4742 = vsub.s32 %v4739, %v4741
      %v4743 = vrot.slane %v4729, %v4742
      %v4744 = vcombine.high %v4736, %v4736
      %v4745 = vcombine.high %v4743, %v4743
      %v4747 = vunpack.c.l.s4 1966171168
      %v4748 = vunpack.c.0.s8 %v4747
      %v4749 = vlaneseq
      %v4750 = vshrl.u32 %v4749, 7
      %v4751 = vsub.s32 %v4748, %v4750
      %v4752 = vrot.slane %v4442, %v4751
      %v4753 = vcombine.high %v4752, %v4752
      %v4755 = vunpack.c.l.s4 1966171168
      %v4756 = vunpack.c.0.s8 %v4755
      %v4757 = vlaneseq
      %v4758 = vshrl.u32 %v4757, 7
      %v4759 = vsub.s32 %v4756, %v4758
      %v4760 = vrot.slane %v4752, %v4759
      %v4762 = vunpack.c.l.s4 1966171168
      %v4763 = vunpack.c.0.s8 %v4762
      %v4764 = vlaneseq
      %v4765 = vshrl.u32 %v4764, 7
      %v4766 = vsub.s32 %v4763, %v4765
      %v4767 = vrot.slane %v4753, %v4766
      %v4768 = vcombine.high %v4760, %v4760
      %v4770 = vunpack.c.l.s4 1966171168
      %v4771 = vunpack.c.0.s8 %v4770
      %v4772 = vlaneseq
      %v4773 = vshrl.u32 %v4772, 7
      %v4774 = vsub.s32 %v4771, %v4773
      %v4775 = vrot.slane %v4443, %v4774
      %v4776 = vcombine.high %v4775, %v4775
      %v4778 = vunpack.c.l.s4 1966171168
      %v4779 = vunpack.c.0.s8 %v4778
      %v4780 = vlaneseq
      %v4781 = vshrl.u32 %v4780, 7
      %v4782 = vsub.s32 %v4779, %v4781
      %v4783 = vrot.slane %v4775, %v4782
      %v4785 = vunpack.c.l.s4 1966171168
      %v4786 = vunpack.c.0.s8 %v4785
      %v4787 = vlaneseq
      %v4788 = vshrl.u32 %v4787, 7
      %v4789 = vsub.s32 %v4786, %v4788
      %v4790 = vrot.slane %v4776, %v4789
      %v4791 = vcombine.high %v4783, %v4783
      %v4792 = vcombine.high %v4790, %v4790
      %v4794 = vunpack.c.l.s4 1966171168
      %v4795 = vunpack.c.0.s8 %v4794
      %v4796 = vlaneseq
      %v4797 = vshrl.u32 %v4796, 7
      %v4798 = vsub.s32 %v4795, %v4797
      %v4799 = vrot.slane %v4444, %v4798
      %v4800 = vcombine.high %v4799, %v4799
      %v4802 = vunpack.c.l.s4 1966171168
      %v4803 = vunpack.c.0.s8 %v4802
      %v4804 = vlaneseq
      %v4805 = vshrl.u32 %v4804, 7
      %v4806 = vsub.s32 %v4803, %v4805
      %v4807 = vrot.slane %v4799, %v4806
      %v4809 = vunpack.c.l.s4 1966171168
      %v4810 = vunpack.c.0.s8 %v4809
      %v4811 = vlaneseq
      %v4812 = vshrl.u32 %v4811, 7
      %v4813 = vsub.s32 %v4810, %v4812
      %v4814 = vrot.slane %v4800, %v4813
      %v4815 = vcombine.high %v4807, %v4807
      %v4817 = vunpack.c.l.s4 1966171168
      %v4818 = vunpack.c.0.s8 %v4817
      %v4819 = vlaneseq
      %v4820 = vshrl.u32 %v4819, 7
      %v4821 = vsub.s32 %v4818, %v4820
      %v4822 = vrot.slane %v4445, %v4821
      %v4823 = vcombine.high %v4822, %v4822
      %v4825 = vunpack.c.l.s4 1966171168
      %v4826 = vunpack.c.0.s8 %v4825
      %v4827 = vlaneseq
      %v4828 = vshrl.u32 %v4827, 7
      %v4829 = vsub.s32 %v4826, %v4828
      %v4830 = vrot.slane %v4822, %v4829
      %v4832 = vunpack.c.l.s4 1966171168
      %v4833 = vunpack.c.0.s8 %v4832
      %v4834 = vlaneseq
      %v4835 = vshrl.u32 %v4834, 7
      %v4836 = vsub.s32 %v4833, %v4835
      %v4837 = vrot.slane %v4823, %v4836
      %v4838 = vcombine.high %v4830, %v4830
      %v4839 = vcombine.high %v4837, %v4837
      %v4841 = vunpack.c.l.s4 1966171168
      %v4842 = vunpack.c.0.s8 %v4841
      %v4843 = vlaneseq
      %v4844 = vshrl.u32 %v4843, 7
      %v4845 = vsub.s32 %v4842, %v4844
      %v4846 = vrot.slane %v4446, %v4845
      %v4847 = vcombine.high %v4846, %v4846
      %v4849 = vunpack.c.l.s4 1966171168
      %v4850 = vunpack.c.0.s8 %v4849
      %v4851 = vlaneseq
      %v4852 = vshrl.u32 %v4851, 7
      %v4853 = vsub.s32 %v4850, %v4852
      %v4854 = vrot.slane %v4846, %v4853
      %v4856 = vunpack.c.l.s4 1966171168
      %v4857 = vunpack.c.0.s8 %v4856
      %v4858 = vlaneseq
      %v4859 = vshrl.u32 %v4858, 7
      %v4860 = vsub.s32 %v4857, %v4859
      %v4861 = vrot.slane %v4847, %v4860
      %v4862 = vcombine.high %v4854, %v4854
      %v4864 = vunpack.c.l.s4 1966171168
      %v4865 = vunpack.c.0.s8 %v4864
      %v4866 = vlaneseq
      %v4867 = vshrl.u32 %v4866, 7
      %v4868 = vsub.s32 %v4865, %v4867
      %v4869 = vrot.slane %v4447, %v4868
      %v4870 = vcombine.high %v4869, %v4869
      %v4872 = vunpack.c.l.s4 1966171168
      %v4873 = vunpack.c.0.s8 %v4872
      %v4874 = vlaneseq
      %v4875 = vshrl.u32 %v4874, 7
      %v4876 = vsub.s32 %v4873, %v4875
      %v4877 = vrot.slane %v4869, %v4876
      %v4879 = vunpack.c.l.s4 1966171168
      %v4880 = vunpack.c.0.s8 %v4879
      %v4881 = vlaneseq
      %v4882 = vshrl.u32 %v4881, 7
      %v4883 = vsub.s32 %v4880, %v4882
      %v4884 = vrot.slane %v4870, %v4883
      %v4885 = vcombine.high %v4877, %v4877
      %v4886 = vcombine.high %v4884, %v4884
      %v4888 = vunpack.c.l.s4 1966171168
      %v4889 = vunpack.c.0.s8 %v4888
      %v4890 = vlaneseq
      %v4891 = vshrl.u32 %v4890, 7
      %v4892 = vsub.s32 %v4889, %v4891
      %v4893 = vrot.slane %v4448, %v4892
      %v4894 = vcombine.high %v4893, %v4893
      %v4896 = vunpack.c.l.s4 1966171168
      %v4897 = vunpack.c.0.s8 %v4896
      %v4898 = vlaneseq
      %v4899 = vshrl.u32 %v4898, 7
      %v4900 = vsub.s32 %v4897, %v4899
      %v4901 = vrot.slane %v4893, %v4900
      %v4903 = vunpack.c.l.s4 1966171168
      %v4904 = vunpack.c.0.s8 %v4903
      %v4905 = vlaneseq
      %v4906 = vshrl.u32 %v4905, 7
      %v4907 = vsub.s32 %v4904, %v4906
      %v4908 = vrot.slane %v4894, %v4907
      %v4909 = vcombine.high %v4901, %v4901
      %v4911 = vunpack.c.l.s4 1966171168
      %v4912 = vunpack.c.0.s8 %v4911
      %v4913 = vlaneseq
      %v4914 = vshrl.u32 %v4913, 7
      %v4915 = vsub.s32 %v4912, %v4914
      %v4916 = vrot.slane %v4449, %v4915
      %v4917 = vcombine.high %v4916, %v4916
      %v4919 = vunpack.c.l.s4 1966171168
      %v4920 = vunpack.c.0.s8 %v4919
      %v4921 = vlaneseq
      %v4922 = vshrl.u32 %v4921, 7
      %v4923 = vsub.s32 %v4920, %v4922
      %v4924 = vrot.slane %v4916, %v4923
      %v4926 = vunpack.c.l.s4 1966171168
      %v4927 = vunpack.c.0.s8 %v4926
      %v4928 = vlaneseq
      %v4929 = vshrl.u32 %v4928, 7
      %v4930 = vsub.s32 %v4927, %v4929
      %v4931 = vrot.slane %v4917, %v4930
      %v4932 = vcombine.high %v4924, %v4924
      %v4933 = vcombine.high %v4931, %v4931
      %v4935 = vunpack.c.l.s4 1966171168
      %v4936 = vunpack.c.0.s8 %v4935
      %v4937 = vlaneseq
      %v4938 = vshrl.u32 %v4937, 7
      %v4939 = vsub.s32 %v4936, %v4938
      %v4940 = vrot.slane %v4450, %v4939
      %v4941 = vcombine.high %v4940, %v4940
      %v4943 = vunpack.c.l.s4 1966171168
      %v4944 = vunpack.c.0.s8 %v4943
      %v4945 = vlaneseq
      %v4946 = vshrl.u32 %v4945, 7
      %v4947 = vsub.s32 %v4944, %v4946
      %v4948 = vrot.slane %v4940, %v4947
      %v4950 = vunpack.c.l.s4 1966171168
      %v4951 = vunpack.c.0.s8 %v4950
      %v4952 = vlaneseq
      %v4953 = vshrl.u32 %v4952, 7
      %v4954 = vsub.s32 %v4951, %v4953
      %v4955 = vrot.slane %v4941, %v4954
      %v4956 = vcombine.high %v4948, %v4948
      %v4958 = vunpack.c.l.s4 1966171168
      %v4959 = vunpack.c.0.s8 %v4958
      %v4960 = vlaneseq
      %v4961 = vshrl.u32 %v4960, 7
      %v4962 = vsub.s32 %v4959, %v4961
      %v4963 = vrot.slane %v4451, %v4962
      %v4964 = vcombine.high %v4963, %v4963
      %v4966 = vunpack.c.l.s4 1966171168
      %v4967 = vunpack.c.0.s8 %v4966
      %v4968 = vlaneseq
      %v4969 = vshrl.u32 %v4968, 7
      %v4970 = vsub.s32 %v4967, %v4969
      %v4971 = vrot.slane %v4963, %v4970
      %v4973 = vunpack.c.l.s4 1966171168
      %v4974 = vunpack.c.0.s8 %v4973
      %v4975 = vlaneseq
      %v4976 = vshrl.u32 %v4975, 7
      %v4977 = vsub.s32 %v4974, %v4976
      %v4978 = vrot.slane %v4964, %v4977
      %v4979 = vcombine.high %v4971, %v4971
      %v4980 = vcombine.high %v4978, %v4978
      %v4982 = vunpack.c.l.s4 1966171168
      %v4983 = vunpack.c.0.s8 %v4982
      %v4984 = vlaneseq
      %v4985 = vshrl.u32 %v4984, 7
      %v4986 = vsub.s32 %v4983, %v4985
      %v4987 = vrot.slane %v4452, %v4986
      %v4988 = vcombine.high %v4987, %v4987
      %v4990 = vunpack.c.l.s4 1966171168
      %v4991 = vunpack.c.0.s8 %v4990
      %v4992 = vlaneseq
      %v4993 = vshrl.u32 %v4992, 7
      %v4994 = vsub.s32 %v4991, %v4993
      %v4995 = vrot.slane %v4987, %v4994
      %v4997 = vunpack.c.l.s4 1966171168
      %v4998 = vunpack.c.0.s8 %v4997
      %v4999 = vlaneseq
      %v5000 = vshrl.u32 %v4999, 7
      %v5001 = vsub.s32 %v4998, %v5000
      %v5002 = vrot.slane %v4988, %v5001
      %v5003 = vcombine.high %v4995, %v4995
      %v5005 = vunpack.c.l.s4 1966171168
      %v5006 = vunpack.c.0.s8 %v5005
      %v5007 = vlaneseq
      %v5008 = vshrl.u32 %v5007, 7
      %v5009 = vsub.s32 %v5006, %v5008
      %v5010 = vrot.slane %v4453, %v5009
      %v5011 = vcombine.high %v5010, %v5010
      %v5013 = vunpack.c.l.s4 1966171168
      %v5014 = vunpack.c.0.s8 %v5013
      %v5015 = vlaneseq
      %v5016 = vshrl.u32 %v5015, 7
      %v5017 = vsub.s32 %v5014, %v5016
      %v5018 = vrot.slane %v5010, %v5017
      %v5020 = vunpack.c.l.s4 1966171168
      %v5021 = vunpack.c.0.s8 %v5020
      %v5022 = vlaneseq
      %v5023 = vshrl.u32 %v5022, 7
      %v5024 = vsub.s32 %v5021, %v5023
      %v5025 = vrot.slane %v5011, %v5024
      %v5026 = vcombine.high %v5018, %v5018
      %v5027 = vcombine.high %v5025, %v5025
      %v5029 = vunpack.c.l.s4 1966171168
      %v5030 = vunpack.c.0.s8 %v5029
      %v5031 = vlaneseq
      %v5032 = vshrl.u32 %v5031, 7
      %v5033 = vsub.s32 %v5030, %v5032
      %v5034 = vrot.slane %v4454, %v5033
      %v5035 = vcombine.high %v5034, %v5034
      %v5037 = vunpack.c.l.s4 1966171168
      %v5038 = vunpack.c.0.s8 %v5037
      %v5039 = vlaneseq
      %v5040 = vshrl.u32 %v5039, 7
      %v5041 = vsub.s32 %v5038, %v5040
      %v5042 = vrot.slane %v5034, %v5041
      %v5044 = vunpack.c.l.s4 1966171168
      %v5045 = vunpack.c.0.s8 %v5044
      %v5046 = vlaneseq
      %v5047 = vshrl.u32 %v5046, 7
      %v5048 = vsub.s32 %v5045, %v5047
      %v5049 = vrot.slane %v5035, %v5048
      %v5050 = vcombine.high %v5042, %v5042
      %v5052 = vunpack.c.l.s4 1966171168
      %v5053 = vunpack.c.0.s8 %v5052
      %v5054 = vlaneseq
      %v5055 = vshrl.u32 %v5054, 7
      %v5056 = vsub.s32 %v5053, %v5055
      %v5057 = vrot.slane %v4455, %v5056
      %v5058 = vcombine.high %v5057, %v5057
      %v5060 = vunpack.c.l.s4 1966171168
      %v5061 = vunpack.c.0.s8 %v5060
      %v5062 = vlaneseq
      %v5063 = vshrl.u32 %v5062, 7
      %v5064 = vsub.s32 %v5061, %v5063
      %v5065 = vrot.slane %v5057, %v5064
      %v5067 = vunpack.c.l.s4 1966171168
      %v5068 = vunpack.c.0.s8 %v5067
      %v5069 = vlaneseq
      %v5070 = vshrl.u32 %v5069, 7
      %v5071 = vsub.s32 %v5068, %v5070
      %v5072 = vrot.slane %v5058, %v5071
      %v5073 = vcombine.high %v5065, %v5065
      %v5074 = vcombine.high %v5072, %v5072
      %v5076 = vunpack.c.l.s4 1966171168
      %v5077 = vunpack.c.0.s8 %v5076
      %v5078 = vlaneseq
      %v5079 = vshrl.u32 %v5078, 7
      %v5080 = vsub.s32 %v5077, %v5079
      %v5081 = vrot.slane %v4456, %v5080
      %v5082 = vcombine.high %v5081, %v5081
      %v5084 = vunpack.c.l.s4 1966171168
      %v5085 = vunpack.c.0.s8 %v5084
      %v5086 = vlaneseq
      %v5087 = vshrl.u32 %v5086, 7
      %v5088 = vsub.s32 %v5085, %v5087
      %v5089 = vrot.slane %v5081, %v5088
      %v5091 = vunpack.c.l.s4 1966171168
      %v5092 = vunpack.c.0.s8 %v5091
      %v5093 = vlaneseq
      %v5094 = vshrl.u32 %v5093, 7
      %v5095 = vsub.s32 %v5092, %v5094
      %v5096 = vrot.slane %v5082, %v5095
      %v5097 = vcombine.high %v5089, %v5089
      %v5099 = vunpack.c.l.s4 1966171168
      %v5100 = vunpack.c.0.s8 %v5099
      %v5101 = vlaneseq
      %v5102 = vshrl.u32 %v5101, 7
      %v5103 = vsub.s32 %v5100, %v5102
      %v5104 = vrot.slane %v4457, %v5103
      %v5105 = vcombine.high %v5104, %v5104
      %v5107 = vunpack.c.l.s4 1966171168
      %v5108 = vunpack.c.0.s8 %v5107
      %v5109 = vlaneseq
      %v5110 = vshrl.u32 %v5109, 7
      %v5111 = vsub.s32 %v5108, %v5110
      %v5112 = vrot.slane %v5104, %v5111
      %v5114 = vunpack.c.l.s4 1966171168
      %v5115 = vunpack.c.0.s8 %v5114
      %v5116 = vlaneseq
      %v5117 = vshrl.u32 %v5116, 7
      %v5118 = vsub.s32 %v5115, %v5117
      %v5119 = vrot.slane %v5105, %v5118
      %v5120 = vcombine.high %v5112, %v5112
      %v5121 = vcombine.high %v5119, %v5119
      %v5123 = vunpack.c.l.s4 1966171168
      %v5124 = vunpack.c.0.s8 %v5123
      %v5125 = vlaneseq
      %v5126 = vshrl.u32 %v5125, 7
      %v5127 = vsub.s32 %v5124, %v5126
      %v5128 = vrot.slane %v4458, %v5127
      %v5129 = vcombine.high %v5128, %v5128
      %v5131 = vunpack.c.l.s4 1966171168
      %v5132 = vunpack.c.0.s8 %v5131
      %v5133 = vlaneseq
      %v5134 = vshrl.u32 %v5133, 7
      %v5135 = vsub.s32 %v5132, %v5134
      %v5136 = vrot.slane %v5128, %v5135
      %v5138 = vunpack.c.l.s4 1966171168
      %v5139 = vunpack.c.0.s8 %v5138
      %v5140 = vlaneseq
      %v5141 = vshrl.u32 %v5140, 7
      %v5142 = vsub.s32 %v5139, %v5141
      %v5143 = vrot.slane %v5129, %v5142
      %v5144 = vcombine.high %v5136, %v5136
      %v5145 = vld [vmem:[%s10] sm:$0xf]
      %v5146 = vld [vmem:[%s10 + $0x4] sm:$0xf]
      %v5147 = vld [vmem:[%s10 + $0x8] sm:$0xf]
      %v5148 = vld [vmem:[%s10 + $0xc] sm:$0xf]
      %v5149 = vld [vmem:[%s10 + $0x10] sm:$0xf]
      %v5150 = vld [vmem:[%s10 + $0x14] sm:$0xf]
      %v5151 = vld [vmem:[%s10 + $0x18] sm:$0xf]
      %v5152 = vld [vmem:[%s10 + $0x1c] sm:$0xf]
      %v5153 = vld [vmem:[%s10 + $0x20] sm:$0xf]
      %v5154 = vcombine.low %v4501, %v4508
      %v5155 = vcombine.low %v4509, %v4510
      %v5156 = vcombine.low %v4525, %v4532
      %v5157 = vcombine.low %v4533, %v4548
      %v5159 = vunpack.c.l.s4 1966171168
      %v5160 = vunpack.c.0.s8 %v5159
      %v5161 = vlaneseq
      %v5162 = vshrl.u32 %v5161, 7
      %v5163 = vsub.s32 %v5160, %v5162
      %v5164 = vrot.slane %v5154, %v5163
      %v5166 = vunpack.c.l.s4 1966171168
      %v5167 = vunpack.c.0.s8 %v5166
      %v5168 = vlaneseq
      %v5169 = vshrl.u32 %v5168, 7
      %v5170 = vsub.s32 %v5167, %v5169
      %v5171 = vrot.slane %v5155, %v5170
      %v5173 = vunpack.c.l.s4 1966171168
      %v5174 = vunpack.c.0.s8 %v5173
      %v5175 = vlaneseq
      %v5176 = vshrl.u32 %v5175, 7
      %v5177 = vsub.s32 %v5174, %v5176
      %v5178 = vrot.slane %v5156, %v5177
      %v5180 = vunpack.c.l.s4 1966171168
      %v5181 = vunpack.c.0.s8 %v5180
      %v5182 = vlaneseq
      %v5183 = vshrl.u32 %v5182, 7
      %v5184 = vsub.s32 %v5181, %v5183
      %v5185 = vrot.slane %v5157, %v5184
      %v5186 = vcombine.low %v5164, %v5171
      %v5187 = vcombine.low %v5178, %v5185
      %v5189 = vunpack.c.l.s4 1966171168
      %v5190 = vunpack.c.0.s8 %v5189
      %v5191 = vlaneseq
      %v5192 = vshrl.u32 %v5191, 7
      %v5193 = vsub.s32 %v5190, %v5192
      %v5194 = vrot.slane %v5186, %v5193
      %v5196 = vunpack.c.l.s4 1966171168
      %v5197 = vunpack.c.0.s8 %v5196
      %v5198 = vlaneseq
      %v5199 = vshrl.u32 %v5198, 7
      %v5200 = vsub.s32 %v5197, %v5199
      %v5201 = vrot.slane %v5187, %v5200
      %v5202 = vcombine.low %v5194, %v5201
      %v5203 = vcombine.low %v4555, %v4556
      %v5204 = vcombine.low %v4557, %v4572
      %v5205 = vcombine.low %v4579, %v4580
      %v5206 = vcombine.low %v4595, %v4602
      %v5208 = vunpack.c.l.s4 1966171168
      %v5209 = vunpack.c.0.s8 %v5208
      %v5210 = vlaneseq
      %v5211 = vshrl.u32 %v5210, 7
      %v5212 = vsub.s32 %v5209, %v5211
      %v5213 = vrot.slane %v5203, %v5212
      %v5215 = vunpack.c.l.s4 1966171168
      %v5216 = vunpack.c.0.s8 %v5215
      %v5217 = vlaneseq
      %v5218 = vshrl.u32 %v5217, 7
      %v5219 = vsub.s32 %v5216, %v5218
      %v5220 = vrot.slane %v5204, %v5219
      %v5222 = vunpack.c.l.s4 1966171168
      %v5223 = vunpack.c.0.s8 %v5222
      %v5224 = vlaneseq
      %v5225 = vshrl.u32 %v5224, 7
      %v5226 = vsub.s32 %v5223, %v5225
      %v5227 = vrot.slane %v5205, %v5226
      %v5229 = vunpack.c.l.s4 1966171168
      %v5230 = vunpack.c.0.s8 %v5229
      %v5231 = vlaneseq
      %v5232 = vshrl.u32 %v5231, 7
      %v5233 = vsub.s32 %v5230, %v5232
      %v5234 = vrot.slane %v5206, %v5233
      %v5235 = vcombine.low %v5213, %v5220
      %v5236 = vcombine.low %v5227, %v5234
      %v5238 = vunpack.c.l.s4 1966171168
      %v5239 = vunpack.c.0.s8 %v5238
      %v5240 = vlaneseq
      %v5241 = vshrl.u32 %v5240, 7
      %v5242 = vsub.s32 %v5239, %v5241
      %v5243 = vrot.slane %v5235, %v5242
      %v5245 = vunpack.c.l.s4 1966171168
      %v5246 = vunpack.c.0.s8 %v5245
      %v5247 = vlaneseq
      %v5248 = vshrl.u32 %v5247, 7
      %v5249 = vsub.s32 %v5246, %v5248
      %v5250 = vrot.slane %v5236, %v5249
      %v5251 = vcombine.low %v5243, %v5250
      %v5252 = vcombine.low %v4603, %v4604
      %v5253 = vcombine.low %v4619, %v4626
      %v5254 = vcombine.low %v4627, %v4642
      %v5255 = vcombine.low %v4649, %v4650
      %v5257 = vunpack.c.l.s4 1966171168
      %v5258 = vunpack.c.0.s8 %v5257
      %v5259 = vlaneseq
      %v5260 = vshrl.u32 %v5259, 7
      %v5261 = vsub.s32 %v5258, %v5260
      %v5262 = vrot.slane %v5252, %v5261
      %v5264 = vunpack.c.l.s4 1966171168
      %v5265 = vunpack.c.0.s8 %v5264
      %v5266 = vlaneseq
      %v5267 = vshrl.u32 %v5266, 7
      %v5268 = vsub.s32 %v5265, %v5267
      %v5269 = vrot.slane %v5253, %v5268
      %v5271 = vunpack.c.l.s4 1966171168
      %v5272 = vunpack.c.0.s8 %v5271
      %v5273 = vlaneseq
      %v5274 = vshrl.u32 %v5273, 7
      %v5275 = vsub.s32 %v5272, %v5274
      %v5276 = vrot.slane %v5254, %v5275
      %v5278 = vunpack.c.l.s4 1966171168
      %v5279 = vunpack.c.0.s8 %v5278
      %v5280 = vlaneseq
      %v5281 = vshrl.u32 %v5280, 7
      %v5282 = vsub.s32 %v5279, %v5281
      %v5283 = vrot.slane %v5255, %v5282
      %v5284 = vcombine.low %v5262, %v5269
      %v5285 = vcombine.low %v5276, %v5283
      %v5287 = vunpack.c.l.s4 1966171168
      %v5288 = vunpack.c.0.s8 %v5287
      %v5289 = vlaneseq
      %v5290 = vshrl.u32 %v5289, 7
      %v5291 = vsub.s32 %v5288, %v5290
      %v5292 = vrot.slane %v5284, %v5291
      %v5294 = vunpack.c.l.s4 1966171168
      %v5295 = vunpack.c.0.s8 %v5294
      %v5296 = vlaneseq
      %v5297 = vshrl.u32 %v5296, 7
      %v5298 = vsub.s32 %v5295, %v5297
      %v5299 = vrot.slane %v5285, %v5298
      %v5300 = vcombine.low %v5292, %v5299
      %v5301 = vcombine.low %v4651, %v4666
      %v5302 = vcombine.low %v4673, %v4674
      %v5303 = vcombine.low %v4689, %v4696
      %v5304 = vcombine.low %v4697, %v4698
      %v5306 = vunpack.c.l.s4 1966171168
      %v5307 = vunpack.c.0.s8 %v5306
      %v5308 = vlaneseq
      %v5309 = vshrl.u32 %v5308, 7
      %v5310 = vsub.s32 %v5307, %v5309
      %v5311 = vrot.slane %v5301, %v5310
      %v5313 = vunpack.c.l.s4 1966171168
      %v5314 = vunpack.c.0.s8 %v5313
      %v5315 = vlaneseq
      %v5316 = vshrl.u32 %v5315, 7
      %v5317 = vsub.s32 %v5314, %v5316
      %v5318 = vrot.slane %v5302, %v5317
      %v5320 = vunpack.c.l.s4 1966171168
      %v5321 = vunpack.c.0.s8 %v5320
      %v5322 = vlaneseq
      %v5323 = vshrl.u32 %v5322, 7
      %v5324 = vsub.s32 %v5321, %v5323
      %v5325 = vrot.slane %v5303, %v5324
      %v5327 = vunpack.c.l.s4 1966171168
      %v5328 = vunpack.c.0.s8 %v5327
      %v5329 = vlaneseq
      %v5330 = vshrl.u32 %v5329, 7
      %v5331 = vsub.s32 %v5328, %v5330
      %v5332 = vrot.slane %v5304, %v5331
      %v5333 = vcombine.low %v5311, %v5318
      %v5334 = vcombine.low %v5325, %v5332
      %v5336 = vunpack.c.l.s4 1966171168
      %v5337 = vunpack.c.0.s8 %v5336
      %v5338 = vlaneseq
      %v5339 = vshrl.u32 %v5338, 7
      %v5340 = vsub.s32 %v5337, %v5339
      %v5341 = vrot.slane %v5333, %v5340
      %v5343 = vunpack.c.l.s4 1966171168
      %v5344 = vunpack.c.0.s8 %v5343
      %v5345 = vlaneseq
      %v5346 = vshrl.u32 %v5345, 7
      %v5347 = vsub.s32 %v5344, %v5346
      %v5348 = vrot.slane %v5334, %v5347
      %v5349 = vcombine.low %v5341, %v5348
      %v5350 = vcombine.low %v4713, %v4720
      %v5351 = vcombine.low %v4721, %v4736
      %v5352 = vcombine.low %v4743, %v4744
      %v5353 = vcombine.low %v4745, %v4760
      %v5355 = vunpack.c.l.s4 1966171168
      %v5356 = vunpack.c.0.s8 %v5355
      %v5357 = vlaneseq
      %v5358 = vshrl.u32 %v5357, 7
      %v5359 = vsub.s32 %v5356, %v5358
      %v5360 = vrot.slane %v5350, %v5359
      %v5362 = vunpack.c.l.s4 1966171168
      %v5363 = vunpack.c.0.s8 %v5362
      %v5364 = vlaneseq
      %v5365 = vshrl.u32 %v5364, 7
      %v5366 = vsub.s32 %v5363, %v5365
      %v5367 = vrot.slane %v5351, %v5366
      %v5369 = vunpack.c.l.s4 1966171168
      %v5370 = vunpack.c.0.s8 %v5369
      %v5371 = vlaneseq
      %v5372 = vshrl.u32 %v5371, 7
      %v5373 = vsub.s32 %v5370, %v5372
      %v5374 = vrot.slane %v5352, %v5373
      %v5376 = vunpack.c.l.s4 1966171168
      %v5377 = vunpack.c.0.s8 %v5376
      %v5378 = vlaneseq
      %v5379 = vshrl.u32 %v5378, 7
      %v5380 = vsub.s32 %v5377, %v5379
      %v5381 = vrot.slane %v5353, %v5380
      %v5382 = vcombine.low %v5360, %v5367
      %v5383 = vcombine.low %v5374, %v5381
      %v5385 = vunpack.c.l.s4 1966171168
      %v5386 = vunpack.c.0.s8 %v5385
      %v5387 = vlaneseq
      %v5388 = vshrl.u32 %v5387, 7
      %v5389 = vsub.s32 %v5386, %v5388
      %v5390 = vrot.slane %v5382, %v5389
      %v5392 = vunpack.c.l.s4 1966171168
      %v5393 = vunpack.c.0.s8 %v5392
      %v5394 = vlaneseq
      %v5395 = vshrl.u32 %v5394, 7
      %v5396 = vsub.s32 %v5393, %v5395
      %v5397 = vrot.slane %v5383, %v5396
      %v5398 = vcombine.low %v5390, %v5397
      %v5399 = vcombine.low %v4767, %v4768
      %v5400 = vcombine.low %v4783, %v4790
      %v5401 = vcombine.low %v4791, %v4792
      %v5402 = vcombine.low %v4807, %v4814
      %v5404 = vunpack.c.l.s4 1966171168
      %v5405 = vunpack.c.0.s8 %v5404
      %v5406 = vlaneseq
      %v5407 = vshrl.u32 %v5406, 7
      %v5408 = vsub.s32 %v5405, %v5407
      %v5409 = vrot.slane %v5399, %v5408
      %v5411 = vunpack.c.l.s4 1966171168
      %v5412 = vunpack.c.0.s8 %v5411
      %v5413 = vlaneseq
      %v5414 = vshrl.u32 %v5413, 7
      %v5415 = vsub.s32 %v5412, %v5414
      %v5416 = vrot.slane %v5400, %v5415
      %v5418 = vunpack.c.l.s4 1966171168
      %v5419 = vunpack.c.0.s8 %v5418
      %v5420 = vlaneseq
      %v5421 = vshrl.u32 %v5420, 7
      %v5422 = vsub.s32 %v5419, %v5421
      %v5423 = vrot.slane %v5401, %v5422
      %v5425 = vunpack.c.l.s4 1966171168
      %v5426 = vunpack.c.0.s8 %v5425
      %v5427 = vlaneseq
      %v5428 = vshrl.u32 %v5427, 7
      %v5429 = vsub.s32 %v5426, %v5428
      %v5430 = vrot.slane %v5402, %v5429
      %v5431 = vcombine.low %v5409, %v5416
      %v5432 = vcombine.low %v5423, %v5430
      %v5434 = vunpack.c.l.s4 1966171168
      %v5435 = vunpack.c.0.s8 %v5434
      %v5436 = vlaneseq
      %v5437 = vshrl.u32 %v5436, 7
      %v5438 = vsub.s32 %v5435, %v5437
      %v5439 = vrot.slane %v5431, %v5438
      %v5441 = vunpack.c.l.s4 1966171168
      %v5442 = vunpack.c.0.s8 %v5441
      %v5443 = vlaneseq
      %v5444 = vshrl.u32 %v5443, 7
      %v5445 = vsub.s32 %v5442, %v5444
      %v5446 = vrot.slane %v5432, %v5445
      %v5447 = vcombine.low %v5439, %v5446
      %v5448 = vcombine.low %v4815, %v4830
      %v5449 = vcombine.low %v4837, %v4838
      %v5450 = vcombine.low %v4839, %v4854
      %v5451 = vcombine.low %v4861, %v4862
      %v5453 = vunpack.c.l.s4 1966171168
      %v5454 = vunpack.c.0.s8 %v5453
      %v5455 = vlaneseq
      %v5456 = vshrl.u32 %v5455, 7
      %v5457 = vsub.s32 %v5454, %v5456
      %v5458 = vrot.slane %v5448, %v5457
      %v5460 = vunpack.c.l.s4 1966171168
      %v5461 = vunpack.c.0.s8 %v5460
      %v5462 = vlaneseq
      %v5463 = vshrl.u32 %v5462, 7
      %v5464 = vsub.s32 %v5461, %v5463
      %v5465 = vrot.slane %v5449, %v5464
      %v5467 = vunpack.c.l.s4 1966171168
      %v5468 = vunpack.c.0.s8 %v5467
      %v5469 = vlaneseq
      %v5470 = vshrl.u32 %v5469, 7
      %v5471 = vsub.s32 %v5468, %v5470
      %v5472 = vrot.slane %v5450, %v5471
      %v5474 = vunpack.c.l.s4 1966171168
      %v5475 = vunpack.c.0.s8 %v5474
      %v5476 = vlaneseq
      %v5477 = vshrl.u32 %v5476, 7
      %v5478 = vsub.s32 %v5475, %v5477
      %v5479 = vrot.slane %v5451, %v5478
      %v5480 = vcombine.low %v5458, %v5465
      %v5481 = vcombine.low %v5472, %v5479
      %v5483 = vunpack.c.l.s4 1966171168
      %v5484 = vunpack.c.0.s8 %v5483
      %v5485 = vlaneseq
      %v5486 = vshrl.u32 %v5485, 7
      %v5487 = vsub.s32 %v5484, %v5486
      %v5488 = vrot.slane %v5480, %v5487
      %v5490 = vunpack.c.l.s4 1966171168
      %v5491 = vunpack.c.0.s8 %v5490
      %v5492 = vlaneseq
      %v5493 = vshrl.u32 %v5492, 7
      %v5494 = vsub.s32 %v5491, %v5493
      %v5495 = vrot.slane %v5481, %v5494
      %v5496 = vcombine.low %v5488, %v5495
      %v5497 = vcombine.low %v4877, %v4884
      %v5498 = vcombine.low %v4885, %v4886
      %v5499 = vcombine.low %v4901, %v4908
      %v5500 = vcombine.low %v4909, %v4924
      %v5502 = vunpack.c.l.s4 1966171168
      %v5503 = vunpack.c.0.s8 %v5502
      %v5504 = vlaneseq
      %v5505 = vshrl.u32 %v5504, 7
      %v5506 = vsub.s32 %v5503, %v5505
      %v5507 = vrot.slane %v5497, %v5506
      %v5509 = vunpack.c.l.s4 1966171168
      %v5510 = vunpack.c.0.s8 %v5509
      %v5511 = vlaneseq
      %v5512 = vshrl.u32 %v5511, 7
      %v5513 = vsub.s32 %v5510, %v5512
      %v5514 = vrot.slane %v5498, %v5513
      %v5516 = vunpack.c.l.s4 1966171168
      %v5517 = vunpack.c.0.s8 %v5516
      %v5518 = vlaneseq
      %v5519 = vshrl.u32 %v5518, 7
      %v5520 = vsub.s32 %v5517, %v5519
      %v5521 = vrot.slane %v5499, %v5520
      %v5523 = vunpack.c.l.s4 1966171168
      %v5524 = vunpack.c.0.s8 %v5523
      %v5525 = vlaneseq
      %v5526 = vshrl.u32 %v5525, 7
      %v5527 = vsub.s32 %v5524, %v5526
      %v5528 = vrot.slane %v5500, %v5527
      %v5529 = vcombine.low %v5507, %v5514
      %v5530 = vcombine.low %v5521, %v5528
      %v5532 = vunpack.c.l.s4 1966171168
      %v5533 = vunpack.c.0.s8 %v5532
      %v5534 = vlaneseq
      %v5535 = vshrl.u32 %v5534, 7
      %v5536 = vsub.s32 %v5533, %v5535
      %v5537 = vrot.slane %v5529, %v5536
      %v5539 = vunpack.c.l.s4 1966171168
      %v5540 = vunpack.c.0.s8 %v5539
      %v5541 = vlaneseq
      %v5542 = vshrl.u32 %v5541, 7
      %v5543 = vsub.s32 %v5540, %v5542
      %v5544 = vrot.slane %v5530, %v5543
      %v5545 = vcombine.low %v5537, %v5544
      %v5546 = vcombine.low %v4931, %v4932
      %v5547 = vcombine.low %v4933, %v4948
      %v5548 = vcombine.low %v4955, %v4956
      %v5549 = vcombine.low %v4971, %v4978
      %v5551 = vunpack.c.l.s4 1966171168
      %v5552 = vunpack.c.0.s8 %v5551
      %v5553 = vlaneseq
      %v5554 = vshrl.u32 %v5553, 7
      %v5555 = vsub.s32 %v5552, %v5554
      %v5556 = vrot.slane %v5546, %v5555
      %v5558 = vunpack.c.l.s4 1966171168
      %v5559 = vunpack.c.0.s8 %v5558
      %v5560 = vlaneseq
      %v5561 = vshrl.u32 %v5560, 7
      %v5562 = vsub.s32 %v5559, %v5561
      %v5563 = vrot.slane %v5547, %v5562
      %v5565 = vunpack.c.l.s4 1966171168
      %v5566 = vunpack.c.0.s8 %v5565
      %v5567 = vlaneseq
      %v5568 = vshrl.u32 %v5567, 7
      %v5569 = vsub.s32 %v5566, %v5568
      %v5570 = vrot.slane %v5548, %v5569
      %v5572 = vunpack.c.l.s4 1966171168
      %v5573 = vunpack.c.0.s8 %v5572
      %v5574 = vlaneseq
      %v5575 = vshrl.u32 %v5574, 7
      %v5576 = vsub.s32 %v5573, %v5575
      %v5577 = vrot.slane %v5549, %v5576
      %v5578 = vcombine.low %v5556, %v5563
      %v5579 = vcombine.low %v5570, %v5577
      %v5581 = vunpack.c.l.s4 1966171168
      %v5582 = vunpack.c.0.s8 %v5581
      %v5583 = vlaneseq
      %v5584 = vshrl.u32 %v5583, 7
      %v5585 = vsub.s32 %v5582, %v5584
      %v5586 = vrot.slane %v5578, %v5585
      %v5588 = vunpack.c.l.s4 1966171168
      %v5589 = vunpack.c.0.s8 %v5588
      %v5590 = vlaneseq
      %v5591 = vshrl.u32 %v5590, 7
      %v5592 = vsub.s32 %v5589, %v5591
      %v5593 = vrot.slane %v5579, %v5592
      %v5594 = vcombine.low %v5586, %v5593
      %v5595 = vcombine.low %v4979, %v4980
      %v5596 = vcombine.low %v4995, %v5002
      %v5597 = vcombine.low %v5003, %v5018
      %v5598 = vcombine.low %v5025, %v5026
      %v5600 = vunpack.c.l.s4 1966171168
      %v5601 = vunpack.c.0.s8 %v5600
      %v5602 = vlaneseq
      %v5603 = vshrl.u32 %v5602, 7
      %v5604 = vsub.s32 %v5601, %v5603
      %v5605 = vrot.slane %v5595, %v5604
      %v5607 = vunpack.c.l.s4 1966171168
      %v5608 = vunpack.c.0.s8 %v5607
      %v5609 = vlaneseq
      %v5610 = vshrl.u32 %v5609, 7
      %v5611 = vsub.s32 %v5608, %v5610
      %v5612 = vrot.slane %v5596, %v5611
      %v5614 = vunpack.c.l.s4 1966171168
      %v5615 = vunpack.c.0.s8 %v5614
      %v5616 = vlaneseq
      %v5617 = vshrl.u32 %v5616, 7
      %v5618 = vsub.s32 %v5615, %v5617
      %v5619 = vrot.slane %v5597, %v5618
      %v5621 = vunpack.c.l.s4 1966171168
      %v5622 = vunpack.c.0.s8 %v5621
      %v5623 = vlaneseq
      %v5624 = vshrl.u32 %v5623, 7
      %v5625 = vsub.s32 %v5622, %v5624
      %v5626 = vrot.slane %v5598, %v5625
      %v5627 = vcombine.low %v5605, %v5612
      %v5628 = vcombine.low %v5619, %v5626
      %v5630 = vunpack.c.l.s4 1966171168
      %v5631 = vunpack.c.0.s8 %v5630
      %v5632 = vlaneseq
      %v5633 = vshrl.u32 %v5632, 7
      %v5634 = vsub.s32 %v5631, %v5633
      %v5635 = vrot.slane %v5627, %v5634
      %v5637 = vunpack.c.l.s4 1966171168
      %v5638 = vunpack.c.0.s8 %v5637
      %v5639 = vlaneseq
      %v5640 = vshrl.u32 %v5639, 7
      %v5641 = vsub.s32 %v5638, %v5640
      %v5642 = vrot.slane %v5628, %v5641
      %v5643 = vcombine.low %v5635, %v5642
      %v5644 = vcombine.low %v5027, %v5042
      %v5645 = vcombine.low %v5049, %v5050
      %v5646 = vcombine.low %v5065, %v5072
      %v5647 = vcombine.low %v5073, %v5074
      %v5649 = vunpack.c.l.s4 1966171168
      %v5650 = vunpack.c.0.s8 %v5649
      %v5651 = vlaneseq
      %v5652 = vshrl.u32 %v5651, 7
      %v5653 = vsub.s32 %v5650, %v5652
      %v5654 = vrot.slane %v5644, %v5653
      %v5656 = vunpack.c.l.s4 1966171168
      %v5657 = vunpack.c.0.s8 %v5656
      %v5658 = vlaneseq
      %v5659 = vshrl.u32 %v5658, 7
      %v5660 = vsub.s32 %v5657, %v5659
      %v5661 = vrot.slane %v5645, %v5660
      %v5663 = vunpack.c.l.s4 1966171168
      %v5664 = vunpack.c.0.s8 %v5663
      %v5665 = vlaneseq
      %v5666 = vshrl.u32 %v5665, 7
      %v5667 = vsub.s32 %v5664, %v5666
      %v5668 = vrot.slane %v5646, %v5667
      %v5670 = vunpack.c.l.s4 1966171168
      %v5671 = vunpack.c.0.s8 %v5670
      %v5672 = vlaneseq
      %v5673 = vshrl.u32 %v5672, 7
      %v5674 = vsub.s32 %v5671, %v5673
      %v5675 = vrot.slane %v5647, %v5674
      %v5676 = vcombine.low %v5654, %v5661
      %v5677 = vcombine.low %v5668, %v5675
      %v5679 = vunpack.c.l.s4 1966171168
      %v5680 = vunpack.c.0.s8 %v5679
      %v5681 = vlaneseq
      %v5682 = vshrl.u32 %v5681, 7
      %v5683 = vsub.s32 %v5680, %v5682
      %v5684 = vrot.slane %v5676, %v5683
      %v5686 = vunpack.c.l.s4 1966171168
      %v5687 = vunpack.c.0.s8 %v5686
      %v5688 = vlaneseq
      %v5689 = vshrl.u32 %v5688, 7
      %v5690 = vsub.s32 %v5687, %v5689
      %v5691 = vrot.slane %v5677, %v5690
      %v5692 = vcombine.low %v5684, %v5691
      %v5693 = vcombine.low %v5089, %v5096
      %v5694 = vcombine.low %v5097, %v5112
      %v5695 = vcombine.low %v5119, %v5120
      %v5696 = vcombine.low %v5121, %v5136
      %v5698 = vunpack.c.l.s4 1966171168
      %v5699 = vunpack.c.0.s8 %v5698
      %v5700 = vlaneseq
      %v5701 = vshrl.u32 %v5700, 7
      %v5702 = vsub.s32 %v5699, %v5701
      %v5703 = vrot.slane %v5693, %v5702
      %v5705 = vunpack.c.l.s4 1966171168
      %v5706 = vunpack.c.0.s8 %v5705
      %v5707 = vlaneseq
      %v5708 = vshrl.u32 %v5707, 7
      %v5709 = vsub.s32 %v5706, %v5708
      %v5710 = vrot.slane %v5694, %v5709
      %v5712 = vunpack.c.l.s4 1966171168
      %v5713 = vunpack.c.0.s8 %v5712
      %v5714 = vlaneseq
      %v5715 = vshrl.u32 %v5714, 7
      %v5716 = vsub.s32 %v5713, %v5715
      %v5717 = vrot.slane %v5695, %v5716
      %v5719 = vunpack.c.l.s4 1966171168
      %v5720 = vunpack.c.0.s8 %v5719
      %v5721 = vlaneseq
      %v5722 = vshrl.u32 %v5721, 7
      %v5723 = vsub.s32 %v5720, %v5722
      %v5724 = vrot.slane %v5696, %v5723
      %v5725 = vcombine.low %v5703, %v5710
      %v5726 = vcombine.low %v5717, %v5724
      %v5728 = vunpack.c.l.s4 1966171168
      %v5729 = vunpack.c.0.s8 %v5728
      %v5730 = vlaneseq
      %v5731 = vshrl.u32 %v5730, 7
      %v5732 = vsub.s32 %v5729, %v5731
      %v5733 = vrot.slane %v5725, %v5732
      %v5735 = vunpack.c.l.s4 1966171168
      %v5736 = vunpack.c.0.s8 %v5735
      %v5737 = vlaneseq
      %v5738 = vshrl.u32 %v5737, 7
      %v5739 = vsub.s32 %v5736, %v5738
      %v5740 = vrot.slane %v5726, %v5739
      %v5741 = vcombine.low %v5733, %v5740
      %v5742 = vcombine.low %v5143, %v5144
      %v5744 = vunpack.c.l.s4 1966171168
      %v5745 = vunpack.c.0.s8 %v5744
      %v5746 = vlaneseq
      %v5747 = vshrl.u32 %v5746, 7
      %v5748 = vsub.s32 %v5745, %v5747
      %v5749 = vrot.slane %v5742, %v5748
      %v5751 = vunpack.c.l.s4 1966171168
      %v5752 = vunpack.c.0.s8 %v5751
      %v5753 = vlaneseq
      %v5754 = vshrl.u32 %v5753, 7
      %v5755 = vsub.s32 %v5752, %v5754
      %v5756 = vrot.slane %v5749, %v5755
      %v5766 = vunpack.c.l.b16 %v5145
      %v5767 = vunpack.c.l.b16 %v5146
      %v5768 = vunpack.c.l.b16 %v5147
      %v5769 = vunpack.c.l.b16 %v5148
      %v5770 = vunpack.c.l.b16 %v5149
      %v5771 = vunpack.c.l.b16 %v5150
      %v5772 = vunpack.c.l.b16 %v5151
      %v5773 = vunpack.c.l.b16 %v5152
      %v5774 = vunpack.c.l.b16 %v5153
      %v5775 = vpack.c.b16 %v5767, %v5766
      %v5776 = vpack.c.b16 %v5769, %v5768
      %v5777 = vpack.c.b16 %v5771, %v5770
      %v5778 = vpack.c.b16 %v5773, %v5772
      %v5779 = vpack.c.b16 %v5774, %v5774
      %vm5784 = vcmask 588800
      %v5786 = vsel %vm5784, %v5202, 0
      %v5789 = vsel %vm5784, %v5251, 0
      %v5792 = vsel %vm5784, %v5300, 0
      %v5795 = vsel %vm5784, %v5349, 0
      %v5798 = vsel %vm5784, %v5398, 0
      %v5801 = vsel %vm5784, %v5447, 0
      %v5804 = vsel %vm5784, %v5496, 0
      %v5807 = vsel %vm5784, %v5545, 0
      %v5810 = vsel %vm5784, %v5594, 0
      %v5813 = vsel %vm5784, %v5643, 0
      %v5816 = vsel %vm5784, %v5692, 0
      %v5819 = vsel %vm5784, %v5741, 0
      %v5822 = vsel %vm5784, %v5756, 0
      %v5825 = vsel %vm1932, %v5779, 0
      %5827 = vmatprep.subr.bf16.mxu0 0
      %5828 = vmatpush1.bf16.msra.mxu0 %v5775
      %5829 = vmatprep.subr.bf16.mxu0 0
      %5830 = vmatpush1.bf16.msra.mxu0 %v5776
      %5831 = vmatprep.subr.bf16.mxu0 0
      %5832 = vmatpush1.bf16.msra.mxu0 %v5777
      %5833 = vmatprep.subr.bf16.mxu0 0
      %5834 = vmatpush1.bf16.msra.mxu0 %v5778
      %5835 = vmatprep.subr.bf16.mxu0 0
      %5836 = vmatpush1.bf16.msra.mxu0 %v5825
      %5837 = vmatprep.subr.bf16.mxu0 0
      %5838 = vmatpush1.bf16.msra.mxu0 0
      %5839 = vmatprep.subr.bf16.mxu0 0
      %5840 = vmatpush1.bf16.msra.mxu0 0
      %5841 = vmatprep.subr.bf16.mxu0 0
      %5842 = vmatpush1.bf16.msra.mxu0 0
      %5843 = vmatprep.subr.bf16.mxu0 0
      %5844 = vmatpush1.bf16.msra.mxu0 0
      %5845 = vmatprep.subr.bf16.mxu0 0
      %5846 = vmatpush1.bf16.msra.mxu0 0
      %5847 = vmatprep.subr.bf16.mxu0 0
      %5848 = vmatpush1.bf16.msra.mxu0 0
      %5849 = vmatprep.subr.bf16.mxu0 0
      %5850 = vmatpush1.bf16.msra.mxu0 0
      %5851 = vmatprep.subr.bf16.mxu0 0
      %5852 = vmatpush1.bf16.msra.mxu0 0
      %5853 = vmatprep.subr.bf16.mxu0 0
      %5854 = vmatpush1.bf16.msra.mxu0 0
      %5855 = vmatprep.subr.bf16.mxu0 0
      %5856 = vmatpush1.bf16.msra.mxu0 0
      %5857 = vmatprep.subr.bf16.mxu0 0
      %5858 = vmatpush1.bf16.msra.mxu0 0
      %5859 = vmatprep.mubr.bf16.mxu0 0
      %5860 = vmatmul.mubr.bf16.gmra.mrb[0].mxu0 %v5786
      %v5861 = vpop.f32.mrb[0].mxu0
      %v5862 = vadd.f32 0.0, %v5861
      %v5863 = vpop.f32.mrb[0].mxu0
      %v5864 = vpop.f32.mrb[0].mxu0
      %v5865 = vadd.f32 0.0, %v5864
      %v5866 = vpop.f32.mrb[0].mxu0
      %5867 = vmatprep.mubr.bf16.mxu0 0
      %5868 = vmatmul.mubr.bf16.gmra.mrb[0].mxu0 %v5789
      %v5869 = vpop.f32.mrb[0].mxu0
      %v5870 = vadd.f32 0.0, %v5869
      %v5871 = vpop.f32.mrb[0].mxu0
      %v5872 = vpop.f32.mrb[0].mxu0
      %v5873 = vadd.f32 0.0, %v5872
      %v5874 = vpop.f32.mrb[0].mxu0
      %5875 = vmatprep.mubr.bf16.mxu0 0
      %5876 = vmatmul.mubr.bf16.gmra.mrb[0].mxu0 %v5792
      %v5877 = vpop.f32.mrb[0].mxu0
      %v5878 = vadd.f32 0.0, %v5877
      %v5879 = vpop.f32.mrb[0].mxu0
      %v5880 = vpop.f32.mrb[0].mxu0
      %v5881 = vadd.f32 0.0, %v5880
      %v5882 = vpop.f32.mrb[0].mxu0
      %5883 = vmatprep.mubr.bf16.mxu0 0
      %5884 = vmatmul.mubr.bf16.gmra.mrb[0].mxu0 %v5795
      %v5885 = vpop.f32.mrb[0].mxu0
      %v5886 = vadd.f32 0.0, %v5885
      %v5887 = vpop.f32.mrb[0].mxu0
      %v5888 = vpop.f32.mrb[0].mxu0
      %v5889 = vadd.f32 0.0, %v5888
      %v5890 = vpop.f32.mrb[0].mxu0
      %5891 = vmatprep.mubr.bf16.mxu0 0
      %5892 = vmatmul.mubr.bf16.gmra.mrb[0].mxu0 %v5798
      %v5893 = vpop.f32.mrb[0].mxu0
      %v5894 = vadd.f32 0.0, %v5893
      %v5895 = vpop.f32.mrb[0].mxu0
      %v5896 = vpop.f32.mrb[0].mxu0
      %v5897 = vadd.f32 0.0, %v5896
      %v5898 = vpop.f32.mrb[0].mxu0
      %5899 = vmatprep.mubr.bf16.mxu0 0
      %5900 = vmatmul.mubr.bf16.gmra.mrb[0].mxu0 %v5801
      %v5901 = vpop.f32.mrb[0].mxu0
      %v5902 = vadd.f32 0.0, %v5901
      %v5903 = vpop.f32.mrb[0].mxu0
      %v5904 = vpop.f32.mrb[0].mxu0
      %v5905 = vadd.f32 0.0, %v5904
      %v5906 = vpop.f32.mrb[0].mxu0
      %5907 = vmatprep.mubr.bf16.mxu0 0
      %5908 = vmatmul.mubr.bf16.gmra.mrb[0].mxu0 %v5804
      %v5909 = vpop.f32.mrb[0].mxu0
      %v5910 = vadd.f32 0.0, %v5909
      %v5911 = vpop.f32.mrb[0].mxu0
      %v5912 = vpop.f32.mrb[0].mxu0
      %v5913 = vadd.f32 0.0, %v5912
      %v5914 = vpop.f32.mrb[0].mxu0
      %5915 = vmatprep.mubr.bf16.mxu0 0
      %5916 = vmatmul.mubr.bf16.gmra.mrb[0].mxu0 %v5807
      %v5917 = vpop.f32.mrb[0].mxu0
      %v5918 = vadd.f32 0.0, %v5917
      %v5919 = vpop.f32.mrb[0].mxu0
      %v5920 = vpop.f32.mrb[0].mxu0
      %v5921 = vadd.f32 0.0, %v5920
      %v5922 = vpop.f32.mrb[0].mxu0
      %5923 = vmatprep.mubr.bf16.mxu0 0
      %5924 = vmatmul.mubr.bf16.gmra.mrb[0].mxu0 %v5810
      %v5925 = vpop.f32.mrb[0].mxu0
      %v5926 = vadd.f32 0.0, %v5925
      %v5927 = vpop.f32.mrb[0].mxu0
      %v5928 = vpop.f32.mrb[0].mxu0
      %v5929 = vadd.f32 0.0, %v5928
      %v5930 = vpop.f32.mrb[0].mxu0
      %5931 = vmatprep.mubr.bf16.mxu0 0
      %5932 = vmatmul.mubr.bf16.gmra.mrb[0].mxu0 %v5813
      %v5933 = vpop.f32.mrb[0].mxu0
      %v5934 = vadd.f32 0.0, %v5933
      %v5935 = vpop.f32.mrb[0].mxu0
      %v5936 = vpop.f32.mrb[0].mxu0
      %v5937 = vadd.f32 0.0, %v5936
      %v5938 = vpop.f32.mrb[0].mxu0
      %5939 = vmatprep.mubr.bf16.mxu0 0
      %5940 = vmatmul.mubr.bf16.gmra.mrb[0].mxu0 %v5816
      %v5941 = vpop.f32.mrb[0].mxu0
      %v5942 = vadd.f32 0.0, %v5941
      %v5943 = vpop.f32.mrb[0].mxu0
      %v5944 = vpop.f32.mrb[0].mxu0
      %v5945 = vadd.f32 0.0, %v5944
      %v5946 = vpop.f32.mrb[0].mxu0
      %5947 = vmatprep.mubr.bf16.mxu0 0
      %5948 = vmatmul.mubr.bf16.gmra.mrb[0].mxu0 %v5819
      %v5949 = vpop.f32.mrb[0].mxu0
      %v5950 = vadd.f32 0.0, %v5949
      %v5951 = vpop.f32.mrb[0].mxu0
      %v5952 = vpop.f32.mrb[0].mxu0
      %v5953 = vadd.f32 0.0, %v5952
      %v5954 = vpop.f32.mrb[0].mxu0
      %5955 = vmatprep.mubr.bf16.mxu0 0
      %5956 = vmatmul.mubr.bf16.gmra.mrb[0].mxu0 %v5822
      %v5957 = vpop.f32.mrb[0].mxu0
      %v5958 = vadd.f32 0.0, %v5957
      %v5959 = vpop.f32.mrb[0].mxu0
      %v5960 = vpop.f32.mrb[0].mxu0
      %v5961 = vpop.f32.mrb[0].mxu0
      %5962 = vdwg.mxu0
      %v5963 = vld [vmem:[%s11] sm:$0x1]
      %v5965 = vlaneseq
      %v5966 = vshrl.u32 %v5965, 7
      %v5967 = vsub.s32 0, %v5966
      %v5968 = vrot.slane %v5963, %v5967
      %v5970 = vmul.f32 %v5862, %v5968
      %v5971 = vmul.f32 %v5865, %v5968
      %v5972 = vmul.f32 %v5870, %v5968
      %v5973 = vmul.f32 %v5873, %v5968
      %v5974 = vmul.f32 %v5878, %v5968
      %v5975 = vmul.f32 %v5881, %v5968
      %v5976 = vmul.f32 %v5886, %v5968
      %v5977 = vmul.f32 %v5889, %v5968
      %v5978 = vmul.f32 %v5894, %v5968
      %v5979 = vmul.f32 %v5897, %v5968
      %v5980 = vmul.f32 %v5902, %v5968
      %v5981 = vmul.f32 %v5905, %v5968
      %v5982 = vmul.f32 %v5910, %v5968
      %v5983 = vmul.f32 %v5913, %v5968
      %v5984 = vmul.f32 %v5918, %v5968
      %v5985 = vmul.f32 %v5921, %v5968
      %v5986 = vmul.f32 %v5926, %v5968
      %v5987 = vmul.f32 %v5929, %v5968
      %v5988 = vmul.f32 %v5934, %v5968
      %v5989 = vmul.f32 %v5937, %v5968
      %v5990 = vmul.f32 %v5942, %v5968
      %v5991 = vmul.f32 %v5945, %v5968
      %v5992 = vmul.f32 %v5950, %v5968
      %v5993 = vmul.f32 %v5953, %v5968
      %v5994 = vmul.f32 %v5958, %v5968
      %v5995 = vld [vmem:[%s12] sm:$0x1]
      %v5997 = vlaneseq
      %v5998 = vshrl.u32 %v5997, 7
      %v5999 = vsub.s32 0, %v5998
      %v6000 = vrot.slane %v5995, %v5999
      %v6002 = vadd.f32 %v5970, %v6000
      %v6003 = vadd.f32 %v5971, %v6000
      %v6004 = vadd.f32 %v5972, %v6000
      %v6005 = vadd.f32 %v5973, %v6000
      %v6006 = vadd.f32 %v5974, %v6000
      %v6007 = vadd.f32 %v5975, %v6000
      %v6008 = vadd.f32 %v5976, %v6000
      %v6009 = vadd.f32 %v5977, %v6000
      %v6010 = vadd.f32 %v5978, %v6000
      %v6011 = vadd.f32 %v5979, %v6000
      %v6012 = vadd.f32 %v5980, %v6000
      %v6013 = vadd.f32 %v5981, %v6000
      %v6014 = vadd.f32 %v5982, %v6000
      %v6015 = vadd.f32 %v5983, %v6000
      %v6016 = vadd.f32 %v5984, %v6000
      %v6017 = vadd.f32 %v5985, %v6000
      %v6018 = vadd.f32 %v5986, %v6000
      %v6019 = vadd.f32 %v5987, %v6000
      %v6020 = vadd.f32 %v5988, %v6000
      %v6021 = vadd.f32 %v5989, %v6000
      %v6022 = vadd.f32 %v5990, %v6000
      %v6023 = vadd.f32 %v5991, %v6000
      %v6024 = vadd.f32 %v5992, %v6000
      %v6025 = vadd.f32 %v5993, %v6000
      %v6026 = vadd.f32 %v5994, %v6000
      %v6027 = vmax.f32 %v6002, 0.0
      %v6028 = vmax.f32 %v6003, 0.0
      %v6029 = vmax.f32 %v6004, 0.0
      %v6030 = vmax.f32 %v6005, 0.0
      %v6031 = vmax.f32 %v6006, 0.0
      %v6032 = vmax.f32 %v6007, 0.0
      %v6033 = vmax.f32 %v6008, 0.0
      %v6034 = vmax.f32 %v6009, 0.0
      %v6035 = vmax.f32 %v6010, 0.0
      %v6036 = vmax.f32 %v6011, 0.0
      %v6037 = vmax.f32 %v6012, 0.0
      %v6038 = vmax.f32 %v6013, 0.0
      %v6039 = vmax.f32 %v6014, 0.0
      %v6040 = vmax.f32 %v6015, 0.0
      %v6041 = vmax.f32 %v6016, 0.0
      %v6042 = vmax.f32 %v6017, 0.0
      %v6043 = vmax.f32 %v6018, 0.0
      %v6044 = vmax.f32 %v6019, 0.0
      %v6045 = vmax.f32 %v6020, 0.0
      %v6046 = vmax.f32 %v6021, 0.0
      %v6047 = vmax.f32 %v6022, 0.0
      %v6048 = vmax.f32 %v6023, 0.0
      %v6049 = vmax.f32 %v6024, 0.0
      %v6050 = vmax.f32 %v6025, 0.0
      %v6051 = vmax.f32 %v6026, 0.0
      %v6077 = vcombine.high %v6027, %v6027
      %v6079 = vunpack.c.l.s4 1983009808
      %v6080 = vunpack.c.0.s8 %v6079
      %v6081 = vlaneseq
      %v6082 = vshrl.u32 %v6081, 7
      %v6083 = vsub.s32 %v6080, %v6082
      %v6084 = vrot.slane %v6027, %v6083
      %v6086 = vunpack.c.l.s4 1983009808
      %v6087 = vunpack.c.0.s8 %v6086
      %v6088 = vlaneseq
      %v6089 = vshrl.u32 %v6088, 7
      %v6090 = vsub.s32 %v6087, %v6089
      %v6091 = vrot.slane %v6077, %v6090
      %v6092 = vcombine.high %v6084, %v6084
      %v6093 = vcombine.high %v6091, %v6091
      %v6094 = vcombine.high %v6028, %v6028
      %v6096 = vunpack.c.l.s4 1983009808
      %v6097 = vunpack.c.0.s8 %v6096
      %v6098 = vlaneseq
      %v6099 = vshrl.u32 %v6098, 7
      %v6100 = vsub.s32 %v6097, %v6099
      %v6101 = vrot.slane %v6028, %v6100
      %v6103 = vunpack.c.l.s4 1983009808
      %v6104 = vunpack.c.0.s8 %v6103
      %v6105 = vlaneseq
      %v6106 = vshrl.u32 %v6105, 7
      %v6107 = vsub.s32 %v6104, %v6106
      %v6108 = vrot.slane %v6094, %v6107
      %v6109 = vcombine.high %v6101, %v6101
      %v6110 = vcombine.high %v6108, %v6108
      %v6111 = vcombine.high %v6029, %v6029
      %v6113 = vunpack.c.l.s4 1983009808
      %v6114 = vunpack.c.0.s8 %v6113
      %v6115 = vlaneseq
      %v6116 = vshrl.u32 %v6115, 7
      %v6117 = vsub.s32 %v6114, %v6116
      %v6118 = vrot.slane %v6029, %v6117
      %v6120 = vunpack.c.l.s4 1983009808
      %v6121 = vunpack.c.0.s8 %v6120
      %v6122 = vlaneseq
      %v6123 = vshrl.u32 %v6122, 7
      %v6124 = vsub.s32 %v6121, %v6123
      %v6125 = vrot.slane %v6111, %v6124
      %v6126 = vcombine.high %v6118, %v6118
      %v6127 = vcombine.high %v6125, %v6125
      %v6128 = vcombine.high %v6030, %v6030
      %v6130 = vunpack.c.l.s4 1983009808
      %v6131 = vunpack.c.0.s8 %v6130
      %v6132 = vlaneseq
      %v6133 = vshrl.u32 %v6132, 7
      %v6134 = vsub.s32 %v6131, %v6133
      %v6135 = vrot.slane %v6030, %v6134
      %v6137 = vunpack.c.l.s4 1983009808
      %v6138 = vunpack.c.0.s8 %v6137
      %v6139 = vlaneseq
      %v6140 = vshrl.u32 %v6139, 7
      %v6141 = vsub.s32 %v6138, %v6140
      %v6142 = vrot.slane %v6128, %v6141
      %v6143 = vcombine.high %v6135, %v6135
      %v6144 = vcombine.high %v6142, %v6142
      %v6145 = vcombine.high %v6031, %v6031
      %v6147 = vunpack.c.l.s4 1983009808
      %v6148 = vunpack.c.0.s8 %v6147
      %v6149 = vlaneseq
      %v6150 = vshrl.u32 %v6149, 7
      %v6151 = vsub.s32 %v6148, %v6150
      %v6152 = vrot.slane %v6031, %v6151
      %v6154 = vunpack.c.l.s4 1983009808
      %v6155 = vunpack.c.0.s8 %v6154
      %v6156 = vlaneseq
      %v6157 = vshrl.u32 %v6156, 7
      %v6158 = vsub.s32 %v6155, %v6157
      %v6159 = vrot.slane %v6145, %v6158
      %v6160 = vcombine.high %v6152, %v6152
      %v6161 = vcombine.high %v6159, %v6159
      %v6162 = vcombine.high %v6032, %v6032
      %v6164 = vunpack.c.l.s4 1983009808
      %v6165 = vunpack.c.0.s8 %v6164
      %v6166 = vlaneseq
      %v6167 = vshrl.u32 %v6166, 7
      %v6168 = vsub.s32 %v6165, %v6167
      %v6169 = vrot.slane %v6032, %v6168
      %v6171 = vunpack.c.l.s4 1983009808
      %v6172 = vunpack.c.0.s8 %v6171
      %v6173 = vlaneseq
      %v6174 = vshrl.u32 %v6173, 7
      %v6175 = vsub.s32 %v6172, %v6174
      %v6176 = vrot.slane %v6162, %v6175
      %v6177 = vcombine.high %v6169, %v6169
      %v6178 = vcombine.high %v6176, %v6176
      %v6179 = vcombine.high %v6033, %v6033
      %v6181 = vunpack.c.l.s4 1983009808
      %v6182 = vunpack.c.0.s8 %v6181
      %v6183 = vlaneseq
      %v6184 = vshrl.u32 %v6183, 7
      %v6185 = vsub.s32 %v6182, %v6184
      %v6186 = vrot.slane %v6033, %v6185
      %v6188 = vunpack.c.l.s4 1983009808
      %v6189 = vunpack.c.0.s8 %v6188
      %v6190 = vlaneseq
      %v6191 = vshrl.u32 %v6190, 7
      %v6192 = vsub.s32 %v6189, %v6191
      %v6193 = vrot.slane %v6179, %v6192
      %v6194 = vcombine.high %v6186, %v6186
      %v6195 = vcombine.high %v6193, %v6193
      %v6196 = vcombine.high %v6034, %v6034
      %v6198 = vunpack.c.l.s4 1983009808
      %v6199 = vunpack.c.0.s8 %v6198
      %v6200 = vlaneseq
      %v6201 = vshrl.u32 %v6200, 7
      %v6202 = vsub.s32 %v6199, %v6201
      %v6203 = vrot.slane %v6034, %v6202
      %v6205 = vunpack.c.l.s4 1983009808
      %v6206 = vunpack.c.0.s8 %v6205
      %v6207 = vlaneseq
      %v6208 = vshrl.u32 %v6207, 7
      %v6209 = vsub.s32 %v6206, %v6208
      %v6210 = vrot.slane %v6196, %v6209
      %v6211 = vcombine.high %v6203, %v6203
      %v6212 = vcombine.high %v6210, %v6210
      %v6213 = vcombine.high %v6035, %v6035
      %v6215 = vunpack.c.l.s4 1983009808
      %v6216 = vunpack.c.0.s8 %v6215
      %v6217 = vlaneseq
      %v6218 = vshrl.u32 %v6217, 7
      %v6219 = vsub.s32 %v6216, %v6218
      %v6220 = vrot.slane %v6035, %v6219
      %v6222 = vunpack.c.l.s4 1983009808
      %v6223 = vunpack.c.0.s8 %v6222
      %v6224 = vlaneseq
      %v6225 = vshrl.u32 %v6224, 7
      %v6226 = vsub.s32 %v6223, %v6225
      %v6227 = vrot.slane %v6213, %v6226
      %v6228 = vcombine.high %v6220, %v6220
      %v6229 = vcombine.high %v6227, %v6227
      %v6230 = vcombine.high %v6036, %v6036
      %v6232 = vunpack.c.l.s4 1983009808
      %v6233 = vunpack.c.0.s8 %v6232
      %v6234 = vlaneseq
      %v6235 = vshrl.u32 %v6234, 7
      %v6236 = vsub.s32 %v6233, %v6235
      %v6237 = vrot.slane %v6036, %v6236
      %v6239 = vunpack.c.l.s4 1983009808
      %v6240 = vunpack.c.0.s8 %v6239
      %v6241 = vlaneseq
      %v6242 = vshrl.u32 %v6241, 7
      %v6243 = vsub.s32 %v6240, %v6242
      %v6244 = vrot.slane %v6230, %v6243
      %v6245 = vcombine.high %v6237, %v6237
      %v6246 = vcombine.high %v6244, %v6244
      %v6247 = vcombine.high %v6037, %v6037
      %v6249 = vunpack.c.l.s4 1983009808
      %v6250 = vunpack.c.0.s8 %v6249
      %v6251 = vlaneseq
      %v6252 = vshrl.u32 %v6251, 7
      %v6253 = vsub.s32 %v6250, %v6252
      %v6254 = vrot.slane %v6037, %v6253
      %v6256 = vunpack.c.l.s4 1983009808
      %v6257 = vunpack.c.0.s8 %v6256
      %v6258 = vlaneseq
      %v6259 = vshrl.u32 %v6258, 7
      %v6260 = vsub.s32 %v6257, %v6259
      %v6261 = vrot.slane %v6247, %v6260
      %v6262 = vcombine.high %v6254, %v6254
      %v6263 = vcombine.high %v6261, %v6261
      %v6264 = vcombine.high %v6038, %v6038
      %v6266 = vunpack.c.l.s4 1983009808
      %v6267 = vunpack.c.0.s8 %v6266
      %v6268 = vlaneseq
      %v6269 = vshrl.u32 %v6268, 7
      %v6270 = vsub.s32 %v6267, %v6269
      %v6271 = vrot.slane %v6038, %v6270
      %v6273 = vunpack.c.l.s4 1983009808
      %v6274 = vunpack.c.0.s8 %v6273
      %v6275 = vlaneseq
      %v6276 = vshrl.u32 %v6275, 7
      %v6277 = vsub.s32 %v6274, %v6276
      %v6278 = vrot.slane %v6264, %v6277
      %v6279 = vcombine.high %v6271, %v6271
      %v6280 = vcombine.high %v6278, %v6278
      %v6281 = vcombine.high %v6039, %v6039
      %v6283 = vunpack.c.l.s4 1983009808
      %v6284 = vunpack.c.0.s8 %v6283
      %v6285 = vlaneseq
      %v6286 = vshrl.u32 %v6285, 7
      %v6287 = vsub.s32 %v6284, %v6286
      %v6288 = vrot.slane %v6039, %v6287
      %v6290 = vunpack.c.l.s4 1983009808
      %v6291 = vunpack.c.0.s8 %v6290
      %v6292 = vlaneseq
      %v6293 = vshrl.u32 %v6292, 7
      %v6294 = vsub.s32 %v6291, %v6293
      %v6295 = vrot.slane %v6281, %v6294
      %v6296 = vcombine.high %v6288, %v6288
      %v6297 = vcombine.high %v6295, %v6295
      %v6298 = vcombine.high %v6040, %v6040
      %v6300 = vunpack.c.l.s4 1983009808
      %v6301 = vunpack.c.0.s8 %v6300
      %v6302 = vlaneseq
      %v6303 = vshrl.u32 %v6302, 7
      %v6304 = vsub.s32 %v6301, %v6303
      %v6305 = vrot.slane %v6040, %v6304
      %v6307 = vunpack.c.l.s4 1983009808
      %v6308 = vunpack.c.0.s8 %v6307
      %v6309 = vlaneseq
      %v6310 = vshrl.u32 %v6309, 7
      %v6311 = vsub.s32 %v6308, %v6310
      %v6312 = vrot.slane %v6298, %v6311
      %v6313 = vcombine.high %v6305, %v6305
      %v6314 = vcombine.high %v6312, %v6312
      %v6315 = vcombine.high %v6041, %v6041
      %v6317 = vunpack.c.l.s4 1983009808
      %v6318 = vunpack.c.0.s8 %v6317
      %v6319 = vlaneseq
      %v6320 = vshrl.u32 %v6319, 7
      %v6321 = vsub.s32 %v6318, %v6320
      %v6322 = vrot.slane %v6041, %v6321
      %v6324 = vunpack.c.l.s4 1983009808
      %v6325 = vunpack.c.0.s8 %v6324
      %v6326 = vlaneseq
      %v6327 = vshrl.u32 %v6326, 7
      %v6328 = vsub.s32 %v6325, %v6327
      %v6329 = vrot.slane %v6315, %v6328
      %v6330 = vcombine.high %v6322, %v6322
      %v6331 = vcombine.high %v6329, %v6329
      %v6332 = vcombine.high %v6042, %v6042
      %v6334 = vunpack.c.l.s4 1983009808
      %v6335 = vunpack.c.0.s8 %v6334
      %v6336 = vlaneseq
      %v6337 = vshrl.u32 %v6336, 7
      %v6338 = vsub.s32 %v6335, %v6337
      %v6339 = vrot.slane %v6042, %v6338
      %v6341 = vunpack.c.l.s4 1983009808
      %v6342 = vunpack.c.0.s8 %v6341
      %v6343 = vlaneseq
      %v6344 = vshrl.u32 %v6343, 7
      %v6345 = vsub.s32 %v6342, %v6344
      %v6346 = vrot.slane %v6332, %v6345
      %v6347 = vcombine.high %v6339, %v6339
      %v6348 = vcombine.high %v6346, %v6346
      %v6349 = vcombine.high %v6043, %v6043
      %v6351 = vunpack.c.l.s4 1983009808
      %v6352 = vunpack.c.0.s8 %v6351
      %v6353 = vlaneseq
      %v6354 = vshrl.u32 %v6353, 7
      %v6355 = vsub.s32 %v6352, %v6354
      %v6356 = vrot.slane %v6043, %v6355
      %v6358 = vunpack.c.l.s4 1983009808
      %v6359 = vunpack.c.0.s8 %v6358
      %v6360 = vlaneseq
      %v6361 = vshrl.u32 %v6360, 7
      %v6362 = vsub.s32 %v6359, %v6361
      %v6363 = vrot.slane %v6349, %v6362
      %v6364 = vcombine.high %v6356, %v6356
      %v6365 = vcombine.high %v6363, %v6363
      %v6366 = vcombine.high %v6044, %v6044
      %v6368 = vunpack.c.l.s4 1983009808
      %v6369 = vunpack.c.0.s8 %v6368
      %v6370 = vlaneseq
      %v6371 = vshrl.u32 %v6370, 7
      %v6372 = vsub.s32 %v6369, %v6371
      %v6373 = vrot.slane %v6044, %v6372
      %v6375 = vunpack.c.l.s4 1983009808
      %v6376 = vunpack.c.0.s8 %v6375
      %v6377 = vlaneseq
      %v6378 = vshrl.u32 %v6377, 7
      %v6379 = vsub.s32 %v6376, %v6378
      %v6380 = vrot.slane %v6366, %v6379
      %v6381 = vcombine.high %v6373, %v6373
      %v6382 = vcombine.high %v6380, %v6380
      %v6383 = vcombine.high %v6045, %v6045
      %v6385 = vunpack.c.l.s4 1983009808
      %v6386 = vunpack.c.0.s8 %v6385
      %v6387 = vlaneseq
      %v6388 = vshrl.u32 %v6387, 7
      %v6389 = vsub.s32 %v6386, %v6388
      %v6390 = vrot.slane %v6045, %v6389
      %v6392 = vunpack.c.l.s4 1983009808
      %v6393 = vunpack.c.0.s8 %v6392
      %v6394 = vlaneseq
      %v6395 = vshrl.u32 %v6394, 7
      %v6396 = vsub.s32 %v6393, %v6395
      %v6397 = vrot.slane %v6383, %v6396
      %v6398 = vcombine.high %v6390, %v6390
      %v6399 = vcombine.high %v6397, %v6397
      %v6400 = vcombine.high %v6046, %v6046
      %v6402 = vunpack.c.l.s4 1983009808
      %v6403 = vunpack.c.0.s8 %v6402
      %v6404 = vlaneseq
      %v6405 = vshrl.u32 %v6404, 7
      %v6406 = vsub.s32 %v6403, %v6405
      %v6407 = vrot.slane %v6046, %v6406
      %v6409 = vunpack.c.l.s4 1983009808
      %v6410 = vunpack.c.0.s8 %v6409
      %v6411 = vlaneseq
      %v6412 = vshrl.u32 %v6411, 7
      %v6413 = vsub.s32 %v6410, %v6412
      %v6414 = vrot.slane %v6400, %v6413
      %v6415 = vcombine.high %v6407, %v6407
      %v6416 = vcombine.high %v6414, %v6414
      %v6417 = vcombine.high %v6047, %v6047
      %v6419 = vunpack.c.l.s4 1983009808
      %v6420 = vunpack.c.0.s8 %v6419
      %v6421 = vlaneseq
      %v6422 = vshrl.u32 %v6421, 7
      %v6423 = vsub.s32 %v6420, %v6422
      %v6424 = vrot.slane %v6047, %v6423
      %v6426 = vunpack.c.l.s4 1983009808
      %v6427 = vunpack.c.0.s8 %v6426
      %v6428 = vlaneseq
      %v6429 = vshrl.u32 %v6428, 7
      %v6430 = vsub.s32 %v6427, %v6429
      %v6431 = vrot.slane %v6417, %v6430
      %v6432 = vcombine.high %v6424, %v6424
      %v6433 = vcombine.high %v6431, %v6431
      %v6434 = vcombine.high %v6048, %v6048
      %v6436 = vunpack.c.l.s4 1983009808
      %v6437 = vunpack.c.0.s8 %v6436
      %v6438 = vlaneseq
      %v6439 = vshrl.u32 %v6438, 7
      %v6440 = vsub.s32 %v6437, %v6439
      %v6441 = vrot.slane %v6048, %v6440
      %v6443 = vunpack.c.l.s4 1983009808
      %v6444 = vunpack.c.0.s8 %v6443
      %v6445 = vlaneseq
      %v6446 = vshrl.u32 %v6445, 7
      %v6447 = vsub.s32 %v6444, %v6446
      %v6448 = vrot.slane %v6434, %v6447
      %v6449 = vcombine.high %v6441, %v6441
      %v6450 = vcombine.high %v6448, %v6448
      %v6451 = vcombine.high %v6049, %v6049
      %v6453 = vunpack.c.l.s4 1983009808
      %v6454 = vunpack.c.0.s8 %v6453
      %v6455 = vlaneseq
      %v6456 = vshrl.u32 %v6455, 7
      %v6457 = vsub.s32 %v6454, %v6456
      %v6458 = vrot.slane %v6049, %v6457
      %v6460 = vunpack.c.l.s4 1983009808
      %v6461 = vunpack.c.0.s8 %v6460
      %v6462 = vlaneseq
      %v6463 = vshrl.u32 %v6462, 7
      %v6464 = vsub.s32 %v6461, %v6463
      %v6465 = vrot.slane %v6451, %v6464
      %v6466 = vcombine.high %v6458, %v6458
      %v6467 = vcombine.high %v6465, %v6465
      %v6468 = vcombine.high %v6050, %v6050
      %v6470 = vunpack.c.l.s4 1983009808
      %v6471 = vunpack.c.0.s8 %v6470
      %v6472 = vlaneseq
      %v6473 = vshrl.u32 %v6472, 7
      %v6474 = vsub.s32 %v6471, %v6473
      %v6475 = vrot.slane %v6050, %v6474
      %v6477 = vunpack.c.l.s4 1983009808
      %v6478 = vunpack.c.0.s8 %v6477
      %v6479 = vlaneseq
      %v6480 = vshrl.u32 %v6479, 7
      %v6481 = vsub.s32 %v6478, %v6480
      %v6482 = vrot.slane %v6468, %v6481
      %v6483 = vcombine.high %v6475, %v6475
      %v6484 = vcombine.high %v6482, %v6482
      %v6486 = vunpack.c.l.s4 1983009808
      %v6487 = vunpack.c.0.s8 %v6486
      %v6488 = vlaneseq
      %v6489 = vshrl.u32 %v6488, 7
      %v6490 = vsub.s32 %v6487, %v6489
      %v6491 = vrot.slane %v6051, %v6490
      %v6492 = vcombine.high %v6491, %v6491
      %v6493 = vcombine.low %v6084, %v6092
      %v6494 = vcombine.low %v6091, %v6093
      %v6496 = vunpack.c.l.s4 1983009808
      %v6497 = vunpack.c.0.s8 %v6496
      %v6498 = vlaneseq
      %v6499 = vshrl.u32 %v6498, 7
      %v6500 = vsub.s32 %v6497, %v6499
      %v6501 = vrot.slane %v6493, %v6500
      %v6503 = vunpack.c.l.s4 1983009808
      %v6504 = vunpack.c.0.s8 %v6503
      %v6505 = vlaneseq
      %v6506 = vshrl.u32 %v6505, 7
      %v6507 = vsub.s32 %v6504, %v6506
      %v6508 = vrot.slane %v6494, %v6507
      %v6509 = vcombine.low %v6501, %v6508
      %v6510 = vcombine.low %v6101, %v6109
      %v6512 = vunpack.c.l.s4 1983009808
      %v6513 = vunpack.c.0.s8 %v6512
      %v6514 = vlaneseq
      %v6515 = vshrl.u32 %v6514, 7
      %v6516 = vsub.s32 %v6513, %v6515
      %v6517 = vrot.slane %v6510, %v6516
      %v6519 = vunpack.c.l.s4 1983009808
      %v6520 = vunpack.c.0.s8 %v6519
      %v6521 = vlaneseq
      %v6522 = vshrl.u32 %v6521, 7
      %v6523 = vsub.s32 %v6520, %v6522
      %v6524 = vrot.slane %v6108, %v6523
      %v6525 = vcombine.low %v6517, %v6524
      %v6526 = vcombine.low %v6110, %v6118
      %v6527 = vcombine.low %v6126, %v6125
      %v6529 = vunpack.c.l.s4 1983009808
      %v6530 = vunpack.c.0.s8 %v6529
      %v6531 = vlaneseq
      %v6532 = vshrl.u32 %v6531, 7
      %v6533 = vsub.s32 %v6530, %v6532
      %v6534 = vrot.slane %v6526, %v6533
      %v6536 = vunpack.c.l.s4 1983009808
      %v6537 = vunpack.c.0.s8 %v6536
      %v6538 = vlaneseq
      %v6539 = vshrl.u32 %v6538, 7
      %v6540 = vsub.s32 %v6537, %v6539
      %v6541 = vrot.slane %v6527, %v6540
      %v6542 = vcombine.low %v6534, %v6541
      %v6543 = vcombine.low %v6127, %v6135
      %v6545 = vunpack.c.l.s4 1983009808
      %v6546 = vunpack.c.0.s8 %v6545
      %v6547 = vlaneseq
      %v6548 = vshrl.u32 %v6547, 7
      %v6549 = vsub.s32 %v6546, %v6548
      %v6550 = vrot.slane %v6543, %v6549
      %v6552 = vunpack.c.l.s4 1983009808
      %v6553 = vunpack.c.0.s8 %v6552
      %v6554 = vlaneseq
      %v6555 = vshrl.u32 %v6554, 7
      %v6556 = vsub.s32 %v6553, %v6555
      %v6557 = vrot.slane %v6143, %v6556
      %v6558 = vcombine.low %v6550, %v6557
      %v6559 = vcombine.low %v6142, %v6144
      %v6560 = vcombine.low %v6152, %v6160
      %v6562 = vunpack.c.l.s4 1983009808
      %v6563 = vunpack.c.0.s8 %v6562
      %v6564 = vlaneseq
      %v6565 = vshrl.u32 %v6564, 7
      %v6566 = vsub.s32 %v6563, %v6565
      %v6567 = vrot.slane %v6559, %v6566
      %v6569 = vunpack.c.l.s4 1983009808
      %v6570 = vunpack.c.0.s8 %v6569
      %v6571 = vlaneseq
      %v6572 = vshrl.u32 %v6571, 7
      %v6573 = vsub.s32 %v6570, %v6572
      %v6574 = vrot.slane %v6560, %v6573
      %v6575 = vcombine.low %v6567, %v6574
      %v6576 = vcombine.low %v6159, %v6161
      %v6578 = vunpack.c.l.s4 1983009808
      %v6579 = vunpack.c.0.s8 %v6578
      %v6580 = vlaneseq
      %v6581 = vshrl.u32 %v6580, 7
      %v6582 = vsub.s32 %v6579, %v6581
      %v6583 = vrot.slane %v6576, %v6582
      %v6585 = vunpack.c.l.s4 1983009808
      %v6586 = vunpack.c.0.s8 %v6585
      %v6587 = vlaneseq
      %v6588 = vshrl.u32 %v6587, 7
      %v6589 = vsub.s32 %v6586, %v6588
      %v6590 = vrot.slane %v6169, %v6589
      %v6591 = vcombine.low %v6583, %v6590
      %v6592 = vcombine.low %v6177, %v6176
      %v6593 = vcombine.low %v6178, %v6186
      %v6595 = vunpack.c.l.s4 1983009808
      %v6596 = vunpack.c.0.s8 %v6595
      %v6597 = vlaneseq
      %v6598 = vshrl.u32 %v6597, 7
      %v6599 = vsub.s32 %v6596, %v6598
      %v6600 = vrot.slane %v6592, %v6599
      %v6602 = vunpack.c.l.s4 1983009808
      %v6603 = vunpack.c.0.s8 %v6602
      %v6604 = vlaneseq
      %v6605 = vshrl.u32 %v6604, 7
      %v6606 = vsub.s32 %v6603, %v6605
      %v6607 = vrot.slane %v6593, %v6606
      %v6608 = vcombine.low %v6600, %v6607
      %v6609 = vcombine.low %v6194, %v6193
      %v6611 = vunpack.c.l.s4 1983009808
      %v6612 = vunpack.c.0.s8 %v6611
      %v6613 = vlaneseq
      %v6614 = vshrl.u32 %v6613, 7
      %v6615 = vsub.s32 %v6612, %v6614
      %v6616 = vrot.slane %v6609, %v6615
      %v6618 = vunpack.c.l.s4 1983009808
      %v6619 = vunpack.c.0.s8 %v6618
      %v6620 = vlaneseq
      %v6621 = vshrl.u32 %v6620, 7
      %v6622 = vsub.s32 %v6619, %v6621
      %v6623 = vrot.slane %v6195, %v6622
      %v6624 = vcombine.low %v6616, %v6623
      %v6625 = vcombine.low %v6203, %v6211
      %v6626 = vcombine.low %v6210, %v6212
      %v6628 = vunpack.c.l.s4 1983009808
      %v6629 = vunpack.c.0.s8 %v6628
      %v6630 = vlaneseq
      %v6631 = vshrl.u32 %v6630, 7
      %v6632 = vsub.s32 %v6629, %v6631
      %v6633 = vrot.slane %v6625, %v6632
      %v6635 = vunpack.c.l.s4 1983009808
      %v6636 = vunpack.c.0.s8 %v6635
      %v6637 = vlaneseq
      %v6638 = vshrl.u32 %v6637, 7
      %v6639 = vsub.s32 %v6636, %v6638
      %v6640 = vrot.slane %v6626, %v6639
      %v6641 = vcombine.low %v6633, %v6640
      %v6642 = vcombine.low %v6220, %v6228
      %v6644 = vunpack.c.l.s4 1983009808
      %v6645 = vunpack.c.0.s8 %v6644
      %v6646 = vlaneseq
      %v6647 = vshrl.u32 %v6646, 7
      %v6648 = vsub.s32 %v6645, %v6647
      %v6649 = vrot.slane %v6642, %v6648
      %v6651 = vunpack.c.l.s4 1983009808
      %v6652 = vunpack.c.0.s8 %v6651
      %v6653 = vlaneseq
      %v6654 = vshrl.u32 %v6653, 7
      %v6655 = vsub.s32 %v6652, %v6654
      %v6656 = vrot.slane %v6227, %v6655
      %v6657 = vcombine.low %v6649, %v6656
      %v6658 = vcombine.low %v6229, %v6237
      %v6659 = vcombine.low %v6245, %v6244
      %v6661 = vunpack.c.l.s4 1983009808
      %v6662 = vunpack.c.0.s8 %v6661
      %v6663 = vlaneseq
      %v6664 = vshrl.u32 %v6663, 7
      %v6665 = vsub.s32 %v6662, %v6664
      %v6666 = vrot.slane %v6658, %v6665
      %v6668 = vunpack.c.l.s4 1983009808
      %v6669 = vunpack.c.0.s8 %v6668
      %v6670 = vlaneseq
      %v6671 = vshrl.u32 %v6670, 7
      %v6672 = vsub.s32 %v6669, %v6671
      %v6673 = vrot.slane %v6659, %v6672
      %v6674 = vcombine.low %v6666, %v6673
      %v6675 = vcombine.low %v6246, %v6254
      %v6677 = vunpack.c.l.s4 1983009808
      %v6678 = vunpack.c.0.s8 %v6677
      %v6679 = vlaneseq
      %v6680 = vshrl.u32 %v6679, 7
      %v6681 = vsub.s32 %v6678, %v6680
      %v6682 = vrot.slane %v6675, %v6681
      %v6684 = vunpack.c.l.s4 1983009808
      %v6685 = vunpack.c.0.s8 %v6684
      %v6686 = vlaneseq
      %v6687 = vshrl.u32 %v6686, 7
      %v6688 = vsub.s32 %v6685, %v6687
      %v6689 = vrot.slane %v6262, %v6688
      %v6690 = vcombine.low %v6682, %v6689
      %v6691 = vcombine.low %v6261, %v6263
      %v6692 = vcombine.low %v6271, %v6279
      %v6694 = vunpack.c.l.s4 1983009808
      %v6695 = vunpack.c.0.s8 %v6694
      %v6696 = vlaneseq
      %v6697 = vshrl.u32 %v6696, 7
      %v6698 = vsub.s32 %v6695, %v6697
      %v6699 = vrot.slane %v6691, %v6698
      %v6701 = vunpack.c.l.s4 1983009808
      %v6702 = vunpack.c.0.s8 %v6701
      %v6703 = vlaneseq
      %v6704 = vshrl.u32 %v6703, 7
      %v6705 = vsub.s32 %v6702, %v6704
      %v6706 = vrot.slane %v6692, %v6705
      %v6707 = vcombine.low %v6699, %v6706
      %v6708 = vcombine.low %v6278, %v6280
      %v6710 = vunpack.c.l.s4 1983009808
      %v6711 = vunpack.c.0.s8 %v6710
      %v6712 = vlaneseq
      %v6713 = vshrl.u32 %v6712, 7
      %v6714 = vsub.s32 %v6711, %v6713
      %v6715 = vrot.slane %v6708, %v6714
      %v6717 = vunpack.c.l.s4 1983009808
      %v6718 = vunpack.c.0.s8 %v6717
      %v6719 = vlaneseq
      %v6720 = vshrl.u32 %v6719, 7
      %v6721 = vsub.s32 %v6718, %v6720
      %v6722 = vrot.slane %v6288, %v6721
      %v6723 = vcombine.low %v6715, %v6722
      %v6724 = vcombine.low %v6296, %v6295
      %v6725 = vcombine.low %v6297, %v6305
      %v6727 = vunpack.c.l.s4 1983009808
      %v6728 = vunpack.c.0.s8 %v6727
      %v6729 = vlaneseq
      %v6730 = vshrl.u32 %v6729, 7
      %v6731 = vsub.s32 %v6728, %v6730
      %v6732 = vrot.slane %v6724, %v6731
      %v6734 = vunpack.c.l.s4 1983009808
      %v6735 = vunpack.c.0.s8 %v6734
      %v6736 = vlaneseq
      %v6737 = vshrl.u32 %v6736, 7
      %v6738 = vsub.s32 %v6735, %v6737
      %v6739 = vrot.slane %v6725, %v6738
      %v6740 = vcombine.low %v6732, %v6739
      %v6741 = vcombine.low %v6313, %v6312
      %v6743 = vunpack.c.l.s4 1983009808
      %v6744 = vunpack.c.0.s8 %v6743
      %v6745 = vlaneseq
      %v6746 = vshrl.u32 %v6745, 7
      %v6747 = vsub.s32 %v6744, %v6746
      %v6748 = vrot.slane %v6741, %v6747
      %v6750 = vunpack.c.l.s4 1983009808
      %v6751 = vunpack.c.0.s8 %v6750
      %v6752 = vlaneseq
      %v6753 = vshrl.u32 %v6752, 7
      %v6754 = vsub.s32 %v6751, %v6753
      %v6755 = vrot.slane %v6314, %v6754
      %v6756 = vcombine.low %v6748, %v6755
      %v6757 = vcombine.low %v6322, %v6330
      %v6758 = vcombine.low %v6329, %v6331
      %v6760 = vunpack.c.l.s4 1983009808
      %v6761 = vunpack.c.0.s8 %v6760
      %v6762 = vlaneseq
      %v6763 = vshrl.u32 %v6762, 7
      %v6764 = vsub.s32 %v6761, %v6763
      %v6765 = vrot.slane %v6757, %v6764
      %v6767 = vunpack.c.l.s4 1983009808
      %v6768 = vunpack.c.0.s8 %v6767
      %v6769 = vlaneseq
      %v6770 = vshrl.u32 %v6769, 7
      %v6771 = vsub.s32 %v6768, %v6770
      %v6772 = vrot.slane %v6758, %v6771
      %v6773 = vcombine.low %v6765, %v6772
      %v6774 = vcombine.low %v6339, %v6347
      %v6776 = vunpack.c.l.s4 1983009808
      %v6777 = vunpack.c.0.s8 %v6776
      %v6778 = vlaneseq
      %v6779 = vshrl.u32 %v6778, 7
      %v6780 = vsub.s32 %v6777, %v6779
      %v6781 = vrot.slane %v6774, %v6780
      %v6783 = vunpack.c.l.s4 1983009808
      %v6784 = vunpack.c.0.s8 %v6783
      %v6785 = vlaneseq
      %v6786 = vshrl.u32 %v6785, 7
      %v6787 = vsub.s32 %v6784, %v6786
      %v6788 = vrot.slane %v6346, %v6787
      %v6789 = vcombine.low %v6781, %v6788
      %v6790 = vcombine.low %v6348, %v6356
      %v6791 = vcombine.low %v6364, %v6363
      %v6793 = vunpack.c.l.s4 1983009808
      %v6794 = vunpack.c.0.s8 %v6793
      %v6795 = vlaneseq
      %v6796 = vshrl.u32 %v6795, 7
      %v6797 = vsub.s32 %v6794, %v6796
      %v6798 = vrot.slane %v6790, %v6797
      %v6800 = vunpack.c.l.s4 1983009808
      %v6801 = vunpack.c.0.s8 %v6800
      %v6802 = vlaneseq
      %v6803 = vshrl.u32 %v6802, 7
      %v6804 = vsub.s32 %v6801, %v6803
      %v6805 = vrot.slane %v6791, %v6804
      %v6806 = vcombine.low %v6798, %v6805
      %v6807 = vcombine.low %v6365, %v6373
      %v6809 = vunpack.c.l.s4 1983009808
      %v6810 = vunpack.c.0.s8 %v6809
      %v6811 = vlaneseq
      %v6812 = vshrl.u32 %v6811, 7
      %v6813 = vsub.s32 %v6810, %v6812
      %v6814 = vrot.slane %v6807, %v6813
      %v6816 = vunpack.c.l.s4 1983009808
      %v6817 = vunpack.c.0.s8 %v6816
      %v6818 = vlaneseq
      %v6819 = vshrl.u32 %v6818, 7
      %v6820 = vsub.s32 %v6817, %v6819
      %v6821 = vrot.slane %v6381, %v6820
      %v6822 = vcombine.low %v6814, %v6821
      %v6823 = vcombine.low %v6380, %v6382
      %v6824 = vcombine.low %v6390, %v6398
      %v6826 = vunpack.c.l.s4 1983009808
      %v6827 = vunpack.c.0.s8 %v6826
      %v6828 = vlaneseq
      %v6829 = vshrl.u32 %v6828, 7
      %v6830 = vsub.s32 %v6827, %v6829
      %v6831 = vrot.slane %v6823, %v6830
      %v6833 = vunpack.c.l.s4 1983009808
      %v6834 = vunpack.c.0.s8 %v6833
      %v6835 = vlaneseq
      %v6836 = vshrl.u32 %v6835, 7
      %v6837 = vsub.s32 %v6834, %v6836
      %v6838 = vrot.slane %v6824, %v6837
      %v6839 = vcombine.low %v6831, %v6838
      %v6840 = vcombine.low %v6397, %v6399
      %v6842 = vunpack.c.l.s4 1983009808
      %v6843 = vunpack.c.0.s8 %v6842
      %v6844 = vlaneseq
      %v6845 = vshrl.u32 %v6844, 7
      %v6846 = vsub.s32 %v6843, %v6845
      %v6847 = vrot.slane %v6840, %v6846
      %v6849 = vunpack.c.l.s4 1983009808
      %v6850 = vunpack.c.0.s8 %v6849
      %v6851 = vlaneseq
      %v6852 = vshrl.u32 %v6851, 7
      %v6853 = vsub.s32 %v6850, %v6852
      %v6854 = vrot.slane %v6407, %v6853
      %v6855 = vcombine.low %v6847, %v6854
      %v6856 = vcombine.low %v6415, %v6414
      %v6857 = vcombine.low %v6416, %v6424
      %v6859 = vunpack.c.l.s4 1983009808
      %v6860 = vunpack.c.0.s8 %v6859
      %v6861 = vlaneseq
      %v6862 = vshrl.u32 %v6861, 7
      %v6863 = vsub.s32 %v6860, %v6862
      %v6864 = vrot.slane %v6856, %v6863
      %v6866 = vunpack.c.l.s4 1983009808
      %v6867 = vunpack.c.0.s8 %v6866
      %v6868 = vlaneseq
      %v6869 = vshrl.u32 %v6868, 7
      %v6870 = vsub.s32 %v6867, %v6869
      %v6871 = vrot.slane %v6857, %v6870
      %v6872 = vcombine.low %v6864, %v6871
      %v6873 = vcombine.low %v6432, %v6431
      %v6875 = vunpack.c.l.s4 1983009808
      %v6876 = vunpack.c.0.s8 %v6875
      %v6877 = vlaneseq
      %v6878 = vshrl.u32 %v6877, 7
      %v6879 = vsub.s32 %v6876, %v6878
      %v6880 = vrot.slane %v6873, %v6879
      %v6882 = vunpack.c.l.s4 1983009808
      %v6883 = vunpack.c.0.s8 %v6882
      %v6884 = vlaneseq
      %v6885 = vshrl.u32 %v6884, 7
      %v6886 = vsub.s32 %v6883, %v6885
      %v6887 = vrot.slane %v6433, %v6886
      %v6888 = vcombine.low %v6880, %v6887
      %v6889 = vcombine.low %v6441, %v6449
      %v6890 = vcombine.low %v6448, %v6450
      %v6892 = vunpack.c.l.s4 1983009808
      %v6893 = vunpack.c.0.s8 %v6892
      %v6894 = vlaneseq
      %v6895 = vshrl.u32 %v6894, 7
      %v6896 = vsub.s32 %v6893, %v6895
      %v6897 = vrot.slane %v6889, %v6896
      %v6899 = vunpack.c.l.s4 1983009808
      %v6900 = vunpack.c.0.s8 %v6899
      %v6901 = vlaneseq
      %v6902 = vshrl.u32 %v6901, 7
      %v6903 = vsub.s32 %v6900, %v6902
      %v6904 = vrot.slane %v6890, %v6903
      %v6905 = vcombine.low %v6897, %v6904
      %v6906 = vcombine.low %v6458, %v6466
      %v6908 = vunpack.c.l.s4 1983009808
      %v6909 = vunpack.c.0.s8 %v6908
      %v6910 = vlaneseq
      %v6911 = vshrl.u32 %v6910, 7
      %v6912 = vsub.s32 %v6909, %v6911
      %v6913 = vrot.slane %v6906, %v6912
      %v6915 = vunpack.c.l.s4 1983009808
      %v6916 = vunpack.c.0.s8 %v6915
      %v6917 = vlaneseq
      %v6918 = vshrl.u32 %v6917, 7
      %v6919 = vsub.s32 %v6916, %v6918
      %v6920 = vrot.slane %v6465, %v6919
      %v6921 = vcombine.low %v6913, %v6920
      %v6922 = vcombine.low %v6467, %v6475
      %v6923 = vcombine.low %v6483, %v6482
      %v6925 = vunpack.c.l.s4 1983009808
      %v6926 = vunpack.c.0.s8 %v6925
      %v6927 = vlaneseq
      %v6928 = vshrl.u32 %v6927, 7
      %v6929 = vsub.s32 %v6926, %v6928
      %v6930 = vrot.slane %v6922, %v6929
      %v6932 = vunpack.c.l.s4 1983009808
      %v6933 = vunpack.c.0.s8 %v6932
      %v6934 = vlaneseq
      %v6935 = vshrl.u32 %v6934, 7
      %v6936 = vsub.s32 %v6933, %v6935
      %v6937 = vrot.slane %v6923, %v6936
      %v6938 = vcombine.low %v6930, %v6937
      %v6939 = vcombine.low %v6484, %v6491
      %v6941 = vunpack.c.l.s4 1983009808
      %v6942 = vunpack.c.0.s8 %v6941
      %v6943 = vlaneseq
      %v6944 = vshrl.u32 %v6943, 7
      %v6945 = vsub.s32 %v6942, %v6944
      %v6946 = vrot.slane %v6939, %v6945
      %v6948 = vunpack.c.l.s4 1983009808
      %v6949 = vunpack.c.0.s8 %v6948
      %v6950 = vlaneseq
      %v6951 = vshrl.u32 %v6950, 7
      %v6952 = vsub.s32 %v6949, %v6951
      %v6953 = vrot.slane %v6492, %v6952
      %v6954 = vcombine.low %v6946, %v6953
      %vm6983 = vcmask 97280
      %6984 = vst.msk [vmem:[%s521] sm:$0xff] %vm6983, %v6509
      %vm6985 = vcmask 95232
      %6986 = vst.msk [vmem:[%s521 + $0x8] sm:$0x3f] %vm6985, %v6525
      %6987 = vst.msk [vmem:[%s521 + $0x10] sm:$0xff] %vm6983, %v6542
      %6988 = vst.msk [vmem:[%s521 + $0x18] sm:$0x3f] %vm6985, %v6558
      %6989 = vst.msk [vmem:[%s521 + $0x20] sm:$0xff] %vm6983, %v6575
      %6990 = vst.msk [vmem:[%s521 + $0x28] sm:$0x3f] %vm6985, %v6591
      %6991 = vst.msk [vmem:[%s521 + $0x30] sm:$0xff] %vm6983, %v6608
      %6992 = vst.msk [vmem:[%s521 + $0x38] sm:$0x3f] %vm6985, %v6624
      %6993 = vst.msk [vmem:[%s521 + $0x40] sm:$0xff] %vm6983, %v6641
      %6994 = vst.msk [vmem:[%s521 + $0x48] sm:$0x3f] %vm6985, %v6657
      %6995 = vst.msk [vmem:[%s521 + $0x50] sm:$0xff] %vm6983, %v6674
      %6996 = vst.msk [vmem:[%s521 + $0x58] sm:$0x3f] %vm6985, %v6690
      %6997 = vst.msk [vmem:[%s521 + $0x60] sm:$0xff] %vm6983, %v6707
      %6998 = vst.msk [vmem:[%s521 + $0x68] sm:$0x3f] %vm6985, %v6723
      %6999 = vst.msk [vmem:[%s521 + $0x70] sm:$0xff] %vm6983, %v6740
      %7000 = vst.msk [vmem:[%s521 + $0x78] sm:$0x3f] %vm6985, %v6756
      %7001 = vst.msk [vmem:[%s521 + $0x80] sm:$0xff] %vm6983, %v6773
      %7002 = vst.msk [vmem:[%s521 + $0x88] sm:$0x3f] %vm6985, %v6789
      %7003 = vst.msk [vmem:[%s521 + $0x90] sm:$0xff] %vm6983, %v6806
      %7004 = vst.msk [vmem:[%s521 + $0x98] sm:$0x3f] %vm6985, %v6822
      %7005 = vst.msk [vmem:[%s521 + $0xa0] sm:$0xff] %vm6983, %v6839
      %7006 = vst.msk [vmem:[%s521 + $0xa8] sm:$0x3f] %vm6985, %v6855
      %7007 = vst.msk [vmem:[%s521 + $0xb0] sm:$0xff] %vm6983, %v6872
      %7008 = vst.msk [vmem:[%s521 + $0xb8] sm:$0x3f] %vm6985, %v6888
      %7009 = vst.msk [vmem:[%s521 + $0xc0] sm:$0xff] %vm6983, %v6905
      %7010 = vst.msk [vmem:[%s521 + $0xc8] sm:$0x3f] %vm6985, %v6921
      %7011 = vst.msk [vmem:[%s521 + $0xd0] sm:$0xff] %vm6983, %v6938
      %7012 = vst.msk [vmem:[%s521 + $0xd8] sm:$0x3f] %vm6985, %v6954
      %v7027 = vunpack.c.l.b16 %v2991
      %v7028 = vunpack.c.h.b16 %v2991
      %v7029 = vunpack.c.l.b16 %v2992
      %v7030 = vunpack.c.h.b16 %v2992
      %v7031 = vunpack.c.l.b16 %v2993
      %v7032 = vunpack.c.h.b16 %v2993
      %v7033 = vunpack.c.l.b16 %v2994
      %v7034 = vunpack.c.h.b16 %v2994
      %v7035 = vunpack.c.l.b16 %v2995
      %v7036 = vunpack.c.h.b16 %v2995
      %v7037 = vunpack.c.l.b16 %v2996
      %v7038 = vunpack.c.h.b16 %v2996
      %v7039 = vunpack.c.l.b16 %v2997
      %v7040 = vunpack.c.h.b16 %v2997
      %v7041 = vunpack.c.l.b16 %v2998
      %v7042 = vunpack.c.h.b16 %v2998
      %v7043 = vunpack.c.l.b16 %v2999
      %v7044 = vunpack.c.h.b16 %v2999
      %v7045 = vunpack.c.l.b16 %v3000
      %v7046 = vunpack.c.h.b16 %v3000
      %v7047 = vunpack.c.l.b16 %v3001
      %v7048 = vunpack.c.h.b16 %v3001
      %v7049 = vunpack.c.l.b16 %v3002
      %v7050 = vunpack.c.h.b16 %v3002
      %v7051 = vunpack.c.l.b16 %v3003
      %v7052 = vunpack.c.h.b16 %v3003
      %v7053 = vunpack.c.l.b16 %v3004
      %v7054 = vunpack.c.h.b16 %v3004
      %v7055 = vpack.c.b16 %v7027, %v7027
      %v7056 = vpack.c.b16 %v7028, %v7028
      %v7057 = vpack.c.b16 %v7029, %v7029
      %v7058 = vpack.c.b16 %v7030, %v7030
      %v7059 = vpack.c.b16 %v7031, %v7031
      %v7060 = vpack.c.b16 %v7032, %v7032
      %v7061 = vpack.c.b16 %v7033, %v7033
      %v7062 = vpack.c.b16 %v7034, %v7034
      %v7063 = vpack.c.b16 %v7035, %v7035
      %v7064 = vpack.c.b16 %v7036, %v7036
      %v7065 = vpack.c.b16 %v7037, %v7037
      %v7066 = vpack.c.b16 %v7038, %v7038
      %v7067 = vpack.c.b16 %v7039, %v7039
      %v7068 = vpack.c.b16 %v7040, %v7040
      %v7069 = vpack.c.b16 %v7041, %v7041
      %v7070 = vpack.c.b16 %v7042, %v7042
      %v7071 = vpack.c.b16 %v7043, %v7043
      %v7072 = vpack.c.b16 %v7044, %v7044
      %v7073 = vpack.c.b16 %v7045, %v7045
      %v7074 = vpack.c.b16 %v7046, %v7046
      %v7075 = vpack.c.b16 %v7047, %v7047
      %v7076 = vpack.c.b16 %v7048, %v7048
      %v7077 = vpack.c.b16 %v7049, %v7049
      %v7078 = vpack.c.b16 %v7050, %v7050
      %v7079 = vpack.c.b16 %v7051, %v7051
      %v7080 = vpack.c.b16 %v7052, %v7052
      %v7081 = vpack.c.b16 %v7053, %v7053
      %v7082 = vpack.c.b16 %v7054, %v7054
      %7111 = vst.msk [vmem:[#allocation3] sm:$0xf] %vm3091, %v7055
      %7112 = vst.msk [vmem:[#allocation3 + $0x4] sm:$0x7] %vm3093, %v7056
      %7113 = vst.msk [vmem:[#allocation3 + $0x8] sm:$0xf] %vm3091, %v7057
      %7114 = vst.msk [vmem:[#allocation3 + $0xc] sm:$0x7] %vm3093, %v7058
      %7115 = vst.msk [vmem:[#allocation3 + $0x10] sm:$0xf] %vm3091, %v7059
      %7116 = vst.msk [vmem:[#allocation3 + $0x14] sm:$0x7] %vm3093, %v7060
      %7117 = vst.msk [vmem:[#allocation3 + $0x18] sm:$0xf] %vm3091, %v7061
      %7118 = vst.msk [vmem:[#allocation3 + $0x1c] sm:$0x7] %vm3093, %v7062
      %7119 = vst.msk [vmem:[#allocation3 + $0x20] sm:$0xf] %vm3091, %v7063
      %7120 = vst.msk [vmem:[#allocation3 + $0x24] sm:$0x7] %vm3093, %v7064
      %7121 = vst.msk [vmem:[#allocation3 + $0x28] sm:$0xf] %vm3091, %v7065
      %7122 = vst.msk [vmem:[#allocation3 + $0x2c] sm:$0x7] %vm3093, %v7066
      %7123 = vst.msk [vmem:[#allocation3 + $0x30] sm:$0xf] %vm3091, %v7067
      %7124 = vst.msk [vmem:[#allocation3 + $0x34] sm:$0x7] %vm3093, %v7068
      %7125 = vst.msk [vmem:[#allocation3 + $0x38] sm:$0xf] %vm3091, %v7069
      %7126 = vst.msk [vmem:[#allocation3 + $0x3c] sm:$0x7] %vm3093, %v7070
      %7127 = vst.msk [vmem:[#allocation3 + $0x40] sm:$0xf] %vm3091, %v7071
      %7128 = vst.msk [vmem:[#allocation3 + $0x44] sm:$0x7] %vm3093, %v7072
      %7129 = vst.msk [vmem:[#allocation3 + $0x48] sm:$0xf] %vm3091, %v7073
      %7130 = vst.msk [vmem:[#allocation3 + $0x4c] sm:$0x7] %vm3093, %v7074
      %7131 = vst.msk [vmem:[#allocation3 + $0x50] sm:$0xf] %vm3091, %v7075
      %7132 = vst.msk [vmem:[#allocation3 + $0x54] sm:$0x7] %vm3093, %v7076
      %7133 = vst.msk [vmem:[#allocation3 + $0x58] sm:$0xf] %vm3091, %v7077
      %7134 = vst.msk [vmem:[#allocation3 + $0x5c] sm:$0x7] %vm3093, %v7078
      %7135 = vst.msk [vmem:[#allocation3 + $0x60] sm:$0xf] %vm3091, %v7079
      %7136 = vst.msk [vmem:[#allocation3 + $0x64] sm:$0x7] %vm3093, %v7080
      %7137 = vst.msk [vmem:[#allocation3 + $0x68] sm:$0xf] %vm3091, %v7081
      %7138 = vst.msk [vmem:[#allocation3 + $0x6c] sm:$0x7] %vm3093, %v7082
      %v7140 = vshrl.u32 %v7055, 16
      %v7142 = vrot.slane %v7140, 4
      %v7143 = vshll.u32 %v7055, 16
      %v7145 = vrot.slane %v7143, 5
      %v7146 = vor.u32 %v7142, %v7145
      %v7147 = vrot.slane %v7146, 4
      %v7149 = vshll.u32 %v7056, 16
      %v7151 = vrot.slane %v7149, 5
      %v7152 = vsel %vm3123, %v7147, %v7151
      %v7153 = vshrl.u32 %v7056, 16
      %v7155 = vrot.slane %v7153, 4
      %v7156 = vor.u32 %v7155, %v7151
      %v7157 = vrot.slane %v7156, 4
      %v7159 = vshrl.u32 %v7057, 16
      %v7161 = vrot.slane %v7159, 4
      %v7162 = vshll.u32 %v7057, 16
      %v7164 = vrot.slane %v7162, 5
      %v7165 = vor.u32 %v7161, %v7164
      %v7166 = vrot.slane %v7165, 4
      %v7168 = vshll.u32 %v7058, 16
      %v7170 = vrot.slane %v7168, 5
      %v7171 = vsel %vm3123, %v7166, %v7170
      %v7172 = vshrl.u32 %v7058, 16
      %v7174 = vrot.slane %v7172, 4
      %v7175 = vor.u32 %v7174, %v7170
      %v7176 = vrot.slane %v7175, 4
      %v7178 = vshrl.u32 %v7059, 16
      %v7180 = vrot.slane %v7178, 4
      %v7181 = vshll.u32 %v7059, 16
      %v7183 = vrot.slane %v7181, 5
      %v7184 = vor.u32 %v7180, %v7183
      %v7185 = vrot.slane %v7184, 4
      %v7187 = vshll.u32 %v7060, 16
      %v7189 = vrot.slane %v7187, 5
      %v7190 = vsel %vm3123, %v7185, %v7189
      %v7191 = vshrl.u32 %v7060, 16
      %v7193 = vrot.slane %v7191, 4
      %v7194 = vor.u32 %v7193, %v7189
      %v7195 = vrot.slane %v7194, 4
      %v7197 = vshrl.u32 %v7061, 16
      %v7199 = vrot.slane %v7197, 4
      %v7200 = vshll.u32 %v7061, 16
      %v7202 = vrot.slane %v7200, 5
      %v7203 = vor.u32 %v7199, %v7202
      %v7204 = vrot.slane %v7203, 4
      %v7206 = vshll.u32 %v7062, 16
      %v7208 = vrot.slane %v7206, 5
      %v7209 = vsel %vm3123, %v7204, %v7208
      %v7210 = vshrl.u32 %v7062, 16
      %v7212 = vrot.slane %v7210, 4
      %v7213 = vor.u32 %v7212, %v7208
      %v7214 = vrot.slane %v7213, 4
      %v7216 = vshrl.u32 %v7063, 16
      %v7218 = vrot.slane %v7216, 4
      %v7219 = vshll.u32 %v7063, 16
      %v7221 = vrot.slane %v7219, 5
      %v7222 = vor.u32 %v7218, %v7221
      %v7223 = vrot.slane %v7222, 4
      %v7225 = vshll.u32 %v7064, 16
      %v7227 = vrot.slane %v7225, 5
      %v7228 = vsel %vm3123, %v7223, %v7227
      %v7229 = vshrl.u32 %v7064, 16
      %v7231 = vrot.slane %v7229, 4
      %v7232 = vor.u32 %v7231, %v7227
      %v7233 = vrot.slane %v7232, 4
      %v7235 = vshrl.u32 %v7065, 16
      %v7237 = vrot.slane %v7235, 4
      %v7238 = vshll.u32 %v7065, 16
      %v7240 = vrot.slane %v7238, 5
      %v7241 = vor.u32 %v7237, %v7240
      %v7242 = vrot.slane %v7241, 4
      %v7244 = vshll.u32 %v7066, 16
      %v7246 = vrot.slane %v7244, 5
      %v7247 = vsel %vm3123, %v7242, %v7246
      %v7248 = vshrl.u32 %v7066, 16
      %v7250 = vrot.slane %v7248, 4
      %v7251 = vor.u32 %v7250, %v7246
      %v7252 = vrot.slane %v7251, 4
      %v7254 = vshrl.u32 %v7067, 16
      %v7256 = vrot.slane %v7254, 4
      %v7257 = vshll.u32 %v7067, 16
      %v7259 = vrot.slane %v7257, 5
      %v7260 = vor.u32 %v7256, %v7259
      %v7261 = vrot.slane %v7260, 4
      %v7263 = vshll.u32 %v7068, 16
      %v7265 = vrot.slane %v7263, 5
      %v7266 = vsel %vm3123, %v7261, %v7265
      %v7267 = vshrl.u32 %v7068, 16
      %v7269 = vrot.slane %v7267, 4
      %v7270 = vor.u32 %v7269, %v7265
      %v7271 = vrot.slane %v7270, 4
      %v7273 = vshrl.u32 %v7069, 16
      %v7275 = vrot.slane %v7273, 4
      %v7276 = vshll.u32 %v7069, 16
      %v7278 = vrot.slane %v7276, 5
      %v7279 = vor.u32 %v7275, %v7278
      %v7280 = vrot.slane %v7279, 4
      %v7282 = vshll.u32 %v7070, 16
      %v7284 = vrot.slane %v7282, 5
      %v7285 = vsel %vm3123, %v7280, %v7284
      %v7286 = vshrl.u32 %v7070, 16
      %v7288 = vrot.slane %v7286, 4
      %v7289 = vor.u32 %v7288, %v7284
      %v7290 = vrot.slane %v7289, 4
      %v7292 = vshrl.u32 %v7071, 16
      %v7294 = vrot.slane %v7292, 4
      %v7295 = vshll.u32 %v7071, 16
      %v7297 = vrot.slane %v7295, 5
      %v7298 = vor.u32 %v7294, %v7297
      %v7299 = vrot.slane %v7298, 4
      %v7301 = vshll.u32 %v7072, 16
      %v7303 = vrot.slane %v7301, 5
      %v7304 = vsel %vm3123, %v7299, %v7303
      %v7305 = vshrl.u32 %v7072, 16
      %v7307 = vrot.slane %v7305, 4
      %v7308 = vor.u32 %v7307, %v7303
      %v7309 = vrot.slane %v7308, 4
      %v7311 = vshrl.u32 %v7073, 16
      %v7313 = vrot.slane %v7311, 4
      %v7314 = vshll.u32 %v7073, 16
      %v7316 = vrot.slane %v7314, 5
      %v7317 = vor.u32 %v7313, %v7316
      %v7318 = vrot.slane %v7317, 4
      %v7320 = vshll.u32 %v7074, 16
      %v7322 = vrot.slane %v7320, 5
      %v7323 = vsel %vm3123, %v7318, %v7322
      %v7324 = vshrl.u32 %v7074, 16
      %v7326 = vrot.slane %v7324, 4
      %v7327 = vor.u32 %v7326, %v7322
      %v7328 = vrot.slane %v7327, 4
      %v7330 = vshrl.u32 %v7075, 16
      %v7332 = vrot.slane %v7330, 4
      %v7333 = vshll.u32 %v7075, 16
      %v7335 = vrot.slane %v7333, 5
      %v7336 = vor.u32 %v7332, %v7335
      %v7337 = vrot.slane %v7336, 4
      %v7339 = vshll.u32 %v7076, 16
      %v7341 = vrot.slane %v7339, 5
      %v7342 = vsel %vm3123, %v7337, %v7341
      %v7343 = vshrl.u32 %v7076, 16
      %v7345 = vrot.slane %v7343, 4
      %v7346 = vor.u32 %v7345, %v7341
      %v7347 = vrot.slane %v7346, 4
      %v7349 = vshrl.u32 %v7077, 16
      %v7351 = vrot.slane %v7349, 4
      %v7352 = vshll.u32 %v7077, 16
      %v7354 = vrot.slane %v7352, 5
      %v7355 = vor.u32 %v7351, %v7354
      %v7356 = vrot.slane %v7355, 4
      %v7358 = vshll.u32 %v7078, 16
      %v7360 = vrot.slane %v7358, 5
      %v7361 = vsel %vm3123, %v7356, %v7360
      %v7362 = vshrl.u32 %v7078, 16
      %v7364 = vrot.slane %v7362, 4
      %v7365 = vor.u32 %v7364, %v7360
      %v7366 = vrot.slane %v7365, 4
      %v7368 = vshrl.u32 %v7079, 16
      %v7370 = vrot.slane %v7368, 4
      %v7371 = vshll.u32 %v7079, 16
      %v7373 = vrot.slane %v7371, 5
      %v7374 = vor.u32 %v7370, %v7373
      %v7375 = vrot.slane %v7374, 4
      %v7377 = vshll.u32 %v7080, 16
      %v7379 = vrot.slane %v7377, 5
      %v7380 = vsel %vm3123, %v7375, %v7379
      %v7381 = vshrl.u32 %v7080, 16
      %v7383 = vrot.slane %v7381, 4
      %v7384 = vor.u32 %v7383, %v7379
      %v7385 = vrot.slane %v7384, 4
      %v7387 = vshrl.u32 %v7081, 16
      %v7389 = vrot.slane %v7387, 4
      %v7390 = vshll.u32 %v7081, 16
      %v7392 = vrot.slane %v7390, 5
      %v7393 = vor.u32 %v7389, %v7392
      %v7394 = vrot.slane %v7393, 4
      %v7396 = vshll.u32 %v7082, 16
      %v7398 = vrot.slane %v7396, 5
      %v7399 = vsel %vm3123, %v7394, %v7398
      %v7400 = vshrl.u32 %v7082, 16
      %v7402 = vrot.slane %v7400, 4
      %v7403 = vor.u32 %v7402, %v7398
      %v7404 = vrot.slane %v7403, 4
      %7405 = vrot.lane.b32.xlu0 %v7152, 8
      %v7406 = vpop.permute.xlu0 %7405
      %7407 = vrot.lane.b32.xlu0 %v7157, 8
      %v7408 = vpop.permute.xlu0 %7407
      %7409 = vrot.lane.b32.xlu0 %v7171, 8
      %v7410 = vpop.permute.xlu0 %7409
      %7411 = vrot.lane.b32.xlu0 %v7176, 8
      %v7412 = vpop.permute.xlu0 %7411
      %7413 = vrot.lane.b32.xlu0 %v7190, 8
      %v7414 = vpop.permute.xlu0 %7413
      %7415 = vrot.lane.b32.xlu0 %v7195, 8
      %v7416 = vpop.permute.xlu0 %7415
      %7417 = vrot.lane.b32.xlu0 %v7209, 8
      %v7418 = vpop.permute.xlu0 %7417
      %7419 = vrot.lane.b32.xlu0 %v7214, 8
      %v7420 = vpop.permute.xlu0 %7419
      %7421 = vrot.lane.b32.xlu0 %v7228, 8
      %v7422 = vpop.permute.xlu0 %7421
      %7423 = vrot.lane.b32.xlu0 %v7233, 8
      %v7424 = vpop.permute.xlu0 %7423
      %7425 = vrot.lane.b32.xlu0 %v7247, 8
      %v7426 = vpop.permute.xlu0 %7425
      %7427 = vrot.lane.b32.xlu0 %v7252, 8
      %v7428 = vpop.permute.xlu0 %7427
      %7429 = vrot.lane.b32.xlu0 %v7266, 8
      %v7430 = vpop.permute.xlu0 %7429
      %7431 = vrot.lane.b32.xlu0 %v7271, 8
      %v7432 = vpop.permute.xlu0 %7431
      %7433 = vrot.lane.b32.xlu0 %v7285, 8
      %v7434 = vpop.permute.xlu0 %7433
      %7435 = vrot.lane.b32.xlu0 %v7290, 8
      %v7436 = vpop.permute.xlu0 %7435
      %7437 = vrot.lane.b32.xlu0 %v7304, 8
      %v7438 = vpop.permute.xlu0 %7437
      %7439 = vrot.lane.b32.xlu0 %v7309, 8
      %v7440 = vpop.permute.xlu0 %7439
      %7441 = vrot.lane.b32.xlu0 %v7323, 8
      %v7442 = vpop.permute.xlu0 %7441
      %7443 = vrot.lane.b32.xlu0 %v7328, 8
      %v7444 = vpop.permute.xlu0 %7443
      %7445 = vrot.lane.b32.xlu0 %v7342, 8
      %v7446 = vpop.permute.xlu0 %7445
      %7447 = vrot.lane.b32.xlu0 %v7347, 8
      %v7448 = vpop.permute.xlu0 %7447
      %7449 = vrot.lane.b32.xlu0 %v7361, 8
      %v7450 = vpop.permute.xlu0 %7449
      %7451 = vrot.lane.b32.xlu0 %v7366, 8
      %v7452 = vpop.permute.xlu0 %7451
      %7453 = vrot.lane.b32.xlu0 %v7380, 8
      %v7454 = vpop.permute.xlu0 %7453
      %7455 = vrot.lane.b32.xlu0 %v7385, 8
      %v7456 = vpop.permute.xlu0 %7455
      %7457 = vrot.lane.b32.xlu0 %v7399, 8
      %v7458 = vpop.permute.xlu0 %7457
      %7459 = vrot.lane.b32.xlu0 %v7404, 8
      %v7460 = vpop.permute.xlu0 %7459
      %7489 = vst.msk [vmem:[#allocation3] sm:$0xf] %vm3474, %v7406
      %7490 = vst.msk [vmem:[#allocation3 + $0x4] sm:$0x7] %vm3476, %v7408
      %7491 = vst.msk [vmem:[#allocation3 + $0x8] sm:$0xf] %vm3474, %v7410
      %7492 = vst.msk [vmem:[#allocation3 + $0xc] sm:$0x7] %vm3476, %v7412
      %7493 = vst.msk [vmem:[#allocation3 + $0x10] sm:$0xf] %vm3474, %v7414
      %7494 = vst.msk [vmem:[#allocation3 + $0x14] sm:$0x7] %vm3476, %v7416
      %7495 = vst.msk [vmem:[#allocation3 + $0x18] sm:$0xf] %vm3474, %v7418
      %7496 = vst.msk [vmem:[#allocation3 + $0x1c] sm:$0x7] %vm3476, %v7420
      %7497 = vst.msk [vmem:[#allocation3 + $0x20] sm:$0xf] %vm3474, %v7422
      %7498 = vst.msk [vmem:[#allocation3 + $0x24] sm:$0x7] %vm3476, %v7424
      %7499 = vst.msk [vmem:[#allocation3 + $0x28] sm:$0xf] %vm3474, %v7426
      %7500 = vst.msk [vmem:[#allocation3 + $0x2c] sm:$0x7] %vm3476, %v7428
      %7501 = vst.msk [vmem:[#allocation3 + $0x30] sm:$0xf] %vm3474, %v7430
      %7502 = vst.msk [vmem:[#allocation3 + $0x34] sm:$0x7] %vm3476, %v7432
      %7503 = vst.msk [vmem:[#allocation3 + $0x38] sm:$0xf] %vm3474, %v7434
      %7504 = vst.msk [vmem:[#allocation3 + $0x3c] sm:$0x7] %vm3476, %v7436
      %7505 = vst.msk [vmem:[#allocation3 + $0x40] sm:$0xf] %vm3474, %v7438
      %7506 = vst.msk [vmem:[#allocation3 + $0x44] sm:$0x7] %vm3476, %v7440
      %7507 = vst.msk [vmem:[#allocation3 + $0x48] sm:$0xf] %vm3474, %v7442
      %7508 = vst.msk [vmem:[#allocation3 + $0x4c] sm:$0x7] %vm3476, %v7444
      %7509 = vst.msk [vmem:[#allocation3 + $0x50] sm:$0xf] %vm3474, %v7446
      %7510 = vst.msk [vmem:[#allocation3 + $0x54] sm:$0x7] %vm3476, %v7448
      %7511 = vst.msk [vmem:[#allocation3 + $0x58] sm:$0xf] %vm3474, %v7450
      %7512 = vst.msk [vmem:[#allocation3 + $0x5c] sm:$0x7] %vm3476, %v7452
      %7513 = vst.msk [vmem:[#allocation3 + $0x60] sm:$0xf] %vm3474, %v7454
      %7514 = vst.msk [vmem:[#allocation3 + $0x64] sm:$0x7] %vm3476, %v7456
      %7515 = vst.msk [vmem:[#allocation3 + $0x68] sm:$0xf] %vm3474, %v7458
      %7516 = vst.msk [vmem:[#allocation3 + $0x6c] sm:$0x7] %vm3476, %v7460
      %v7517 = vrot.slane %v7055, 5
      %v7518 = vrot.slane %v7517, 4
      %v7519 = vrot.slane %v7056, 5
      %v7520 = vsel %vm3506, %v7518, %v7519
      %v7521 = vrot.slane %v7519, 4
      %v7522 = vrot.slane %v7057, 5
      %v7523 = vrot.slane %v7522, 4
      %v7524 = vrot.slane %v7058, 5
      %v7525 = vsel %vm3506, %v7523, %v7524
      %v7526 = vrot.slane %v7524, 4
      %v7527 = vrot.slane %v7059, 5
      %v7528 = vrot.slane %v7527, 4
      %v7529 = vrot.slane %v7060, 5
      %v7530 = vsel %vm3506, %v7528, %v7529
      %v7531 = vrot.slane %v7529, 4
      %v7532 = vrot.slane %v7061, 5
      %v7533 = vrot.slane %v7532, 4
      %v7534 = vrot.slane %v7062, 5
      %v7535 = vsel %vm3506, %v7533, %v7534
      %v7536 = vrot.slane %v7534, 4
      %v7537 = vrot.slane %v7063, 5
      %v7538 = vrot.slane %v7537, 4
      %v7539 = vrot.slane %v7064, 5
      %v7540 = vsel %vm3506, %v7538, %v7539
      %v7541 = vrot.slane %v7539, 4
      %v7542 = vrot.slane %v7065, 5
      %v7543 = vrot.slane %v7542, 4
      %v7544 = vrot.slane %v7066, 5
      %v7545 = vsel %vm3506, %v7543, %v7544
      %v7546 = vrot.slane %v7544, 4
      %v7547 = vrot.slane %v7067, 5
      %v7548 = vrot.slane %v7547, 4
      %v7549 = vrot.slane %v7068, 5
      %v7550 = vsel %vm3506, %v7548, %v7549
      %v7551 = vrot.slane %v7549, 4
      %v7552 = vrot.slane %v7069, 5
      %v7553 = vrot.slane %v7552, 4
      %v7554 = vrot.slane %v7070, 5
      %v7555 = vsel %vm3506, %v7553, %v7554
      %v7556 = vrot.slane %v7554, 4
      %v7557 = vrot.slane %v7071, 5
      %v7558 = vrot.slane %v7557, 4
      %v7559 = vrot.slane %v7072, 5
      %v7560 = vsel %vm3506, %v7558, %v7559
      %v7561 = vrot.slane %v7559, 4
      %v7562 = vrot.slane %v7073, 5
      %v7563 = vrot.slane %v7562, 4
      %v7564 = vrot.slane %v7074, 5
      %v7565 = vsel %vm3506, %v7563, %v7564
      %v7566 = vrot.slane %v7564, 4
      %v7567 = vrot.slane %v7075, 5
      %v7568 = vrot.slane %v7567, 4
      %v7569 = vrot.slane %v7076, 5
      %v7570 = vsel %vm3506, %v7568, %v7569
      %v7571 = vrot.slane %v7569, 4
      %v7572 = vrot.slane %v7077, 5
      %v7573 = vrot.slane %v7572, 4
      %v7574 = vrot.slane %v7078, 5
      %v7575 = vsel %vm3506, %v7573, %v7574
      %v7576 = vrot.slane %v7574, 4
      %v7577 = vrot.slane %v7079, 5
      %v7578 = vrot.slane %v7577, 4
      %v7579 = vrot.slane %v7080, 5
      %v7580 = vsel %vm3506, %v7578, %v7579
      %v7581 = vrot.slane %v7579, 4
      %v7582 = vrot.slane %v7081, 5
      %v7583 = vrot.slane %v7582, 4
      %v7584 = vrot.slane %v7082, 5
      %v7585 = vsel %vm3506, %v7583, %v7584
      %v7586 = vrot.slane %v7584, 4
      %7587 = vrot.lane.b32.xlu0 %v7520, 16
      %v7588 = vpop.permute.xlu0 %7587
      %7589 = vrot.lane.b32.xlu0 %v7521, 16
      %v7590 = vpop.permute.xlu0 %7589
      %7591 = vrot.lane.b32.xlu0 %v7525, 16
      %v7592 = vpop.permute.xlu0 %7591
      %7593 = vrot.lane.b32.xlu0 %v7526, 16
      %v7594 = vpop.permute.xlu0 %7593
      %7595 = vrot.lane.b32.xlu0 %v7530, 16
      %v7596 = vpop.permute.xlu0 %7595
      %7597 = vrot.lane.b32.xlu0 %v7531, 16
      %v7598 = vpop.permute.xlu0 %7597
      %7599 = vrot.lane.b32.xlu0 %v7535, 16
      %v7600 = vpop.permute.xlu0 %7599
      %7601 = vrot.lane.b32.xlu0 %v7536, 16
      %v7602 = vpop.permute.xlu0 %7601
      %7603 = vrot.lane.b32.xlu0 %v7540, 16
      %v7604 = vpop.permute.xlu0 %7603
      %7605 = vrot.lane.b32.xlu0 %v7541, 16
      %v7606 = vpop.permute.xlu0 %7605
      %7607 = vrot.lane.b32.xlu0 %v7545, 16
      %v7608 = vpop.permute.xlu0 %7607
      %7609 = vrot.lane.b32.xlu0 %v7546, 16
      %v7610 = vpop.permute.xlu0 %7609
      %7611 = vrot.lane.b32.xlu0 %v7550, 16
      %v7612 = vpop.permute.xlu0 %7611
      %7613 = vrot.lane.b32.xlu0 %v7551, 16
      %v7614 = vpop.permute.xlu0 %7613
      %7615 = vrot.lane.b32.xlu0 %v7555, 16
      %v7616 = vpop.permute.xlu0 %7615
      %7617 = vrot.lane.b32.xlu0 %v7556, 16
      %v7618 = vpop.permute.xlu0 %7617
      %7619 = vrot.lane.b32.xlu0 %v7560, 16
      %v7620 = vpop.permute.xlu0 %7619
      %7621 = vrot.lane.b32.xlu0 %v7561, 16
      %v7622 = vpop.permute.xlu0 %7621
      %7623 = vrot.lane.b32.xlu0 %v7565, 16
      %v7624 = vpop.permute.xlu0 %7623
      %7625 = vrot.lane.b32.xlu0 %v7566, 16
      %v7626 = vpop.permute.xlu0 %7625
      %7627 = vrot.lane.b32.xlu0 %v7570, 16
      %v7628 = vpop.permute.xlu0 %7627
      %7629 = vrot.lane.b32.xlu0 %v7571, 16
      %v7630 = vpop.permute.xlu0 %7629
      %7631 = vrot.lane.b32.xlu0 %v7575, 16
      %v7632 = vpop.permute.xlu0 %7631
      %7633 = vrot.lane.b32.xlu0 %v7576, 16
      %v7634 = vpop.permute.xlu0 %7633
      %7635 = vrot.lane.b32.xlu0 %v7580, 16
      %v7636 = vpop.permute.xlu0 %7635
      %7637 = vrot.lane.b32.xlu0 %v7581, 16
      %v7638 = vpop.permute.xlu0 %7637
      %7639 = vrot.lane.b32.xlu0 %v7585, 16
      %v7640 = vpop.permute.xlu0 %7639
      %7641 = vrot.lane.b32.xlu0 %v7586, 16
      %v7642 = vpop.permute.xlu0 %7641
      %7671 = vst.msk [vmem:[#allocation3] sm:$0xf] %vm3661, %v7588
      %7672 = vst.msk [vmem:[#allocation3 + $0x4] sm:$0x7] %vm3663, %v7590
      %7673 = vst.msk [vmem:[#allocation3 + $0x8] sm:$0xf] %vm3661, %v7592
      %7674 = vst.msk [vmem:[#allocation3 + $0xc] sm:$0x7] %vm3663, %v7594
      %7675 = vst.msk [vmem:[#allocation3 + $0x10] sm:$0xf] %vm3661, %v7596
      %7676 = vst.msk [vmem:[#allocation3 + $0x14] sm:$0x7] %vm3663, %v7598
      %7677 = vst.msk [vmem:[#allocation3 + $0x18] sm:$0xf] %vm3661, %v7600
      %7678 = vst.msk [vmem:[#allocation3 + $0x1c] sm:$0x7] %vm3663, %v7602
      %7679 = vst.msk [vmem:[#allocation3 + $0x20] sm:$0xf] %vm3661, %v7604
      %7680 = vst.msk [vmem:[#allocation3 + $0x24] sm:$0x7] %vm3663, %v7606
      %7681 = vst.msk [vmem:[#allocation3 + $0x28] sm:$0xf] %vm3661, %v7608
      %7682 = vst.msk [vmem:[#allocation3 + $0x2c] sm:$0x7] %vm3663, %v7610
      %7683 = vst.msk [vmem:[#allocation3 + $0x30] sm:$0xf] %vm3661, %v7612
      %7684 = vst.msk [vmem:[#allocation3 + $0x34] sm:$0x7] %vm3663, %v7614
      %7685 = vst.msk [vmem:[#allocation3 + $0x38] sm:$0xf] %vm3661, %v7616
      %7686 = vst.msk [vmem:[#allocation3 + $0x3c] sm:$0x7] %vm3663, %v7618
      %7687 = vst.msk [vmem:[#allocation3 + $0x40] sm:$0xf] %vm3661, %v7620
      %7688 = vst.msk [vmem:[#allocation3 + $0x44] sm:$0x7] %vm3663, %v7622
      %7689 = vst.msk [vmem:[#allocation3 + $0x48] sm:$0xf] %vm3661, %v7624
      %7690 = vst.msk [vmem:[#allocation3 + $0x4c] sm:$0x7] %vm3663, %v7626
      %7691 = vst.msk [vmem:[#allocation3 + $0x50] sm:$0xf] %vm3661, %v7628
      %7692 = vst.msk [vmem:[#allocation3 + $0x54] sm:$0x7] %vm3663, %v7630
      %7693 = vst.msk [vmem:[#allocation3 + $0x58] sm:$0xf] %vm3661, %v7632
      %7694 = vst.msk [vmem:[#allocation3 + $0x5c] sm:$0x7] %vm3663, %v7634
      %7695 = vst.msk [vmem:[#allocation3 + $0x60] sm:$0xf] %vm3661, %v7636
      %7696 = vst.msk [vmem:[#allocation3 + $0x64] sm:$0x7] %vm3663, %v7638
      %7697 = vst.msk [vmem:[#allocation3 + $0x68] sm:$0xf] %vm3661, %v7640
      %7698 = vst.msk [vmem:[#allocation3 + $0x6c] sm:$0x7] %vm3663, %v7642
      %v7700 = vunpack.c.l.b16 %v3005
      %v7701 = vunpack.c.h.b16 %v3005
      %v7702 = vpack.c.b16 %v7700, %v7700
      %v7703 = vpack.c.b16 %v7701, %v7701
      %7704 = vrot.lane.b32.xlu0 %v7057, 24
      %v7705 = vpop.permute.xlu0 %7704
      %7706 = vrot.lane.b32.xlu0 %v7058, 24
      %v7707 = vpop.permute.xlu0 %7706
      %7708 = vrot.lane.b32.xlu0 %v7059, 24
      %v7709 = vpop.permute.xlu0 %7708
      %7710 = vrot.lane.b32.xlu0 %v7060, 24
      %v7711 = vpop.permute.xlu0 %7710
      %7712 = vrot.lane.b32.xlu0 %v7061, 24
      %v7713 = vpop.permute.xlu0 %7712
      %7714 = vrot.lane.b32.xlu0 %v7062, 24
      %v7715 = vpop.permute.xlu0 %7714
      %7716 = vrot.lane.b32.xlu0 %v7063, 24
      %v7717 = vpop.permute.xlu0 %7716
      %7718 = vrot.lane.b32.xlu0 %v7064, 24
      %v7719 = vpop.permute.xlu0 %7718
      %7720 = vrot.lane.b32.xlu0 %v7065, 24
      %v7721 = vpop.permute.xlu0 %7720
      %7722 = vrot.lane.b32.xlu0 %v7066, 24
      %v7723 = vpop.permute.xlu0 %7722
      %7724 = vrot.lane.b32.xlu0 %v7067, 24
      %v7725 = vpop.permute.xlu0 %7724
      %7726 = vrot.lane.b32.xlu0 %v7068, 24
      %v7727 = vpop.permute.xlu0 %7726
      %7728 = vrot.lane.b32.xlu0 %v7069, 24
      %v7729 = vpop.permute.xlu0 %7728
      %7730 = vrot.lane.b32.xlu0 %v7070, 24
      %v7731 = vpop.permute.xlu0 %7730
      %7732 = vrot.lane.b32.xlu0 %v7071, 24
      %v7733 = vpop.permute.xlu0 %7732
      %7734 = vrot.lane.b32.xlu0 %v7072, 24
      %v7735 = vpop.permute.xlu0 %7734
      %7736 = vrot.lane.b32.xlu0 %v7073, 24
      %v7737 = vpop.permute.xlu0 %7736
      %7738 = vrot.lane.b32.xlu0 %v7074, 24
      %v7739 = vpop.permute.xlu0 %7738
      %7740 = vrot.lane.b32.xlu0 %v7075, 24
      %v7741 = vpop.permute.xlu0 %7740
      %7742 = vrot.lane.b32.xlu0 %v7076, 24
      %v7743 = vpop.permute.xlu0 %7742
      %7744 = vrot.lane.b32.xlu0 %v7077, 24
      %v7745 = vpop.permute.xlu0 %7744
      %7746 = vrot.lane.b32.xlu0 %v7078, 24
      %v7747 = vpop.permute.xlu0 %7746
      %7748 = vrot.lane.b32.xlu0 %v7079, 24
      %v7749 = vpop.permute.xlu0 %7748
      %7750 = vrot.lane.b32.xlu0 %v7080, 24
      %v7751 = vpop.permute.xlu0 %7750
      %7752 = vrot.lane.b32.xlu0 %v7081, 24
      %v7753 = vpop.permute.xlu0 %7752
      %7754 = vrot.lane.b32.xlu0 %v7082, 24
      %v7755 = vpop.permute.xlu0 %7754
      %7756 = vrot.lane.b32.xlu0 %v7702, 24
      %v7757 = vpop.permute.xlu0 %7756
      %7758 = vrot.lane.b32.xlu0 %v7703, 24
      %v7759 = vpop.permute.xlu0 %7758
      %7788 = vst.msk [vmem:[#allocation3] sm:$0xf] %vm3779, %v7705
      %7789 = vst.msk [vmem:[#allocation3 + $0x4] sm:$0x7] %vm3781, %v7707
      %7790 = vst.msk [vmem:[#allocation3 + $0x8] sm:$0xf] %vm3779, %v7709
      %7791 = vst.msk [vmem:[#allocation3 + $0xc] sm:$0x7] %vm3781, %v7711
      %7792 = vst.msk [vmem:[#allocation3 + $0x10] sm:$0xf] %vm3779, %v7713
      %7793 = vst.msk [vmem:[#allocation3 + $0x14] sm:$0x7] %vm3781, %v7715
      %7794 = vst.msk [vmem:[#allocation3 + $0x18] sm:$0xf] %vm3779, %v7717
      %7795 = vst.msk [vmem:[#allocation3 + $0x1c] sm:$0x7] %vm3781, %v7719
      %7796 = vst.msk [vmem:[#allocation3 + $0x20] sm:$0xf] %vm3779, %v7721
      %7797 = vst.msk [vmem:[#allocation3 + $0x24] sm:$0x7] %vm3781, %v7723
      %7798 = vst.msk [vmem:[#allocation3 + $0x28] sm:$0xf] %vm3779, %v7725
      %7799 = vst.msk [vmem:[#allocation3 + $0x2c] sm:$0x7] %vm3781, %v7727
      %7800 = vst.msk [vmem:[#allocation3 + $0x30] sm:$0xf] %vm3779, %v7729
      %7801 = vst.msk [vmem:[#allocation3 + $0x34] sm:$0x7] %vm3781, %v7731
      %7802 = vst.msk [vmem:[#allocation3 + $0x38] sm:$0xf] %vm3779, %v7733
      %7803 = vst.msk [vmem:[#allocation3 + $0x3c] sm:$0x7] %vm3781, %v7735
      %7804 = vst.msk [vmem:[#allocation3 + $0x40] sm:$0xf] %vm3779, %v7737
      %7805 = vst.msk [vmem:[#allocation3 + $0x44] sm:$0x7] %vm3781, %v7739
      %7806 = vst.msk [vmem:[#allocation3 + $0x48] sm:$0xf] %vm3779, %v7741
      %7807 = vst.msk [vmem:[#allocation3 + $0x4c] sm:$0x7] %vm3781, %v7743
      %7808 = vst.msk [vmem:[#allocation3 + $0x50] sm:$0xf] %vm3779, %v7745
      %7809 = vst.msk [vmem:[#allocation3 + $0x54] sm:$0x7] %vm3781, %v7747
      %7810 = vst.msk [vmem:[#allocation3 + $0x58] sm:$0xf] %vm3779, %v7749
      %7811 = vst.msk [vmem:[#allocation3 + $0x5c] sm:$0x7] %vm3781, %v7751
      %7812 = vst.msk [vmem:[#allocation3 + $0x60] sm:$0xf] %vm3779, %v7753
      %7813 = vst.msk [vmem:[#allocation3 + $0x64] sm:$0x7] %vm3781, %v7755
      %7814 = vst.msk [vmem:[#allocation3 + $0x68] sm:$0xf] %vm3779, %v7757
      %7815 = vst.msk [vmem:[#allocation3 + $0x6c] sm:$0x7] %vm3781, %v7759
      %v7817 = vshrl.u32 %v7702, 16
      %v7819 = vrot.slane %v7817, 4
      %v7820 = vshll.u32 %v7702, 16
      %v7822 = vrot.slane %v7820, 5
      %v7823 = vor.u32 %v7819, %v7822
      %v7824 = vrot.slane %v7823, 4
      %v7826 = vshll.u32 %v7703, 16
      %v7828 = vrot.slane %v7826, 5
      %v7829 = vsel %vm3123, %v7824, %v7828
      %v7830 = vshrl.u32 %v7703, 16
      %v7832 = vrot.slane %v7830, 4
      %v7833 = vor.u32 %v7832, %v7828
      %v7834 = vrot.slane %v7833, 4
      %7835 = vrot.lane.b32.xlu0 %v7171, 32
      %v7836 = vpop.permute.xlu0 %7835
      %7837 = vrot.lane.b32.xlu0 %v7176, 32
      %v7838 = vpop.permute.xlu0 %7837
      %7839 = vrot.lane.b32.xlu0 %v7190, 32
      %v7840 = vpop.permute.xlu0 %7839
      %7841 = vrot.lane.b32.xlu0 %v7195, 32
      %v7842 = vpop.permute.xlu0 %7841
      %7843 = vrot.lane.b32.xlu0 %v7209, 32
      %v7844 = vpop.permute.xlu0 %7843
      %7845 = vrot.lane.b32.xlu0 %v7214, 32
      %v7846 = vpop.permute.xlu0 %7845
      %7847 = vrot.lane.b32.xlu0 %v7228, 32
      %v7848 = vpop.permute.xlu0 %7847
      %7849 = vrot.lane.b32.xlu0 %v7233, 32
      %v7850 = vpop.permute.xlu0 %7849
      %7851 = vrot.lane.b32.xlu0 %v7247, 32
      %v7852 = vpop.permute.xlu0 %7851
      %7853 = vrot.lane.b32.xlu0 %v7252, 32
      %v7854 = vpop.permute.xlu0 %7853
      %7855 = vrot.lane.b32.xlu0 %v7266, 32
      %v7856 = vpop.permute.xlu0 %7855
      %7857 = vrot.lane.b32.xlu0 %v7271, 32
      %v7858 = vpop.permute.xlu0 %7857
      %7859 = vrot.lane.b32.xlu0 %v7285, 32
      %v7860 = vpop.permute.xlu0 %7859
      %7861 = vrot.lane.b32.xlu0 %v7290, 32
      %v7862 = vpop.permute.xlu0 %7861
      %7863 = vrot.lane.b32.xlu0 %v7304, 32
      %v7864 = vpop.permute.xlu0 %7863
      %7865 = vrot.lane.b32.xlu0 %v7309, 32
      %v7866 = vpop.permute.xlu0 %7865
      %7867 = vrot.lane.b32.xlu0 %v7323, 32
      %v7868 = vpop.permute.xlu0 %7867
      %7869 = vrot.lane.b32.xlu0 %v7328, 32
      %v7870 = vpop.permute.xlu0 %7869
      %7871 = vrot.lane.b32.xlu0 %v7342, 32
      %v7872 = vpop.permute.xlu0 %7871
      %7873 = vrot.lane.b32.xlu0 %v7347, 32
      %v7874 = vpop.permute.xlu0 %7873
      %7875 = vrot.lane.b32.xlu0 %v7361, 32
      %v7876 = vpop.permute.xlu0 %7875
      %7877 = vrot.lane.b32.xlu0 %v7366, 32
      %v7878 = vpop.permute.xlu0 %7877
      %7879 = vrot.lane.b32.xlu0 %v7380, 32
      %v7880 = vpop.permute.xlu0 %7879
      %7881 = vrot.lane.b32.xlu0 %v7385, 32
      %v7882 = vpop.permute.xlu0 %7881
      %7883 = vrot.lane.b32.xlu0 %v7399, 32
      %v7884 = vpop.permute.xlu0 %7883
      %7885 = vrot.lane.b32.xlu0 %v7404, 32
      %v7886 = vpop.permute.xlu0 %7885
      %7887 = vrot.lane.b32.xlu0 %v7829, 32
      %v7888 = vpop.permute.xlu0 %7887
      %7889 = vrot.lane.b32.xlu0 %v7834, 32
      %v7890 = vpop.permute.xlu0 %7889
      %7919 = vst.msk [vmem:[#allocation3] sm:$0xf] %vm3912, %v7836
      %7920 = vst.msk [vmem:[#allocation3 + $0x4] sm:$0x7] %vm3914, %v7838
      %7921 = vst.msk [vmem:[#allocation3 + $0x8] sm:$0xf] %vm3912, %v7840
      %7922 = vst.msk [vmem:[#allocation3 + $0xc] sm:$0x7] %vm3914, %v7842
      %7923 = vst.msk [vmem:[#allocation3 + $0x10] sm:$0xf] %vm3912, %v7844
      %7924 = vst.msk [vmem:[#allocation3 + $0x14] sm:$0x7] %vm3914, %v7846
      %7925 = vst.msk [vmem:[#allocation3 + $0x18] sm:$0xf] %vm3912, %v7848
      %7926 = vst.msk [vmem:[#allocation3 + $0x1c] sm:$0x7] %vm3914, %v7850
      %7927 = vst.msk [vmem:[#allocation3 + $0x20] sm:$0xf] %vm3912, %v7852
      %7928 = vst.msk [vmem:[#allocation3 + $0x24] sm:$0x7] %vm3914, %v7854
      %7929 = vst.msk [vmem:[#allocation3 + $0x28] sm:$0xf] %vm3912, %v7856
      %7930 = vst.msk [vmem:[#allocation3 + $0x2c] sm:$0x7] %vm3914, %v7858
      %7931 = vst.msk [vmem:[#allocation3 + $0x30] sm:$0xf] %vm3912, %v7860
      %7932 = vst.msk [vmem:[#allocation3 + $0x34] sm:$0x7] %vm3914, %v7862
      %7933 = vst.msk [vmem:[#allocation3 + $0x38] sm:$0xf] %vm3912, %v7864
      %7934 = vst.msk [vmem:[#allocation3 + $0x3c] sm:$0x7] %vm3914, %v7866
      %7935 = vst.msk [vmem:[#allocation3 + $0x40] sm:$0xf] %vm3912, %v7868
      %7936 = vst.msk [vmem:[#allocation3 + $0x44] sm:$0x7] %vm3914, %v7870
      %7937 = vst.msk [vmem:[#allocation3 + $0x48] sm:$0xf] %vm3912, %v7872
      %7938 = vst.msk [vmem:[#allocation3 + $0x4c] sm:$0x7] %vm3914, %v7874
      %7939 = vst.msk [vmem:[#allocation3 + $0x50] sm:$0xf] %vm3912, %v7876
      %7940 = vst.msk [vmem:[#allocation3 + $0x54] sm:$0x7] %vm3914, %v7878
      %7941 = vst.msk [vmem:[#allocation3 + $0x58] sm:$0xf] %vm3912, %v7880
      %7942 = vst.msk [vmem:[#allocation3 + $0x5c] sm:$0x7] %vm3914, %v7882
      %7943 = vst.msk [vmem:[#allocation3 + $0x60] sm:$0xf] %vm3912, %v7884
      %7944 = vst.msk [vmem:[#allocation3 + $0x64] sm:$0x7] %vm3914, %v7886
      %7945 = vst.msk [vmem:[#allocation3 + $0x68] sm:$0xf] %vm3912, %v7888
      %7946 = vst.msk [vmem:[#allocation3 + $0x6c] sm:$0x7] %vm3914, %v7890
      %v7947 = vrot.slane %v7702, 5
      %v7948 = vrot.slane %v7947, 4
      %v7949 = vrot.slane %v7703, 5
      %v7950 = vsel %vm3506, %v7948, %v7949
      %v7951 = vrot.slane %v7949, 4
      %7952 = vrot.lane.b32.xlu0 %v7525, 40
      %v7953 = vpop.permute.xlu0 %7952
      %7954 = vrot.lane.b32.xlu0 %v7526, 40
      %v7955 = vpop.permute.xlu0 %7954
      %7956 = vrot.lane.b32.xlu0 %v7530, 40
      %v7957 = vpop.permute.xlu0 %7956
      %7958 = vrot.lane.b32.xlu0 %v7531, 40
      %v7959 = vpop.permute.xlu0 %7958
      %7960 = vrot.lane.b32.xlu0 %v7535, 40
      %v7961 = vpop.permute.xlu0 %7960
      %7962 = vrot.lane.b32.xlu0 %v7536, 40
      %v7963 = vpop.permute.xlu0 %7962
      %7964 = vrot.lane.b32.xlu0 %v7540, 40
      %v7965 = vpop.permute.xlu0 %7964
      %7966 = vrot.lane.b32.xlu0 %v7541, 40
      %v7967 = vpop.permute.xlu0 %7966
      %7968 = vrot.lane.b32.xlu0 %v7545, 40
      %v7969 = vpop.permute.xlu0 %7968
      %7970 = vrot.lane.b32.xlu0 %v7546, 40
      %v7971 = vpop.permute.xlu0 %7970
      %7972 = vrot.lane.b32.xlu0 %v7550, 40
      %v7973 = vpop.permute.xlu0 %7972
      %7974 = vrot.lane.b32.xlu0 %v7551, 40
      %v7975 = vpop.permute.xlu0 %7974
      %7976 = vrot.lane.b32.xlu0 %v7555, 40
      %v7977 = vpop.permute.xlu0 %7976
      %7978 = vrot.lane.b32.xlu0 %v7556, 40
      %v7979 = vpop.permute.xlu0 %7978
      %7980 = vrot.lane.b32.xlu0 %v7560, 40
      %v7981 = vpop.permute.xlu0 %7980
      %7982 = vrot.lane.b32.xlu0 %v7561, 40
      %v7983 = vpop.permute.xlu0 %7982
      %7984 = vrot.lane.b32.xlu0 %v7565, 40
      %v7985 = vpop.permute.xlu0 %7984
      %7986 = vrot.lane.b32.xlu0 %v7566, 40
      %v7987 = vpop.permute.xlu0 %7986
      %7988 = vrot.lane.b32.xlu0 %v7570, 40
      %v7989 = vpop.permute.xlu0 %7988
      %7990 = vrot.lane.b32.xlu0 %v7571, 40
      %v7991 = vpop.permute.xlu0 %7990
      %7992 = vrot.lane.b32.xlu0 %v7575, 40
      %v7993 = vpop.permute.xlu0 %7992
      %7994 = vrot.lane.b32.xlu0 %v7576, 40
      %v7995 = vpop.permute.xlu0 %7994
      %7996 = vrot.lane.b32.xlu0 %v7580, 40
      %v7997 = vpop.permute.xlu0 %7996
      %7998 = vrot.lane.b32.xlu0 %v7581, 40
      %v7999 = vpop.permute.xlu0 %7998
      %8000 = vrot.lane.b32.xlu0 %v7585, 40
      %v8001 = vpop.permute.xlu0 %8000
      %8002 = vrot.lane.b32.xlu0 %v7586, 40
      %v8003 = vpop.permute.xlu0 %8002
      %8004 = vrot.lane.b32.xlu0 %v7950, 40
      %v8005 = vpop.permute.xlu0 %8004
      %8006 = vrot.lane.b32.xlu0 %v7951, 40
      %v8007 = vpop.permute.xlu0 %8006
      %8036 = vst.msk [vmem:[#allocation3] sm:$0xf] %vm4031, %v7953
      %8037 = vst.msk [vmem:[#allocation3 + $0x4] sm:$0x7] %vm4033, %v7955
      %8038 = vst.msk [vmem:[#allocation3 + $0x8] sm:$0xf] %vm4031, %v7957
      %8039 = vst.msk [vmem:[#allocation3 + $0xc] sm:$0x7] %vm4033, %v7959
      %8040 = vst.msk [vmem:[#allocation3 + $0x10] sm:$0xf] %vm4031, %v7961
      %8041 = vst.msk [vmem:[#allocation3 + $0x14] sm:$0x7] %vm4033, %v7963
      %8042 = vst.msk [vmem:[#allocation3 + $0x18] sm:$0xf] %vm4031, %v7965
      %8043 = vst.msk [vmem:[#allocation3 + $0x1c] sm:$0x7] %vm4033, %v7967
      %8044 = vst.msk [vmem:[#allocation3 + $0x20] sm:$0xf] %vm4031, %v7969
      %8045 = vst.msk [vmem:[#allocation3 + $0x24] sm:$0x7] %vm4033, %v7971
      %8046 = vst.msk [vmem:[#allocation3 + $0x28] sm:$0xf] %vm4031, %v7973
      %8047 = vst.msk [vmem:[#allocation3 + $0x2c] sm:$0x7] %vm4033, %v7975
      %8048 = vst.msk [vmem:[#allocation3 + $0x30] sm:$0xf] %vm4031, %v7977
      %8049 = vst.msk [vmem:[#allocation3 + $0x34] sm:$0x7] %vm4033, %v7979
      %8050 = vst.msk [vmem:[#allocation3 + $0x38] sm:$0xf] %vm4031, %v7981
      %8051 = vst.msk [vmem:[#allocation3 + $0x3c] sm:$0x7] %vm4033, %v7983
      %8052 = vst.msk [vmem:[#allocation3 + $0x40] sm:$0xf] %vm4031, %v7985
      %8053 = vst.msk [vmem:[#allocation3 + $0x44] sm:$0x7] %vm4033, %v7987
      %8054 = vst.msk [vmem:[#allocation3 + $0x48] sm:$0xf] %vm4031, %v7989
      %8055 = vst.msk [vmem:[#allocation3 + $0x4c] sm:$0x7] %vm4033, %v7991
      %8056 = vst.msk [vmem:[#allocation3 + $0x50] sm:$0xf] %vm4031, %v7993
      %8057 = vst.msk [vmem:[#allocation3 + $0x54] sm:$0x7] %vm4033, %v7995
      %8058 = vst.msk [vmem:[#allocation3 + $0x58] sm:$0xf] %vm4031, %v7997
      %8059 = vst.msk [vmem:[#allocation3 + $0x5c] sm:$0x7] %vm4033, %v7999
      %8060 = vst.msk [vmem:[#allocation3 + $0x60] sm:$0xf] %vm4031, %v8001
      %8061 = vst.msk [vmem:[#allocation3 + $0x64] sm:$0x7] %vm4033, %v8003
      %8062 = vst.msk [vmem:[#allocation3 + $0x68] sm:$0xf] %vm4031, %v8005
      %8063 = vst.msk [vmem:[#allocation3 + $0x6c] sm:$0x7] %vm4033, %v8007
      %v8065 = vunpack.c.l.b16 %v3006
      %v8066 = vunpack.c.h.b16 %v3006
      %v8067 = vpack.c.b16 %v8065, %v8065
      %v8068 = vpack.c.b16 %v8066, %v8066
      %8069 = vrot.lane.b32.xlu0 %v7059, 48
      %v8070 = vpop.permute.xlu0 %8069
      %8071 = vrot.lane.b32.xlu0 %v7060, 48
      %v8072 = vpop.permute.xlu0 %8071
      %8073 = vrot.lane.b32.xlu0 %v7061, 48
      %v8074 = vpop.permute.xlu0 %8073
      %8075 = vrot.lane.b32.xlu0 %v7062, 48
      %v8076 = vpop.permute.xlu0 %8075
      %8077 = vrot.lane.b32.xlu0 %v7063, 48
      %v8078 = vpop.permute.xlu0 %8077
      %8079 = vrot.lane.b32.xlu0 %v7064, 48
      %v8080 = vpop.permute.xlu0 %8079
      %8081 = vrot.lane.b32.xlu0 %v7065, 48
      %v8082 = vpop.permute.xlu0 %8081
      %8083 = vrot.lane.b32.xlu0 %v7066, 48
      %v8084 = vpop.permute.xlu0 %8083
      %8085 = vrot.lane.b32.xlu0 %v7067, 48
      %v8086 = vpop.permute.xlu0 %8085
      %8087 = vrot.lane.b32.xlu0 %v7068, 48
      %v8088 = vpop.permute.xlu0 %8087
      %8089 = vrot.lane.b32.xlu0 %v7069, 48
      %v8090 = vpop.permute.xlu0 %8089
      %8091 = vrot.lane.b32.xlu0 %v7070, 48
      %v8092 = vpop.permute.xlu0 %8091
      %8093 = vrot.lane.b32.xlu0 %v7071, 48
      %v8094 = vpop.permute.xlu0 %8093
      %8095 = vrot.lane.b32.xlu0 %v7072, 48
      %v8096 = vpop.permute.xlu0 %8095
      %8097 = vrot.lane.b32.xlu0 %v7073, 48
      %v8098 = vpop.permute.xlu0 %8097
      %8099 = vrot.lane.b32.xlu0 %v7074, 48
      %v8100 = vpop.permute.xlu0 %8099
      %8101 = vrot.lane.b32.xlu0 %v7075, 48
      %v8102 = vpop.permute.xlu0 %8101
      %8103 = vrot.lane.b32.xlu0 %v7076, 48
      %v8104 = vpop.permute.xlu0 %8103
      %8105 = vrot.lane.b32.xlu0 %v7077, 48
      %v8106 = vpop.permute.xlu0 %8105
      %8107 = vrot.lane.b32.xlu0 %v7078, 48
      %v8108 = vpop.permute.xlu0 %8107
      %8109 = vrot.lane.b32.xlu0 %v7079, 48
      %v8110 = vpop.permute.xlu0 %8109
      %8111 = vrot.lane.b32.xlu0 %v7080, 48
      %v8112 = vpop.permute.xlu0 %8111
      %8113 = vrot.lane.b32.xlu0 %v7081, 48
      %v8114 = vpop.permute.xlu0 %8113
      %8115 = vrot.lane.b32.xlu0 %v7082, 48
      %v8116 = vpop.permute.xlu0 %8115
      %8117 = vrot.lane.b32.xlu0 %v7702, 48
      %v8118 = vpop.permute.xlu0 %8117
      %8119 = vrot.lane.b32.xlu0 %v7703, 48
      %v8120 = vpop.permute.xlu0 %8119
      %8121 = vrot.lane.b32.xlu0 %v8067, 48
      %v8122 = vpop.permute.xlu0 %8121
      %8123 = vrot.lane.b32.xlu0 %v8068, 48
      %v8124 = vpop.permute.xlu0 %8123
      %8153 = vst.msk [vmem:[#allocation3] sm:$0xf] %vm4149, %v8070
      %8154 = vst.msk [vmem:[#allocation3 + $0x4] sm:$0x7] %vm4151, %v8072
      %8155 = vst.msk [vmem:[#allocation3 + $0x8] sm:$0xf] %vm4149, %v8074
      %8156 = vst.msk [vmem:[#allocation3 + $0xc] sm:$0x7] %vm4151, %v8076
      %8157 = vst.msk [vmem:[#allocation3 + $0x10] sm:$0xf] %vm4149, %v8078
      %8158 = vst.msk [vmem:[#allocation3 + $0x14] sm:$0x7] %vm4151, %v8080
      %8159 = vst.msk [vmem:[#allocation3 + $0x18] sm:$0xf] %vm4149, %v8082
      %8160 = vst.msk [vmem:[#allocation3 + $0x1c] sm:$0x7] %vm4151, %v8084
      %8161 = vst.msk [vmem:[#allocation3 + $0x20] sm:$0xf] %vm4149, %v8086
      %8162 = vst.msk [vmem:[#allocation3 + $0x24] sm:$0x7] %vm4151, %v8088
      %8163 = vst.msk [vmem:[#allocation3 + $0x28] sm:$0xf] %vm4149, %v8090
      %8164 = vst.msk [vmem:[#allocation3 + $0x2c] sm:$0x7] %vm4151, %v8092
      %8165 = vst.msk [vmem:[#allocation3 + $0x30] sm:$0xf] %vm4149, %v8094
      %8166 = vst.msk [vmem:[#allocation3 + $0x34] sm:$0x7] %vm4151, %v8096
      %8167 = vst.msk [vmem:[#allocation3 + $0x38] sm:$0xf] %vm4149, %v8098
      %8168 = vst.msk [vmem:[#allocation3 + $0x3c] sm:$0x7] %vm4151, %v8100
      %8169 = vst.msk [vmem:[#allocation3 + $0x40] sm:$0xf] %vm4149, %v8102
      %8170 = vst.msk [vmem:[#allocation3 + $0x44] sm:$0x7] %vm4151, %v8104
      %8171 = vst.msk [vmem:[#allocation3 + $0x48] sm:$0xf] %vm4149, %v8106
      %8172 = vst.msk [vmem:[#allocation3 + $0x4c] sm:$0x7] %vm4151, %v8108
      %8173 = vst.msk [vmem:[#allocation3 + $0x50] sm:$0xf] %vm4149, %v8110
      %8174 = vst.msk [vmem:[#allocation3 + $0x54] sm:$0x7] %vm4151, %v8112
      %8175 = vst.msk [vmem:[#allocation3 + $0x58] sm:$0xf] %vm4149, %v8114
      %8176 = vst.msk [vmem:[#allocation3 + $0x5c] sm:$0x7] %vm4151, %v8116
      %8177 = vst.msk [vmem:[#allocation3 + $0x60] sm:$0xf] %vm4149, %v8118
      %8178 = vst.msk [vmem:[#allocation3 + $0x64] sm:$0x7] %vm4151, %v8120
      %8179 = vst.msk [vmem:[#allocation3 + $0x68] sm:$0xf] %vm4149, %v8122
      %8180 = vst.msk [vmem:[#allocation3 + $0x6c] sm:$0x7] %vm4151, %v8124
      %v8182 = vshrl.u32 %v8067, 16
      %v8184 = vrot.slane %v8182, 4
      %v8185 = vshll.u32 %v8067, 16
      %v8187 = vrot.slane %v8185, 5
      %v8188 = vor.u32 %v8184, %v8187
      %v8189 = vrot.slane %v8188, 4
      %v8191 = vshll.u32 %v8068, 16
      %v8193 = vrot.slane %v8191, 5
      %v8194 = vsel %vm3123, %v8189, %v8193
      %v8195 = vshrl.u32 %v8068, 16
      %v8197 = vrot.slane %v8195, 4
      %v8198 = vor.u32 %v8197, %v8193
      %v8199 = vrot.slane %v8198, 4
      %8200 = vrot.lane.b32.xlu0 %v7190, 56
      %v8201 = vpop.permute.xlu0 %8200
      %8202 = vrot.lane.b32.xlu0 %v7195, 56
      %v8203 = vpop.permute.xlu0 %8202
      %8204 = vrot.lane.b32.xlu0 %v7209, 56
      %v8205 = vpop.permute.xlu0 %8204
      %8206 = vrot.lane.b32.xlu0 %v7214, 56
      %v8207 = vpop.permute.xlu0 %8206
      %8208 = vrot.lane.b32.xlu0 %v7228, 56
      %v8209 = vpop.permute.xlu0 %8208
      %8210 = vrot.lane.b32.xlu0 %v7233, 56
      %v8211 = vpop.permute.xlu0 %8210
      %8212 = vrot.lane.b32.xlu0 %v7247, 56
      %v8213 = vpop.permute.xlu0 %8212
      %8214 = vrot.lane.b32.xlu0 %v7252, 56
      %v8215 = vpop.permute.xlu0 %8214
      %8216 = vrot.lane.b32.xlu0 %v7266, 56
      %v8217 = vpop.permute.xlu0 %8216
      %8218 = vrot.lane.b32.xlu0 %v7271, 56
      %v8219 = vpop.permute.xlu0 %8218
      %8220 = vrot.lane.b32.xlu0 %v7285, 56
      %v8221 = vpop.permute.xlu0 %8220
      %8222 = vrot.lane.b32.xlu0 %v7290, 56
      %v8223 = vpop.permute.xlu0 %8222
      %8224 = vrot.lane.b32.xlu0 %v7304, 56
      %v8225 = vpop.permute.xlu0 %8224
      %8226 = vrot.lane.b32.xlu0 %v7309, 56
      %v8227 = vpop.permute.xlu0 %8226
      %8228 = vrot.lane.b32.xlu0 %v7323, 56
      %v8229 = vpop.permute.xlu0 %8228
      %8230 = vrot.lane.b32.xlu0 %v7328, 56
      %v8231 = vpop.permute.xlu0 %8230
      %8232 = vrot.lane.b32.xlu0 %v7342, 56
      %v8233 = vpop.permute.xlu0 %8232
      %8234 = vrot.lane.b32.xlu0 %v7347, 56
      %v8235 = vpop.permute.xlu0 %8234
      %8236 = vrot.lane.b32.xlu0 %v7361, 56
      %v8237 = vpop.permute.xlu0 %8236
      %8238 = vrot.lane.b32.xlu0 %v7366, 56
      %v8239 = vpop.permute.xlu0 %8238
      %8240 = vrot.lane.b32.xlu0 %v7380, 56
      %v8241 = vpop.permute.xlu0 %8240
      %8242 = vrot.lane.b32.xlu0 %v7385, 56
      %v8243 = vpop.permute.xlu0 %8242
      %8244 = vrot.lane.b32.xlu0 %v7399, 56
      %v8245 = vpop.permute.xlu0 %8244
      %8246 = vrot.lane.b32.xlu0 %v7404, 56
      %v8247 = vpop.permute.xlu0 %8246
      %8248 = vrot.lane.b32.xlu0 %v7829, 56
      %v8249 = vpop.permute.xlu0 %8248
      %8250 = vrot.lane.b32.xlu0 %v7834, 56
      %v8251 = vpop.permute.xlu0 %8250
      %8252 = vrot.lane.b32.xlu0 %v8194, 56
      %v8253 = vpop.permute.xlu0 %8252
      %8254 = vrot.lane.b32.xlu0 %v8199, 56
      %v8255 = vpop.permute.xlu0 %8254
      %8284 = vst.msk [vmem:[#allocation3] sm:$0xf] %vm4282, %v8201
      %8285 = vst.msk [vmem:[#allocation3 + $0x4] sm:$0x7] %vm4284, %v8203
      %8286 = vst.msk [vmem:[#allocation3 + $0x8] sm:$0xf] %vm4282, %v8205
      %8287 = vst.msk [vmem:[#allocation3 + $0xc] sm:$0x7] %vm4284, %v8207
      %8288 = vst.msk [vmem:[#allocation3 + $0x10] sm:$0xf] %vm4282, %v8209
      %8289 = vst.msk [vmem:[#allocation3 + $0x14] sm:$0x7] %vm4284, %v8211
      %8290 = vst.msk [vmem:[#allocation3 + $0x18] sm:$0xf] %vm4282, %v8213
      %8291 = vst.msk [vmem:[#allocation3 + $0x1c] sm:$0x7] %vm4284, %v8215
      %8292 = vst.msk [vmem:[#allocation3 + $0x20] sm:$0xf] %vm4282, %v8217
      %8293 = vst.msk [vmem:[#allocation3 + $0x24] sm:$0x7] %vm4284, %v8219
      %8294 = vst.msk [vmem:[#allocation3 + $0x28] sm:$0xf] %vm4282, %v8221
      %8295 = vst.msk [vmem:[#allocation3 + $0x2c] sm:$0x7] %vm4284, %v8223
      %8296 = vst.msk [vmem:[#allocation3 + $0x30] sm:$0xf] %vm4282, %v8225
      %8297 = vst.msk [vmem:[#allocation3 + $0x34] sm:$0x7] %vm4284, %v8227
      %8298 = vst.msk [vmem:[#allocation3 + $0x38] sm:$0xf] %vm4282, %v8229
      %8299 = vst.msk [vmem:[#allocation3 + $0x3c] sm:$0x7] %vm4284, %v8231
      %8300 = vst.msk [vmem:[#allocation3 + $0x40] sm:$0xf] %vm4282, %v8233
      %8301 = vst.msk [vmem:[#allocation3 + $0x44] sm:$0x7] %vm4284, %v8235
      %8302 = vst.msk [vmem:[#allocation3 + $0x48] sm:$0xf] %vm4282, %v8237
      %8303 = vst.msk [vmem:[#allocation3 + $0x4c] sm:$0x7] %vm4284, %v8239
      %8304 = vst.msk [vmem:[#allocation3 + $0x50] sm:$0xf] %vm4282, %v8241
      %8305 = vst.msk [vmem:[#allocation3 + $0x54] sm:$0x7] %vm4284, %v8243
      %8306 = vst.msk [vmem:[#allocation3 + $0x58] sm:$0xf] %vm4282, %v8245
      %8307 = vst.msk [vmem:[#allocation3 + $0x5c] sm:$0x7] %vm4284, %v8247
      %8308 = vst.msk [vmem:[#allocation3 + $0x60] sm:$0xf] %vm4282, %v8249
      %8309 = vst.msk [vmem:[#allocation3 + $0x64] sm:$0x7] %vm4284, %v8251
      %8310 = vst.msk [vmem:[#allocation3 + $0x68] sm:$0xf] %vm4282, %v8253
      %8311 = vst.msk [vmem:[#allocation3 + $0x6c] sm:$0x7] %vm4284, %v8255
      %v8312 = vrot.slane %v8067, 5
      %v8313 = vrot.slane %v8312, 4
      %v8314 = vrot.slane %v8068, 5
      %v8315 = vsel %vm3506, %v8313, %v8314
      %v8316 = vrot.slane %v8314, 4
      %8317 = vrot.lane.b32.xlu0 %v7530, 64
      %v8318 = vpop.permute.xlu0 %8317
      %8319 = vrot.lane.b32.xlu0 %v7531, 64
      %v8320 = vpop.permute.xlu0 %8319
      %8321 = vrot.lane.b32.xlu0 %v7535, 64
      %v8322 = vpop.permute.xlu0 %8321
      %8323 = vrot.lane.b32.xlu0 %v7536, 64
      %v8324 = vpop.permute.xlu0 %8323
      %8325 = vrot.lane.b32.xlu0 %v7540, 64
      %v8326 = vpop.permute.xlu0 %8325
      %8327 = vrot.lane.b32.xlu0 %v7541, 64
      %v8328 = vpop.permute.xlu0 %8327
      %8329 = vrot.lane.b32.xlu0 %v7545, 64
      %v8330 = vpop.permute.xlu0 %8329
      %8331 = vrot.lane.b32.xlu0 %v7546, 64
      %v8332 = vpop.permute.xlu0 %8331
      %8333 = vrot.lane.b32.xlu0 %v7550, 64
      %v8334 = vpop.permute.xlu0 %8333
      %8335 = vrot.lane.b32.xlu0 %v7551, 64
      %v8336 = vpop.permute.xlu0 %8335
      %8337 = vrot.lane.b32.xlu0 %v7555, 64
      %v8338 = vpop.permute.xlu0 %8337
      %8339 = vrot.lane.b32.xlu0 %v7556, 64
      %v8340 = vpop.permute.xlu0 %8339
      %8341 = vrot.lane.b32.xlu0 %v7560, 64
      %v8342 = vpop.permute.xlu0 %8341
      %8343 = vrot.lane.b32.xlu0 %v7561, 64
      %v8344 = vpop.permute.xlu0 %8343
      %8345 = vrot.lane.b32.xlu0 %v7565, 64
      %v8346 = vpop.permute.xlu0 %8345
      %8347 = vrot.lane.b32.xlu0 %v7566, 64
      %v8348 = vpop.permute.xlu0 %8347
      %8349 = vrot.lane.b32.xlu0 %v7570, 64
      %v8350 = vpop.permute.xlu0 %8349
      %8351 = vrot.lane.b32.xlu0 %v7571, 64
      %v8352 = vpop.permute.xlu0 %8351
      %8353 = vrot.lane.b32.xlu0 %v7575, 64
      %v8354 = vpop.permute.xlu0 %8353
      %8355 = vrot.lane.b32.xlu0 %v7576, 64
      %v8356 = vpop.permute.xlu0 %8355
      %8357 = vrot.lane.b32.xlu0 %v7580, 64
      %v8358 = vpop.permute.xlu0 %8357
      %8359 = vrot.lane.b32.xlu0 %v7581, 64
      %v8360 = vpop.permute.xlu0 %8359
      %8361 = vrot.lane.b32.xlu0 %v7585, 64
      %v8362 = vpop.permute.xlu0 %8361
      %8363 = vrot.lane.b32.xlu0 %v7586, 64
      %v8364 = vpop.permute.xlu0 %8363
      %8365 = vrot.lane.b32.xlu0 %v7950, 64
      %v8366 = vpop.permute.xlu0 %8365
      %8367 = vrot.lane.b32.xlu0 %v7951, 64
      %v8368 = vpop.permute.xlu0 %8367
      %8369 = vrot.lane.b32.xlu0 %v8315, 64
      %v8370 = vpop.permute.xlu0 %8369
      %8371 = vrot.lane.b32.xlu0 %v8316, 64
      %v8372 = vpop.permute.xlu0 %8371
      %8401 = vst.msk [vmem:[#allocation3] sm:$0xf] %vm4401, %v8318
      %8402 = vst.msk [vmem:[#allocation3 + $0x4] sm:$0x7] %vm4403, %v8320
      %8403 = vst.msk [vmem:[#allocation3 + $0x8] sm:$0xf] %vm4401, %v8322
      %8404 = vst.msk [vmem:[#allocation3 + $0xc] sm:$0x7] %vm4403, %v8324
      %8405 = vst.msk [vmem:[#allocation3 + $0x10] sm:$0xf] %vm4401, %v8326
      %8406 = vst.msk [vmem:[#allocation3 + $0x14] sm:$0x7] %vm4403, %v8328
      %8407 = vst.msk [vmem:[#allocation3 + $0x18] sm:$0xf] %vm4401, %v8330
      %8408 = vst.msk [vmem:[#allocation3 + $0x1c] sm:$0x7] %vm4403, %v8332
      %8409 = vst.msk [vmem:[#allocation3 + $0x20] sm:$0xf] %vm4401, %v8334
      %8410 = vst.msk [vmem:[#allocation3 + $0x24] sm:$0x7] %vm4403, %v8336
      %8411 = vst.msk [vmem:[#allocation3 + $0x28] sm:$0xf] %vm4401, %v8338
      %8412 = vst.msk [vmem:[#allocation3 + $0x2c] sm:$0x7] %vm4403, %v8340
      %8413 = vst.msk [vmem:[#allocation3 + $0x30] sm:$0xf] %vm4401, %v8342
      %8414 = vst.msk [vmem:[#allocation3 + $0x34] sm:$0x7] %vm4403, %v8344
      %8415 = vst.msk [vmem:[#allocation3 + $0x38] sm:$0xf] %vm4401, %v8346
      %8416 = vst.msk [vmem:[#allocation3 + $0x3c] sm:$0x7] %vm4403, %v8348
      %8417 = vst.msk [vmem:[#allocation3 + $0x40] sm:$0xf] %vm4401, %v8350
      %8418 = vst.msk [vmem:[#allocation3 + $0x44] sm:$0x7] %vm4403, %v8352
      %8419 = vst.msk [vmem:[#allocation3 + $0x48] sm:$0xf] %vm4401, %v8354
      %8420 = vst.msk [vmem:[#allocation3 + $0x4c] sm:$0x7] %vm4403, %v8356
      %8421 = vst.msk [vmem:[#allocation3 + $0x50] sm:$0xf] %vm4401, %v8358
      %8422 = vst.msk [vmem:[#allocation3 + $0x54] sm:$0x7] %vm4403, %v8360
      %8423 = vst.msk [vmem:[#allocation3 + $0x58] sm:$0xf] %vm4401, %v8362
      %8424 = vst.msk [vmem:[#allocation3 + $0x5c] sm:$0x7] %vm4403, %v8364
      %8425 = vst.msk [vmem:[#allocation3 + $0x60] sm:$0xf] %vm4401, %v8366
      %8426 = vst.msk [vmem:[#allocation3 + $0x64] sm:$0x7] %vm4403, %v8368
      %8427 = vst.msk [vmem:[#allocation3 + $0x68] sm:$0xf] %vm4401, %v8370
      %8428 = vst.msk [vmem:[#allocation3 + $0x6c] sm:$0x7] %vm4403, %v8372
      %v8429 = vld [vmem:[#allocation3] sm:$0xf]
      %v8430 = vld [vmem:[#allocation3 + $0x4] sm:$0x7]
      %v8431 = vld [vmem:[#allocation3 + $0x8] sm:$0xf]
      %v8432 = vld [vmem:[#allocation3 + $0xc] sm:$0x7]
      %v8433 = vld [vmem:[#allocation3 + $0x10] sm:$0xf]
      %v8434 = vld [vmem:[#allocation3 + $0x14] sm:$0x7]
      %v8435 = vld [vmem:[#allocation3 + $0x18] sm:$0xf]
      %v8436 = vld [vmem:[#allocation3 + $0x1c] sm:$0x7]
      %v8437 = vld [vmem:[#allocation3 + $0x20] sm:$0xf]
      %v8438 = vld [vmem:[#allocation3 + $0x24] sm:$0x7]
      %v8439 = vld [vmem:[#allocation3 + $0x28] sm:$0xf]
      %v8440 = vld [vmem:[#allocation3 + $0x2c] sm:$0x7]
      %v8441 = vld [vmem:[#allocation3 + $0x30] sm:$0xf]
      %v8442 = vld [vmem:[#allocation3 + $0x34] sm:$0x7]
      %v8443 = vld [vmem:[#allocation3 + $0x38] sm:$0xf]
      %v8444 = vld [vmem:[#allocation3 + $0x3c] sm:$0x7]
      %v8445 = vld [vmem:[#allocation3 + $0x40] sm:$0xf]
      %v8446 = vld [vmem:[#allocation3 + $0x44] sm:$0x7]
      %v8447 = vld [vmem:[#allocation3 + $0x48] sm:$0xf]
      %v8448 = vld [vmem:[#allocation3 + $0x4c] sm:$0x7]
      %v8449 = vld [vmem:[#allocation3 + $0x50] sm:$0xf]
      %v8450 = vld [vmem:[#allocation3 + $0x54] sm:$0x7]
      %v8451 = vld [vmem:[#allocation3 + $0x58] sm:$0xf]
      %v8452 = vld [vmem:[#allocation3 + $0x5c] sm:$0x7]
      %v8453 = vld [vmem:[#allocation3 + $0x60] sm:$0xf]
      %v8454 = vld [vmem:[#allocation3 + $0x64] sm:$0x7]
      %v8455 = vld [vmem:[#allocation3 + $0x68] sm:$0xf]
      %v8456 = vld [vmem:[#allocation3 + $0x6c] sm:$0x7]
      %v8486 = vunpack.c.l.s4 1966171168
      %v8487 = vunpack.c.0.s8 %v8486
      %v8488 = vlaneseq
      %v8489 = vshrl.u32 %v8488, 7
      %v8490 = vsub.s32 %v8487, %v8489
      %v8491 = vrot.slane %v8429, %v8490
      %v8492 = vcombine.high %v8491, %v8491
      %v8494 = vunpack.c.l.s4 1966171168
      %v8495 = vunpack.c.0.s8 %v8494
      %v8496 = vlaneseq
      %v8497 = vshrl.u32 %v8496, 7
      %v8498 = vsub.s32 %v8495, %v8497
      %v8499 = vrot.slane %v8491, %v8498
      %v8501 = vunpack.c.l.s4 1966171168
      %v8502 = vunpack.c.0.s8 %v8501
      %v8503 = vlaneseq
      %v8504 = vshrl.u32 %v8503, 7
      %v8505 = vsub.s32 %v8502, %v8504
      %v8506 = vrot.slane %v8492, %v8505
      %v8507 = vcombine.high %v8499, %v8499
      %v8508 = vcombine.high %v8506, %v8506
      %v8510 = vunpack.c.l.s4 1966171168
      %v8511 = vunpack.c.0.s8 %v8510
      %v8512 = vlaneseq
      %v8513 = vshrl.u32 %v8512, 7
      %v8514 = vsub.s32 %v8511, %v8513
      %v8515 = vrot.slane %v8430, %v8514
      %v8516 = vcombine.high %v8515, %v8515
      %v8518 = vunpack.c.l.s4 1966171168
      %v8519 = vunpack.c.0.s8 %v8518
      %v8520 = vlaneseq
      %v8521 = vshrl.u32 %v8520, 7
      %v8522 = vsub.s32 %v8519, %v8521
      %v8523 = vrot.slane %v8515, %v8522
      %v8525 = vunpack.c.l.s4 1966171168
      %v8526 = vunpack.c.0.s8 %v8525
      %v8527 = vlaneseq
      %v8528 = vshrl.u32 %v8527, 7
      %v8529 = vsub.s32 %v8526, %v8528
      %v8530 = vrot.slane %v8516, %v8529
      %v8531 = vcombine.high %v8523, %v8523
      %v8533 = vunpack.c.l.s4 1966171168
      %v8534 = vunpack.c.0.s8 %v8533
      %v8535 = vlaneseq
      %v8536 = vshrl.u32 %v8535, 7
      %v8537 = vsub.s32 %v8534, %v8536
      %v8538 = vrot.slane %v8431, %v8537
      %v8539 = vcombine.high %v8538, %v8538
      %v8541 = vunpack.c.l.s4 1966171168
      %v8542 = vunpack.c.0.s8 %v8541
      %v8543 = vlaneseq
      %v8544 = vshrl.u32 %v8543, 7
      %v8545 = vsub.s32 %v8542, %v8544
      %v8546 = vrot.slane %v8538, %v8545
      %v8548 = vunpack.c.l.s4 1966171168
      %v8549 = vunpack.c.0.s8 %v8548
      %v8550 = vlaneseq
      %v8551 = vshrl.u32 %v8550, 7
      %v8552 = vsub.s32 %v8549, %v8551
      %v8553 = vrot.slane %v8539, %v8552
      %v8554 = vcombine.high %v8546, %v8546
      %v8555 = vcombine.high %v8553, %v8553
      %v8557 = vunpack.c.l.s4 1966171168
      %v8558 = vunpack.c.0.s8 %v8557
      %v8559 = vlaneseq
      %v8560 = vshrl.u32 %v8559, 7
      %v8561 = vsub.s32 %v8558, %v8560
      %v8562 = vrot.slane %v8432, %v8561
      %v8563 = vcombine.high %v8562, %v8562
      %v8565 = vunpack.c.l.s4 1966171168
      %v8566 = vunpack.c.0.s8 %v8565
      %v8567 = vlaneseq
      %v8568 = vshrl.u32 %v8567, 7
      %v8569 = vsub.s32 %v8566, %v8568
      %v8570 = vrot.slane %v8562, %v8569
      %v8572 = vunpack.c.l.s4 1966171168
      %v8573 = vunpack.c.0.s8 %v8572
      %v8574 = vlaneseq
      %v8575 = vshrl.u32 %v8574, 7
      %v8576 = vsub.s32 %v8573, %v8575
      %v8577 = vrot.slane %v8563, %v8576
      %v8578 = vcombine.high %v8570, %v8570
      %v8580 = vunpack.c.l.s4 1966171168
      %v8581 = vunpack.c.0.s8 %v8580
      %v8582 = vlaneseq
      %v8583 = vshrl.u32 %v8582, 7
      %v8584 = vsub.s32 %v8581, %v8583
      %v8585 = vrot.slane %v8433, %v8584
      %v8586 = vcombine.high %v8585, %v8585
      %v8588 = vunpack.c.l.s4 1966171168
      %v8589 = vunpack.c.0.s8 %v8588
      %v8590 = vlaneseq
      %v8591 = vshrl.u32 %v8590, 7
      %v8592 = vsub.s32 %v8589, %v8591
      %v8593 = vrot.slane %v8585, %v8592
      %v8595 = vunpack.c.l.s4 1966171168
      %v8596 = vunpack.c.0.s8 %v8595
      %v8597 = vlaneseq
      %v8598 = vshrl.u32 %v8597, 7
      %v8599 = vsub.s32 %v8596, %v8598
      %v8600 = vrot.slane %v8586, %v8599
      %v8601 = vcombine.high %v8593, %v8593
      %v8602 = vcombine.high %v8600, %v8600
      %v8604 = vunpack.c.l.s4 1966171168
      %v8605 = vunpack.c.0.s8 %v8604
      %v8606 = vlaneseq
      %v8607 = vshrl.u32 %v8606, 7
      %v8608 = vsub.s32 %v8605, %v8607
      %v8609 = vrot.slane %v8434, %v8608
      %v8610 = vcombine.high %v8609, %v8609
      %v8612 = vunpack.c.l.s4 1966171168
      %v8613 = vunpack.c.0.s8 %v8612
      %v8614 = vlaneseq
      %v8615 = vshrl.u32 %v8614, 7
      %v8616 = vsub.s32 %v8613, %v8615
      %v8617 = vrot.slane %v8609, %v8616
      %v8619 = vunpack.c.l.s4 1966171168
      %v8620 = vunpack.c.0.s8 %v8619
      %v8621 = vlaneseq
      %v8622 = vshrl.u32 %v8621, 7
      %v8623 = vsub.s32 %v8620, %v8622
      %v8624 = vrot.slane %v8610, %v8623
      %v8625 = vcombine.high %v8617, %v8617
      %v8627 = vunpack.c.l.s4 1966171168
      %v8628 = vunpack.c.0.s8 %v8627
      %v8629 = vlaneseq
      %v8630 = vshrl.u32 %v8629, 7
      %v8631 = vsub.s32 %v8628, %v8630
      %v8632 = vrot.slane %v8435, %v8631
      %v8633 = vcombine.high %v8632, %v8632
      %v8635 = vunpack.c.l.s4 1966171168
      %v8636 = vunpack.c.0.s8 %v8635
      %v8637 = vlaneseq
      %v8638 = vshrl.u32 %v8637, 7
      %v8639 = vsub.s32 %v8636, %v8638
      %v8640 = vrot.slane %v8632, %v8639
      %v8642 = vunpack.c.l.s4 1966171168
      %v8643 = vunpack.c.0.s8 %v8642
      %v8644 = vlaneseq
      %v8645 = vshrl.u32 %v8644, 7
      %v8646 = vsub.s32 %v8643, %v8645
      %v8647 = vrot.slane %v8633, %v8646
      %v8648 = vcombine.high %v8640, %v8640
      %v8649 = vcombine.high %v8647, %v8647
      %v8651 = vunpack.c.l.s4 1966171168
      %v8652 = vunpack.c.0.s8 %v8651
      %v8653 = vlaneseq
      %v8654 = vshrl.u32 %v8653, 7
      %v8655 = vsub.s32 %v8652, %v8654
      %v8656 = vrot.slane %v8436, %v8655
      %v8657 = vcombine.high %v8656, %v8656
      %v8659 = vunpack.c.l.s4 1966171168
      %v8660 = vunpack.c.0.s8 %v8659
      %v8661 = vlaneseq
      %v8662 = vshrl.u32 %v8661, 7
      %v8663 = vsub.s32 %v8660, %v8662
      %v8664 = vrot.slane %v8656, %v8663
      %v8666 = vunpack.c.l.s4 1966171168
      %v8667 = vunpack.c.0.s8 %v8666
      %v8668 = vlaneseq
      %v8669 = vshrl.u32 %v8668, 7
      %v8670 = vsub.s32 %v8667, %v8669
      %v8671 = vrot.slane %v8657, %v8670
      %v8672 = vcombine.high %v8664, %v8664
      %v8674 = vunpack.c.l.s4 1966171168
      %v8675 = vunpack.c.0.s8 %v8674
      %v8676 = vlaneseq
      %v8677 = vshrl.u32 %v8676, 7
      %v8678 = vsub.s32 %v8675, %v8677
      %v8679 = vrot.slane %v8437, %v8678
      %v8680 = vcombine.high %v8679, %v8679
      %v8682 = vunpack.c.l.s4 1966171168
      %v8683 = vunpack.c.0.s8 %v8682
      %v8684 = vlaneseq
      %v8685 = vshrl.u32 %v8684, 7
      %v8686 = vsub.s32 %v8683, %v8685
      %v8687 = vrot.slane %v8679, %v8686
      %v8689 = vunpack.c.l.s4 1966171168
      %v8690 = vunpack.c.0.s8 %v8689
      %v8691 = vlaneseq
      %v8692 = vshrl.u32 %v8691, 7
      %v8693 = vsub.s32 %v8690, %v8692
      %v8694 = vrot.slane %v8680, %v8693
      %v8695 = vcombine.high %v8687, %v8687
      %v8696 = vcombine.high %v8694, %v8694
      %v8698 = vunpack.c.l.s4 1966171168
      %v8699 = vunpack.c.0.s8 %v8698
      %v8700 = vlaneseq
      %v8701 = vshrl.u32 %v8700, 7
      %v8702 = vsub.s32 %v8699, %v8701
      %v8703 = vrot.slane %v8438, %v8702
      %v8704 = vcombine.high %v8703, %v8703
      %v8706 = vunpack.c.l.s4 1966171168
      %v8707 = vunpack.c.0.s8 %v8706
      %v8708 = vlaneseq
      %v8709 = vshrl.u32 %v8708, 7
      %v8710 = vsub.s32 %v8707, %v8709
      %v8711 = vrot.slane %v8703, %v8710
      %v8713 = vunpack.c.l.s4 1966171168
      %v8714 = vunpack.c.0.s8 %v8713
      %v8715 = vlaneseq
      %v8716 = vshrl.u32 %v8715, 7
      %v8717 = vsub.s32 %v8714, %v8716
      %v8718 = vrot.slane %v8704, %v8717
      %v8719 = vcombine.high %v8711, %v8711
      %v8721 = vunpack.c.l.s4 1966171168
      %v8722 = vunpack.c.0.s8 %v8721
      %v8723 = vlaneseq
      %v8724 = vshrl.u32 %v8723, 7
      %v8725 = vsub.s32 %v8722, %v8724
      %v8726 = vrot.slane %v8439, %v8725
      %v8727 = vcombine.high %v8726, %v8726
      %v8729 = vunpack.c.l.s4 1966171168
      %v8730 = vunpack.c.0.s8 %v8729
      %v8731 = vlaneseq
      %v8732 = vshrl.u32 %v8731, 7
      %v8733 = vsub.s32 %v8730, %v8732
      %v8734 = vrot.slane %v8726, %v8733
      %v8736 = vunpack.c.l.s4 1966171168
      %v8737 = vunpack.c.0.s8 %v8736
      %v8738 = vlaneseq
      %v8739 = vshrl.u32 %v8738, 7
      %v8740 = vsub.s32 %v8737, %v8739
      %v8741 = vrot.slane %v8727, %v8740
      %v8742 = vcombine.high %v8734, %v8734
      %v8743 = vcombine.high %v8741, %v8741
      %v8745 = vunpack.c.l.s4 1966171168
      %v8746 = vunpack.c.0.s8 %v8745
      %v8747 = vlaneseq
      %v8748 = vshrl.u32 %v8747, 7
      %v8749 = vsub.s32 %v8746, %v8748
      %v8750 = vrot.slane %v8440, %v8749
      %v8751 = vcombine.high %v8750, %v8750
      %v8753 = vunpack.c.l.s4 1966171168
      %v8754 = vunpack.c.0.s8 %v8753
      %v8755 = vlaneseq
      %v8756 = vshrl.u32 %v8755, 7
      %v8757 = vsub.s32 %v8754, %v8756
      %v8758 = vrot.slane %v8750, %v8757
      %v8760 = vunpack.c.l.s4 1966171168
      %v8761 = vunpack.c.0.s8 %v8760
      %v8762 = vlaneseq
      %v8763 = vshrl.u32 %v8762, 7
      %v8764 = vsub.s32 %v8761, %v8763
      %v8765 = vrot.slane %v8751, %v8764
      %v8766 = vcombine.high %v8758, %v8758
      %v8768 = vunpack.c.l.s4 1966171168
      %v8769 = vunpack.c.0.s8 %v8768
      %v8770 = vlaneseq
      %v8771 = vshrl.u32 %v8770, 7
      %v8772 = vsub.s32 %v8769, %v8771
      %v8773 = vrot.slane %v8441, %v8772
      %v8774 = vcombine.high %v8773, %v8773
      %v8776 = vunpack.c.l.s4 1966171168
      %v8777 = vunpack.c.0.s8 %v8776
      %v8778 = vlaneseq
      %v8779 = vshrl.u32 %v8778, 7
      %v8780 = vsub.s32 %v8777, %v8779
      %v8781 = vrot.slane %v8773, %v8780
      %v8783 = vunpack.c.l.s4 1966171168
      %v8784 = vunpack.c.0.s8 %v8783
      %v8785 = vlaneseq
      %v8786 = vshrl.u32 %v8785, 7
      %v8787 = vsub.s32 %v8784, %v8786
      %v8788 = vrot.slane %v8774, %v8787
      %v8789 = vcombine.high %v8781, %v8781
      %v8790 = vcombine.high %v8788, %v8788
      %v8792 = vunpack.c.l.s4 1966171168
      %v8793 = vunpack.c.0.s8 %v8792
      %v8794 = vlaneseq
      %v8795 = vshrl.u32 %v8794, 7
      %v8796 = vsub.s32 %v8793, %v8795
      %v8797 = vrot.slane %v8442, %v8796
      %v8798 = vcombine.high %v8797, %v8797
      %v8800 = vunpack.c.l.s4 1966171168
      %v8801 = vunpack.c.0.s8 %v8800
      %v8802 = vlaneseq
      %v8803 = vshrl.u32 %v8802, 7
      %v8804 = vsub.s32 %v8801, %v8803
      %v8805 = vrot.slane %v8797, %v8804
      %v8807 = vunpack.c.l.s4 1966171168
      %v8808 = vunpack.c.0.s8 %v8807
      %v8809 = vlaneseq
      %v8810 = vshrl.u32 %v8809, 7
      %v8811 = vsub.s32 %v8808, %v8810
      %v8812 = vrot.slane %v8798, %v8811
      %v8813 = vcombine.high %v8805, %v8805
      %v8815 = vunpack.c.l.s4 1966171168
      %v8816 = vunpack.c.0.s8 %v8815
      %v8817 = vlaneseq
      %v8818 = vshrl.u32 %v8817, 7
      %v8819 = vsub.s32 %v8816, %v8818
      %v8820 = vrot.slane %v8443, %v8819
      %v8821 = vcombine.high %v8820, %v8820
      %v8823 = vunpack.c.l.s4 1966171168
      %v8824 = vunpack.c.0.s8 %v8823
      %v8825 = vlaneseq
      %v8826 = vshrl.u32 %v8825, 7
      %v8827 = vsub.s32 %v8824, %v8826
      %v8828 = vrot.slane %v8820, %v8827
      %v8830 = vunpack.c.l.s4 1966171168
      %v8831 = vunpack.c.0.s8 %v8830
      %v8832 = vlaneseq
      %v8833 = vshrl.u32 %v8832, 7
      %v8834 = vsub.s32 %v8831, %v8833
      %v8835 = vrot.slane %v8821, %v8834
      %v8836 = vcombine.high %v8828, %v8828
      %v8837 = vcombine.high %v8835, %v8835
      %v8839 = vunpack.c.l.s4 1966171168
      %v8840 = vunpack.c.0.s8 %v8839
      %v8841 = vlaneseq
      %v8842 = vshrl.u32 %v8841, 7
      %v8843 = vsub.s32 %v8840, %v8842
      %v8844 = vrot.slane %v8444, %v8843
      %v8845 = vcombine.high %v8844, %v8844
      %v8847 = vunpack.c.l.s4 1966171168
      %v8848 = vunpack.c.0.s8 %v8847
      %v8849 = vlaneseq
      %v8850 = vshrl.u32 %v8849, 7
      %v8851 = vsub.s32 %v8848, %v8850
      %v8852 = vrot.slane %v8844, %v8851
      %v8854 = vunpack.c.l.s4 1966171168
      %v8855 = vunpack.c.0.s8 %v8854
      %v8856 = vlaneseq
      %v8857 = vshrl.u32 %v8856, 7
      %v8858 = vsub.s32 %v8855, %v8857
      %v8859 = vrot.slane %v8845, %v8858
      %v8860 = vcombine.high %v8852, %v8852
      %v8862 = vunpack.c.l.s4 1966171168
      %v8863 = vunpack.c.0.s8 %v8862
      %v8864 = vlaneseq
      %v8865 = vshrl.u32 %v8864, 7
      %v8866 = vsub.s32 %v8863, %v8865
      %v8867 = vrot.slane %v8445, %v8866
      %v8868 = vcombine.high %v8867, %v8867
      %v8870 = vunpack.c.l.s4 1966171168
      %v8871 = vunpack.c.0.s8 %v8870
      %v8872 = vlaneseq
      %v8873 = vshrl.u32 %v8872, 7
      %v8874 = vsub.s32 %v8871, %v8873
      %v8875 = vrot.slane %v8867, %v8874
      %v8877 = vunpack.c.l.s4 1966171168
      %v8878 = vunpack.c.0.s8 %v8877
      %v8879 = vlaneseq
      %v8880 = vshrl.u32 %v8879, 7
      %v8881 = vsub.s32 %v8878, %v8880
      %v8882 = vrot.slane %v8868, %v8881
      %v8883 = vcombine.high %v8875, %v8875
      %v8884 = vcombine.high %v8882, %v8882
      %v8886 = vunpack.c.l.s4 1966171168
      %v8887 = vunpack.c.0.s8 %v8886
      %v8888 = vlaneseq
      %v8889 = vshrl.u32 %v8888, 7
      %v8890 = vsub.s32 %v8887, %v8889
      %v8891 = vrot.slane %v8446, %v8890
      %v8892 = vcombine.high %v8891, %v8891
      %v8894 = vunpack.c.l.s4 1966171168
      %v8895 = vunpack.c.0.s8 %v8894
      %v8896 = vlaneseq
      %v8897 = vshrl.u32 %v8896, 7
      %v8898 = vsub.s32 %v8895, %v8897
      %v8899 = vrot.slane %v8891, %v8898
      %v8901 = vunpack.c.l.s4 1966171168
      %v8902 = vunpack.c.0.s8 %v8901
      %v8903 = vlaneseq
      %v8904 = vshrl.u32 %v8903, 7
      %v8905 = vsub.s32 %v8902, %v8904
      %v8906 = vrot.slane %v8892, %v8905
      %v8907 = vcombine.high %v8899, %v8899
      %v8909 = vunpack.c.l.s4 1966171168
      %v8910 = vunpack.c.0.s8 %v8909
      %v8911 = vlaneseq
      %v8912 = vshrl.u32 %v8911, 7
      %v8913 = vsub.s32 %v8910, %v8912
      %v8914 = vrot.slane %v8447, %v8913
      %v8915 = vcombine.high %v8914, %v8914
      %v8917 = vunpack.c.l.s4 1966171168
      %v8918 = vunpack.c.0.s8 %v8917
      %v8919 = vlaneseq
      %v8920 = vshrl.u32 %v8919, 7
      %v8921 = vsub.s32 %v8918, %v8920
      %v8922 = vrot.slane %v8914, %v8921
      %v8924 = vunpack.c.l.s4 1966171168
      %v8925 = vunpack.c.0.s8 %v8924
      %v8926 = vlaneseq
      %v8927 = vshrl.u32 %v8926, 7
      %v8928 = vsub.s32 %v8925, %v8927
      %v8929 = vrot.slane %v8915, %v8928
      %v8930 = vcombine.high %v8922, %v8922
      %v8931 = vcombine.high %v8929, %v8929
      %v8933 = vunpack.c.l.s4 1966171168
      %v8934 = vunpack.c.0.s8 %v8933
      %v8935 = vlaneseq
      %v8936 = vshrl.u32 %v8935, 7
      %v8937 = vsub.s32 %v8934, %v8936
      %v8938 = vrot.slane %v8448, %v8937
      %v8939 = vcombine.high %v8938, %v8938
      %v8941 = vunpack.c.l.s4 1966171168
      %v8942 = vunpack.c.0.s8 %v8941
      %v8943 = vlaneseq
      %v8944 = vshrl.u32 %v8943, 7
      %v8945 = vsub.s32 %v8942, %v8944
      %v8946 = vrot.slane %v8938, %v8945
      %v8948 = vunpack.c.l.s4 1966171168
      %v8949 = vunpack.c.0.s8 %v8948
      %v8950 = vlaneseq
      %v8951 = vshrl.u32 %v8950, 7
      %v8952 = vsub.s32 %v8949, %v8951
      %v8953 = vrot.slane %v8939, %v8952
      %v8954 = vcombine.high %v8946, %v8946
      %v8956 = vunpack.c.l.s4 1966171168
      %v8957 = vunpack.c.0.s8 %v8956
      %v8958 = vlaneseq
      %v8959 = vshrl.u32 %v8958, 7
      %v8960 = vsub.s32 %v8957, %v8959
      %v8961 = vrot.slane %v8449, %v8960
      %v8962 = vcombine.high %v8961, %v8961
      %v8964 = vunpack.c.l.s4 1966171168
      %v8965 = vunpack.c.0.s8 %v8964
      %v8966 = vlaneseq
      %v8967 = vshrl.u32 %v8966, 7
      %v8968 = vsub.s32 %v8965, %v8967
      %v8969 = vrot.slane %v8961, %v8968
      %v8971 = vunpack.c.l.s4 1966171168
      %v8972 = vunpack.c.0.s8 %v8971
      %v8973 = vlaneseq
      %v8974 = vshrl.u32 %v8973, 7
      %v8975 = vsub.s32 %v8972, %v8974
      %v8976 = vrot.slane %v8962, %v8975
      %v8977 = vcombine.high %v8969, %v8969
      %v8978 = vcombine.high %v8976, %v8976
      %v8980 = vunpack.c.l.s4 1966171168
      %v8981 = vunpack.c.0.s8 %v8980
      %v8982 = vlaneseq
      %v8983 = vshrl.u32 %v8982, 7
      %v8984 = vsub.s32 %v8981, %v8983
      %v8985 = vrot.slane %v8450, %v8984
      %v8986 = vcombine.high %v8985, %v8985
      %v8988 = vunpack.c.l.s4 1966171168
      %v8989 = vunpack.c.0.s8 %v8988
      %v8990 = vlaneseq
      %v8991 = vshrl.u32 %v8990, 7
      %v8992 = vsub.s32 %v8989, %v8991
      %v8993 = vrot.slane %v8985, %v8992
      %v8995 = vunpack.c.l.s4 1966171168
      %v8996 = vunpack.c.0.s8 %v8995
      %v8997 = vlaneseq
      %v8998 = vshrl.u32 %v8997, 7
      %v8999 = vsub.s32 %v8996, %v8998
      %v9000 = vrot.slane %v8986, %v8999
      %v9001 = vcombine.high %v8993, %v8993
      %v9003 = vunpack.c.l.s4 1966171168
      %v9004 = vunpack.c.0.s8 %v9003
      %v9005 = vlaneseq
      %v9006 = vshrl.u32 %v9005, 7
      %v9007 = vsub.s32 %v9004, %v9006
      %v9008 = vrot.slane %v8451, %v9007
      %v9009 = vcombine.high %v9008, %v9008
      %v9011 = vunpack.c.l.s4 1966171168
      %v9012 = vunpack.c.0.s8 %v9011
      %v9013 = vlaneseq
      %v9014 = vshrl.u32 %v9013, 7
      %v9015 = vsub.s32 %v9012, %v9014
      %v9016 = vrot.slane %v9008, %v9015
      %v9018 = vunpack.c.l.s4 1966171168
      %v9019 = vunpack.c.0.s8 %v9018
      %v9020 = vlaneseq
      %v9021 = vshrl.u32 %v9020, 7
      %v9022 = vsub.s32 %v9019, %v9021
      %v9023 = vrot.slane %v9009, %v9022
      %v9024 = vcombine.high %v9016, %v9016
      %v9025 = vcombine.high %v9023, %v9023
      %v9027 = vunpack.c.l.s4 1966171168
      %v9028 = vunpack.c.0.s8 %v9027
      %v9029 = vlaneseq
      %v9030 = vshrl.u32 %v9029, 7
      %v9031 = vsub.s32 %v9028, %v9030
      %v9032 = vrot.slane %v8452, %v9031
      %v9033 = vcombine.high %v9032, %v9032
      %v9035 = vunpack.c.l.s4 1966171168
      %v9036 = vunpack.c.0.s8 %v9035
      %v9037 = vlaneseq
      %v9038 = vshrl.u32 %v9037, 7
      %v9039 = vsub.s32 %v9036, %v9038
      %v9040 = vrot.slane %v9032, %v9039
      %v9042 = vunpack.c.l.s4 1966171168
      %v9043 = vunpack.c.0.s8 %v9042
      %v9044 = vlaneseq
      %v9045 = vshrl.u32 %v9044, 7
      %v9046 = vsub.s32 %v9043, %v9045
      %v9047 = vrot.slane %v9033, %v9046
      %v9048 = vcombine.high %v9040, %v9040
      %v9050 = vunpack.c.l.s4 1966171168
      %v9051 = vunpack.c.0.s8 %v9050
      %v9052 = vlaneseq
      %v9053 = vshrl.u32 %v9052, 7
      %v9054 = vsub.s32 %v9051, %v9053
      %v9055 = vrot.slane %v8453, %v9054
      %v9056 = vcombine.high %v9055, %v9055
      %v9058 = vunpack.c.l.s4 1966171168
      %v9059 = vunpack.c.0.s8 %v9058
      %v9060 = vlaneseq
      %v9061 = vshrl.u32 %v9060, 7
      %v9062 = vsub.s32 %v9059, %v9061
      %v9063 = vrot.slane %v9055, %v9062
      %v9065 = vunpack.c.l.s4 1966171168
      %v9066 = vunpack.c.0.s8 %v9065
      %v9067 = vlaneseq
      %v9068 = vshrl.u32 %v9067, 7
      %v9069 = vsub.s32 %v9066, %v9068
      %v9070 = vrot.slane %v9056, %v9069
      %v9071 = vcombine.high %v9063, %v9063
      %v9072 = vcombine.high %v9070, %v9070
      %v9074 = vunpack.c.l.s4 1966171168
      %v9075 = vunpack.c.0.s8 %v9074
      %v9076 = vlaneseq
      %v9077 = vshrl.u32 %v9076, 7
      %v9078 = vsub.s32 %v9075, %v9077
      %v9079 = vrot.slane %v8454, %v9078
      %v9080 = vcombine.high %v9079, %v9079
      %v9082 = vunpack.c.l.s4 1966171168
      %v9083 = vunpack.c.0.s8 %v9082
      %v9084 = vlaneseq
      %v9085 = vshrl.u32 %v9084, 7
      %v9086 = vsub.s32 %v9083, %v9085
      %v9087 = vrot.slane %v9079, %v9086
      %v9089 = vunpack.c.l.s4 1966171168
      %v9090 = vunpack.c.0.s8 %v9089
      %v9091 = vlaneseq
      %v9092 = vshrl.u32 %v9091, 7
      %v9093 = vsub.s32 %v9090, %v9092
      %v9094 = vrot.slane %v9080, %v9093
      %v9095 = vcombine.high %v9087, %v9087
      %v9097 = vunpack.c.l.s4 1966171168
      %v9098 = vunpack.c.0.s8 %v9097
      %v9099 = vlaneseq
      %v9100 = vshrl.u32 %v9099, 7
      %v9101 = vsub.s32 %v9098, %v9100
      %v9102 = vrot.slane %v8455, %v9101
      %v9103 = vcombine.high %v9102, %v9102
      %v9105 = vunpack.c.l.s4 1966171168
      %v9106 = vunpack.c.0.s8 %v9105
      %v9107 = vlaneseq
      %v9108 = vshrl.u32 %v9107, 7
      %v9109 = vsub.s32 %v9106, %v9108
      %v9110 = vrot.slane %v9102, %v9109
      %v9112 = vunpack.c.l.s4 1966171168
      %v9113 = vunpack.c.0.s8 %v9112
      %v9114 = vlaneseq
      %v9115 = vshrl.u32 %v9114, 7
      %v9116 = vsub.s32 %v9113, %v9115
      %v9117 = vrot.slane %v9103, %v9116
      %v9118 = vcombine.high %v9110, %v9110
      %v9119 = vcombine.high %v9117, %v9117
      %v9121 = vunpack.c.l.s4 1966171168
      %v9122 = vunpack.c.0.s8 %v9121
      %v9123 = vlaneseq
      %v9124 = vshrl.u32 %v9123, 7
      %v9125 = vsub.s32 %v9122, %v9124
      %v9126 = vrot.slane %v8456, %v9125
      %v9127 = vcombine.high %v9126, %v9126
      %v9129 = vunpack.c.l.s4 1966171168
      %v9130 = vunpack.c.0.s8 %v9129
      %v9131 = vlaneseq
      %v9132 = vshrl.u32 %v9131, 7
      %v9133 = vsub.s32 %v9130, %v9132
      %v9134 = vrot.slane %v9126, %v9133
      %v9136 = vunpack.c.l.s4 1966171168
      %v9137 = vunpack.c.0.s8 %v9136
      %v9138 = vlaneseq
      %v9139 = vshrl.u32 %v9138, 7
      %v9140 = vsub.s32 %v9137, %v9139
      %v9141 = vrot.slane %v9127, %v9140
      %v9142 = vcombine.high %v9134, %v9134
      %v9143 = vld [vmem:[%s13] sm:$0xf]
      %v9144 = vld [vmem:[%s13 + $0x4] sm:$0xf]
      %v9145 = vld [vmem:[%s13 + $0x8] sm:$0xf]
      %v9146 = vld [vmem:[%s13 + $0xc] sm:$0xf]
      %v9147 = vld [vmem:[%s13 + $0x10] sm:$0xf]
      %v9148 = vld [vmem:[%s13 + $0x14] sm:$0xf]
      %v9149 = vld [vmem:[%s13 + $0x18] sm:$0xf]
      %v9150 = vld [vmem:[%s13 + $0x1c] sm:$0xf]
      %v9151 = vld [vmem:[%s13 + $0x20] sm:$0xf]
      %v9152 = vcombine.low %v8499, %v8506
      %v9153 = vcombine.low %v8507, %v8508
      %v9154 = vcombine.low %v8523, %v8530
      %v9155 = vcombine.low %v8531, %v8546
      %v9157 = vunpack.c.l.s4 1966171168
      %v9158 = vunpack.c.0.s8 %v9157
      %v9159 = vlaneseq
      %v9160 = vshrl.u32 %v9159, 7
      %v9161 = vsub.s32 %v9158, %v9160
      %v9162 = vrot.slane %v9152, %v9161
      %v9164 = vunpack.c.l.s4 1966171168
      %v9165 = vunpack.c.0.s8 %v9164
      %v9166 = vlaneseq
      %v9167 = vshrl.u32 %v9166, 7
      %v9168 = vsub.s32 %v9165, %v9167
      %v9169 = vrot.slane %v9153, %v9168
      %v9171 = vunpack.c.l.s4 1966171168
      %v9172 = vunpack.c.0.s8 %v9171
      %v9173 = vlaneseq
      %v9174 = vshrl.u32 %v9173, 7
      %v9175 = vsub.s32 %v9172, %v9174
      %v9176 = vrot.slane %v9154, %v9175
      %v9178 = vunpack.c.l.s4 1966171168
      %v9179 = vunpack.c.0.s8 %v9178
      %v9180 = vlaneseq
      %v9181 = vshrl.u32 %v9180, 7
      %v9182 = vsub.s32 %v9179, %v9181
      %v9183 = vrot.slane %v9155, %v9182
      %v9184 = vcombine.low %v9162, %v9169
      %v9185 = vcombine.low %v9176, %v9183
      %v9187 = vunpack.c.l.s4 1966171168
      %v9188 = vunpack.c.0.s8 %v9187
      %v9189 = vlaneseq
      %v9190 = vshrl.u32 %v9189, 7
      %v9191 = vsub.s32 %v9188, %v9190
      %v9192 = vrot.slane %v9184, %v9191
      %v9194 = vunpack.c.l.s4 1966171168
      %v9195 = vunpack.c.0.s8 %v9194
      %v9196 = vlaneseq
      %v9197 = vshrl.u32 %v9196, 7
      %v9198 = vsub.s32 %v9195, %v9197
      %v9199 = vrot.slane %v9185, %v9198
      %v9200 = vcombine.low %v9192, %v9199
      %v9201 = vcombine.low %v8553, %v8554
      %v9202 = vcombine.low %v8555, %v8570
      %v9203 = vcombine.low %v8577, %v8578
      %v9204 = vcombine.low %v8593, %v8600
      %v9206 = vunpack.c.l.s4 1966171168
      %v9207 = vunpack.c.0.s8 %v9206
      %v9208 = vlaneseq
      %v9209 = vshrl.u32 %v9208, 7
      %v9210 = vsub.s32 %v9207, %v9209
      %v9211 = vrot.slane %v9201, %v9210
      %v9213 = vunpack.c.l.s4 1966171168
      %v9214 = vunpack.c.0.s8 %v9213
      %v9215 = vlaneseq
      %v9216 = vshrl.u32 %v9215, 7
      %v9217 = vsub.s32 %v9214, %v9216
      %v9218 = vrot.slane %v9202, %v9217
      %v9220 = vunpack.c.l.s4 1966171168
      %v9221 = vunpack.c.0.s8 %v9220
      %v9222 = vlaneseq
      %v9223 = vshrl.u32 %v9222, 7
      %v9224 = vsub.s32 %v9221, %v9223
      %v9225 = vrot.slane %v9203, %v9224
      %v9227 = vunpack.c.l.s4 1966171168
      %v9228 = vunpack.c.0.s8 %v9227
      %v9229 = vlaneseq
      %v9230 = vshrl.u32 %v9229, 7
      %v9231 = vsub.s32 %v9228, %v9230
      %v9232 = vrot.slane %v9204, %v9231
      %v9233 = vcombine.low %v9211, %v9218
      %v9234 = vcombine.low %v9225, %v9232
      %v9236 = vunpack.c.l.s4 1966171168
      %v9237 = vunpack.c.0.s8 %v9236
      %v9238 = vlaneseq
      %v9239 = vshrl.u32 %v9238, 7
      %v9240 = vsub.s32 %v9237, %v9239
      %v9241 = vrot.slane %v9233, %v9240
      %v9243 = vunpack.c.l.s4 1966171168
      %v9244 = vunpack.c.0.s8 %v9243
      %v9245 = vlaneseq
      %v9246 = vshrl.u32 %v9245, 7
      %v9247 = vsub.s32 %v9244, %v9246
      %v9248 = vrot.slane %v9234, %v9247
      %v9249 = vcombine.low %v9241, %v9248
      %v9250 = vcombine.low %v8601, %v8602
      %v9251 = vcombine.low %v8617, %v8624
      %v9252 = vcombine.low %v8625, %v8640
      %v9253 = vcombine.low %v8647, %v8648
      %v9255 = vunpack.c.l.s4 1966171168
      %v9256 = vunpack.c.0.s8 %v9255
      %v9257 = vlaneseq
      %v9258 = vshrl.u32 %v9257, 7
      %v9259 = vsub.s32 %v9256, %v9258
      %v9260 = vrot.slane %v9250, %v9259
      %v9262 = vunpack.c.l.s4 1966171168
      %v9263 = vunpack.c.0.s8 %v9262
      %v9264 = vlaneseq
      %v9265 = vshrl.u32 %v9264, 7
      %v9266 = vsub.s32 %v9263, %v9265
      %v9267 = vrot.slane %v9251, %v9266
      %v9269 = vunpack.c.l.s4 1966171168
      %v9270 = vunpack.c.0.s8 %v9269
      %v9271 = vlaneseq
      %v9272 = vshrl.u32 %v9271, 7
      %v9273 = vsub.s32 %v9270, %v9272
      %v9274 = vrot.slane %v9252, %v9273
      %v9276 = vunpack.c.l.s4 1966171168
      %v9277 = vunpack.c.0.s8 %v9276
      %v9278 = vlaneseq
      %v9279 = vshrl.u32 %v9278, 7
      %v9280 = vsub.s32 %v9277, %v9279
      %v9281 = vrot.slane %v9253, %v9280
      %v9282 = vcombine.low %v9260, %v9267
      %v9283 = vcombine.low %v9274, %v9281
      %v9285 = vunpack.c.l.s4 1966171168
      %v9286 = vunpack.c.0.s8 %v9285
      %v9287 = vlaneseq
      %v9288 = vshrl.u32 %v9287, 7
      %v9289 = vsub.s32 %v9286, %v9288
      %v9290 = vrot.slane %v9282, %v9289
      %v9292 = vunpack.c.l.s4 1966171168
      %v9293 = vunpack.c.0.s8 %v9292
      %v9294 = vlaneseq
      %v9295 = vshrl.u32 %v9294, 7
      %v9296 = vsub.s32 %v9293, %v9295
      %v9297 = vrot.slane %v9283, %v9296
      %v9298 = vcombine.low %v9290, %v9297
      %v9299 = vcombine.low %v8649, %v8664
      %v9300 = vcombine.low %v8671, %v8672
      %v9301 = vcombine.low %v8687, %v8694
      %v9302 = vcombine.low %v8695, %v8696
      %v9304 = vunpack.c.l.s4 1966171168
      %v9305 = vunpack.c.0.s8 %v9304
      %v9306 = vlaneseq
      %v9307 = vshrl.u32 %v9306, 7
      %v9308 = vsub.s32 %v9305, %v9307
      %v9309 = vrot.slane %v9299, %v9308
      %v9311 = vunpack.c.l.s4 1966171168
      %v9312 = vunpack.c.0.s8 %v9311
      %v9313 = vlaneseq
      %v9314 = vshrl.u32 %v9313, 7
      %v9315 = vsub.s32 %v9312, %v9314
      %v9316 = vrot.slane %v9300, %v9315
      %v9318 = vunpack.c.l.s4 1966171168
      %v9319 = vunpack.c.0.s8 %v9318
      %v9320 = vlaneseq
      %v9321 = vshrl.u32 %v9320, 7
      %v9322 = vsub.s32 %v9319, %v9321
      %v9323 = vrot.slane %v9301, %v9322
      %v9325 = vunpack.c.l.s4 1966171168
      %v9326 = vunpack.c.0.s8 %v9325
      %v9327 = vlaneseq
      %v9328 = vshrl.u32 %v9327, 7
      %v9329 = vsub.s32 %v9326, %v9328
      %v9330 = vrot.slane %v9302, %v9329
      %v9331 = vcombine.low %v9309, %v9316
      %v9332 = vcombine.low %v9323, %v9330
      %v9334 = vunpack.c.l.s4 1966171168
      %v9335 = vunpack.c.0.s8 %v9334
      %v9336 = vlaneseq
      %v9337 = vshrl.u32 %v9336, 7
      %v9338 = vsub.s32 %v9335, %v9337
      %v9339 = vrot.slane %v9331, %v9338
      %v9341 = vunpack.c.l.s4 1966171168
      %v9342 = vunpack.c.0.s8 %v9341
      %v9343 = vlaneseq
      %v9344 = vshrl.u32 %v9343, 7
      %v9345 = vsub.s32 %v9342, %v9344
      %v9346 = vrot.slane %v9332, %v9345
      %v9347 = vcombine.low %v9339, %v9346
      %v9348 = vcombine.low %v8711, %v8718
      %v9349 = vcombine.low %v8719, %v8734
      %v9350 = vcombine.low %v8741, %v8742
      %v9351 = vcombine.low %v8743, %v8758
      %v9353 = vunpack.c.l.s4 1966171168
      %v9354 = vunpack.c.0.s8 %v9353
      %v9355 = vlaneseq
      %v9356 = vshrl.u32 %v9355, 7
      %v9357 = vsub.s32 %v9354, %v9356
      %v9358 = vrot.slane %v9348, %v9357
      %v9360 = vunpack.c.l.s4 1966171168
      %v9361 = vunpack.c.0.s8 %v9360
      %v9362 = vlaneseq
      %v9363 = vshrl.u32 %v9362, 7
      %v9364 = vsub.s32 %v9361, %v9363
      %v9365 = vrot.slane %v9349, %v9364
      %v9367 = vunpack.c.l.s4 1966171168
      %v9368 = vunpack.c.0.s8 %v9367
      %v9369 = vlaneseq
      %v9370 = vshrl.u32 %v9369, 7
      %v9371 = vsub.s32 %v9368, %v9370
      %v9372 = vrot.slane %v9350, %v9371
      %v9374 = vunpack.c.l.s4 1966171168
      %v9375 = vunpack.c.0.s8 %v9374
      %v9376 = vlaneseq
      %v9377 = vshrl.u32 %v9376, 7
      %v9378 = vsub.s32 %v9375, %v9377
      %v9379 = vrot.slane %v9351, %v9378
      %v9380 = vcombine.low %v9358, %v9365
      %v9381 = vcombine.low %v9372, %v9379
      %v9383 = vunpack.c.l.s4 1966171168
      %v9384 = vunpack.c.0.s8 %v9383
      %v9385 = vlaneseq
      %v9386 = vshrl.u32 %v9385, 7
      %v9387 = vsub.s32 %v9384, %v9386
      %v9388 = vrot.slane %v9380, %v9387
      %v9390 = vunpack.c.l.s4 1966171168
      %v9391 = vunpack.c.0.s8 %v9390
      %v9392 = vlaneseq
      %v9393 = vshrl.u32 %v9392, 7
      %v9394 = vsub.s32 %v9391, %v9393
      %v9395 = vrot.slane %v9381, %v9394
      %v9396 = vcombine.low %v9388, %v9395
      %v9397 = vcombine.low %v8765, %v8766
      %v9398 = vcombine.low %v8781, %v8788
      %v9399 = vcombine.low %v8789, %v8790
      %v9400 = vcombine.low %v8805, %v8812
      %v9402 = vunpack.c.l.s4 1966171168
      %v9403 = vunpack.c.0.s8 %v9402
      %v9404 = vlaneseq
      %v9405 = vshrl.u32 %v9404, 7
      %v9406 = vsub.s32 %v9403, %v9405
      %v9407 = vrot.slane %v9397, %v9406
      %v9409 = vunpack.c.l.s4 1966171168
      %v9410 = vunpack.c.0.s8 %v9409
      %v9411 = vlaneseq
      %v9412 = vshrl.u32 %v9411, 7
      %v9413 = vsub.s32 %v9410, %v9412
      %v9414 = vrot.slane %v9398, %v9413
      %v9416 = vunpack.c.l.s4 1966171168
      %v9417 = vunpack.c.0.s8 %v9416
      %v9418 = vlaneseq
      %v9419 = vshrl.u32 %v9418, 7
      %v9420 = vsub.s32 %v9417, %v9419
      %v9421 = vrot.slane %v9399, %v9420
      %v9423 = vunpack.c.l.s4 1966171168
      %v9424 = vunpack.c.0.s8 %v9423
      %v9425 = vlaneseq
      %v9426 = vshrl.u32 %v9425, 7
      %v9427 = vsub.s32 %v9424, %v9426
      %v9428 = vrot.slane %v9400, %v9427
      %v9429 = vcombine.low %v9407, %v9414
      %v9430 = vcombine.low %v9421, %v9428
      %v9432 = vunpack.c.l.s4 1966171168
      %v9433 = vunpack.c.0.s8 %v9432
      %v9434 = vlaneseq
      %v9435 = vshrl.u32 %v9434, 7
      %v9436 = vsub.s32 %v9433, %v9435
      %v9437 = vrot.slane %v9429, %v9436
      %v9439 = vunpack.c.l.s4 1966171168
      %v9440 = vunpack.c.0.s8 %v9439
      %v9441 = vlaneseq
      %v9442 = vshrl.u32 %v9441, 7
      %v9443 = vsub.s32 %v9440, %v9442
      %v9444 = vrot.slane %v9430, %v9443
      %v9445 = vcombine.low %v9437, %v9444
      %v9446 = vcombine.low %v8813, %v8828
      %v9447 = vcombine.low %v8835, %v8836
      %v9448 = vcombine.low %v8837, %v8852
      %v9449 = vcombine.low %v8859, %v8860
      %v9451 = vunpack.c.l.s4 1966171168
      %v9452 = vunpack.c.0.s8 %v9451
      %v9453 = vlaneseq
      %v9454 = vshrl.u32 %v9453, 7
      %v9455 = vsub.s32 %v9452, %v9454
      %v9456 = vrot.slane %v9446, %v9455
      %v9458 = vunpack.c.l.s4 1966171168
      %v9459 = vunpack.c.0.s8 %v9458
      %v9460 = vlaneseq
      %v9461 = vshrl.u32 %v9460, 7
      %v9462 = vsub.s32 %v9459, %v9461
      %v9463 = vrot.slane %v9447, %v9462
      %v9465 = vunpack.c.l.s4 1966171168
      %v9466 = vunpack.c.0.s8 %v9465
      %v9467 = vlaneseq
      %v9468 = vshrl.u32 %v9467, 7
      %v9469 = vsub.s32 %v9466, %v9468
      %v9470 = vrot.slane %v9448, %v9469
      %v9472 = vunpack.c.l.s4 1966171168
      %v9473 = vunpack.c.0.s8 %v9472
      %v9474 = vlaneseq
      %v9475 = vshrl.u32 %v9474, 7
      %v9476 = vsub.s32 %v9473, %v9475
      %v9477 = vrot.slane %v9449, %v9476
      %v9478 = vcombine.low %v9456, %v9463
      %v9479 = vcombine.low %v9470, %v9477
      %v9481 = vunpack.c.l.s4 1966171168
      %v9482 = vunpack.c.0.s8 %v9481
      %v9483 = vlaneseq
      %v9484 = vshrl.u32 %v9483, 7
      %v9485 = vsub.s32 %v9482, %v9484
      %v9486 = vrot.slane %v9478, %v9485
      %v9488 = vunpack.c.l.s4 1966171168
      %v9489 = vunpack.c.0.s8 %v9488
      %v9490 = vlaneseq
      %v9491 = vshrl.u32 %v9490, 7
      %v9492 = vsub.s32 %v9489, %v9491
      %v9493 = vrot.slane %v9479, %v9492
      %v9494 = vcombine.low %v9486, %v9493
      %v9495 = vcombine.low %v8875, %v8882
      %v9496 = vcombine.low %v8883, %v8884
      %v9497 = vcombine.low %v8899, %v8906
      %v9498 = vcombine.low %v8907, %v8922
      %v9500 = vunpack.c.l.s4 1966171168
      %v9501 = vunpack.c.0.s8 %v9500
      %v9502 = vlaneseq
      %v9503 = vshrl.u32 %v9502, 7
      %v9504 = vsub.s32 %v9501, %v9503
      %v9505 = vrot.slane %v9495, %v9504
      %v9507 = vunpack.c.l.s4 1966171168
      %v9508 = vunpack.c.0.s8 %v9507
      %v9509 = vlaneseq
      %v9510 = vshrl.u32 %v9509, 7
      %v9511 = vsub.s32 %v9508, %v9510
      %v9512 = vrot.slane %v9496, %v9511
      %v9514 = vunpack.c.l.s4 1966171168
      %v9515 = vunpack.c.0.s8 %v9514
      %v9516 = vlaneseq
      %v9517 = vshrl.u32 %v9516, 7
      %v9518 = vsub.s32 %v9515, %v9517
      %v9519 = vrot.slane %v9497, %v9518
      %v9521 = vunpack.c.l.s4 1966171168
      %v9522 = vunpack.c.0.s8 %v9521
      %v9523 = vlaneseq
      %v9524 = vshrl.u32 %v9523, 7
      %v9525 = vsub.s32 %v9522, %v9524
      %v9526 = vrot.slane %v9498, %v9525
      %v9527 = vcombine.low %v9505, %v9512
      %v9528 = vcombine.low %v9519, %v9526
      %v9530 = vunpack.c.l.s4 1966171168
      %v9531 = vunpack.c.0.s8 %v9530
      %v9532 = vlaneseq
      %v9533 = vshrl.u32 %v9532, 7
      %v9534 = vsub.s32 %v9531, %v9533
      %v9535 = vrot.slane %v9527, %v9534
      %v9537 = vunpack.c.l.s4 1966171168
      %v9538 = vunpack.c.0.s8 %v9537
      %v9539 = vlaneseq
      %v9540 = vshrl.u32 %v9539, 7
      %v9541 = vsub.s32 %v9538, %v9540
      %v9542 = vrot.slane %v9528, %v9541
      %v9543 = vcombine.low %v9535, %v9542
      %v9544 = vcombine.low %v8929, %v8930
      %v9545 = vcombine.low %v8931, %v8946
      %v9546 = vcombine.low %v8953, %v8954
      %v9547 = vcombine.low %v8969, %v8976
      %v9549 = vunpack.c.l.s4 1966171168
      %v9550 = vunpack.c.0.s8 %v9549
      %v9551 = vlaneseq
      %v9552 = vshrl.u32 %v9551, 7
      %v9553 = vsub.s32 %v9550, %v9552
      %v9554 = vrot.slane %v9544, %v9553
      %v9556 = vunpack.c.l.s4 1966171168
      %v9557 = vunpack.c.0.s8 %v9556
      %v9558 = vlaneseq
      %v9559 = vshrl.u32 %v9558, 7
      %v9560 = vsub.s32 %v9557, %v9559
      %v9561 = vrot.slane %v9545, %v9560
      %v9563 = vunpack.c.l.s4 1966171168
      %v9564 = vunpack.c.0.s8 %v9563
      %v9565 = vlaneseq
      %v9566 = vshrl.u32 %v9565, 7
      %v9567 = vsub.s32 %v9564, %v9566
      %v9568 = vrot.slane %v9546, %v9567
      %v9570 = vunpack.c.l.s4 1966171168
      %v9571 = vunpack.c.0.s8 %v9570
      %v9572 = vlaneseq
      %v9573 = vshrl.u32 %v9572, 7
      %v9574 = vsub.s32 %v9571, %v9573
      %v9575 = vrot.slane %v9547, %v9574
      %v9576 = vcombine.low %v9554, %v9561
      %v9577 = vcombine.low %v9568, %v9575
      %v9579 = vunpack.c.l.s4 1966171168
      %v9580 = vunpack.c.0.s8 %v9579
      %v9581 = vlaneseq
      %v9582 = vshrl.u32 %v9581, 7
      %v9583 = vsub.s32 %v9580, %v9582
      %v9584 = vrot.slane %v9576, %v9583
      %v9586 = vunpack.c.l.s4 1966171168
      %v9587 = vunpack.c.0.s8 %v9586
      %v9588 = vlaneseq
      %v9589 = vshrl.u32 %v9588, 7
      %v9590 = vsub.s32 %v9587, %v9589
      %v9591 = vrot.slane %v9577, %v9590
      %v9592 = vcombine.low %v9584, %v9591
      %v9593 = vcombine.low %v8977, %v8978
      %v9594 = vcombine.low %v8993, %v9000
      %v9595 = vcombine.low %v9001, %v9016
      %v9596 = vcombine.low %v9023, %v9024
      %v9598 = vunpack.c.l.s4 1966171168
      %v9599 = vunpack.c.0.s8 %v9598
      %v9600 = vlaneseq
      %v9601 = vshrl.u32 %v9600, 7
      %v9602 = vsub.s32 %v9599, %v9601
      %v9603 = vrot.slane %v9593, %v9602
      %v9605 = vunpack.c.l.s4 1966171168
      %v9606 = vunpack.c.0.s8 %v9605
      %v9607 = vlaneseq
      %v9608 = vshrl.u32 %v9607, 7
      %v9609 = vsub.s32 %v9606, %v9608
      %v9610 = vrot.slane %v9594, %v9609
      %v9612 = vunpack.c.l.s4 1966171168
      %v9613 = vunpack.c.0.s8 %v9612
      %v9614 = vlaneseq
      %v9615 = vshrl.u32 %v9614, 7
      %v9616 = vsub.s32 %v9613, %v9615
      %v9617 = vrot.slane %v9595, %v9616
      %v9619 = vunpack.c.l.s4 1966171168
      %v9620 = vunpack.c.0.s8 %v9619
      %v9621 = vlaneseq
      %v9622 = vshrl.u32 %v9621, 7
      %v9623 = vsub.s32 %v9620, %v9622
      %v9624 = vrot.slane %v9596, %v9623
      %v9625 = vcombine.low %v9603, %v9610
      %v9626 = vcombine.low %v9617, %v9624
      %v9628 = vunpack.c.l.s4 1966171168
      %v9629 = vunpack.c.0.s8 %v9628
      %v9630 = vlaneseq
      %v9631 = vshrl.u32 %v9630, 7
      %v9632 = vsub.s32 %v9629, %v9631
      %v9633 = vrot.slane %v9625, %v9632
      %v9635 = vunpack.c.l.s4 1966171168
      %v9636 = vunpack.c.0.s8 %v9635
      %v9637 = vlaneseq
      %v9638 = vshrl.u32 %v9637, 7
      %v9639 = vsub.s32 %v9636, %v9638
      %v9640 = vrot.slane %v9626, %v9639
      %v9641 = vcombine.low %v9633, %v9640
      %v9642 = vcombine.low %v9025, %v9040
      %v9643 = vcombine.low %v9047, %v9048
      %v9644 = vcombine.low %v9063, %v9070
      %v9645 = vcombine.low %v9071, %v9072
      %v9647 = vunpack.c.l.s4 1966171168
      %v9648 = vunpack.c.0.s8 %v9647
      %v9649 = vlaneseq
      %v9650 = vshrl.u32 %v9649, 7
      %v9651 = vsub.s32 %v9648, %v9650
      %v9652 = vrot.slane %v9642, %v9651
      %v9654 = vunpack.c.l.s4 1966171168
      %v9655 = vunpack.c.0.s8 %v9654
      %v9656 = vlaneseq
      %v9657 = vshrl.u32 %v9656, 7
      %v9658 = vsub.s32 %v9655, %v9657
      %v9659 = vrot.slane %v9643, %v9658
      %v9661 = vunpack.c.l.s4 1966171168
      %v9662 = vunpack.c.0.s8 %v9661
      %v9663 = vlaneseq
      %v9664 = vshrl.u32 %v9663, 7
      %v9665 = vsub.s32 %v9662, %v9664
      %v9666 = vrot.slane %v9644, %v9665
      %v9668 = vunpack.c.l.s4 1966171168
      %v9669 = vunpack.c.0.s8 %v9668
      %v9670 = vlaneseq
      %v9671 = vshrl.u32 %v9670, 7
      %v9672 = vsub.s32 %v9669, %v9671
      %v9673 = vrot.slane %v9645, %v9672
      %v9674 = vcombine.low %v9652, %v9659
      %v9675 = vcombine.low %v9666, %v9673
      %v9677 = vunpack.c.l.s4 1966171168
      %v9678 = vunpack.c.0.s8 %v9677
      %v9679 = vlaneseq
      %v9680 = vshrl.u32 %v9679, 7
      %v9681 = vsub.s32 %v9678, %v9680
      %v9682 = vrot.slane %v9674, %v9681
      %v9684 = vunpack.c.l.s4 1966171168
      %v9685 = vunpack.c.0.s8 %v9684
      %v9686 = vlaneseq
      %v9687 = vshrl.u32 %v9686, 7
      %v9688 = vsub.s32 %v9685, %v9687
      %v9689 = vrot.slane %v9675, %v9688
      %v9690 = vcombine.low %v9682, %v9689
      %v9691 = vcombine.low %v9087, %v9094
      %v9692 = vcombine.low %v9095, %v9110
      %v9693 = vcombine.low %v9117, %v9118
      %v9694 = vcombine.low %v9119, %v9134
      %v9696 = vunpack.c.l.s4 1966171168
      %v9697 = vunpack.c.0.s8 %v9696
      %v9698 = vlaneseq
      %v9699 = vshrl.u32 %v9698, 7
      %v9700 = vsub.s32 %v9697, %v9699
      %v9701 = vrot.slane %v9691, %v9700
      %v9703 = vunpack.c.l.s4 1966171168
      %v9704 = vunpack.c.0.s8 %v9703
      %v9705 = vlaneseq
      %v9706 = vshrl.u32 %v9705, 7
      %v9707 = vsub.s32 %v9704, %v9706
      %v9708 = vrot.slane %v9692, %v9707
      %v9710 = vunpack.c.l.s4 1966171168
      %v9711 = vunpack.c.0.s8 %v9710
      %v9712 = vlaneseq
      %v9713 = vshrl.u32 %v9712, 7
      %v9714 = vsub.s32 %v9711, %v9713
      %v9715 = vrot.slane %v9693, %v9714
      %v9717 = vunpack.c.l.s4 1966171168
      %v9718 = vunpack.c.0.s8 %v9717
      %v9719 = vlaneseq
      %v9720 = vshrl.u32 %v9719, 7
      %v9721 = vsub.s32 %v9718, %v9720
      %v9722 = vrot.slane %v9694, %v9721
      %v9723 = vcombine.low %v9701, %v9708
      %v9724 = vcombine.low %v9715, %v9722
      %v9726 = vunpack.c.l.s4 1966171168
      %v9727 = vunpack.c.0.s8 %v9726
      %v9728 = vlaneseq
      %v9729 = vshrl.u32 %v9728, 7
      %v9730 = vsub.s32 %v9727, %v9729
      %v9731 = vrot.slane %v9723, %v9730
      %v9733 = vunpack.c.l.s4 1966171168
      %v9734 = vunpack.c.0.s8 %v9733
      %v9735 = vlaneseq
      %v9736 = vshrl.u32 %v9735, 7
      %v9737 = vsub.s32 %v9734, %v9736
      %v9738 = vrot.slane %v9724, %v9737
      %v9739 = vcombine.low %v9731, %v9738
      %v9740 = vcombine.low %v9141, %v9142
      %v9742 = vunpack.c.l.s4 1966171168
      %v9743 = vunpack.c.0.s8 %v9742
      %v9744 = vlaneseq
      %v9745 = vshrl.u32 %v9744, 7
      %v9746 = vsub.s32 %v9743, %v9745
      %v9747 = vrot.slane %v9740, %v9746
      %v9749 = vunpack.c.l.s4 1966171168
      %v9750 = vunpack.c.0.s8 %v9749
      %v9751 = vlaneseq
      %v9752 = vshrl.u32 %v9751, 7
      %v9753 = vsub.s32 %v9750, %v9752
      %v9754 = vrot.slane %v9747, %v9753
      %v9764 = vunpack.c.l.b16 %v9143
      %v9765 = vunpack.c.l.b16 %v9144
      %v9766 = vunpack.c.l.b16 %v9145
      %v9767 = vunpack.c.l.b16 %v9146
      %v9768 = vunpack.c.l.b16 %v9147
      %v9769 = vunpack.c.l.b16 %v9148
      %v9770 = vunpack.c.l.b16 %v9149
      %v9771 = vunpack.c.l.b16 %v9150
      %v9772 = vunpack.c.l.b16 %v9151
      %v9773 = vpack.c.b16 %v9765, %v9764
      %v9774 = vpack.c.b16 %v9767, %v9766
      %v9775 = vpack.c.b16 %v9769, %v9768
      %v9776 = vpack.c.b16 %v9771, %v9770
      %v9777 = vpack.c.b16 %v9772, %v9772
      %v9783 = vsel %vm5784, %v9200, 0
      %v9786 = vsel %vm5784, %v9249, 0
      %v9789 = vsel %vm5784, %v9298, 0
      %v9792 = vsel %vm5784, %v9347, 0
      %v9795 = vsel %vm5784, %v9396, 0
      %v9798 = vsel %vm5784, %v9445, 0
      %v9801 = vsel %vm5784, %v9494, 0
      %v9804 = vsel %vm5784, %v9543, 0
      %v9807 = vsel %vm5784, %v9592, 0
      %v9810 = vsel %vm5784, %v9641, 0
      %v9813 = vsel %vm5784, %v9690, 0
      %v9816 = vsel %vm5784, %v9739, 0
      %v9819 = vsel %vm5784, %v9754, 0
      %v9822 = vsel %vm1932, %v9777, 0
      %9824 = vmatprep.subr.bf16.mxu0 0
      %9825 = vmatpush1.bf16.msra.mxu0 %v9773
      %9826 = vmatprep.subr.bf16.mxu0 0
      %9827 = vmatpush1.bf16.msra.mxu0 %v9774
      %9828 = vmatprep.subr.bf16.mxu0 0
      %9829 = vmatpush1.bf16.msra.mxu0 %v9775
      %9830 = vmatprep.subr.bf16.mxu0 0
      %9831 = vmatpush1.bf16.msra.mxu0 %v9776
      %9832 = vmatprep.subr.bf16.mxu0 0
      %9833 = vmatpush1.bf16.msra.mxu0 %v9822
      %9834 = vmatprep.subr.bf16.mxu0 0
      %9835 = vmatpush1.bf16.msra.mxu0 0
      %9836 = vmatprep.subr.bf16.mxu0 0
      %9837 = vmatpush1.bf16.msra.mxu0 0
      %9838 = vmatprep.subr.bf16.mxu0 0
      %9839 = vmatpush1.bf16.msra.mxu0 0
      %9840 = vmatprep.subr.bf16.mxu0 0
      %9841 = vmatpush1.bf16.msra.mxu0 0
      %9842 = vmatprep.subr.bf16.mxu0 0
      %9843 = vmatpush1.bf16.msra.mxu0 0
      %9844 = vmatprep.subr.bf16.mxu0 0
      %9845 = vmatpush1.bf16.msra.mxu0 0
      %9846 = vmatprep.subr.bf16.mxu0 0
      %9847 = vmatpush1.bf16.msra.mxu0 0
      %9848 = vmatprep.subr.bf16.mxu0 0
      %9849 = vmatpush1.bf16.msra.mxu0 0
      %9850 = vmatprep.subr.bf16.mxu0 0
      %9851 = vmatpush1.bf16.msra.mxu0 0
      %9852 = vmatprep.subr.bf16.mxu0 0
      %9853 = vmatpush1.bf16.msra.mxu0 0
      %9854 = vmatprep.subr.bf16.mxu0 0
      %9855 = vmatpush1.bf16.msra.mxu0 0
      %9856 = vmatprep.mubr.bf16.mxu0 0
      %9857 = vmatmul.mubr.bf16.gmra.mrb[0].mxu0 %v9783
      %v9858 = vpop.f32.mrb[0].mxu0
      %v9859 = vadd.f32 0.0, %v9858
      %v9860 = vpop.f32.mrb[0].mxu0
      %v9861 = vpop.f32.mrb[0].mxu0
      %v9862 = vadd.f32 0.0, %v9861
      %v9863 = vpop.f32.mrb[0].mxu0
      %9864 = vmatprep.mubr.bf16.mxu0 0
      %9865 = vmatmul.mubr.bf16.gmra.mrb[0].mxu0 %v9786
      %v9866 = vpop.f32.mrb[0].mxu0
      %v9867 = vadd.f32 0.0, %v9866
      %v9868 = vpop.f32.mrb[0].mxu0
      %v9869 = vpop.f32.mrb[0].mxu0
      %v9870 = vadd.f32 0.0, %v9869
      %v9871 = vpop.f32.mrb[0].mxu0
      %9872 = vmatprep.mubr.bf16.mxu0 0
      %9873 = vmatmul.mubr.bf16.gmra.mrb[0].mxu0 %v9789
      %v9874 = vpop.f32.mrb[0].mxu0
      %v9875 = vadd.f32 0.0, %v9874
      %v9876 = vpop.f32.mrb[0].mxu0
      %v9877 = vpop.f32.mrb[0].mxu0
      %v9878 = vadd.f32 0.0, %v9877
      %v9879 = vpop.f32.mrb[0].mxu0
      %9880 = vmatprep.mubr.bf16.mxu0 0
      %9881 = vmatmul.mubr.bf16.gmra.mrb[0].mxu0 %v9792
      %v9882 = vpop.f32.mrb[0].mxu0
      %v9883 = vadd.f32 0.0, %v9882
      %v9884 = vpop.f32.mrb[0].mxu0
      %v9885 = vpop.f32.mrb[0].mxu0
      %v9886 = vadd.f32 0.0, %v9885
      %v9887 = vpop.f32.mrb[0].mxu0
      %9888 = vmatprep.mubr.bf16.mxu0 0
      %9889 = vmatmul.mubr.bf16.gmra.mrb[0].mxu0 %v9795
      %v9890 = vpop.f32.mrb[0].mxu0
      %v9891 = vadd.f32 0.0, %v9890
      %v9892 = vpop.f32.mrb[0].mxu0
      %v9893 = vpop.f32.mrb[0].mxu0
      %v9894 = vadd.f32 0.0, %v9893
      %v9895 = vpop.f32.mrb[0].mxu0
      %9896 = vmatprep.mubr.bf16.mxu0 0
      %9897 = vmatmul.mubr.bf16.gmra.mrb[0].mxu0 %v9798
      %v9898 = vpop.f32.mrb[0].mxu0
      %v9899 = vadd.f32 0.0, %v9898
      %v9900 = vpop.f32.mrb[0].mxu0
      %v9901 = vpop.f32.mrb[0].mxu0
      %v9902 = vadd.f32 0.0, %v9901
      %v9903 = vpop.f32.mrb[0].mxu0
      %9904 = vmatprep.mubr.bf16.mxu0 0
      %9905 = vmatmul.mubr.bf16.gmra.mrb[0].mxu0 %v9801
      %v9906 = vpop.f32.mrb[0].mxu0
      %v9907 = vadd.f32 0.0, %v9906
      %v9908 = vpop.f32.mrb[0].mxu0
      %v9909 = vpop.f32.mrb[0].mxu0
      %v9910 = vadd.f32 0.0, %v9909
      %v9911 = vpop.f32.mrb[0].mxu0
      %9912 = vmatprep.mubr.bf16.mxu0 0
      %9913 = vmatmul.mubr.bf16.gmra.mrb[0].mxu0 %v9804
      %v9914 = vpop.f32.mrb[0].mxu0
      %v9915 = vadd.f32 0.0, %v9914
      %v9916 = vpop.f32.mrb[0].mxu0
      %v9917 = vpop.f32.mrb[0].mxu0
      %v9918 = vadd.f32 0.0, %v9917
      %v9919 = vpop.f32.mrb[0].mxu0
      %9920 = vmatprep.mubr.bf16.mxu0 0
      %9921 = vmatmul.mubr.bf16.gmra.mrb[0].mxu0 %v9807
      %v9922 = vpop.f32.mrb[0].mxu0
      %v9923 = vadd.f32 0.0, %v9922
      %v9924 = vpop.f32.mrb[0].mxu0
      %v9925 = vpop.f32.mrb[0].mxu0
      %v9926 = vadd.f32 0.0, %v9925
      %v9927 = vpop.f32.mrb[0].mxu0
      %9928 = vmatprep.mubr.bf16.mxu0 0
      %9929 = vmatmul.mubr.bf16.gmra.mrb[0].mxu0 %v9810
      %v9930 = vpop.f32.mrb[0].mxu0
      %v9931 = vadd.f32 0.0, %v9930
      %v9932 = vpop.f32.mrb[0].mxu0
      %v9933 = vpop.f32.mrb[0].mxu0
      %v9934 = vadd.f32 0.0, %v9933
      %v9935 = vpop.f32.mrb[0].mxu0
      %9936 = vmatprep.mubr.bf16.mxu0 0
      %9937 = vmatmul.mubr.bf16.gmra.mrb[0].mxu0 %v9813
      %v9938 = vpop.f32.mrb[0].mxu0
      %v9939 = vadd.f32 0.0, %v9938
      %v9940 = vpop.f32.mrb[0].mxu0
      %v9941 = vpop.f32.mrb[0].mxu0
      %v9942 = vadd.f32 0.0, %v9941
      %v9943 = vpop.f32.mrb[0].mxu0
      %9944 = vmatprep.mubr.bf16.mxu0 0
      %9945 = vmatmul.mubr.bf16.gmra.mrb[0].mxu0 %v9816
      %v9946 = vpop.f32.mrb[0].mxu0
      %v9947 = vadd.f32 0.0, %v9946
      %v9948 = vpop.f32.mrb[0].mxu0
      %v9949 = vpop.f32.mrb[0].mxu0
      %v9950 = vadd.f32 0.0, %v9949
      %v9951 = vpop.f32.mrb[0].mxu0
      %9952 = vmatprep.mubr.bf16.mxu0 0
      %9953 = vmatmul.mubr.bf16.gmra.mrb[0].mxu0 %v9819
      %v9954 = vpop.f32.mrb[0].mxu0
      %v9955 = vadd.f32 0.0, %v9954
      %v9956 = vpop.f32.mrb[0].mxu0
      %v9957 = vpop.f32.mrb[0].mxu0
      %v9958 = vpop.f32.mrb[0].mxu0
      %9959 = vdwg.mxu0
      %v9960 = vld [vmem:[%s14] sm:$0x1]
      %v9962 = vlaneseq
      %v9963 = vshrl.u32 %v9962, 7
      %v9964 = vsub.s32 0, %v9963
      %v9965 = vrot.slane %v9960, %v9964
      %v9967 = vmul.f32 %v9859, %v9965
      %v9968 = vmul.f32 %v9862, %v9965
      %v9969 = vmul.f32 %v9867, %v9965
      %v9970 = vmul.f32 %v9870, %v9965
      %v9971 = vmul.f32 %v9875, %v9965
      %v9972 = vmul.f32 %v9878, %v9965
      %v9973 = vmul.f32 %v9883, %v9965
      %v9974 = vmul.f32 %v9886, %v9965
      %v9975 = vmul.f32 %v9891, %v9965
      %v9976 = vmul.f32 %v9894, %v9965
      %v9977 = vmul.f32 %v9899, %v9965
      %v9978 = vmul.f32 %v9902, %v9965
      %v9979 = vmul.f32 %v9907, %v9965
      %v9980 = vmul.f32 %v9910, %v9965
      %v9981 = vmul.f32 %v9915, %v9965
      %v9982 = vmul.f32 %v9918, %v9965
      %v9983 = vmul.f32 %v9923, %v9965
      %v9984 = vmul.f32 %v9926, %v9965
      %v9985 = vmul.f32 %v9931, %v9965
      %v9986 = vmul.f32 %v9934, %v9965
      %v9987 = vmul.f32 %v9939, %v9965
      %v9988 = vmul.f32 %v9942, %v9965
      %v9989 = vmul.f32 %v9947, %v9965
      %v9990 = vmul.f32 %v9950, %v9965
      %v9991 = vmul.f32 %v9955, %v9965
      %v9992 = vld [vmem:[%s15] sm:$0x1]
      %v9994 = vlaneseq
      %v9995 = vshrl.u32 %v9994, 7
      %v9996 = vsub.s32 0, %v9995
      %v9997 = vrot.slane %v9992, %v9996
      %v9999 = vadd.f32 %v9967, %v9997
      %v10000 = vadd.f32 %v9968, %v9997
      %v10001 = vadd.f32 %v9969, %v9997
      %v10002 = vadd.f32 %v9970, %v9997
      %v10003 = vadd.f32 %v9971, %v9997
      %v10004 = vadd.f32 %v9972, %v9997
      %v10005 = vadd.f32 %v9973, %v9997
      %v10006 = vadd.f32 %v9974, %v9997
      %v10007 = vadd.f32 %v9975, %v9997
      %v10008 = vadd.f32 %v9976, %v9997
      %v10009 = vadd.f32 %v9977, %v9997
      %v10010 = vadd.f32 %v9978, %v9997
      %v10011 = vadd.f32 %v9979, %v9997
      %v10012 = vadd.f32 %v9980, %v9997
      %v10013 = vadd.f32 %v9981, %v9997
      %v10014 = vadd.f32 %v9982, %v9997
      %v10015 = vadd.f32 %v9983, %v9997
      %v10016 = vadd.f32 %v9984, %v9997
      %v10017 = vadd.f32 %v9985, %v9997
      %v10018 = vadd.f32 %v9986, %v9997
      %v10019 = vadd.f32 %v9987, %v9997
      %v10020 = vadd.f32 %v9988, %v9997
      %v10021 = vadd.f32 %v9989, %v9997
      %v10022 = vadd.f32 %v9990, %v9997
      %v10023 = vadd.f32 %v9991, %v9997
      %v10024 = vmax.f32 %v9999, 0.0
      %v10025 = vmax.f32 %v10000, 0.0
      %v10026 = vmax.f32 %v10001, 0.0
      %v10027 = vmax.f32 %v10002, 0.0
      %v10028 = vmax.f32 %v10003, 0.0
      %v10029 = vmax.f32 %v10004, 0.0
      %v10030 = vmax.f32 %v10005, 0.0
      %v10031 = vmax.f32 %v10006, 0.0
      %v10032 = vmax.f32 %v10007, 0.0
      %v10033 = vmax.f32 %v10008, 0.0
      %v10034 = vmax.f32 %v10009, 0.0
      %v10035 = vmax.f32 %v10010, 0.0
      %v10036 = vmax.f32 %v10011, 0.0
      %v10037 = vmax.f32 %v10012, 0.0
      %v10038 = vmax.f32 %v10013, 0.0
      %v10039 = vmax.f32 %v10014, 0.0
      %v10040 = vmax.f32 %v10015, 0.0
      %v10041 = vmax.f32 %v10016, 0.0
      %v10042 = vmax.f32 %v10017, 0.0
      %v10043 = vmax.f32 %v10018, 0.0
      %v10044 = vmax.f32 %v10019, 0.0
      %v10045 = vmax.f32 %v10020, 0.0
      %v10046 = vmax.f32 %v10021, 0.0
      %v10047 = vmax.f32 %v10022, 0.0
      %v10048 = vmax.f32 %v10023, 0.0
      %v10074 = vcombine.high %v10024, %v10024
      %v10076 = vunpack.c.l.s4 1983009808
      %v10077 = vunpack.c.0.s8 %v10076
      %v10078 = vlaneseq
      %v10079 = vshrl.u32 %v10078, 7
      %v10080 = vsub.s32 %v10077, %v10079
      %v10081 = vrot.slane %v10024, %v10080
      %v10083 = vunpack.c.l.s4 1983009808
      %v10084 = vunpack.c.0.s8 %v10083
      %v10085 = vlaneseq
      %v10086 = vshrl.u32 %v10085, 7
      %v10087 = vsub.s32 %v10084, %v10086
      %v10088 = vrot.slane %v10074, %v10087
      %v10089 = vcombine.high %v10081, %v10081
      %v10090 = vcombine.high %v10088, %v10088
      %v10091 = vcombine.high %v10025, %v10025
      %v10093 = vunpack.c.l.s4 1983009808
      %v10094 = vunpack.c.0.s8 %v10093
      %v10095 = vlaneseq
      %v10096 = vshrl.u32 %v10095, 7
      %v10097 = vsub.s32 %v10094, %v10096
      %v10098 = vrot.slane %v10025, %v10097
      %v10100 = vunpack.c.l.s4 1983009808
      %v10101 = vunpack.c.0.s8 %v10100
      %v10102 = vlaneseq
      %v10103 = vshrl.u32 %v10102, 7
      %v10104 = vsub.s32 %v10101, %v10103
      %v10105 = vrot.slane %v10091, %v10104
      %v10106 = vcombine.high %v10098, %v10098
      %v10107 = vcombine.high %v10105, %v10105
      %v10108 = vcombine.high %v10026, %v10026
      %v10110 = vunpack.c.l.s4 1983009808
      %v10111 = vunpack.c.0.s8 %v10110
      %v10112 = vlaneseq
      %v10113 = vshrl.u32 %v10112, 7
      %v10114 = vsub.s32 %v10111, %v10113
      %v10115 = vrot.slane %v10026, %v10114
      %v10117 = vunpack.c.l.s4 1983009808
      %v10118 = vunpack.c.0.s8 %v10117
      %v10119 = vlaneseq
      %v10120 = vshrl.u32 %v10119, 7
      %v10121 = vsub.s32 %v10118, %v10120
      %v10122 = vrot.slane %v10108, %v10121
      %v10123 = vcombine.high %v10115, %v10115
      %v10124 = vcombine.high %v10122, %v10122
      %v10125 = vcombine.high %v10027, %v10027
      %v10127 = vunpack.c.l.s4 1983009808
      %v10128 = vunpack.c.0.s8 %v10127
      %v10129 = vlaneseq
      %v10130 = vshrl.u32 %v10129, 7
      %v10131 = vsub.s32 %v10128, %v10130
      %v10132 = vrot.slane %v10027, %v10131
      %v10134 = vunpack.c.l.s4 1983009808
      %v10135 = vunpack.c.0.s8 %v10134
      %v10136 = vlaneseq
      %v10137 = vshrl.u32 %v10136, 7
      %v10138 = vsub.s32 %v10135, %v10137
      %v10139 = vrot.slane %v10125, %v10138
      %v10140 = vcombine.high %v10132, %v10132
      %v10141 = vcombine.high %v10139, %v10139
      %v10142 = vcombine.high %v10028, %v10028
      %v10144 = vunpack.c.l.s4 1983009808
      %v10145 = vunpack.c.0.s8 %v10144
      %v10146 = vlaneseq
      %v10147 = vshrl.u32 %v10146, 7
      %v10148 = vsub.s32 %v10145, %v10147
      %v10149 = vrot.slane %v10028, %v10148
      %v10151 = vunpack.c.l.s4 1983009808
      %v10152 = vunpack.c.0.s8 %v10151
      %v10153 = vlaneseq
      %v10154 = vshrl.u32 %v10153, 7
      %v10155 = vsub.s32 %v10152, %v10154
      %v10156 = vrot.slane %v10142, %v10155
      %v10157 = vcombine.high %v10149, %v10149
      %v10158 = vcombine.high %v10156, %v10156
      %v10159 = vcombine.high %v10029, %v10029
      %v10161 = vunpack.c.l.s4 1983009808
      %v10162 = vunpack.c.0.s8 %v10161
      %v10163 = vlaneseq
      %v10164 = vshrl.u32 %v10163, 7
      %v10165 = vsub.s32 %v10162, %v10164
      %v10166 = vrot.slane %v10029, %v10165
      %v10168 = vunpack.c.l.s4 1983009808
      %v10169 = vunpack.c.0.s8 %v10168
      %v10170 = vlaneseq
      %v10171 = vshrl.u32 %v10170, 7
      %v10172 = vsub.s32 %v10169, %v10171
      %v10173 = vrot.slane %v10159, %v10172
      %v10174 = vcombine.high %v10166, %v10166
      %v10175 = vcombine.high %v10173, %v10173
      %v10176 = vcombine.high %v10030, %v10030
      %v10178 = vunpack.c.l.s4 1983009808
      %v10179 = vunpack.c.0.s8 %v10178
      %v10180 = vlaneseq
      %v10181 = vshrl.u32 %v10180, 7
      %v10182 = vsub.s32 %v10179, %v10181
      %v10183 = vrot.slane %v10030, %v10182
      %v10185 = vunpack.c.l.s4 1983009808
      %v10186 = vunpack.c.0.s8 %v10185
      %v10187 = vlaneseq
      %v10188 = vshrl.u32 %v10187, 7
      %v10189 = vsub.s32 %v10186, %v10188
      %v10190 = vrot.slane %v10176, %v10189
      %v10191 = vcombine.high %v10183, %v10183
      %v10192 = vcombine.high %v10190, %v10190
      %v10193 = vcombine.high %v10031, %v10031
      %v10195 = vunpack.c.l.s4 1983009808
      %v10196 = vunpack.c.0.s8 %v10195
      %v10197 = vlaneseq
      %v10198 = vshrl.u32 %v10197, 7
      %v10199 = vsub.s32 %v10196, %v10198
      %v10200 = vrot.slane %v10031, %v10199
      %v10202 = vunpack.c.l.s4 1983009808
      %v10203 = vunpack.c.0.s8 %v10202
      %v10204 = vlaneseq
      %v10205 = vshrl.u32 %v10204, 7
      %v10206 = vsub.s32 %v10203, %v10205
      %v10207 = vrot.slane %v10193, %v10206
      %v10208 = vcombine.high %v10200, %v10200
      %v10209 = vcombine.high %v10207, %v10207
      %v10210 = vcombine.high %v10032, %v10032
      %v10212 = vunpack.c.l.s4 1983009808
      %v10213 = vunpack.c.0.s8 %v10212
      %v10214 = vlaneseq
      %v10215 = vshrl.u32 %v10214, 7
      %v10216 = vsub.s32 %v10213, %v10215
      %v10217 = vrot.slane %v10032, %v10216
      %v10219 = vunpack.c.l.s4 1983009808
      %v10220 = vunpack.c.0.s8 %v10219
      %v10221 = vlaneseq
      %v10222 = vshrl.u32 %v10221, 7
      %v10223 = vsub.s32 %v10220, %v10222
      %v10224 = vrot.slane %v10210, %v10223
      %v10225 = vcombine.high %v10217, %v10217
      %v10226 = vcombine.high %v10224, %v10224
      %v10227 = vcombine.high %v10033, %v10033
      %v10229 = vunpack.c.l.s4 1983009808
      %v10230 = vunpack.c.0.s8 %v10229
      %v10231 = vlaneseq
      %v10232 = vshrl.u32 %v10231, 7
      %v10233 = vsub.s32 %v10230, %v10232
      %v10234 = vrot.slane %v10033, %v10233
      %v10236 = vunpack.c.l.s4 1983009808
      %v10237 = vunpack.c.0.s8 %v10236
      %v10238 = vlaneseq
      %v10239 = vshrl.u32 %v10238, 7
      %v10240 = vsub.s32 %v10237, %v10239
      %v10241 = vrot.slane %v10227, %v10240
      %v10242 = vcombine.high %v10234, %v10234
      %v10243 = vcombine.high %v10241, %v10241
      %v10244 = vcombine.high %v10034, %v10034
      %v10246 = vunpack.c.l.s4 1983009808
      %v10247 = vunpack.c.0.s8 %v10246
      %v10248 = vlaneseq
      %v10249 = vshrl.u32 %v10248, 7
      %v10250 = vsub.s32 %v10247, %v10249
      %v10251 = vrot.slane %v10034, %v10250
      %v10253 = vunpack.c.l.s4 1983009808
      %v10254 = vunpack.c.0.s8 %v10253
      %v10255 = vlaneseq
      %v10256 = vshrl.u32 %v10255, 7
      %v10257 = vsub.s32 %v10254, %v10256
      %v10258 = vrot.slane %v10244, %v10257
      %v10259 = vcombine.high %v10251, %v10251
      %v10260 = vcombine.high %v10258, %v10258
      %v10261 = vcombine.high %v10035, %v10035
      %v10263 = vunpack.c.l.s4 1983009808
      %v10264 = vunpack.c.0.s8 %v10263
      %v10265 = vlaneseq
      %v10266 = vshrl.u32 %v10265, 7
      %v10267 = vsub.s32 %v10264, %v10266
      %v10268 = vrot.slane %v10035, %v10267
      %v10270 = vunpack.c.l.s4 1983009808
      %v10271 = vunpack.c.0.s8 %v10270
      %v10272 = vlaneseq
      %v10273 = vshrl.u32 %v10272, 7
      %v10274 = vsub.s32 %v10271, %v10273
      %v10275 = vrot.slane %v10261, %v10274
      %v10276 = vcombine.high %v10268, %v10268
      %v10277 = vcombine.high %v10275, %v10275
      %v10278 = vcombine.high %v10036, %v10036
      %v10280 = vunpack.c.l.s4 1983009808
      %v10281 = vunpack.c.0.s8 %v10280
      %v10282 = vlaneseq
      %v10283 = vshrl.u32 %v10282, 7
      %v10284 = vsub.s32 %v10281, %v10283
      %v10285 = vrot.slane %v10036, %v10284
      %v10287 = vunpack.c.l.s4 1983009808
      %v10288 = vunpack.c.0.s8 %v10287
      %v10289 = vlaneseq
      %v10290 = vshrl.u32 %v10289, 7
      %v10291 = vsub.s32 %v10288, %v10290
      %v10292 = vrot.slane %v10278, %v10291
      %v10293 = vcombine.high %v10285, %v10285
      %v10294 = vcombine.high %v10292, %v10292
      %v10295 = vcombine.high %v10037, %v10037
      %v10297 = vunpack.c.l.s4 1983009808
      %v10298 = vunpack.c.0.s8 %v10297
      %v10299 = vlaneseq
      %v10300 = vshrl.u32 %v10299, 7
      %v10301 = vsub.s32 %v10298, %v10300
      %v10302 = vrot.slane %v10037, %v10301
      %v10304 = vunpack.c.l.s4 1983009808
      %v10305 = vunpack.c.0.s8 %v10304
      %v10306 = vlaneseq
      %v10307 = vshrl.u32 %v10306, 7
      %v10308 = vsub.s32 %v10305, %v10307
      %v10309 = vrot.slane %v10295, %v10308
      %v10310 = vcombine.high %v10302, %v10302
      %v10311 = vcombine.high %v10309, %v10309
      %v10312 = vcombine.high %v10038, %v10038
      %v10314 = vunpack.c.l.s4 1983009808
      %v10315 = vunpack.c.0.s8 %v10314
      %v10316 = vlaneseq
      %v10317 = vshrl.u32 %v10316, 7
      %v10318 = vsub.s32 %v10315, %v10317
      %v10319 = vrot.slane %v10038, %v10318
      %v10321 = vunpack.c.l.s4 1983009808
      %v10322 = vunpack.c.0.s8 %v10321
      %v10323 = vlaneseq
      %v10324 = vshrl.u32 %v10323, 7
      %v10325 = vsub.s32 %v10322, %v10324
      %v10326 = vrot.slane %v10312, %v10325
      %v10327 = vcombine.high %v10319, %v10319
      %v10328 = vcombine.high %v10326, %v10326
      %v10329 = vcombine.high %v10039, %v10039
      %v10331 = vunpack.c.l.s4 1983009808
      %v10332 = vunpack.c.0.s8 %v10331
      %v10333 = vlaneseq
      %v10334 = vshrl.u32 %v10333, 7
      %v10335 = vsub.s32 %v10332, %v10334
      %v10336 = vrot.slane %v10039, %v10335
      %v10338 = vunpack.c.l.s4 1983009808
      %v10339 = vunpack.c.0.s8 %v10338
      %v10340 = vlaneseq
      %v10341 = vshrl.u32 %v10340, 7
      %v10342 = vsub.s32 %v10339, %v10341
      %v10343 = vrot.slane %v10329, %v10342
      %v10344 = vcombine.high %v10336, %v10336
      %v10345 = vcombine.high %v10343, %v10343
      %v10346 = vcombine.high %v10040, %v10040
      %v10348 = vunpack.c.l.s4 1983009808
      %v10349 = vunpack.c.0.s8 %v10348
      %v10350 = vlaneseq
      %v10351 = vshrl.u32 %v10350, 7
      %v10352 = vsub.s32 %v10349, %v10351
      %v10353 = vrot.slane %v10040, %v10352
      %v10355 = vunpack.c.l.s4 1983009808
      %v10356 = vunpack.c.0.s8 %v10355
      %v10357 = vlaneseq
      %v10358 = vshrl.u32 %v10357, 7
      %v10359 = vsub.s32 %v10356, %v10358
      %v10360 = vrot.slane %v10346, %v10359
      %v10361 = vcombine.high %v10353, %v10353
      %v10362 = vcombine.high %v10360, %v10360
      %v10363 = vcombine.high %v10041, %v10041
      %v10365 = vunpack.c.l.s4 1983009808
      %v10366 = vunpack.c.0.s8 %v10365
      %v10367 = vlaneseq
      %v10368 = vshrl.u32 %v10367, 7
      %v10369 = vsub.s32 %v10366, %v10368
      %v10370 = vrot.slane %v10041, %v10369
      %v10372 = vunpack.c.l.s4 1983009808
      %v10373 = vunpack.c.0.s8 %v10372
      %v10374 = vlaneseq
      %v10375 = vshrl.u32 %v10374, 7
      %v10376 = vsub.s32 %v10373, %v10375
      %v10377 = vrot.slane %v10363, %v10376
      %v10378 = vcombine.high %v10370, %v10370
      %v10379 = vcombine.high %v10377, %v10377
      %v10380 = vcombine.high %v10042, %v10042
      %v10382 = vunpack.c.l.s4 1983009808
      %v10383 = vunpack.c.0.s8 %v10382
      %v10384 = vlaneseq
      %v10385 = vshrl.u32 %v10384, 7
      %v10386 = vsub.s32 %v10383, %v10385
      %v10387 = vrot.slane %v10042, %v10386
      %v10389 = vunpack.c.l.s4 1983009808
      %v10390 = vunpack.c.0.s8 %v10389
      %v10391 = vlaneseq
      %v10392 = vshrl.u32 %v10391, 7
      %v10393 = vsub.s32 %v10390, %v10392
      %v10394 = vrot.slane %v10380, %v10393
      %v10395 = vcombine.high %v10387, %v10387
      %v10396 = vcombine.high %v10394, %v10394
      %v10397 = vcombine.high %v10043, %v10043
      %v10399 = vunpack.c.l.s4 1983009808
      %v10400 = vunpack.c.0.s8 %v10399
      %v10401 = vlaneseq
      %v10402 = vshrl.u32 %v10401, 7
      %v10403 = vsub.s32 %v10400, %v10402
      %v10404 = vrot.slane %v10043, %v10403
      %v10406 = vunpack.c.l.s4 1983009808
      %v10407 = vunpack.c.0.s8 %v10406
      %v10408 = vlaneseq
      %v10409 = vshrl.u32 %v10408, 7
      %v10410 = vsub.s32 %v10407, %v10409
      %v10411 = vrot.slane %v10397, %v10410
      %v10412 = vcombine.high %v10404, %v10404
      %v10413 = vcombine.high %v10411, %v10411
      %v10414 = vcombine.high %v10044, %v10044
      %v10416 = vunpack.c.l.s4 1983009808
      %v10417 = vunpack.c.0.s8 %v10416
      %v10418 = vlaneseq
      %v10419 = vshrl.u32 %v10418, 7
      %v10420 = vsub.s32 %v10417, %v10419
      %v10421 = vrot.slane %v10044, %v10420
      %v10423 = vunpack.c.l.s4 1983009808
      %v10424 = vunpack.c.0.s8 %v10423
      %v10425 = vlaneseq
      %v10426 = vshrl.u32 %v10425, 7
      %v10427 = vsub.s32 %v10424, %v10426
      %v10428 = vrot.slane %v10414, %v10427
      %v10429 = vcombine.high %v10421, %v10421
      %v10430 = vcombine.high %v10428, %v10428
      %v10431 = vcombine.high %v10045, %v10045
      %v10433 = vunpack.c.l.s4 1983009808
      %v10434 = vunpack.c.0.s8 %v10433
      %v10435 = vlaneseq
      %v10436 = vshrl.u32 %v10435, 7
      %v10437 = vsub.s32 %v10434, %v10436
      %v10438 = vrot.slane %v10045, %v10437
      %v10440 = vunpack.c.l.s4 1983009808
      %v10441 = vunpack.c.0.s8 %v10440
      %v10442 = vlaneseq
      %v10443 = vshrl.u32 %v10442, 7
      %v10444 = vsub.s32 %v10441, %v10443
      %v10445 = vrot.slane %v10431, %v10444
      %v10446 = vcombine.high %v10438, %v10438
      %v10447 = vcombine.high %v10445, %v10445
      %v10448 = vcombine.high %v10046, %v10046
      %v10450 = vunpack.c.l.s4 1983009808
      %v10451 = vunpack.c.0.s8 %v10450
      %v10452 = vlaneseq
      %v10453 = vshrl.u32 %v10452, 7
      %v10454 = vsub.s32 %v10451, %v10453
      %v10455 = vrot.slane %v10046, %v10454
      %v10457 = vunpack.c.l.s4 1983009808
      %v10458 = vunpack.c.0.s8 %v10457
      %v10459 = vlaneseq
      %v10460 = vshrl.u32 %v10459, 7
      %v10461 = vsub.s32 %v10458, %v10460
      %v10462 = vrot.slane %v10448, %v10461
      %v10463 = vcombine.high %v10455, %v10455
      %v10464 = vcombine.high %v10462, %v10462
      %v10465 = vcombine.high %v10047, %v10047
      %v10467 = vunpack.c.l.s4 1983009808
      %v10468 = vunpack.c.0.s8 %v10467
      %v10469 = vlaneseq
      %v10470 = vshrl.u32 %v10469, 7
      %v10471 = vsub.s32 %v10468, %v10470
      %v10472 = vrot.slane %v10047, %v10471
      %v10474 = vunpack.c.l.s4 1983009808
      %v10475 = vunpack.c.0.s8 %v10474
      %v10476 = vlaneseq
      %v10477 = vshrl.u32 %v10476, 7
      %v10478 = vsub.s32 %v10475, %v10477
      %v10479 = vrot.slane %v10465, %v10478
      %v10480 = vcombine.high %v10472, %v10472
      %v10481 = vcombine.high %v10479, %v10479
      %v10483 = vunpack.c.l.s4 1983009808
      %v10484 = vunpack.c.0.s8 %v10483
      %v10485 = vlaneseq
      %v10486 = vshrl.u32 %v10485, 7
      %v10487 = vsub.s32 %v10484, %v10486
      %v10488 = vrot.slane %v10048, %v10487
      %v10489 = vcombine.high %v10488, %v10488
      %v10490 = vcombine.low %v10081, %v10089
      %v10491 = vcombine.low %v10088, %v10090
      %v10493 = vunpack.c.l.s4 1983009808
      %v10494 = vunpack.c.0.s8 %v10493
      %v10495 = vlaneseq
      %v10496 = vshrl.u32 %v10495, 7
      %v10497 = vsub.s32 %v10494, %v10496
      %v10498 = vrot.slane %v10490, %v10497
      %v10500 = vunpack.c.l.s4 1983009808
      %v10501 = vunpack.c.0.s8 %v10500
      %v10502 = vlaneseq
      %v10503 = vshrl.u32 %v10502, 7
      %v10504 = vsub.s32 %v10501, %v10503
      %v10505 = vrot.slane %v10491, %v10504
      %v10506 = vcombine.low %v10498, %v10505
      %v10507 = vcombine.low %v10098, %v10106
      %v10509 = vunpack.c.l.s4 1983009808
      %v10510 = vunpack.c.0.s8 %v10509
      %v10511 = vlaneseq
      %v10512 = vshrl.u32 %v10511, 7
      %v10513 = vsub.s32 %v10510, %v10512
      %v10514 = vrot.slane %v10507, %v10513
      %v10516 = vunpack.c.l.s4 1983009808
      %v10517 = vunpack.c.0.s8 %v10516
      %v10518 = vlaneseq
      %v10519 = vshrl.u32 %v10518, 7
      %v10520 = vsub.s32 %v10517, %v10519
      %v10521 = vrot.slane %v10105, %v10520
      %v10522 = vcombine.low %v10514, %v10521
      %v10523 = vcombine.low %v10107, %v10115
      %v10524 = vcombine.low %v10123, %v10122
      %v10526 = vunpack.c.l.s4 1983009808
      %v10527 = vunpack.c.0.s8 %v10526
      %v10528 = vlaneseq
      %v10529 = vshrl.u32 %v10528, 7
      %v10530 = vsub.s32 %v10527, %v10529
      %v10531 = vrot.slane %v10523, %v10530
      %v10533 = vunpack.c.l.s4 1983009808
      %v10534 = vunpack.c.0.s8 %v10533
      %v10535 = vlaneseq
      %v10536 = vshrl.u32 %v10535, 7
      %v10537 = vsub.s32 %v10534, %v10536
      %v10538 = vrot.slane %v10524, %v10537
      %v10539 = vcombine.low %v10531, %v10538
      %v10540 = vcombine.low %v10124, %v10132
      %v10542 = vunpack.c.l.s4 1983009808
      %v10543 = vunpack.c.0.s8 %v10542
      %v10544 = vlaneseq
      %v10545 = vshrl.u32 %v10544, 7
      %v10546 = vsub.s32 %v10543, %v10545
      %v10547 = vrot.slane %v10540, %v10546
      %v10549 = vunpack.c.l.s4 1983009808
      %v10550 = vunpack.c.0.s8 %v10549
      %v10551 = vlaneseq
      %v10552 = vshrl.u32 %v10551, 7
      %v10553 = vsub.s32 %v10550, %v10552
      %v10554 = vrot.slane %v10140, %v10553
      %v10555 = vcombine.low %v10547, %v10554
      %v10556 = vcombine.low %v10139, %v10141
      %v10557 = vcombine.low %v10149, %v10157
      %v10559 = vunpack.c.l.s4 1983009808
      %v10560 = vunpack.c.0.s8 %v10559
      %v10561 = vlaneseq
      %v10562 = vshrl.u32 %v10561, 7
      %v10563 = vsub.s32 %v10560, %v10562
      %v10564 = vrot.slane %v10556, %v10563
      %v10566 = vunpack.c.l.s4 1983009808
      %v10567 = vunpack.c.0.s8 %v10566
      %v10568 = vlaneseq
      %v10569 = vshrl.u32 %v10568, 7
      %v10570 = vsub.s32 %v10567, %v10569
      %v10571 = vrot.slane %v10557, %v10570
      %v10572 = vcombine.low %v10564, %v10571
      %v10573 = vcombine.low %v10156, %v10158
      %v10575 = vunpack.c.l.s4 1983009808
      %v10576 = vunpack.c.0.s8 %v10575
      %v10577 = vlaneseq
      %v10578 = vshrl.u32 %v10577, 7
      %v10579 = vsub.s32 %v10576, %v10578
      %v10580 = vrot.slane %v10573, %v10579
      %v10582 = vunpack.c.l.s4 1983009808
      %v10583 = vunpack.c.0.s8 %v10582
      %v10584 = vlaneseq
      %v10585 = vshrl.u32 %v10584, 7
      %v10586 = vsub.s32 %v10583, %v10585
      %v10587 = vrot.slane %v10166, %v10586
      %v10588 = vcombine.low %v10580, %v10587
      %v10589 = vcombine.low %v10174, %v10173
      %v10590 = vcombine.low %v10175, %v10183
      %v10592 = vunpack.c.l.s4 1983009808
      %v10593 = vunpack.c.0.s8 %v10592
      %v10594 = vlaneseq
      %v10595 = vshrl.u32 %v10594, 7
      %v10596 = vsub.s32 %v10593, %v10595
      %v10597 = vrot.slane %v10589, %v10596
      %v10599 = vunpack.c.l.s4 1983009808
      %v10600 = vunpack.c.0.s8 %v10599
      %v10601 = vlaneseq
      %v10602 = vshrl.u32 %v10601, 7
      %v10603 = vsub.s32 %v10600, %v10602
      %v10604 = vrot.slane %v10590, %v10603
      %v10605 = vcombine.low %v10597, %v10604
      %v10606 = vcombine.low %v10191, %v10190
      %v10608 = vunpack.c.l.s4 1983009808
      %v10609 = vunpack.c.0.s8 %v10608
      %v10610 = vlaneseq
      %v10611 = vshrl.u32 %v10610, 7
      %v10612 = vsub.s32 %v10609, %v10611
      %v10613 = vrot.slane %v10606, %v10612
      %v10615 = vunpack.c.l.s4 1983009808
      %v10616 = vunpack.c.0.s8 %v10615
      %v10617 = vlaneseq
      %v10618 = vshrl.u32 %v10617, 7
      %v10619 = vsub.s32 %v10616, %v10618
      %v10620 = vrot.slane %v10192, %v10619
      %v10621 = vcombine.low %v10613, %v10620
      %v10622 = vcombine.low %v10200, %v10208
      %v10623 = vcombine.low %v10207, %v10209
      %v10625 = vunpack.c.l.s4 1983009808
      %v10626 = vunpack.c.0.s8 %v10625
      %v10627 = vlaneseq
      %v10628 = vshrl.u32 %v10627, 7
      %v10629 = vsub.s32 %v10626, %v10628
      %v10630 = vrot.slane %v10622, %v10629
      %v10632 = vunpack.c.l.s4 1983009808
      %v10633 = vunpack.c.0.s8 %v10632
      %v10634 = vlaneseq
      %v10635 = vshrl.u32 %v10634, 7
      %v10636 = vsub.s32 %v10633, %v10635
      %v10637 = vrot.slane %v10623, %v10636
      %v10638 = vcombine.low %v10630, %v10637
      %v10639 = vcombine.low %v10217, %v10225
      %v10641 = vunpack.c.l.s4 1983009808
      %v10642 = vunpack.c.0.s8 %v10641
      %v10643 = vlaneseq
      %v10644 = vshrl.u32 %v10643, 7
      %v10645 = vsub.s32 %v10642, %v10644
      %v10646 = vrot.slane %v10639, %v10645
      %v10648 = vunpack.c.l.s4 1983009808
      %v10649 = vunpack.c.0.s8 %v10648
      %v10650 = vlaneseq
      %v10651 = vshrl.u32 %v10650, 7
      %v10652 = vsub.s32 %v10649, %v10651
      %v10653 = vrot.slane %v10224, %v10652
      %v10654 = vcombine.low %v10646, %v10653
      %v10655 = vcombine.low %v10226, %v10234
      %v10656 = vcombine.low %v10242, %v10241
      %v10658 = vunpack.c.l.s4 1983009808
      %v10659 = vunpack.c.0.s8 %v10658
      %v10660 = vlaneseq
      %v10661 = vshrl.u32 %v10660, 7
      %v10662 = vsub.s32 %v10659, %v10661
      %v10663 = vrot.slane %v10655, %v10662
      %v10665 = vunpack.c.l.s4 1983009808
      %v10666 = vunpack.c.0.s8 %v10665
      %v10667 = vlaneseq
      %v10668 = vshrl.u32 %v10667, 7
      %v10669 = vsub.s32 %v10666, %v10668
      %v10670 = vrot.slane %v10656, %v10669
      %v10671 = vcombine.low %v10663, %v10670
      %v10672 = vcombine.low %v10243, %v10251
      %v10674 = vunpack.c.l.s4 1983009808
      %v10675 = vunpack.c.0.s8 %v10674
      %v10676 = vlaneseq
      %v10677 = vshrl.u32 %v10676, 7
      %v10678 = vsub.s32 %v10675, %v10677
      %v10679 = vrot.slane %v10672, %v10678
      %v10681 = vunpack.c.l.s4 1983009808
      %v10682 = vunpack.c.0.s8 %v10681
      %v10683 = vlaneseq
      %v10684 = vshrl.u32 %v10683, 7
      %v10685 = vsub.s32 %v10682, %v10684
      %v10686 = vrot.slane %v10259, %v10685
      %v10687 = vcombine.low %v10679, %v10686
      %v10688 = vcombine.low %v10258, %v10260
      %v10689 = vcombine.low %v10268, %v10276
      %v10691 = vunpack.c.l.s4 1983009808
      %v10692 = vunpack.c.0.s8 %v10691
      %v10693 = vlaneseq
      %v10694 = vshrl.u32 %v10693, 7
      %v10695 = vsub.s32 %v10692, %v10694
      %v10696 = vrot.slane %v10688, %v10695
      %v10698 = vunpack.c.l.s4 1983009808
      %v10699 = vunpack.c.0.s8 %v10698
      %v10700 = vlaneseq
      %v10701 = vshrl.u32 %v10700, 7
      %v10702 = vsub.s32 %v10699, %v10701
      %v10703 = vrot.slane %v10689, %v10702
      %v10704 = vcombine.low %v10696, %v10703
      %v10705 = vcombine.low %v10275, %v10277
      %v10707 = vunpack.c.l.s4 1983009808
      %v10708 = vunpack.c.0.s8 %v10707
      %v10709 = vlaneseq
      %v10710 = vshrl.u32 %v10709, 7
      %v10711 = vsub.s32 %v10708, %v10710
      %v10712 = vrot.slane %v10705, %v10711
      %v10714 = vunpack.c.l.s4 1983009808
      %v10715 = vunpack.c.0.s8 %v10714
      %v10716 = vlaneseq
      %v10717 = vshrl.u32 %v10716, 7
      %v10718 = vsub.s32 %v10715, %v10717
      %v10719 = vrot.slane %v10285, %v10718
      %v10720 = vcombine.low %v10712, %v10719
      %v10721 = vcombine.low %v10293, %v10292
      %v10722 = vcombine.low %v10294, %v10302
      %v10724 = vunpack.c.l.s4 1983009808
      %v10725 = vunpack.c.0.s8 %v10724
      %v10726 = vlaneseq
      %v10727 = vshrl.u32 %v10726, 7
      %v10728 = vsub.s32 %v10725, %v10727
      %v10729 = vrot.slane %v10721, %v10728
      %v10731 = vunpack.c.l.s4 1983009808
      %v10732 = vunpack.c.0.s8 %v10731
      %v10733 = vlaneseq
      %v10734 = vshrl.u32 %v10733, 7
      %v10735 = vsub.s32 %v10732, %v10734
      %v10736 = vrot.slane %v10722, %v10735
      %v10737 = vcombine.low %v10729, %v10736
      %v10738 = vcombine.low %v10310, %v10309
      %v10740 = vunpack.c.l.s4 1983009808
      %v10741 = vunpack.c.0.s8 %v10740
      %v10742 = vlaneseq
      %v10743 = vshrl.u32 %v10742, 7
      %v10744 = vsub.s32 %v10741, %v10743
      %v10745 = vrot.slane %v10738, %v10744
      %v10747 = vunpack.c.l.s4 1983009808
      %v10748 = vunpack.c.0.s8 %v10747
      %v10749 = vlaneseq
      %v10750 = vshrl.u32 %v10749, 7
      %v10751 = vsub.s32 %v10748, %v10750
      %v10752 = vrot.slane %v10311, %v10751
      %v10753 = vcombine.low %v10745, %v10752
      %v10754 = vcombine.low %v10319, %v10327
      %v10755 = vcombine.low %v10326, %v10328
      %v10757 = vunpack.c.l.s4 1983009808
      %v10758 = vunpack.c.0.s8 %v10757
      %v10759 = vlaneseq
      %v10760 = vshrl.u32 %v10759, 7
      %v10761 = vsub.s32 %v10758, %v10760
      %v10762 = vrot.slane %v10754, %v10761
      %v10764 = vunpack.c.l.s4 1983009808
      %v10765 = vunpack.c.0.s8 %v10764
      %v10766 = vlaneseq
      %v10767 = vshrl.u32 %v10766, 7
      %v10768 = vsub.s32 %v10765, %v10767
      %v10769 = vrot.slane %v10755, %v10768
      %v10770 = vcombine.low %v10762, %v10769
      %v10771 = vcombine.low %v10336, %v10344
      %v10773 = vunpack.c.l.s4 1983009808
      %v10774 = vunpack.c.0.s8 %v10773
      %v10775 = vlaneseq
      %v10776 = vshrl.u32 %v10775, 7
      %v10777 = vsub.s32 %v10774, %v10776
      %v10778 = vrot.slane %v10771, %v10777
      %v10780 = vunpack.c.l.s4 1983009808
      %v10781 = vunpack.c.0.s8 %v10780
      %v10782 = vlaneseq
      %v10783 = vshrl.u32 %v10782, 7
      %v10784 = vsub.s32 %v10781, %v10783
      %v10785 = vrot.slane %v10343, %v10784
      %v10786 = vcombine.low %v10778, %v10785
      %v10787 = vcombine.low %v10345, %v10353
      %v10788 = vcombine.low %v10361, %v10360
      %v10790 = vunpack.c.l.s4 1983009808
      %v10791 = vunpack.c.0.s8 %v10790
      %v10792 = vlaneseq
      %v10793 = vshrl.u32 %v10792, 7
      %v10794 = vsub.s32 %v10791, %v10793
      %v10795 = vrot.slane %v10787, %v10794
      %v10797 = vunpack.c.l.s4 1983009808
      %v10798 = vunpack.c.0.s8 %v10797
      %v10799 = vlaneseq
      %v10800 = vshrl.u32 %v10799, 7
      %v10801 = vsub.s32 %v10798, %v10800
      %v10802 = vrot.slane %v10788, %v10801
      %v10803 = vcombine.low %v10795, %v10802
      %v10804 = vcombine.low %v10362, %v10370
      %v10806 = vunpack.c.l.s4 1983009808
      %v10807 = vunpack.c.0.s8 %v10806
      %v10808 = vlaneseq
      %v10809 = vshrl.u32 %v10808, 7
      %v10810 = vsub.s32 %v10807, %v10809
      %v10811 = vrot.slane %v10804, %v10810
      %v10813 = vunpack.c.l.s4 1983009808
      %v10814 = vunpack.c.0.s8 %v10813
      %v10815 = vlaneseq
      %v10816 = vshrl.u32 %v10815, 7
      %v10817 = vsub.s32 %v10814, %v10816
      %v10818 = vrot.slane %v10378, %v10817
      %v10819 = vcombine.low %v10811, %v10818
      %v10820 = vcombine.low %v10377, %v10379
      %v10821 = vcombine.low %v10387, %v10395
      %v10823 = vunpack.c.l.s4 1983009808
      %v10824 = vunpack.c.0.s8 %v10823
      %v10825 = vlaneseq
      %v10826 = vshrl.u32 %v10825, 7
      %v10827 = vsub.s32 %v10824, %v10826
      %v10828 = vrot.slane %v10820, %v10827
      %v10830 = vunpack.c.l.s4 1983009808
      %v10831 = vunpack.c.0.s8 %v10830
      %v10832 = vlaneseq
      %v10833 = vshrl.u32 %v10832, 7
      %v10834 = vsub.s32 %v10831, %v10833
      %v10835 = vrot.slane %v10821, %v10834
      %v10836 = vcombine.low %v10828, %v10835
      %v10837 = vcombine.low %v10394, %v10396
      %v10839 = vunpack.c.l.s4 1983009808
      %v10840 = vunpack.c.0.s8 %v10839
      %v10841 = vlaneseq
      %v10842 = vshrl.u32 %v10841, 7
      %v10843 = vsub.s32 %v10840, %v10842
      %v10844 = vrot.slane %v10837, %v10843
      %v10846 = vunpack.c.l.s4 1983009808
      %v10847 = vunpack.c.0.s8 %v10846
      %v10848 = vlaneseq
      %v10849 = vshrl.u32 %v10848, 7
      %v10850 = vsub.s32 %v10847, %v10849
      %v10851 = vrot.slane %v10404, %v10850
      %v10852 = vcombine.low %v10844, %v10851
      %v10853 = vcombine.low %v10412, %v10411
      %v10854 = vcombine.low %v10413, %v10421
      %v10856 = vunpack.c.l.s4 1983009808
      %v10857 = vunpack.c.0.s8 %v10856
      %v10858 = vlaneseq
      %v10859 = vshrl.u32 %v10858, 7
      %v10860 = vsub.s32 %v10857, %v10859
      %v10861 = vrot.slane %v10853, %v10860
      %v10863 = vunpack.c.l.s4 1983009808
      %v10864 = vunpack.c.0.s8 %v10863
      %v10865 = vlaneseq
      %v10866 = vshrl.u32 %v10865, 7
      %v10867 = vsub.s32 %v10864, %v10866
      %v10868 = vrot.slane %v10854, %v10867
      %v10869 = vcombine.low %v10861, %v10868
      %v10870 = vcombine.low %v10429, %v10428
      %v10872 = vunpack.c.l.s4 1983009808
      %v10873 = vunpack.c.0.s8 %v10872
      %v10874 = vlaneseq
      %v10875 = vshrl.u32 %v10874, 7
      %v10876 = vsub.s32 %v10873, %v10875
      %v10877 = vrot.slane %v10870, %v10876
      %v10879 = vunpack.c.l.s4 1983009808
      %v10880 = vunpack.c.0.s8 %v10879
      %v10881 = vlaneseq
      %v10882 = vshrl.u32 %v10881, 7
      %v10883 = vsub.s32 %v10880, %v10882
      %v10884 = vrot.slane %v10430, %v10883
      %v10885 = vcombine.low %v10877, %v10884
      %v10886 = vcombine.low %v10438, %v10446
      %v10887 = vcombine.low %v10445, %v10447
      %v10889 = vunpack.c.l.s4 1983009808
      %v10890 = vunpack.c.0.s8 %v10889
      %v10891 = vlaneseq
      %v10892 = vshrl.u32 %v10891, 7
      %v10893 = vsub.s32 %v10890, %v10892
      %v10894 = vrot.slane %v10886, %v10893
      %v10896 = vunpack.c.l.s4 1983009808
      %v10897 = vunpack.c.0.s8 %v10896
      %v10898 = vlaneseq
      %v10899 = vshrl.u32 %v10898, 7
      %v10900 = vsub.s32 %v10897, %v10899
      %v10901 = vrot.slane %v10887, %v10900
      %v10902 = vcombine.low %v10894, %v10901
      %v10903 = vcombine.low %v10455, %v10463
      %v10905 = vunpack.c.l.s4 1983009808
      %v10906 = vunpack.c.0.s8 %v10905
      %v10907 = vlaneseq
      %v10908 = vshrl.u32 %v10907, 7
      %v10909 = vsub.s32 %v10906, %v10908
      %v10910 = vrot.slane %v10903, %v10909
      %v10912 = vunpack.c.l.s4 1983009808
      %v10913 = vunpack.c.0.s8 %v10912
      %v10914 = vlaneseq
      %v10915 = vshrl.u32 %v10914, 7
      %v10916 = vsub.s32 %v10913, %v10915
      %v10917 = vrot.slane %v10462, %v10916
      %v10918 = vcombine.low %v10910, %v10917
      %v10919 = vcombine.low %v10464, %v10472
      %v10920 = vcombine.low %v10480, %v10479
      %v10922 = vunpack.c.l.s4 1983009808
      %v10923 = vunpack.c.0.s8 %v10922
      %v10924 = vlaneseq
      %v10925 = vshrl.u32 %v10924, 7
      %v10926 = vsub.s32 %v10923, %v10925
      %v10927 = vrot.slane %v10919, %v10926
      %v10929 = vunpack.c.l.s4 1983009808
      %v10930 = vunpack.c.0.s8 %v10929
      %v10931 = vlaneseq
      %v10932 = vshrl.u32 %v10931, 7
      %v10933 = vsub.s32 %v10930, %v10932
      %v10934 = vrot.slane %v10920, %v10933
      %v10935 = vcombine.low %v10927, %v10934
      %v10936 = vcombine.low %v10481, %v10488
      %v10938 = vunpack.c.l.s4 1983009808
      %v10939 = vunpack.c.0.s8 %v10938
      %v10940 = vlaneseq
      %v10941 = vshrl.u32 %v10940, 7
      %v10942 = vsub.s32 %v10939, %v10941
      %v10943 = vrot.slane %v10936, %v10942
      %v10945 = vunpack.c.l.s4 1983009808
      %v10946 = vunpack.c.0.s8 %v10945
      %v10947 = vlaneseq
      %v10948 = vshrl.u32 %v10947, 7
      %v10949 = vsub.s32 %v10946, %v10948
      %v10950 = vrot.slane %v10489, %v10949
      %v10951 = vcombine.low %v10943, %v10950
      %10952 = vrot.lane.b32.xlu0 %v10506, 12
      %v10953 = vpop.permute.xlu0 %10952
      %10954 = vrot.lane.b32.xlu0 %v10522, 12
      %v10955 = vpop.permute.xlu0 %10954
      %10956 = vrot.lane.b32.xlu0 %v10539, 12
      %v10957 = vpop.permute.xlu0 %10956
      %10958 = vrot.lane.b32.xlu0 %v10555, 12
      %v10959 = vpop.permute.xlu0 %10958
      %10960 = vrot.lane.b32.xlu0 %v10572, 12
      %v10961 = vpop.permute.xlu0 %10960
      %10962 = vrot.lane.b32.xlu0 %v10588, 12
      %v10963 = vpop.permute.xlu0 %10962
      %10964 = vrot.lane.b32.xlu0 %v10605, 12
      %v10965 = vpop.permute.xlu0 %10964
      %10966 = vrot.lane.b32.xlu0 %v10621, 12
      %v10967 = vpop.permute.xlu0 %10966
      %10968 = vrot.lane.b32.xlu0 %v10638, 12
      %v10969 = vpop.permute.xlu0 %10968
      %10970 = vrot.lane.b32.xlu0 %v10654, 12
      %v10971 = vpop.permute.xlu0 %10970
      %10972 = vrot.lane.b32.xlu0 %v10671, 12
      %v10973 = vpop.permute.xlu0 %10972
      %10974 = vrot.lane.b32.xlu0 %v10687, 12
      %v10975 = vpop.permute.xlu0 %10974
      %10976 = vrot.lane.b32.xlu0 %v10704, 12
      %v10977 = vpop.permute.xlu0 %10976
      %10978 = vrot.lane.b32.xlu0 %v10720, 12
      %v10979 = vpop.permute.xlu0 %10978
      %10980 = vrot.lane.b32.xlu0 %v10737, 12
      %v10981 = vpop.permute.xlu0 %10980
      %10982 = vrot.lane.b32.xlu0 %v10753, 12
      %v10983 = vpop.permute.xlu0 %10982
      %10984 = vrot.lane.b32.xlu0 %v10770, 12
      %v10985 = vpop.permute.xlu0 %10984
      %10986 = vrot.lane.b32.xlu0 %v10786, 12
      %v10987 = vpop.permute.xlu0 %10986
      %10988 = vrot.lane.b32.xlu0 %v10803, 12
      %v10989 = vpop.permute.xlu0 %10988
      %10990 = vrot.lane.b32.xlu0 %v10819, 12
      %v10991 = vpop.permute.xlu0 %10990
      %10992 = vrot.lane.b32.xlu0 %v10836, 12
      %v10993 = vpop.permute.xlu0 %10992
      %10994 = vrot.lane.b32.xlu0 %v10852, 12
      %v10995 = vpop.permute.xlu0 %10994
      %10996 = vrot.lane.b32.xlu0 %v10869, 12
      %v10997 = vpop.permute.xlu0 %10996
      %10998 = vrot.lane.b32.xlu0 %v10885, 12
      %v10999 = vpop.permute.xlu0 %10998
      %11000 = vrot.lane.b32.xlu0 %v10902, 12
      %v11001 = vpop.permute.xlu0 %11000
      %11002 = vrot.lane.b32.xlu0 %v10918, 12
      %v11003 = vpop.permute.xlu0 %11002
      %11004 = vrot.lane.b32.xlu0 %v10935, 12
      %v11005 = vpop.permute.xlu0 %11004
      %11006 = vrot.lane.b32.xlu0 %v10951, 12
      %v11007 = vpop.permute.xlu0 %11006
      %vm11036 = vcmask 195680
      %11037 = vst.msk [vmem:[%s521] sm:$0xff] %vm11036, %v10953
      %vm11038 = vcmask 193632
      %11039 = vst.msk [vmem:[%s521 + $0x8] sm:$0x3f] %vm11038, %v10955
      %11040 = vst.msk [vmem:[%s521 + $0x10] sm:$0xff] %vm11036, %v10957
      %11041 = vst.msk [vmem:[%s521 + $0x18] sm:$0x3f] %vm11038, %v10959
      %11042 = vst.msk [vmem:[%s521 + $0x20] sm:$0xff] %vm11036, %v10961
      %11043 = vst.msk [vmem:[%s521 + $0x28] sm:$0x3f] %vm11038, %v10963
      %11044 = vst.msk [vmem:[%s521 + $0x30] sm:$0xff] %vm11036, %v10965
      %11045 = vst.msk [vmem:[%s521 + $0x38] sm:$0x3f] %vm11038, %v10967
      %11046 = vst.msk [vmem:[%s521 + $0x40] sm:$0xff] %vm11036, %v10969
      %11047 = vst.msk [vmem:[%s521 + $0x48] sm:$0x3f] %vm11038, %v10971
      %11048 = vst.msk [vmem:[%s521 + $0x50] sm:$0xff] %vm11036, %v10973
      %11049 = vst.msk [vmem:[%s521 + $0x58] sm:$0x3f] %vm11038, %v10975
      %11050 = vst.msk [vmem:[%s521 + $0x60] sm:$0xff] %vm11036, %v10977
      %11051 = vst.msk [vmem:[%s521 + $0x68] sm:$0x3f] %vm11038, %v10979
      %11052 = vst.msk [vmem:[%s521 + $0x70] sm:$0xff] %vm11036, %v10981
      %11053 = vst.msk [vmem:[%s521 + $0x78] sm:$0x3f] %vm11038, %v10983
      %11054 = vst.msk [vmem:[%s521 + $0x80] sm:$0xff] %vm11036, %v10985
      %11055 = vst.msk [vmem:[%s521 + $0x88] sm:$0x3f] %vm11038, %v10987
      %11056 = vst.msk [vmem:[%s521 + $0x90] sm:$0xff] %vm11036, %v10989
      %11057 = vst.msk [vmem:[%s521 + $0x98] sm:$0x3f] %vm11038, %v10991
      %11058 = vst.msk [vmem:[%s521 + $0xa0] sm:$0xff] %vm11036, %v10993
      %11059 = vst.msk [vmem:[%s521 + $0xa8] sm:$0x3f] %vm11038, %v10995
      %11060 = vst.msk [vmem:[%s521 + $0xb0] sm:$0xff] %vm11036, %v10997
      %11061 = vst.msk [vmem:[%s521 + $0xb8] sm:$0x3f] %vm11038, %v10999
      %11062 = vst.msk [vmem:[%s521 + $0xc0] sm:$0xff] %vm11036, %v11001
      %11063 = vst.msk [vmem:[%s521 + $0xc8] sm:$0x3f] %vm11038, %v11003
      %11064 = vst.msk [vmem:[%s521 + $0xd0] sm:$0xff] %vm11036, %v11005
      %11065 = vst.msk [vmem:[%s521 + $0xd8] sm:$0x3f] %vm11038, %v11007
      %p11066 = scmp.lt.s32.totalorder %s27, 1
      %s11067 = scalar_select %p11066, %s27, 1
      %s11068 = smul.addr %s11067, 28
      %s11069 = smul.addr %s11068, 8
      %s11070 = scalar_lea.vmem %s16, %s11069
      // Predicated region
      $region85: #{tpu_custom_call.1} parent=83 // pred_check
        %p11071 = pneg %p386
      $region86: #{tpu_custom_call.1} parent=83 // pred_check_branch
        %11073 = sbr.rel (%p11071) target = $region88
      $region87: #{tpu_custom_call.1} parent=83 // pred_region
        _
      $region88: #{tpu_custom_call.1} parent=83 // pred_fallthru
        _
    $region84: #{tpu_custom_call.1} parent=5 // pred_fallthru
      _
    %p11074 = scmp.le.s32.totalorder 2, %s22
    // Predicated region
    $region89: #{tpu_custom_call.1} parent=5 // pred_check
      %p11075 = pneg %p11074
    $region90: #{tpu_custom_call.1} parent=5 // pred_check_branch
      %11077 = sbr.rel (%p11075) target = $region92
    $region91: #{tpu_custom_call.1} parent=5 // pred_region
      %s11078 = ssub.s32 %s22, 2
      // Predicated region
      $region93: #{tpu_custom_call.1} parent=91 // pred_check
        %p11079 = pneg %p392
      $region94: #{tpu_custom_call.1} parent=91 // pred_check_branch
        %11081 = sbr.rel (%p11079) target = $region96
      $region95: #{tpu_custom_call.1} parent=91 // pred_region
        %p11082 = scmp.lt.s32.totalorder %s28, 1
        %s11083 = scalar_select %p11082, %s28, 1
        %s11084 = smul.addr %s11083, 28
        %s11085 = smul.addr %s11084, 8
        %s11086 = scalar_lea.vmem %s16, %s11085
      $region96: #{tpu_custom_call.1} parent=91 // pred_fallthru
        _
    $region92: #{tpu_custom_call.1} parent=5 // pred_fallthru
      _
  $region6: #{tpu_custom_call.1} parent=0 // loop_footer
    %s26 = sadd.s32 1, %s22
  $region7: #{tpu_custom_call.1} parent=0 // loop_footer_branch
    %21 = sbr.rel target = $region3
  $region8: #{tpu_custom_call.1} parent=0 // loop_exit
    _

</llo_original>
